<compile_context>
chip_gen: v5e
topology: v5e:2x2
jax: 0.10.0
libtpu: 0.0.40
codegen_flags: <defaults>
</compile_context>

<pallas_src>
import jax
import jax.numpy as jnp
from jax import lax
from jax.experimental import pallas as pl
from jax.experimental.pallas import tpu as pltpu

# ----- model config (matches the PyTorch script) -----
N_EMBD = 64
BLOCK_SIZE = 32
N_HEAD = 4
N_LAYER = 4
HEAD_SIZE = N_EMBD // N_HEAD
VOCAB_SIZE = 65          # synthetic "len(chars)"
VPAD = 128               # vocab / one-hot width padded to a full lane tile
LN_EPS = 1e-5


def _layer_norm(x, w, b):
    mu = jnp.mean(x, axis=-1, keepdims=True)
    var = jnp.mean((x - mu) ** 2, axis=-1, keepdims=True)
    return (x - mu) * lax.rsqrt(var + LN_EPS) * w + b


def gpt_kernel(idx_ref, tokemb_ref, posemb_ref, lnw_ref, lnb_ref, wqkv_ref,
               wproj_ref, bproj_ref, w1_ref, b1_ref, w2_ref, b2_ref,
               lmw_ref, lmb_ref, out_ref):
    """Embedding gather -> 4 x Block -> ln_f -> lm_head (padded) on B*T rows."""
    M = idx_ref.shape[0]                                   # B*T rows
    T, C = posemb_ref.shape
    B = M // T

    # ---- token embedding gather as an exact one-hot MXU matmul + pos add ----
    ids = idx_ref[...]                                               # (M, 1) i32
    cols = lax.broadcasted_iota(jnp.int32, (M, VPAD), 1)
    onehot = jnp.where(cols == ids, 1.0, 0.0).astype(jnp.bfloat16)   # (M, VPAD)
    tok = jnp.dot(onehot, tokemb_ref[...],
                  preferred_element_type=jnp.float32)                # (M, C)
    x = (tok.reshape(B, T, C) + posemb_ref[...][None]).reshape(M, C)

    # causal additive mask, built once and shared by every layer / head
    row = lax.broadcasted_iota(jnp.int32, (T, T), 0)
    col = lax.broadcasted_iota(jnp.int32, (T, T), 1)
    mask = jnp.where(col <= row, 0.0, -1e30).astype(jnp.float32)[None]   # (1,T,T)

    for l in range(N_LAYER):
        # ---- multi-head causal self-attention on LN1(x) ----
        h = _layer_norm(x, lnw_ref[2 * l], lnb_ref[2 * l])           # (M, C) f32
        qkv = jnp.dot(h.astype(jnp.bfloat16), wqkv_ref[l],
                      preferred_element_type=jnp.float32)            # (M, 3C)
        q = qkv[:, :C].reshape(B, T, C).astype(jnp.bfloat16)
        k = qkv[:, C:2 * C].reshape(B, T, C).astype(jnp.bfloat16)
        v = qkv[:, 2 * C:].reshape(B, T, C).astype(jnp.bfloat16)

        wp = wproj_ref[l]                                            # (C, C) bf16
        att = jnp.zeros((M, C), jnp.float32)
        for hh in range(N_HEAD):
            sl = slice(hh * HEAD_SIZE, (hh + 1) * HEAD_SIZE)
            # NOTE: the C**-0.5 score scale is pre-folded into the Q columns.
            wei = jnp.einsum('btd,bsd->bts', q[..., sl], k[..., sl],
                             preferred_element_type=jnp.float32) + mask
            wei = wei - jnp.max(wei, axis=-1, keepdims=True)
            p = jnp.exp(wei)
            p = p * pl.reciprocal(jnp.sum(p, axis=-1, keepdims=True), approx=True)
            out_h = jnp.einsum('bts,bsd->btd', p.astype(jnp.bfloat16), v[..., sl],
                               preferred_element_type=jnp.float32)   # (B, T, D)
            # fold each head straight into the output projection: no lane concat
            att = att + jnp.dot(out_h.reshape(M, HEAD_SIZE).astype(jnp.bfloat16),
                                wp[sl, :],
                                preferred_element_type=jnp.float32)
        x = x + att + bproj_ref[l]                                   # dropout=0.0

        # ---- feed-forward on LN2(x) ----
        h2 = _layer_norm(x, lnw_ref[2 * l + 1], lnb_ref[2 * l + 1])
        ff = jnp.dot(h2.astype(jnp.bfloat16), w1_ref[l],
                     preferred_element_type=jnp.float32) + b1_ref[l]
        ff = jnp.maximum(ff, 0.0)                                    # ReLU
        ff = jnp.dot(ff.astype(jnp.bfloat16), w2_ref[l],
                     preferred_element_type=jnp.float32) + b2_ref[l]
        x = x + ff

    # ---- final LayerNorm + lm_head (output padded to 128 lanes) ----
    hf = _layer_norm(x, lnw_ref[2 * N_LAYER], lnb_ref[2 * N_LAYER])
    logits = jnp.dot(hf.astype(jnp.bfloat16), lmw_ref[...],
                     preferred_element_type=jnp.float32) + lmb_ref[...]
    out_ref[...] = logits.astype(out_ref.dtype)


def run_model(params, idx):
    """idx: (B, T) int tokens -> padded logits (B, T, VPAD)."""
    B, T = idx.shape
    M = B * T
    idx2d = idx.reshape(M, 1).astype(jnp.int32)
    pos = params['pos_emb'][:T]
    vmem = pl.BlockSpec(memory_space=pltpu.MemorySpace.VMEM)
    out = pl.pallas_call(
        gpt_kernel,
        out_shape=jax.ShapeDtypeStruct((M, VPAD), jnp.float32),
        in_specs=[vmem] * 14,
        out_specs=vmem,
    )(idx2d, params['tok_emb'], pos, params['ln_w'], params['ln_b'],
      params['wqkv'], params['wproj'], params['bproj'], params['w1'],
      params['b1'], params['w2'], params['b2'], params['lm_w'], params['lm_b'])
    return out.reshape(B, T, VPAD)


def forward(params, idx, targets=None):
    """Matches BigramLanguageModel.forward: returns (logits, loss)."""
    B, T = idx.shape
    padded = run_model(params, idx)                        # (B, T, VPAD)
    logits = padded[:, :, :VOCAB_SIZE]                     # (B, T, vocab)
    if targets is None:
        loss = None
    else:
        flat = logits.reshape(B * T, VOCAB_SIZE)
        tgt = targets.reshape(B * T)
        lse = jax.nn.logsumexp(flat, axis=-1)
        loss = jnp.mean(lse - jnp.take_along_axis(flat, tgt[:, None], axis=-1)[:, 0])
    return logits, loss


def init_params(key):
    keys = iter(jax.random.split(key, 32))

    def nrm(shape, scale=0.02):
        return (scale * jax.random.normal(next(keys), shape)).astype(jnp.float32)

    scale = float(N_EMBD) ** -0.5          # exactly 1/8 (power of 2) -> bf16-exact

    wqkv, wproj, w1, w2 = [], [], [], []
    for _ in range(N_LAYER):
        wq, wk, wv = nrm((N_EMBD, N_EMBD)), nrm((N_EMBD, N_EMBD)), nrm((N_EMBD, N_EMBD))
        # fold the C**-0.5 attention-score scale into the Q columns (host-side)
        wqkv.append(jnp.concatenate([wq * scale, wk, wv], axis=1))   # (C, 3C)
        wproj.append(nrm((N_EMBD, N_EMBD)))
        w1.append(nrm((N_EMBD, 4 * N_EMBD)))
        w2.append(nrm((4 * N_EMBD, N_EMBD)))

    tok = nrm((VOCAB_SIZE, N_EMBD), 1.0)
    tok_pad = jnp.zeros((VPAD, N_EMBD), jnp.float32).at[:VOCAB_SIZE].set(tok)

    lm_w = nrm((N_EMBD, VOCAB_SIZE))
    lm_w_pad = jnp.zeros((N_EMBD, VPAD), jnp.float32).at[:, :VOCAB_SIZE].set(lm_w)

    bf = jnp.bfloat16
    return {
        'tok_emb': tok_pad.astype(bf),                          # (128, C) bf16
        'pos_emb': nrm((BLOCK_SIZE, N_EMBD), 1.0),               # (T, C) f32
        # rows 2l / 2l+1 = ln1 / ln2 of layer l; last row = ln_f
        'ln_w': jnp.ones((2 * N_LAYER + 1, 1, N_EMBD), jnp.float32),
        'ln_b': jnp.zeros((2 * N_LAYER + 1, 1, N_EMBD), jnp.float32),
        'wqkv': jnp.stack(wqkv).astype(bf),                      # (L, C, 3C)
        'wproj': jnp.stack(wproj).astype(bf),                    # (L, C, C)
        'bproj': jnp.zeros((N_LAYER, 1, N_EMBD), jnp.float32),
        'w1': jnp.stack(w1).astype(bf),                          # (L, C, 4C)
        'b1': jnp.zeros((N_LAYER, 1, 4 * N_EMBD), jnp.float32),
        'w2': jnp.stack(w2).astype(bf),                          # (L, 4C, C)
        'b2': jnp.zeros((N_LAYER, 1, N_EMBD), jnp.float32),
        'lm_w': lm_w_pad.astype(bf),                             # (C, 128) bf16
        'lm_b': jnp.zeros((1, VPAD), jnp.float32),
    }


def reference_forward(params, idx):
    """Pure-JAX f32/HIGHEST reference of the PyTorch forward on the same params."""
    hp = lax.Precision.HIGHEST
    B, T = idx.shape
    f32 = lambda a: a.astype(jnp.float32)
    tok = f32(params['tok_emb'])[idx]                      # (B, T, C) gather
    pos = params['pos_emb'][:T]
    x = tok + pos[None]
    tril = jnp.tril(jnp.ones((T, T), bool))

    def ln(x, w, b):
        mu = jnp.mean(x, -1, keepdims=True)
        var = jnp.mean((x - mu) ** 2, -1, keepdims=True)
        return (x - mu) * lax.rsqrt(var + LN_EPS) * w + b

    for l in range(N_LAYER):
        h = ln(x, params['ln_w'][2 * l, 0], params['ln_b'][2 * l, 0])
        qkv = jnp.einsum('btc,cd->btd', h, f32(params['wqkv'][l]), precision=hp)
        q, k, v = (qkv[..., :N_EMBD], qkv[..., N_EMBD:2 * N_EMBD],
                   qkv[..., 2 * N_EMBD:])
        outs = []
        for hh in range(N_HEAD):
            sl = slice(hh * HEAD_SIZE, (hh + 1) * HEAD_SIZE)
            # C**-0.5 scale already folded into the Q columns of wqkv
            wei = jnp.einsum('btd,bsd->bts', q[..., sl], k[..., sl], precision=hp)
            wei = jnp.where(tril[None], wei, -jnp.inf)
            p = jax.nn.softmax(wei, axis=-1)
            outs.append(jnp.einsum('bts,bsd->btd', p, v[..., sl], precision=hp))
        att = jnp.concatenate(outs, -1)
        att = jnp.einsum('btc,cd->btd', att, f32(params['wproj'][l]),
                         precision=hp) + params['bproj'][l, 0]
        x = x + att
        h2 = ln(x, params['ln_w'][2 * l + 1, 0], params['ln_b'][2 * l + 1, 0])
        ff = jnp.maximum(jnp.einsum('btc,cd->btd', h2, f32(params['w1'][l]),
                                    precision=hp) + params['b1'][l, 0], 0.0)
        ff = jnp.einsum('btd,dc->btc', ff, f32(params['w2'][l]),
                        precision=hp) + params['b2'][l, 0]
        x = x + ff
    hf = ln(x, params['ln_w'][-1, 0], params['ln_b'][-1, 0])
    return (jnp.einsum('btc,cv->btv', hf, f32(params['lm_w'][:, :VOCAB_SIZE]),
                       precision=hp) + params['lm_b'][0, :VOCAB_SIZE])


if __name__ == "__main__":
    key = jax.random.PRNGKey(0)
    pkey, dkey = jax.random.split(key)
    params = init_params(pkey)

    B, T = 2, BLOCK_SIZE                     # idx: (B, T) int tokens, T <= block_size
    idx = jax.random.randint(dkey, (B, T), 0, VOCAB_SIZE, dtype=jnp.int32)

    logits, loss = jax.jit(lambda p, i: forward(p, i))(params, idx)
    logits = jax.block_until_ready(logits)
    assert logits.shape == (B, T, VOCAB_SIZE) and logits.dtype == jnp.float32
    assert loss is None                      # targets=None path, matching PyTorch

    # sanity check against a pure-JAX f32 reference of the same forward pass
    ref = jax.block_until_ready(jax.jit(reference_forward)(params, idx))
    err = float(jnp.max(jnp.abs(logits - ref)))
    # tolerance accounts for bf16 MXU operands (f32 accumulation) + approx recip
    assert err < 2.5e-2, f"kernel/reference mismatch: max abs err = {err}"

    print("KERNEL_OK")
</pallas_src>

<mosaic_0001>
module attributes {stable_mosaic.version = 11 : i64} {
  func.func @gpt_kernel(%arg0: memref<64x1xi32, #tpu.memory_space<vmem>>, %arg1: memref<128x64xbf16, #tpu.memory_space<vmem>>, %arg2: memref<32x64xf32, #tpu.memory_space<vmem>>, %arg3: memref<9x1x64xf32, #tpu.memory_space<vmem>>, %arg4: memref<9x1x64xf32, #tpu.memory_space<vmem>>, %arg5: memref<4x64x192xbf16, #tpu.memory_space<vmem>>, %arg6: memref<4x64x64xbf16, #tpu.memory_space<vmem>>, %arg7: memref<4x1x64xf32, #tpu.memory_space<vmem>>, %arg8: memref<4x64x256xbf16, #tpu.memory_space<vmem>>, %arg9: memref<4x1x256xf32, #tpu.memory_space<vmem>>, %arg10: memref<4x256x64xbf16, #tpu.memory_space<vmem>>, %arg11: memref<4x1x64xf32, #tpu.memory_space<vmem>>, %arg12: memref<64x128xbf16, #tpu.memory_space<vmem>>, %arg13: memref<1x128xf32, #tpu.memory_space<vmem>>, %arg14: memref<64x128xf32, #tpu.memory_space<vmem>>) attributes {dimension_semantics = [], scalar_prefetch = 0 : i64, scratch_operands = 0 : i64, tpu.core_type = #tpu.core_type<tc>} {
    %c0 = arith.constant 0 : index
    %c0_0 = arith.constant 0 : index
    %0 = vector.load %arg0[%c0, %c0_0] : memref<64x1xi32, #tpu.memory_space<vmem>>, vector<64x1xi32>
    %1 = tpu.iota {dimensions = array<i32: 1>} : vector<64x128xi32>
    %2 = vector.broadcast %0 : vector<64x1xi32> to vector<64x128xi32>
    %3 = arith.cmpi eq, %1, %2 : vector<64x128xi32>
    %cst = arith.constant 1.000000e+00 : f32
    %cst_1 = arith.constant 0.000000e+00 : f32
    %4 = vector.broadcast %cst : f32 to vector<64x128xf32>
    %5 = vector.broadcast %cst_1 : f32 to vector<64x128xf32>
    %6 = arith.select %3, %4, %5 : vector<64x128xi1>, vector<64x128xf32>
    %7 = arith.truncf %6 : vector<64x128xf32> to vector<64x128xbf16>
    %c0_2 = arith.constant 0 : index
    %c0_3 = arith.constant 0 : index
    %8 = vector.load %arg1[%c0_2, %c0_3] : memref<128x64xbf16, #tpu.memory_space<vmem>>, vector<128x64xbf16>
    %cst_4 = arith.constant dense<0.000000e+00> : vector<64x64xf32>
    %9 = tpu.matmul %7, %8, %cst_4 {dimension_numbers = #tpu.dot_dimension_numbers<[1], [0], [0], [1], [0, 0, 1, 1], [], []>} : vector<64x128xbf16>, vector<128x64xbf16>, vector<64x64xf32> -> vector<64x64xf32>
    %10 = vector.shape_cast %9 : vector<64x64xf32> to vector<2x32x64xf32>
    %c0_5 = arith.constant 0 : index
    %c0_6 = arith.constant 0 : index
    %11 = vector.load %arg2[%c0_5, %c0_6] : memref<32x64xf32, #tpu.memory_space<vmem>>, vector<32x64xf32>
    %12 = vector.shape_cast %11 : vector<32x64xf32> to vector<1x32x64xf32>
    %13 = vector.broadcast %12 : vector<1x32x64xf32> to vector<2x32x64xf32>
    %14 = arith.addf %10, %13 : vector<2x32x64xf32>
    %15 = vector.shape_cast %14 : vector<2x32x64xf32> to vector<64x64xf32>
    %16 = tpu.iota {dimensions = array<i32: 0>} : vector<32x32xi32>
    %17 = tpu.iota {dimensions = array<i32: 1>} : vector<32x32xi32>
    %18 = arith.cmpi sle, %17, %16 : vector<32x32xi32>
    %cst_7 = arith.constant 0.000000e+00 : f32
    %cst_8 = arith.constant -1.000000e+30 : f32
    %19 = vector.broadcast %cst_7 : f32 to vector<32x32xf32>
    %20 = vector.broadcast %cst_8 : f32 to vector<32x32xf32>
    %21 = arith.select %18, %19, %20 : vector<32x32xi1>, vector<32x32xf32>
    %22 = vector.shape_cast %21 : vector<32x32xf32> to vector<1x32x32xf32>
    %c0_9 = arith.constant 0 : index
    %c0_10 = arith.constant 0 : index
    %c0_11 = arith.constant 0 : index
    %23 = vector.load %arg3[%c0_9, %c0_10, %c0_11] : memref<9x1x64xf32, #tpu.memory_space<vmem>>, vector<1x1x64xf32>
    %24 = vector.shape_cast %23 : vector<1x1x64xf32> to vector<1x64xf32>
    %c0_12 = arith.constant 0 : index
    %c0_13 = arith.constant 0 : index
    %c0_14 = arith.constant 0 : index
    %25 = vector.load %arg4[%c0_12, %c0_13, %c0_14] : memref<9x1x64xf32, #tpu.memory_space<vmem>>, vector<1x1x64xf32>
    %26 = vector.shape_cast %25 : vector<1x1x64xf32> to vector<1x64xf32>
    %cst_15 = arith.constant dense<0.000000e+00> : vector<64xf32>
    %27 = vector.multi_reduction <add>, %15, %cst_15 [1] : vector<64x64xf32> to vector<64xf32>
    %28 = vector.shape_cast %27 : vector<64xf32> to vector<64x1xf32>
    %cst_16 = arith.constant 6.400000e+01 : f32
    %29 = vector.broadcast %cst_16 : f32 to vector<64x1xf32>
    %30 = arith.divf %28, %29 : vector<64x1xf32>
    %31 = vector.broadcast %30 : vector<64x1xf32> to vector<64x64xf32>
    %32 = arith.subf %15, %31 : vector<64x64xf32>
    %33 = arith.mulf %32, %32 : vector<64x64xf32>
    %cst_17 = arith.constant dense<0.000000e+00> : vector<64xf32>
    %34 = vector.multi_reduction <add>, %33, %cst_17 [1] : vector<64x64xf32> to vector<64xf32>
    %35 = vector.shape_cast %34 : vector<64xf32> to vector<64x1xf32>
    %cst_18 = arith.constant 6.400000e+01 : f32
    %36 = vector.broadcast %cst_18 : f32 to vector<64x1xf32>
    %37 = arith.divf %35, %36 : vector<64x1xf32>
    %38 = vector.broadcast %30 : vector<64x1xf32> to vector<64x64xf32>
    %39 = arith.subf %15, %38 : vector<64x64xf32>
    %cst_19 = arith.constant 9.99999974E-6 : f32
    %40 = vector.broadcast %cst_19 : f32 to vector<64x1xf32>
    %41 = arith.addf %37, %40 : vector<64x1xf32>
    %42 = math.rsqrt %41 : vector<64x1xf32>
    %43 = vector.broadcast %42 : vector<64x1xf32> to vector<64x64xf32>
    %44 = arith.mulf %39, %43 : vector<64x64xf32>
    %45 = vector.broadcast %24 : vector<1x64xf32> to vector<64x64xf32>
    %46 = arith.mulf %44, %45 : vector<64x64xf32>
    %47 = vector.broadcast %26 : vector<1x64xf32> to vector<64x64xf32>
    %48 = arith.addf %46, %47 : vector<64x64xf32>
    %49 = arith.truncf %48 : vector<64x64xf32> to vector<64x64xbf16>
    %c0_20 = arith.constant 0 : index
    %c0_21 = arith.constant 0 : index
    %c0_22 = arith.constant 0 : index
    %50 = vector.load %arg5[%c0_20, %c0_21, %c0_22] : memref<4x64x192xbf16, #tpu.memory_space<vmem>>, vector<1x64x192xbf16>
    %51 = vector.shape_cast %50 : vector<1x64x192xbf16> to vector<64x192xbf16>
    %cst_23 = arith.constant dense<0.000000e+00> : vector<64x192xf32>
    %52 = tpu.matmul %49, %51, %cst_23 {dimension_numbers = #tpu.dot_dimension_numbers<[1], [0], [0], [1], [0, 0, 1, 1], [], []>} : vector<64x64xbf16>, vector<64x192xbf16>, vector<64x192xf32> -> vector<64x192xf32>
    %53 = vector.extract_strided_slice %52 {offsets = [0, 0], sizes = [64, 64], strides = [1, 1]} : vector<64x192xf32> to vector<64x64xf32>
    %54 = vector.shape_cast %53 : vector<64x64xf32> to vector<2x32x64xf32>
    %55 = arith.truncf %54 : vector<2x32x64xf32> to vector<2x32x64xbf16>
    %56 = vector.extract_strided_slice %52 {offsets = [0, 64], sizes = [64, 64], strides = [1, 1]} : vector<64x192xf32> to vector<64x64xf32>
    %57 = vector.shape_cast %56 : vector<64x64xf32> to vector<2x32x64xf32>
    %58 = arith.truncf %57 : vector<2x32x64xf32> to vector<2x32x64xbf16>
    %59 = vector.extract_strided_slice %52 {offsets = [0, 128], sizes = [64, 64], strides = [1, 1]} : vector<64x192xf32> to vector<64x64xf32>
    %60 = vector.shape_cast %59 : vector<64x64xf32> to vector<2x32x64xf32>
    %61 = arith.truncf %60 : vector<2x32x64xf32> to vector<2x32x64xbf16>
    %c0_24 = arith.constant 0 : index
    %c0_25 = arith.constant 0 : index
    %c0_26 = arith.constant 0 : index
    %62 = vector.load %arg6[%c0_24, %c0_25, %c0_26] : memref<4x64x64xbf16, #tpu.memory_space<vmem>>, vector<1x64x64xbf16>
    %63 = vector.shape_cast %62 : vector<1x64x64xbf16> to vector<64x64xbf16>
    %cst_27 = arith.constant 0.000000e+00 : f32
    %64 = vector.broadcast %cst_27 : f32 to vector<64x64xf32>
    %65 = vector.extract_strided_slice %55 {offsets = [0, 0, 0], sizes = [2, 32, 16], strides = [1, 1, 1]} : vector<2x32x64xbf16> to vector<2x32x16xbf16>
    %66 = vector.extract_strided_slice %58 {offsets = [0, 0, 0], sizes = [2, 32, 16], strides = [1, 1, 1]} : vector<2x32x64xbf16> to vector<2x32x16xbf16>
    "tpu.trace_start"() <{level = 10 : i32, message = "btd,bsd->bts"}> : () -> ()
    %cst_28 = arith.constant dense<0.000000e+00> : vector<2x32x32xf32>
    %67 = tpu.matmul %65, %66, %cst_28 {dimension_numbers = #tpu.dot_dimension_numbers<[2], [2], [1], [1], [0, 0, 0, 1, 1, 1], [0], [0]>} : vector<2x32x16xbf16>, vector<2x32x16xbf16>, vector<2x32x32xf32> -> vector<2x32x32xf32>
    "tpu.trace_stop"() : () -> ()
    %68 = vector.broadcast %22 : vector<1x32x32xf32> to vector<2x32x32xf32>
    %69 = arith.addf %67, %68 : vector<2x32x32xf32>
    %cst_29 = arith.constant dense<0xFF800000> : vector<2x32xf32>
    %70 = vector.multi_reduction <maximumf>, %69, %cst_29 [2] : vector<2x32x32xf32> to vector<2x32xf32>
    %71 = vector.shape_cast %70 : vector<2x32xf32> to vector<2x32x1xf32>
    %72 = vector.broadcast %71 : vector<2x32x1xf32> to vector<2x32x32xf32>
    %73 = arith.subf %69, %72 : vector<2x32x32xf32>
    %74 = math.exp %73 : vector<2x32x32xf32>
    %cst_30 = arith.constant dense<0.000000e+00> : vector<2x32xf32>
    %75 = vector.multi_reduction <add>, %74, %cst_30 [2] : vector<2x32x32xf32> to vector<2x32xf32>
    %76 = vector.shape_cast %75 : vector<2x32xf32> to vector<2x32x1xf32>
    %77 = tpu.reciprocal %76 {approx = true} : vector<2x32x1xf32> -> vector<2x32x1xf32>
    %78 = vector.broadcast %77 : vector<2x32x1xf32> to vector<2x32x32xf32>
    %79 = arith.mulf %74, %78 : vector<2x32x32xf32>
    %80 = arith.truncf %79 : vector<2x32x32xf32> to vector<2x32x32xbf16>
    %81 = vector.extract_strided_slice %61 {offsets = [0, 0, 0], sizes = [2, 32, 16], strides = [1, 1, 1]} : vector<2x32x64xbf16> to vector<2x32x16xbf16>
    "tpu.trace_start"() <{level = 10 : i32, message = "bts,bsd->btd"}> : () -> ()
    %cst_31 = arith.constant dense<0.000000e+00> : vector<2x32x16xf32>
    %82 = tpu.matmul %80, %81, %cst_31 {dimension_numbers = #tpu.dot_dimension_numbers<[2], [1], [1], [2], [0, 0, 0, 1, 1, 2], [0], [0]>} : vector<2x32x32xbf16>, vector<2x32x16xbf16>, vector<2x32x16xf32> -> vector<2x32x16xf32>
    "tpu.trace_stop"() : () -> ()
    %83 = vector.shape_cast %82 : vector<2x32x16xf32> to vector<64x16xf32>
    %84 = arith.truncf %83 : vector<64x16xf32> to vector<64x16xbf16>
    %85 = vector.extract_strided_slice %63 {offsets = [0, 0], sizes = [16, 64], strides = [1, 1]} : vector<64x64xbf16> to vector<16x64xbf16>
    %cst_32 = arith.constant dense<0.000000e+00> : vector<64x64xf32>
    %86 = tpu.matmul %84, %85, %cst_32 {dimension_numbers = #tpu.dot_dimension_numbers<[1], [0], [0], [1], [0, 0, 1, 1], [], []>} : vector<64x16xbf16>, vector<16x64xbf16>, vector<64x64xf32> -> vector<64x64xf32>
    %87 = arith.addf %64, %86 : vector<64x64xf32>
    %88 = vector.extract_strided_slice %55 {offsets = [0, 0, 16], sizes = [2, 32, 16], strides = [1, 1, 1]} : vector<2x32x64xbf16> to vector<2x32x16xbf16>
    %89 = vector.extract_strided_slice %58 {offsets = [0, 0, 16], sizes = [2, 32, 16], strides = [1, 1, 1]} : vector<2x32x64xbf16> to vector<2x32x16xbf16>
    "tpu.trace_start"() <{level = 10 : i32, message = "btd,bsd->bts"}> : () -> ()
    %cst_33 = arith.constant dense<0.000000e+00> : vector<2x32x32xf32>
    %90 = tpu.matmul %88, %89, %cst_33 {dimension_numbers = #tpu.dot_dimension_numbers<[2], [2], [1], [1], [0, 0, 0, 1, 1, 1], [0], [0]>} : vector<2x32x16xbf16>, vector<2x32x16xbf16>, vector<2x32x32xf32> -> vector<2x32x32xf32>
    "tpu.trace_stop"() : () -> ()
    %91 = vector.broadcast %22 : vector<1x32x32xf32> to vector<2x32x32xf32>
    %92 = arith.addf %90, %91 : vector<2x32x32xf32>
    %cst_34 = arith.constant dense<0xFF800000> : vector<2x32xf32>
    %93 = vector.multi_reduction <maximumf>, %92, %cst_34 [2] : vector<2x32x32xf32> to vector<2x32xf32>
    %94 = vector.shape_cast %93 : vector<2x32xf32> to vector<2x32x1xf32>
    %95 = vector.broadcast %94 : vector<2x32x1xf32> to vector<2x32x32xf32>
    %96 = arith.subf %92, %95 : vector<2x32x32xf32>
    %97 = math.exp %96 : vector<2x32x32xf32>
    %cst_35 = arith.constant dense<0.000000e+00> : vector<2x32xf32>
    %98 = vector.multi_reduction <add>, %97, %cst_35 [2] : vector<2x32x32xf32> to vector<2x32xf32>
    %99 = vector.shape_cast %98 : vector<2x32xf32> to vector<2x32x1xf32>
    %100 = tpu.reciprocal %99 {approx = true} : vector<2x32x1xf32> -> vector<2x32x1xf32>
    %101 = vector.broadcast %100 : vector<2x32x1xf32> to vector<2x32x32xf32>
    %102 = arith.mulf %97, %101 : vector<2x32x32xf32>
    %103 = arith.truncf %102 : vector<2x32x32xf32> to vector<2x32x32xbf16>
    %104 = vector.extract_strided_slice %61 {offsets = [0, 0, 16], sizes = [2, 32, 16], strides = [1, 1, 1]} : vector<2x32x64xbf16> to vector<2x32x16xbf16>
    "tpu.trace_start"() <{level = 10 : i32, message = "bts,bsd->btd"}> : () -> ()
    %cst_36 = arith.constant dense<0.000000e+00> : vector<2x32x16xf32>
    %105 = tpu.matmul %103, %104, %cst_36 {dimension_numbers = #tpu.dot_dimension_numbers<[2], [1], [1], [2], [0, 0, 0, 1, 1, 2], [0], [0]>} : vector<2x32x32xbf16>, vector<2x32x16xbf16>, vector<2x32x16xf32> -> vector<2x32x16xf32>
    "tpu.trace_stop"() : () -> ()
    %106 = vector.shape_cast %105 : vector<2x32x16xf32> to vector<64x16xf32>
    %107 = arith.truncf %106 : vector<64x16xf32> to vector<64x16xbf16>
    %108 = vector.extract_strided_slice %63 {offsets = [16, 0], sizes = [16, 64], strides = [1, 1]} : vector<64x64xbf16> to vector<16x64xbf16>
    %cst_37 = arith.constant dense<0.000000e+00> : vector<64x64xf32>
    %109 = tpu.matmul %107, %108, %cst_37 {dimension_numbers = #tpu.dot_dimension_numbers<[1], [0], [0], [1], [0, 0, 1, 1], [], []>} : vector<64x16xbf16>, vector<16x64xbf16>, vector<64x64xf32> -> vector<64x64xf32>
    %110 = arith.addf %87, %109 : vector<64x64xf32>
    %111 = vector.extract_strided_slice %55 {offsets = [0, 0, 32], sizes = [2, 32, 16], strides = [1, 1, 1]} : vector<2x32x64xbf16> to vector<2x32x16xbf16>
    %112 = vector.extract_strided_slice %58 {offsets = [0, 0, 32], sizes = [2, 32, 16], strides = [1, 1, 1]} : vector<2x32x64xbf16> to vector<2x32x16xbf16>
    "tpu.trace_start"() <{level = 10 : i32, message = "btd,bsd->bts"}> : () -> ()
    %cst_38 = arith.constant dense<0.000000e+00> : vector<2x32x32xf32>
    %113 = tpu.matmul %111, %112, %cst_38 {dimension_numbers = #tpu.dot_dimension_numbers<[2], [2], [1], [1], [0, 0, 0, 1, 1, 1], [0], [0]>} : vector<2x32x16xbf16>, vector<2x32x16xbf16>, vector<2x32x32xf32> -> vector<2x32x32xf32>
    "tpu.trace_stop"() : () -> ()
    %114 = vector.broadcast %22 : vector<1x32x32xf32> to vector<2x32x32xf32>
    %115 = arith.addf %113, %114 : vector<2x32x32xf32>
    %cst_39 = arith.constant dense<0xFF800000> : vector<2x32xf32>
    %116 = vector.multi_reduction <maximumf>, %115, %cst_39 [2] : vector<2x32x32xf32> to vector<2x32xf32>
    %117 = vector.shape_cast %116 : vector<2x32xf32> to vector<2x32x1xf32>
    %118 = vector.broadcast %117 : vector<2x32x1xf32> to vector<2x32x32xf32>
    %119 = arith.subf %115, %118 : vector<2x32x32xf32>
    %120 = math.exp %119 : vector<2x32x32xf32>
    %cst_40 = arith.constant dense<0.000000e+00> : vector<2x32xf32>
    %121 = vector.multi_reduction <add>, %120, %cst_40 [2] : vector<2x32x32xf32> to vector<2x32xf32>
    %122 = vector.shape_cast %121 : vector<2x32xf32> to vector<2x32x1xf32>
    %123 = tpu.reciprocal %122 {approx = true} : vector<2x32x1xf32> -> vector<2x32x1xf32>
    %124 = vector.broadcast %123 : vector<2x32x1xf32> to vector<2x32x32xf32>
    %125 = arith.mulf %120, %124 : vector<2x32x32xf32>
    %126 = arith.truncf %125 : vector<2x32x32xf32> to vector<2x32x32xbf16>
    %127 = vector.extract_strided_slice %61 {offsets = [0, 0, 32], sizes = [2, 32, 16], strides = [1, 1, 1]} : vector<2x32x64xbf16> to vector<2x32x16xbf16>
    "tpu.trace_start"() <{level = 10 : i32, message = "bts,bsd->btd"}> : () -> ()
    %cst_41 = arith.constant dense<0.000000e+00> : vector<2x32x16xf32>
    %128 = tpu.matmul %126, %127, %cst_41 {dimension_numbers = #tpu.dot_dimension_numbers<[2], [1], [1], [2], [0, 0, 0, 1, 1, 2], [0], [0]>} : vector<2x32x32xbf16>, vector<2x32x16xbf16>, vector<2x32x16xf32> -> vector<2x32x16xf32>
    "tpu.trace_stop"() : () -> ()
    %129 = vector.shape_cast %128 : vector<2x32x16xf32> to vector<64x16xf32>
    %130 = arith.truncf %129 : vector<64x16xf32> to vector<64x16xbf16>
    %131 = vector.extract_strided_slice %63 {offsets = [32, 0], sizes = [16, 64], strides = [1, 1]} : vector<64x64xbf16> to vector<16x64xbf16>
    %cst_42 = arith.constant dense<0.000000e+00> : vector<64x64xf32>
    %132 = tpu.matmul %130, %131, %cst_42 {dimension_numbers = #tpu.dot_dimension_numbers<[1], [0], [0], [1], [0, 0, 1, 1], [], []>} : vector<64x16xbf16>, vector<16x64xbf16>, vector<64x64xf32> -> vector<64x64xf32>
    %133 = arith.addf %110, %132 : vector<64x64xf32>
    %134 = vector.extract_strided_slice %55 {offsets = [0, 0, 48], sizes = [2, 32, 16], strides = [1, 1, 1]} : vector<2x32x64xbf16> to vector<2x32x16xbf16>
    %135 = vector.extract_strided_slice %58 {offsets = [0, 0, 48], sizes = [2, 32, 16], strides = [1, 1, 1]} : vector<2x32x64xbf16> to vector<2x32x16xbf16>
    "tpu.trace_start"() <{level = 10 : i32, message = "btd,bsd->bts"}> : () -> ()
    %cst_43 = arith.constant dense<0.000000e+00> : vector<2x32x32xf32>
    %136 = tpu.matmul %134, %135, %cst_43 {dimension_numbers = #tpu.dot_dimension_numbers<[2], [2], [1], [1], [0, 0, 0, 1, 1, 1], [0], [0]>} : vector<2x32x16xbf16>, vector<2x32x16xbf16>, vector<2x32x32xf32> -> vector<2x32x32xf32>
    "tpu.trace_stop"() : () -> ()
    %137 = vector.broadcast %22 : vector<1x32x32xf32> to vector<2x32x32xf32>
    %138 = arith.addf %136, %137 : vector<2x32x32xf32>
    %cst_44 = arith.constant dense<0xFF800000> : vector<2x32xf32>
    %139 = vector.multi_reduction <maximumf>, %138, %cst_44 [2] : vector<2x32x32xf32> to vector<2x32xf32>
    %140 = vector.shape_cast %139 : vector<2x32xf32> to vector<2x32x1xf32>
    %141 = vector.broadcast %140 : vector<2x32x1xf32> to vector<2x32x32xf32>
    %142 = arith.subf %138, %141 : vector<2x32x32xf32>
    %143 = math.exp %142 : vector<2x32x32xf32>
    %cst_45 = arith.constant dense<0.000000e+00> : vector<2x32xf32>
    %144 = vector.multi_reduction <add>, %143, %cst_45 [2] : vector<2x32x32xf32> to vector<2x32xf32>
    %145 = vector.shape_cast %144 : vector<2x32xf32> to vector<2x32x1xf32>
    %146 = tpu.reciprocal %145 {approx = true} : vector<2x32x1xf32> -> vector<2x32x1xf32>
    %147 = vector.broadcast %146 : vector<2x32x1xf32> to vector<2x32x32xf32>
    %148 = arith.mulf %143, %147 : vector<2x32x32xf32>
    %149 = arith.truncf %148 : vector<2x32x32xf32> to vector<2x32x32xbf16>
    %150 = vector.extract_strided_slice %61 {offsets = [0, 0, 48], sizes = [2, 32, 16], strides = [1, 1, 1]} : vector<2x32x64xbf16> to vector<2x32x16xbf16>
    "tpu.trace_start"() <{level = 10 : i32, message = "bts,bsd->btd"}> : () -> ()
    %cst_46 = arith.constant dense<0.000000e+00> : vector<2x32x16xf32>
    %151 = tpu.matmul %149, %150, %cst_46 {dimension_numbers = #tpu.dot_dimension_numbers<[2], [1], [1], [2], [0, 0, 0, 1, 1, 2], [0], [0]>} : vector<2x32x32xbf16>, vector<2x32x16xbf16>, vector<2x32x16xf32> -> vector<2x32x16xf32>
    "tpu.trace_stop"() : () -> ()
    %152 = vector.shape_cast %151 : vector<2x32x16xf32> to vector<64x16xf32>
    %153 = arith.truncf %152 : vector<64x16xf32> to vector<64x16xbf16>
    %154 = vector.extract_strided_slice %63 {offsets = [48, 0], sizes = [16, 64], strides = [1, 1]} : vector<64x64xbf16> to vector<16x64xbf16>
    %cst_47 = arith.constant dense<0.000000e+00> : vector<64x64xf32>
    %155 = tpu.matmul %153, %154, %cst_47 {dimension_numbers = #tpu.dot_dimension_numbers<[1], [0], [0], [1], [0, 0, 1, 1], [], []>} : vector<64x16xbf16>, vector<16x64xbf16>, vector<64x64xf32> -> vector<64x64xf32>
    %156 = arith.addf %133, %155 : vector<64x64xf32>
    %157 = arith.addf %15, %156 : vector<64x64xf32>
    %c0_48 = arith.constant 0 : index
    %c0_49 = arith.constant 0 : index
    %c0_50 = arith.constant 0 : index
    %158 = vector.load %arg7[%c0_48, %c0_49, %c0_50] : memref<4x1x64xf32, #tpu.memory_space<vmem>>, vector<1x1x64xf32>
    %159 = vector.shape_cast %158 : vector<1x1x64xf32> to vector<1x64xf32>
    %160 = vector.broadcast %159 : vector<1x64xf32> to vector<64x64xf32>
    %161 = arith.addf %157, %160 : vector<64x64xf32>
    %c1 = arith.constant 1 : index
    %c0_51 = arith.constant 0 : index
    %c0_52 = arith.constant 0 : index
    %162 = vector.load %arg3[%c1, %c0_51, %c0_52] : memref<9x1x64xf32, #tpu.memory_space<vmem>>, vector<1x1x64xf32>
    %163 = vector.shape_cast %162 : vector<1x1x64xf32> to vector<1x64xf32>
    %c1_53 = arith.constant 1 : index
    %c0_54 = arith.constant 0 : index
    %c0_55 = arith.constant 0 : index
    %164 = vector.load %arg4[%c1_53, %c0_54, %c0_55] : memref<9x1x64xf32, #tpu.memory_space<vmem>>, vector<1x1x64xf32>
    %165 = vector.shape_cast %164 : vector<1x1x64xf32> to vector<1x64xf32>
    %cst_56 = arith.constant dense<0.000000e+00> : vector<64xf32>
    %166 = vector.multi_reduction <add>, %161, %cst_56 [1] : vector<64x64xf32> to vector<64xf32>
    %167 = vector.shape_cast %166 : vector<64xf32> to vector<64x1xf32>
    %cst_57 = arith.constant 6.400000e+01 : f32
    %168 = vector.broadcast %cst_57 : f32 to vector<64x1xf32>
    %169 = arith.divf %167, %168 : vector<64x1xf32>
    %170 = vector.broadcast %169 : vector<64x1xf32> to vector<64x64xf32>
    %171 = arith.subf %161, %170 : vector<64x64xf32>
    %172 = arith.mulf %171, %171 : vector<64x64xf32>
    %cst_58 = arith.constant dense<0.000000e+00> : vector<64xf32>
    %173 = vector.multi_reduction <add>, %172, %cst_58 [1] : vector<64x64xf32> to vector<64xf32>
    %174 = vector.shape_cast %173 : vector<64xf32> to vector<64x1xf32>
    %cst_59 = arith.constant 6.400000e+01 : f32
    %175 = vector.broadcast %cst_59 : f32 to vector<64x1xf32>
    %176 = arith.divf %174, %175 : vector<64x1xf32>
    %177 = vector.broadcast %169 : vector<64x1xf32> to vector<64x64xf32>
    %178 = arith.subf %161, %177 : vector<64x64xf32>
    %cst_60 = arith.constant 9.99999974E-6 : f32
    %179 = vector.broadcast %cst_60 : f32 to vector<64x1xf32>
    %180 = arith.addf %176, %179 : vector<64x1xf32>
    %181 = math.rsqrt %180 : vector<64x1xf32>
    %182 = vector.broadcast %181 : vector<64x1xf32> to vector<64x64xf32>
    %183 = arith.mulf %178, %182 : vector<64x64xf32>
    %184 = vector.broadcast %163 : vector<1x64xf32> to vector<64x64xf32>
    %185 = arith.mulf %183, %184 : vector<64x64xf32>
    %186 = vector.broadcast %165 : vector<1x64xf32> to vector<64x64xf32>
    %187 = arith.addf %185, %186 : vector<64x64xf32>
    %188 = arith.truncf %187 : vector<64x64xf32> to vector<64x64xbf16>
    %c0_61 = arith.constant 0 : index
    %c0_62 = arith.constant 0 : index
    %c0_63 = arith.constant 0 : index
    %189 = vector.load %arg8[%c0_61, %c0_62, %c0_63] : memref<4x64x256xbf16, #tpu.memory_space<vmem>>, vector<1x64x256xbf16>
    %190 = vector.shape_cast %189 : vector<1x64x256xbf16> to vector<64x256xbf16>
    %cst_64 = arith.constant dense<0.000000e+00> : vector<64x256xf32>
    %191 = tpu.matmul %188, %190, %cst_64 {dimension_numbers = #tpu.dot_dimension_numbers<[1], [0], [0], [1], [0, 0, 1, 1], [], []>} : vector<64x64xbf16>, vector<64x256xbf16>, vector<64x256xf32> -> vector<64x256xf32>
    %c0_65 = arith.constant 0 : index
    %c0_66 = arith.constant 0 : index
    %c0_67 = arith.constant 0 : index
    %192 = vector.load %arg9[%c0_65, %c0_66, %c0_67] : memref<4x1x256xf32, #tpu.memory_space<vmem>>, vector<1x1x256xf32>
    %193 = vector.shape_cast %192 : vector<1x1x256xf32> to vector<1x256xf32>
    %194 = vector.broadcast %193 : vector<1x256xf32> to vector<64x256xf32>
    %195 = arith.addf %191, %194 : vector<64x256xf32>
    %cst_68 = arith.constant 0.000000e+00 : f32
    %196 = vector.broadcast %cst_68 : f32 to vector<64x256xf32>
    %197 = arith.maximumf %195, %196 : vector<64x256xf32>
    %198 = arith.truncf %197 : vector<64x256xf32> to vector<64x256xbf16>
    %c0_69 = arith.constant 0 : index
    %c0_70 = arith.constant 0 : index
    %c0_71 = arith.constant 0 : index
    %199 = vector.load %arg10[%c0_69, %c0_70, %c0_71] : memref<4x256x64xbf16, #tpu.memory_space<vmem>>, vector<1x256x64xbf16>
    %200 = vector.shape_cast %199 : vector<1x256x64xbf16> to vector<256x64xbf16>
    %cst_72 = arith.constant dense<0.000000e+00> : vector<64x64xf32>
    %201 = tpu.matmul %198, %200, %cst_72 {dimension_numbers = #tpu.dot_dimension_numbers<[1], [0], [0], [1], [0, 0, 1, 1], [], []>} : vector<64x256xbf16>, vector<256x64xbf16>, vector<64x64xf32> -> vector<64x64xf32>
    %c0_73 = arith.constant 0 : index
    %c0_74 = arith.constant 0 : index
    %c0_75 = arith.constant 0 : index
    %202 = vector.load %arg11[%c0_73, %c0_74, %c0_75] : memref<4x1x64xf32, #tpu.memory_space<vmem>>, vector<1x1x64xf32>
    %203 = vector.shape_cast %202 : vector<1x1x64xf32> to vector<1x64xf32>
    %204 = vector.broadcast %203 : vector<1x64xf32> to vector<64x64xf32>
    %205 = arith.addf %201, %204 : vector<64x64xf32>
    %206 = arith.addf %161, %205 : vector<64x64xf32>
    %c2 = arith.constant 2 : index
    %c0_76 = arith.constant 0 : index
    %c0_77 = arith.constant 0 : index
    %207 = vector.load %arg3[%c2, %c0_76, %c0_77] : memref<9x1x64xf32, #tpu.memory_space<vmem>>, vector<1x1x64xf32>
    %208 = vector.shape_cast %207 : vector<1x1x64xf32> to vector<1x64xf32>
    %c2_78 = arith.constant 2 : index
    %c0_79 = arith.constant 0 : index
    %c0_80 = arith.constant 0 : index
    %209 = vector.load %arg4[%c2_78, %c0_79, %c0_80] : memref<9x1x64xf32, #tpu.memory_space<vmem>>, vector<1x1x64xf32>
    %210 = vector.shape_cast %209 : vector<1x1x64xf32> to vector<1x64xf32>
    %cst_81 = arith.constant dense<0.000000e+00> : vector<64xf32>
    %211 = vector.multi_reduction <add>, %206, %cst_81 [1] : vector<64x64xf32> to vector<64xf32>
    %212 = vector.shape_cast %211 : vector<64xf32> to vector<64x1xf32>
    %cst_82 = arith.constant 6.400000e+01 : f32
    %213 = vector.broadcast %cst_82 : f32 to vector<64x1xf32>
    %214 = arith.divf %212, %213 : vector<64x1xf32>
    %215 = vector.broadcast %214 : vector<64x1xf32> to vector<64x64xf32>
    %216 = arith.subf %206, %215 : vector<64x64xf32>
    %217 = arith.mulf %216, %216 : vector<64x64xf32>
    %cst_83 = arith.constant dense<0.000000e+00> : vector<64xf32>
    %218 = vector.multi_reduction <add>, %217, %cst_83 [1] : vector<64x64xf32> to vector<64xf32>
    %219 = vector.shape_cast %218 : vector<64xf32> to vector<64x1xf32>
    %cst_84 = arith.constant 6.400000e+01 : f32
    %220 = vector.broadcast %cst_84 : f32 to vector<64x1xf32>
    %221 = arith.divf %219, %220 : vector<64x1xf32>
    %222 = vector.broadcast %214 : vector<64x1xf32> to vector<64x64xf32>
    %223 = arith.subf %206, %222 : vector<64x64xf32>
    %cst_85 = arith.constant 9.99999974E-6 : f32
    %224 = vector.broadcast %cst_85 : f32 to vector<64x1xf32>
    %225 = arith.addf %221, %224 : vector<64x1xf32>
    %226 = math.rsqrt %225 : vector<64x1xf32>
    %227 = vector.broadcast %226 : vector<64x1xf32> to vector<64x64xf32>
    %228 = arith.mulf %223, %227 : vector<64x64xf32>
    %229 = vector.broadcast %208 : vector<1x64xf32> to vector<64x64xf32>
    %230 = arith.mulf %228, %229 : vector<64x64xf32>
    %231 = vector.broadcast %210 : vector<1x64xf32> to vector<64x64xf32>
    %232 = arith.addf %230, %231 : vector<64x64xf32>
    %233 = arith.truncf %232 : vector<64x64xf32> to vector<64x64xbf16>
    %c1_86 = arith.constant 1 : index
    %c0_87 = arith.constant 0 : index
    %c0_88 = arith.constant 0 : index
    %234 = vector.load %arg5[%c1_86, %c0_87, %c0_88] : memref<4x64x192xbf16, #tpu.memory_space<vmem>>, vector<1x64x192xbf16>
    %235 = vector.shape_cast %234 : vector<1x64x192xbf16> to vector<64x192xbf16>
    %cst_89 = arith.constant dense<0.000000e+00> : vector<64x192xf32>
    %236 = tpu.matmul %233, %235, %cst_89 {dimension_numbers = #tpu.dot_dimension_numbers<[1], [0], [0], [1], [0, 0, 1, 1], [], []>} : vector<64x64xbf16>, vector<64x192xbf16>, vector<64x192xf32> -> vector<64x192xf32>
    %237 = vector.extract_strided_slice %236 {offsets = [0, 0], sizes = [64, 64], strides = [1, 1]} : vector<64x192xf32> to vector<64x64xf32>
    %238 = vector.shape_cast %237 : vector<64x64xf32> to vector<2x32x64xf32>
    %239 = arith.truncf %238 : vector<2x32x64xf32> to vector<2x32x64xbf16>
    %240 = vector.extract_strided_slice %236 {offsets = [0, 64], sizes = [64, 64], strides = [1, 1]} : vector<64x192xf32> to vector<64x64xf32>
    %241 = vector.shape_cast %240 : vector<64x64xf32> to vector<2x32x64xf32>
    %242 = arith.truncf %241 : vector<2x32x64xf32> to vector<2x32x64xbf16>
    %243 = vector.extract_strided_slice %236 {offsets = [0, 128], sizes = [64, 64], strides = [1, 1]} : vector<64x192xf32> to vector<64x64xf32>
    %244 = vector.shape_cast %243 : vector<64x64xf32> to vector<2x32x64xf32>
    %245 = arith.truncf %244 : vector<2x32x64xf32> to vector<2x32x64xbf16>
    %c1_90 = arith.constant 1 : index
    %c0_91 = arith.constant 0 : index
    %c0_92 = arith.constant 0 : index
    %246 = vector.load %arg6[%c1_90, %c0_91, %c0_92] : memref<4x64x64xbf16, #tpu.memory_space<vmem>>, vector<1x64x64xbf16>
    %247 = vector.shape_cast %246 : vector<1x64x64xbf16> to vector<64x64xbf16>
    %cst_93 = arith.constant 0.000000e+00 : f32
    %248 = vector.broadcast %cst_93 : f32 to vector<64x64xf32>
    %249 = vector.extract_strided_slice %239 {offsets = [0, 0, 0], sizes = [2, 32, 16], strides = [1, 1, 1]} : vector<2x32x64xbf16> to vector<2x32x16xbf16>
    %250 = vector.extract_strided_slice %242 {offsets = [0, 0, 0], sizes = [2, 32, 16], strides = [1, 1, 1]} : vector<2x32x64xbf16> to vector<2x32x16xbf16>
    "tpu.trace_start"() <{level = 10 : i32, message = "btd,bsd->bts"}> : () -> ()
    %cst_94 = arith.constant dense<0.000000e+00> : vector<2x32x32xf32>
    %251 = tpu.matmul %249, %250, %cst_94 {dimension_numbers = #tpu.dot_dimension_numbers<[2], [2], [1], [1], [0, 0, 0, 1, 1, 1], [0], [0]>} : vector<2x32x16xbf16>, vector<2x32x16xbf16>, vector<2x32x32xf32> -> vector<2x32x32xf32>
    "tpu.trace_stop"() : () -> ()
    %252 = vector.broadcast %22 : vector<1x32x32xf32> to vector<2x32x32xf32>
    %253 = arith.addf %251, %252 : vector<2x32x32xf32>
    %cst_95 = arith.constant dense<0xFF800000> : vector<2x32xf32>
    %254 = vector.multi_reduction <maximumf>, %253, %cst_95 [2] : vector<2x32x32xf32> to vector<2x32xf32>
    %255 = vector.shape_cast %254 : vector<2x32xf32> to vector<2x32x1xf32>
    %256 = vector.broadcast %255 : vector<2x32x1xf32> to vector<2x32x32xf32>
    %257 = arith.subf %253, %256 : vector<2x32x32xf32>
    %258 = math.exp %257 : vector<2x32x32xf32>
    %cst_96 = arith.constant dense<0.000000e+00> : vector<2x32xf32>
    %259 = vector.multi_reduction <add>, %258, %cst_96 [2] : vector<2x32x32xf32> to vector<2x32xf32>
    %260 = vector.shape_cast %259 : vector<2x32xf32> to vector<2x32x1xf32>
    %261 = tpu.reciprocal %260 {approx = true} : vector<2x32x1xf32> -> vector<2x32x1xf32>
    %262 = vector.broadcast %261 : vector<2x32x1xf32> to vector<2x32x32xf32>
    %263 = arith.mulf %258, %262 : vector<2x32x32xf32>
    %264 = arith.truncf %263 : vector<2x32x32xf32> to vector<2x32x32xbf16>
    %265 = vector.extract_strided_slice %245 {offsets = [0, 0, 0], sizes = [2, 32, 16], strides = [1, 1, 1]} : vector<2x32x64xbf16> to vector<2x32x16xbf16>
    "tpu.trace_start"() <{level = 10 : i32, message = "bts,bsd->btd"}> : () -> ()
    %cst_97 = arith.constant dense<0.000000e+00> : vector<2x32x16xf32>
    %266 = tpu.matmul %264, %265, %cst_97 {dimension_numbers = #tpu.dot_dimension_numbers<[2], [1], [1], [2], [0, 0, 0, 1, 1, 2], [0], [0]>} : vector<2x32x32xbf16>, vector<2x32x16xbf16>, vector<2x32x16xf32> -> vector<2x32x16xf32>
    "tpu.trace_stop"() : () -> ()
    %267 = vector.shape_cast %266 : vector<2x32x16xf32> to vector<64x16xf32>
    %268 = arith.truncf %267 : vector<64x16xf32> to vector<64x16xbf16>
    %269 = vector.extract_strided_slice %247 {offsets = [0, 0], sizes = [16, 64], strides = [1, 1]} : vector<64x64xbf16> to vector<16x64xbf16>
    %cst_98 = arith.constant dense<0.000000e+00> : vector<64x64xf32>
    %270 = tpu.matmul %268, %269, %cst_98 {dimension_numbers = #tpu.dot_dimension_numbers<[1], [0], [0], [1], [0, 0, 1, 1], [], []>} : vector<64x16xbf16>, vector<16x64xbf16>, vector<64x64xf32> -> vector<64x64xf32>
    %271 = arith.addf %248, %270 : vector<64x64xf32>
    %272 = vector.extract_strided_slice %239 {offsets = [0, 0, 16], sizes = [2, 32, 16], strides = [1, 1, 1]} : vector<2x32x64xbf16> to vector<2x32x16xbf16>
    %273 = vector.extract_strided_slice %242 {offsets = [0, 0, 16], sizes = [2, 32, 16], strides = [1, 1, 1]} : vector<2x32x64xbf16> to vector<2x32x16xbf16>
    "tpu.trace_start"() <{level = 10 : i32, message = "btd,bsd->bts"}> : () -> ()
    %cst_99 = arith.constant dense<0.000000e+00> : vector<2x32x32xf32>
    %274 = tpu.matmul %272, %273, %cst_99 {dimension_numbers = #tpu.dot_dimension_numbers<[2], [2], [1], [1], [0, 0, 0, 1, 1, 1], [0], [0]>} : vector<2x32x16xbf16>, vector<2x32x16xbf16>, vector<2x32x32xf32> -> vector<2x32x32xf32>
    "tpu.trace_stop"() : () -> ()
    %275 = vector.broadcast %22 : vector<1x32x32xf32> to vector<2x32x32xf32>
    %276 = arith.addf %274, %275 : vector<2x32x32xf32>
    %cst_100 = arith.constant dense<0xFF800000> : vector<2x32xf32>
    %277 = vector.multi_reduction <maximumf>, %276, %cst_100 [2] : vector<2x32x32xf32> to vector<2x32xf32>
    %278 = vector.shape_cast %277 : vector<2x32xf32> to vector<2x32x1xf32>
    %279 = vector.broadcast %278 : vector<2x32x1xf32> to vector<2x32x32xf32>
    %280 = arith.subf %276, %279 : vector<2x32x32xf32>
    %281 = math.exp %280 : vector<2x32x32xf32>
    %cst_101 = arith.constant dense<0.000000e+00> : vector<2x32xf32>
    %282 = vector.multi_reduction <add>, %281, %cst_101 [2] : vector<2x32x32xf32> to vector<2x32xf32>
    %283 = vector.shape_cast %282 : vector<2x32xf32> to vector<2x32x1xf32>
    %284 = tpu.reciprocal %283 {approx = true} : vector<2x32x1xf32> -> vector<2x32x1xf32>
    %285 = vector.broadcast %284 : vector<2x32x1xf32> to vector<2x32x32xf32>
    %286 = arith.mulf %281, %285 : vector<2x32x32xf32>
    %287 = arith.truncf %286 : vector<2x32x32xf32> to vector<2x32x32xbf16>
    %288 = vector.extract_strided_slice %245 {offsets = [0, 0, 16], sizes = [2, 32, 16], strides = [1, 1, 1]} : vector<2x32x64xbf16> to vector<2x32x16xbf16>
    "tpu.trace_start"() <{level = 10 : i32, message = "bts,bsd->btd"}> : () -> ()
    %cst_102 = arith.constant dense<0.000000e+00> : vector<2x32x16xf32>
    %289 = tpu.matmul %287, %288, %cst_102 {dimension_numbers = #tpu.dot_dimension_numbers<[2], [1], [1], [2], [0, 0, 0, 1, 1, 2], [0], [0]>} : vector<2x32x32xbf16>, vector<2x32x16xbf16>, vector<2x32x16xf32> -> vector<2x32x16xf32>
    "tpu.trace_stop"() : () -> ()
    %290 = vector.shape_cast %289 : vector<2x32x16xf32> to vector<64x16xf32>
    %291 = arith.truncf %290 : vector<64x16xf32> to vector<64x16xbf16>
    %292 = vector.extract_strided_slice %247 {offsets = [16, 0], sizes = [16, 64], strides = [1, 1]} : vector<64x64xbf16> to vector<16x64xbf16>
    %cst_103 = arith.constant dense<0.000000e+00> : vector<64x64xf32>
    %293 = tpu.matmul %291, %292, %cst_103 {dimension_numbers = #tpu.dot_dimension_numbers<[1], [0], [0], [1], [0, 0, 1, 1], [], []>} : vector<64x16xbf16>, vector<16x64xbf16>, vector<64x64xf32> -> vector<64x64xf32>
    %294 = arith.addf %271, %293 : vector<64x64xf32>
    %295 = vector.extract_strided_slice %239 {offsets = [0, 0, 32], sizes = [2, 32, 16], strides = [1, 1, 1]} : vector<2x32x64xbf16> to vector<2x32x16xbf16>
    %296 = vector.extract_strided_slice %242 {offsets = [0, 0, 32], sizes = [2, 32, 16], strides = [1, 1, 1]} : vector<2x32x64xbf16> to vector<2x32x16xbf16>
    "tpu.trace_start"() <{level = 10 : i32, message = "btd,bsd->bts"}> : () -> ()
    %cst_104 = arith.constant dense<0.000000e+00> : vector<2x32x32xf32>
    %297 = tpu.matmul %295, %296, %cst_104 {dimension_numbers = #tpu.dot_dimension_numbers<[2], [2], [1], [1], [0, 0, 0, 1, 1, 1], [0], [0]>} : vector<2x32x16xbf16>, vector<2x32x16xbf16>, vector<2x32x32xf32> -> vector<2x32x32xf32>
    "tpu.trace_stop"() : () -> ()
    %298 = vector.broadcast %22 : vector<1x32x32xf32> to vector<2x32x32xf32>
    %299 = arith.addf %297, %298 : vector<2x32x32xf32>
    %cst_105 = arith.constant dense<0xFF800000> : vector<2x32xf32>
    %300 = vector.multi_reduction <maximumf>, %299, %cst_105 [2] : vector<2x32x32xf32> to vector<2x32xf32>
    %301 = vector.shape_cast %300 : vector<2x32xf32> to vector<2x32x1xf32>
    %302 = vector.broadcast %301 : vector<2x32x1xf32> to vector<2x32x32xf32>
    %303 = arith.subf %299, %302 : vector<2x32x32xf32>
    %304 = math.exp %303 : vector<2x32x32xf32>
    %cst_106 = arith.constant dense<0.000000e+00> : vector<2x32xf32>
    %305 = vector.multi_reduction <add>, %304, %cst_106 [2] : vector<2x32x32xf32> to vector<2x32xf32>
    %306 = vector.shape_cast %305 : vector<2x32xf32> to vector<2x32x1xf32>
    %307 = tpu.reciprocal %306 {approx = true} : vector<2x32x1xf32> -> vector<2x32x1xf32>
    %308 = vector.broadcast %307 : vector<2x32x1xf32> to vector<2x32x32xf32>
    %309 = arith.mulf %304, %308 : vector<2x32x32xf32>
    %310 = arith.truncf %309 : vector<2x32x32xf32> to vector<2x32x32xbf16>
    %311 = vector.extract_strided_slice %245 {offsets = [0, 0, 32], sizes = [2, 32, 16], strides = [1, 1, 1]} : vector<2x32x64xbf16> to vector<2x32x16xbf16>
    "tpu.trace_start"() <{level = 10 : i32, message = "bts,bsd->btd"}> : () -> ()
    %cst_107 = arith.constant dense<0.000000e+00> : vector<2x32x16xf32>
    %312 = tpu.matmul %310, %311, %cst_107 {dimension_numbers = #tpu.dot_dimension_numbers<[2], [1], [1], [2], [0, 0, 0, 1, 1, 2], [0], [0]>} : vector<2x32x32xbf16>, vector<2x32x16xbf16>, vector<2x32x16xf32> -> vector<2x32x16xf32>
    "tpu.trace_stop"() : () -> ()
    %313 = vector.shape_cast %312 : vector<2x32x16xf32> to vector<64x16xf32>
    %314 = arith.truncf %313 : vector<64x16xf32> to vector<64x16xbf16>
    %315 = vector.extract_strided_slice %247 {offsets = [32, 0], sizes = [16, 64], strides = [1, 1]} : vector<64x64xbf16> to vector<16x64xbf16>
    %cst_108 = arith.constant dense<0.000000e+00> : vector<64x64xf32>
    %316 = tpu.matmul %314, %315, %cst_108 {dimension_numbers = #tpu.dot_dimension_numbers<[1], [0], [0], [1], [0, 0, 1, 1], [], []>} : vector<64x16xbf16>, vector<16x64xbf16>, vector<64x64xf32> -> vector<64x64xf32>
    %317 = arith.addf %294, %316 : vector<64x64xf32>
    %318 = vector.extract_strided_slice %239 {offsets = [0, 0, 48], sizes = [2, 32, 16], strides = [1, 1, 1]} : vector<2x32x64xbf16> to vector<2x32x16xbf16>
    %319 = vector.extract_strided_slice %242 {offsets = [0, 0, 48], sizes = [2, 32, 16], strides = [1, 1, 1]} : vector<2x32x64xbf16> to vector<2x32x16xbf16>
    "tpu.trace_start"() <{level = 10 : i32, message = "btd,bsd->bts"}> : () -> ()
    %cst_109 = arith.constant dense<0.000000e+00> : vector<2x32x32xf32>
    %320 = tpu.matmul %318, %319, %cst_109 {dimension_numbers = #tpu.dot_dimension_numbers<[2], [2], [1], [1], [0, 0, 0, 1, 1, 1], [0], [0]>} : vector<2x32x16xbf16>, vector<2x32x16xbf16>, vector<2x32x32xf32> -> vector<2x32x32xf32>
    "tpu.trace_stop"() : () -> ()
    %321 = vector.broadcast %22 : vector<1x32x32xf32> to vector<2x32x32xf32>
    %322 = arith.addf %320, %321 : vector<2x32x32xf32>
    %cst_110 = arith.constant dense<0xFF800000> : vector<2x32xf32>
    %323 = vector.multi_reduction <maximumf>, %322, %cst_110 [2] : vector<2x32x32xf32> to vector<2x32xf32>
    %324 = vector.shape_cast %323 : vector<2x32xf32> to vector<2x32x1xf32>
    %325 = vector.broadcast %324 : vector<2x32x1xf32> to vector<2x32x32xf32>
    %326 = arith.subf %322, %325 : vector<2x32x32xf32>
    %327 = math.exp %326 : vector<2x32x32xf32>
    %cst_111 = arith.constant dense<0.000000e+00> : vector<2x32xf32>
    %328 = vector.multi_reduction <add>, %327, %cst_111 [2] : vector<2x32x32xf32> to vector<2x32xf32>
    %329 = vector.shape_cast %328 : vector<2x32xf32> to vector<2x32x1xf32>
    %330 = tpu.reciprocal %329 {approx = true} : vector<2x32x1xf32> -> vector<2x32x1xf32>
    %331 = vector.broadcast %330 : vector<2x32x1xf32> to vector<2x32x32xf32>
    %332 = arith.mulf %327, %331 : vector<2x32x32xf32>
    %333 = arith.truncf %332 : vector<2x32x32xf32> to vector<2x32x32xbf16>
    %334 = vector.extract_strided_slice %245 {offsets = [0, 0, 48], sizes = [2, 32, 16], strides = [1, 1, 1]} : vector<2x32x64xbf16> to vector<2x32x16xbf16>
    "tpu.trace_start"() <{level = 10 : i32, message = "bts,bsd->btd"}> : () -> ()
    %cst_112 = arith.constant dense<0.000000e+00> : vector<2x32x16xf32>
    %335 = tpu.matmul %333, %334, %cst_112 {dimension_numbers = #tpu.dot_dimension_numbers<[2], [1], [1], [2], [0, 0, 0, 1, 1, 2], [0], [0]>} : vector<2x32x32xbf16>, vector<2x32x16xbf16>, vector<2x32x16xf32> -> vector<2x32x16xf32>
    "tpu.trace_stop"() : () -> ()
    %336 = vector.shape_cast %335 : vector<2x32x16xf32> to vector<64x16xf32>
    %337 = arith.truncf %336 : vector<64x16xf32> to vector<64x16xbf16>
    %338 = vector.extract_strided_slice %247 {offsets = [48, 0], sizes = [16, 64], strides = [1, 1]} : vector<64x64xbf16> to vector<16x64xbf16>
    %cst_113 = arith.constant dense<0.000000e+00> : vector<64x64xf32>
    %339 = tpu.matmul %337, %338, %cst_113 {dimension_numbers = #tpu.dot_dimension_numbers<[1], [0], [0], [1], [0, 0, 1, 1], [], []>} : vector<64x16xbf16>, vector<16x64xbf16>, vector<64x64xf32> -> vector<64x64xf32>
    %340 = arith.addf %317, %339 : vector<64x64xf32>
    %341 = arith.addf %206, %340 : vector<64x64xf32>
    %c1_114 = arith.constant 1 : index
    %c0_115 = arith.constant 0 : index
    %c0_116 = arith.constant 0 : index
    %342 = vector.load %arg7[%c1_114, %c0_115, %c0_116] : memref<4x1x64xf32, #tpu.memory_space<vmem>>, vector<1x1x64xf32>
    %343 = vector.shape_cast %342 : vector<1x1x64xf32> to vector<1x64xf32>
    %344 = vector.broadcast %343 : vector<1x64xf32> to vector<64x64xf32>
    %345 = arith.addf %341, %344 : vector<64x64xf32>
    %c3 = arith.constant 3 : index
    %c0_117 = arith.constant 0 : index
    %c0_118 = arith.constant 0 : index
    %346 = vector.load %arg3[%c3, %c0_117, %c0_118] : memref<9x1x64xf32, #tpu.memory_space<vmem>>, vector<1x1x64xf32>
    %347 = vector.shape_cast %346 : vector<1x1x64xf32> to vector<1x64xf32>
    %c3_119 = arith.constant 3 : index
    %c0_120 = arith.constant 0 : index
    %c0_121 = arith.constant 0 : index
    %348 = vector.load %arg4[%c3_119, %c0_120, %c0_121] : memref<9x1x64xf32, #tpu.memory_space<vmem>>, vector<1x1x64xf32>
    %349 = vector.shape_cast %348 : vector<1x1x64xf32> to vector<1x64xf32>
    %cst_122 = arith.constant dense<0.000000e+00> : vector<64xf32>
    %350 = vector.multi_reduction <add>, %345, %cst_122 [1] : vector<64x64xf32> to vector<64xf32>
    %351 = vector.shape_cast %350 : vector<64xf32> to vector<64x1xf32>
    %cst_123 = arith.constant 6.400000e+01 : f32
    %352 = vector.broadcast %cst_123 : f32 to vector<64x1xf32>
    %353 = arith.divf %351, %352 : vector<64x1xf32>
    %354 = vector.broadcast %353 : vector<64x1xf32> to vector<64x64xf32>
    %355 = arith.subf %345, %354 : vector<64x64xf32>
    %356 = arith.mulf %355, %355 : vector<64x64xf32>
    %cst_124 = arith.constant dense<0.000000e+00> : vector<64xf32>
    %357 = vector.multi_reduction <add>, %356, %cst_124 [1] : vector<64x64xf32> to vector<64xf32>
    %358 = vector.shape_cast %357 : vector<64xf32> to vector<64x1xf32>
    %cst_125 = arith.constant 6.400000e+01 : f32
    %359 = vector.broadcast %cst_125 : f32 to vector<64x1xf32>
    %360 = arith.divf %358, %359 : vector<64x1xf32>
    %361 = vector.broadcast %353 : vector<64x1xf32> to vector<64x64xf32>
    %362 = arith.subf %345, %361 : vector<64x64xf32>
    %cst_126 = arith.constant 9.99999974E-6 : f32
    %363 = vector.broadcast %cst_126 : f32 to vector<64x1xf32>
    %364 = arith.addf %360, %363 : vector<64x1xf32>
    %365 = math.rsqrt %364 : vector<64x1xf32>
    %366 = vector.broadcast %365 : vector<64x1xf32> to vector<64x64xf32>
    %367 = arith.mulf %362, %366 : vector<64x64xf32>
    %368 = vector.broadcast %347 : vector<1x64xf32> to vector<64x64xf32>
    %369 = arith.mulf %367, %368 : vector<64x64xf32>
    %370 = vector.broadcast %349 : vector<1x64xf32> to vector<64x64xf32>
    %371 = arith.addf %369, %370 : vector<64x64xf32>
    %372 = arith.truncf %371 : vector<64x64xf32> to vector<64x64xbf16>
    %c1_127 = arith.constant 1 : index
    %c0_128 = arith.constant 0 : index
    %c0_129 = arith.constant 0 : index
    %373 = vector.load %arg8[%c1_127, %c0_128, %c0_129] : memref<4x64x256xbf16, #tpu.memory_space<vmem>>, vector<1x64x256xbf16>
    %374 = vector.shape_cast %373 : vector<1x64x256xbf16> to vector<64x256xbf16>
    %cst_130 = arith.constant dense<0.000000e+00> : vector<64x256xf32>
    %375 = tpu.matmul %372, %374, %cst_130 {dimension_numbers = #tpu.dot_dimension_numbers<[1], [0], [0], [1], [0, 0, 1, 1], [], []>} : vector<64x64xbf16>, vector<64x256xbf16>, vector<64x256xf32> -> vector<64x256xf32>
    %c1_131 = arith.constant 1 : index
    %c0_132 = arith.constant 0 : index
    %c0_133 = arith.constant 0 : index
    %376 = vector.load %arg9[%c1_131, %c0_132, %c0_133] : memref<4x1x256xf32, #tpu.memory_space<vmem>>, vector<1x1x256xf32>
    %377 = vector.shape_cast %376 : vector<1x1x256xf32> to vector<1x256xf32>
    %378 = vector.broadcast %377 : vector<1x256xf32> to vector<64x256xf32>
    %379 = arith.addf %375, %378 : vector<64x256xf32>
    %cst_134 = arith.constant 0.000000e+00 : f32
    %380 = vector.broadcast %cst_134 : f32 to vector<64x256xf32>
    %381 = arith.maximumf %379, %380 : vector<64x256xf32>
    %382 = arith.truncf %381 : vector<64x256xf32> to vector<64x256xbf16>
    %c1_135 = arith.constant 1 : index
    %c0_136 = arith.constant 0 : index
    %c0_137 = arith.constant 0 : index
    %383 = vector.load %arg10[%c1_135, %c0_136, %c0_137] : memref<4x256x64xbf16, #tpu.memory_space<vmem>>, vector<1x256x64xbf16>
    %384 = vector.shape_cast %383 : vector<1x256x64xbf16> to vector<256x64xbf16>
    %cst_138 = arith.constant dense<0.000000e+00> : vector<64x64xf32>
    %385 = tpu.matmul %382, %384, %cst_138 {dimension_numbers = #tpu.dot_dimension_numbers<[1], [0], [0], [1], [0, 0, 1, 1], [], []>} : vector<64x256xbf16>, vector<256x64xbf16>, vector<64x64xf32> -> vector<64x64xf32>
    %c1_139 = arith.constant 1 : index
    %c0_140 = arith.constant 0 : index
    %c0_141 = arith.constant 0 : index
    %386 = vector.load %arg11[%c1_139, %c0_140, %c0_141] : memref<4x1x64xf32, #tpu.memory_space<vmem>>, vector<1x1x64xf32>
    %387 = vector.shape_cast %386 : vector<1x1x64xf32> to vector<1x64xf32>
    %388 = vector.broadcast %387 : vector<1x64xf32> to vector<64x64xf32>
    %389 = arith.addf %385, %388 : vector<64x64xf32>
    %390 = arith.addf %345, %389 : vector<64x64xf32>
    %c4 = arith.constant 4 : index
    %c0_142 = arith.constant 0 : index
    %c0_143 = arith.constant 0 : index
    %391 = vector.load %arg3[%c4, %c0_142, %c0_143] : memref<9x1x64xf32, #tpu.memory_space<vmem>>, vector<1x1x64xf32>
    %392 = vector.shape_cast %391 : vector<1x1x64xf32> to vector<1x64xf32>
    %c4_144 = arith.constant 4 : index
    %c0_145 = arith.constant 0 : index
    %c0_146 = arith.constant 0 : index
    %393 = vector.load %arg4[%c4_144, %c0_145, %c0_146] : memref<9x1x64xf32, #tpu.memory_space<vmem>>, vector<1x1x64xf32>
    %394 = vector.shape_cast %393 : vector<1x1x64xf32> to vector<1x64xf32>
    %cst_147 = arith.constant dense<0.000000e+00> : vector<64xf32>
    %395 = vector.multi_reduction <add>, %390, %cst_147 [1] : vector<64x64xf32> to vector<64xf32>
    %396 = vector.shape_cast %395 : vector<64xf32> to vector<64x1xf32>
    %cst_148 = arith.constant 6.400000e+01 : f32
    %397 = vector.broadcast %cst_148 : f32 to vector<64x1xf32>
    %398 = arith.divf %396, %397 : vector<64x1xf32>
    %399 = vector.broadcast %398 : vector<64x1xf32> to vector<64x64xf32>
    %400 = arith.subf %390, %399 : vector<64x64xf32>
    %401 = arith.mulf %400, %400 : vector<64x64xf32>
    %cst_149 = arith.constant dense<0.000000e+00> : vector<64xf32>
    %402 = vector.multi_reduction <add>, %401, %cst_149 [1] : vector<64x64xf32> to vector<64xf32>
    %403 = vector.shape_cast %402 : vector<64xf32> to vector<64x1xf32>
    %cst_150 = arith.constant 6.400000e+01 : f32
    %404 = vector.broadcast %cst_150 : f32 to vector<64x1xf32>
    %405 = arith.divf %403, %404 : vector<64x1xf32>
    %406 = vector.broadcast %398 : vector<64x1xf32> to vector<64x64xf32>
    %407 = arith.subf %390, %406 : vector<64x64xf32>
    %cst_151 = arith.constant 9.99999974E-6 : f32
    %408 = vector.broadcast %cst_151 : f32 to vector<64x1xf32>
    %409 = arith.addf %405, %408 : vector<64x1xf32>
    %410 = math.rsqrt %409 : vector<64x1xf32>
    %411 = vector.broadcast %410 : vector<64x1xf32> to vector<64x64xf32>
    %412 = arith.mulf %407, %411 : vector<64x64xf32>
    %413 = vector.broadcast %392 : vector<1x64xf32> to vector<64x64xf32>
    %414 = arith.mulf %412, %413 : vector<64x64xf32>
    %415 = vector.broadcast %394 : vector<1x64xf32> to vector<64x64xf32>
    %416 = arith.addf %414, %415 : vector<64x64xf32>
    %417 = arith.truncf %416 : vector<64x64xf32> to vector<64x64xbf16>
    %c2_152 = arith.constant 2 : index
    %c0_153 = arith.constant 0 : index
    %c0_154 = arith.constant 0 : index
    %418 = vector.load %arg5[%c2_152, %c0_153, %c0_154] : memref<4x64x192xbf16, #tpu.memory_space<vmem>>, vector<1x64x192xbf16>
    %419 = vector.shape_cast %418 : vector<1x64x192xbf16> to vector<64x192xbf16>
    %cst_155 = arith.constant dense<0.000000e+00> : vector<64x192xf32>
    %420 = tpu.matmul %417, %419, %cst_155 {dimension_numbers = #tpu.dot_dimension_numbers<[1], [0], [0], [1], [0, 0, 1, 1], [], []>} : vector<64x64xbf16>, vector<64x192xbf16>, vector<64x192xf32> -> vector<64x192xf32>
    %421 = vector.extract_strided_slice %420 {offsets = [0, 0], sizes = [64, 64], strides = [1, 1]} : vector<64x192xf32> to vector<64x64xf32>
    %422 = vector.shape_cast %421 : vector<64x64xf32> to vector<2x32x64xf32>
    %423 = arith.truncf %422 : vector<2x32x64xf32> to vector<2x32x64xbf16>
    %424 = vector.extract_strided_slice %420 {offsets = [0, 64], sizes = [64, 64], strides = [1, 1]} : vector<64x192xf32> to vector<64x64xf32>
    %425 = vector.shape_cast %424 : vector<64x64xf32> to vector<2x32x64xf32>
    %426 = arith.truncf %425 : vector<2x32x64xf32> to vector<2x32x64xbf16>
    %427 = vector.extract_strided_slice %420 {offsets = [0, 128], sizes = [64, 64], strides = [1, 1]} : vector<64x192xf32> to vector<64x64xf32>
    %428 = vector.shape_cast %427 : vector<64x64xf32> to vector<2x32x64xf32>
    %429 = arith.truncf %428 : vector<2x32x64xf32> to vector<2x32x64xbf16>
    %c2_156 = arith.constant 2 : index
    %c0_157 = arith.constant 0 : index
    %c0_158 = arith.constant 0 : index
    %430 = vector.load %arg6[%c2_156, %c0_157, %c0_158] : memref<4x64x64xbf16, #tpu.memory_space<vmem>>, vector<1x64x64xbf16>
    %431 = vector.shape_cast %430 : vector<1x64x64xbf16> to vector<64x64xbf16>
    %cst_159 = arith.constant 0.000000e+00 : f32
    %432 = vector.broadcast %cst_159 : f32 to vector<64x64xf32>
    %433 = vector.extract_strided_slice %423 {offsets = [0, 0, 0], sizes = [2, 32, 16], strides = [1, 1, 1]} : vector<2x32x64xbf16> to vector<2x32x16xbf16>
    %434 = vector.extract_strided_slice %426 {offsets = [0, 0, 0], sizes = [2, 32, 16], strides = [1, 1, 1]} : vector<2x32x64xbf16> to vector<2x32x16xbf16>
    "tpu.trace_start"() <{level = 10 : i32, message = "btd,bsd->bts"}> : () -> ()
    %cst_160 = arith.constant dense<0.000000e+00> : vector<2x32x32xf32>
    %435 = tpu.matmul %433, %434, %cst_160 {dimension_numbers = #tpu.dot_dimension_numbers<[2], [2], [1], [1], [0, 0, 0, 1, 1, 1], [0], [0]>} : vector<2x32x16xbf16>, vector<2x32x16xbf16>, vector<2x32x32xf32> -> vector<2x32x32xf32>
    "tpu.trace_stop"() : () -> ()
    %436 = vector.broadcast %22 : vector<1x32x32xf32> to vector<2x32x32xf32>
    %437 = arith.addf %435, %436 : vector<2x32x32xf32>
    %cst_161 = arith.constant dense<0xFF800000> : vector<2x32xf32>
    %438 = vector.multi_reduction <maximumf>, %437, %cst_161 [2] : vector<2x32x32xf32> to vector<2x32xf32>
    %439 = vector.shape_cast %438 : vector<2x32xf32> to vector<2x32x1xf32>
    %440 = vector.broadcast %439 : vector<2x32x1xf32> to vector<2x32x32xf32>
    %441 = arith.subf %437, %440 : vector<2x32x32xf32>
    %442 = math.exp %441 : vector<2x32x32xf32>
    %cst_162 = arith.constant dense<0.000000e+00> : vector<2x32xf32>
    %443 = vector.multi_reduction <add>, %442, %cst_162 [2] : vector<2x32x32xf32> to vector<2x32xf32>
    %444 = vector.shape_cast %443 : vector<2x32xf32> to vector<2x32x1xf32>
    %445 = tpu.reciprocal %444 {approx = true} : vector<2x32x1xf32> -> vector<2x32x1xf32>
    %446 = vector.broadcast %445 : vector<2x32x1xf32> to vector<2x32x32xf32>
    %447 = arith.mulf %442, %446 : vector<2x32x32xf32>
    %448 = arith.truncf %447 : vector<2x32x32xf32> to vector<2x32x32xbf16>
    %449 = vector.extract_strided_slice %429 {offsets = [0, 0, 0], sizes = [2, 32, 16], strides = [1, 1, 1]} : vector<2x32x64xbf16> to vector<2x32x16xbf16>
    "tpu.trace_start"() <{level = 10 : i32, message = "bts,bsd->btd"}> : () -> ()
    %cst_163 = arith.constant dense<0.000000e+00> : vector<2x32x16xf32>
    %450 = tpu.matmul %448, %449, %cst_163 {dimension_numbers = #tpu.dot_dimension_numbers<[2], [1], [1], [2], [0, 0, 0, 1, 1, 2], [0], [0]>} : vector<2x32x32xbf16>, vector<2x32x16xbf16>, vector<2x32x16xf32> -> vector<2x32x16xf32>
    "tpu.trace_stop"() : () -> ()
    %451 = vector.shape_cast %450 : vector<2x32x16xf32> to vector<64x16xf32>
    %452 = arith.truncf %451 : vector<64x16xf32> to vector<64x16xbf16>
    %453 = vector.extract_strided_slice %431 {offsets = [0, 0], sizes = [16, 64], strides = [1, 1]} : vector<64x64xbf16> to vector<16x64xbf16>
    %cst_164 = arith.constant dense<0.000000e+00> : vector<64x64xf32>
    %454 = tpu.matmul %452, %453, %cst_164 {dimension_numbers = #tpu.dot_dimension_numbers<[1], [0], [0], [1], [0, 0, 1, 1], [], []>} : vector<64x16xbf16>, vector<16x64xbf16>, vector<64x64xf32> -> vector<64x64xf32>
    %455 = arith.addf %432, %454 : vector<64x64xf32>
    %456 = vector.extract_strided_slice %423 {offsets = [0, 0, 16], sizes = [2, 32, 16], strides = [1, 1, 1]} : vector<2x32x64xbf16> to vector<2x32x16xbf16>
    %457 = vector.extract_strided_slice %426 {offsets = [0, 0, 16], sizes = [2, 32, 16], strides = [1, 1, 1]} : vector<2x32x64xbf16> to vector<2x32x16xbf16>
    "tpu.trace_start"() <{level = 10 : i32, message = "btd,bsd->bts"}> : () -> ()
    %cst_165 = arith.constant dense<0.000000e+00> : vector<2x32x32xf32>
    %458 = tpu.matmul %456, %457, %cst_165 {dimension_numbers = #tpu.dot_dimension_numbers<[2], [2], [1], [1], [0, 0, 0, 1, 1, 1], [0], [0]>} : vector<2x32x16xbf16>, vector<2x32x16xbf16>, vector<2x32x32xf32> -> vector<2x32x32xf32>
    "tpu.trace_stop"() : () -> ()
    %459 = vector.broadcast %22 : vector<1x32x32xf32> to vector<2x32x32xf32>
    %460 = arith.addf %458, %459 : vector<2x32x32xf32>
    %cst_166 = arith.constant dense<0xFF800000> : vector<2x32xf32>
    %461 = vector.multi_reduction <maximumf>, %460, %cst_166 [2] : vector<2x32x32xf32> to vector<2x32xf32>
    %462 = vector.shape_cast %461 : vector<2x32xf32> to vector<2x32x1xf32>
    %463 = vector.broadcast %462 : vector<2x32x1xf32> to vector<2x32x32xf32>
    %464 = arith.subf %460, %463 : vector<2x32x32xf32>
    %465 = math.exp %464 : vector<2x32x32xf32>
    %cst_167 = arith.constant dense<0.000000e+00> : vector<2x32xf32>
    %466 = vector.multi_reduction <add>, %465, %cst_167 [2] : vector<2x32x32xf32> to vector<2x32xf32>
    %467 = vector.shape_cast %466 : vector<2x32xf32> to vector<2x32x1xf32>
    %468 = tpu.reciprocal %467 {approx = true} : vector<2x32x1xf32> -> vector<2x32x1xf32>
    %469 = vector.broadcast %468 : vector<2x32x1xf32> to vector<2x32x32xf32>
    %470 = arith.mulf %465, %469 : vector<2x32x32xf32>
    %471 = arith.truncf %470 : vector<2x32x32xf32> to vector<2x32x32xbf16>
    %472 = vector.extract_strided_slice %429 {offsets = [0, 0, 16], sizes = [2, 32, 16], strides = [1, 1, 1]} : vector<2x32x64xbf16> to vector<2x32x16xbf16>
    "tpu.trace_start"() <{level = 10 : i32, message = "bts,bsd->btd"}> : () -> ()
    %cst_168 = arith.constant dense<0.000000e+00> : vector<2x32x16xf32>
    %473 = tpu.matmul %471, %472, %cst_168 {dimension_numbers = #tpu.dot_dimension_numbers<[2], [1], [1], [2], [0, 0, 0, 1, 1, 2], [0], [0]>} : vector<2x32x32xbf16>, vector<2x32x16xbf16>, vector<2x32x16xf32> -> vector<2x32x16xf32>
    "tpu.trace_stop"() : () -> ()
    %474 = vector.shape_cast %473 : vector<2x32x16xf32> to vector<64x16xf32>
    %475 = arith.truncf %474 : vector<64x16xf32> to vector<64x16xbf16>
    %476 = vector.extract_strided_slice %431 {offsets = [16, 0], sizes = [16, 64], strides = [1, 1]} : vector<64x64xbf16> to vector<16x64xbf16>
    %cst_169 = arith.constant dense<0.000000e+00> : vector<64x64xf32>
    %477 = tpu.matmul %475, %476, %cst_169 {dimension_numbers = #tpu.dot_dimension_numbers<[1], [0], [0], [1], [0, 0, 1, 1], [], []>} : vector<64x16xbf16>, vector<16x64xbf16>, vector<64x64xf32> -> vector<64x64xf32>
    %478 = arith.addf %455, %477 : vector<64x64xf32>
    %479 = vector.extract_strided_slice %423 {offsets = [0, 0, 32], sizes = [2, 32, 16], strides = [1, 1, 1]} : vector<2x32x64xbf16> to vector<2x32x16xbf16>
    %480 = vector.extract_strided_slice %426 {offsets = [0, 0, 32], sizes = [2, 32, 16], strides = [1, 1, 1]} : vector<2x32x64xbf16> to vector<2x32x16xbf16>
    "tpu.trace_start"() <{level = 10 : i32, message = "btd,bsd->bts"}> : () -> ()
    %cst_170 = arith.constant dense<0.000000e+00> : vector<2x32x32xf32>
    %481 = tpu.matmul %479, %480, %cst_170 {dimension_numbers = #tpu.dot_dimension_numbers<[2], [2], [1], [1], [0, 0, 0, 1, 1, 1], [0], [0]>} : vector<2x32x16xbf16>, vector<2x32x16xbf16>, vector<2x32x32xf32> -> vector<2x32x32xf32>
    "tpu.trace_stop"() : () -> ()
    %482 = vector.broadcast %22 : vector<1x32x32xf32> to vector<2x32x32xf32>
    %483 = arith.addf %481, %482 : vector<2x32x32xf32>
    %cst_171 = arith.constant dense<0xFF800000> : vector<2x32xf32>
    %484 = vector.multi_reduction <maximumf>, %483, %cst_171 [2] : vector<2x32x32xf32> to vector<2x32xf32>
    %485 = vector.shape_cast %484 : vector<2x32xf32> to vector<2x32x1xf32>
    %486 = vector.broadcast %485 : vector<2x32x1xf32> to vector<2x32x32xf32>
    %487 = arith.subf %483, %486 : vector<2x32x32xf32>
    %488 = math.exp %487 : vector<2x32x32xf32>
    %cst_172 = arith.constant dense<0.000000e+00> : vector<2x32xf32>
    %489 = vector.multi_reduction <add>, %488, %cst_172 [2] : vector<2x32x32xf32> to vector<2x32xf32>
    %490 = vector.shape_cast %489 : vector<2x32xf32> to vector<2x32x1xf32>
    %491 = tpu.reciprocal %490 {approx = true} : vector<2x32x1xf32> -> vector<2x32x1xf32>
    %492 = vector.broadcast %491 : vector<2x32x1xf32> to vector<2x32x32xf32>
    %493 = arith.mulf %488, %492 : vector<2x32x32xf32>
    %494 = arith.truncf %493 : vector<2x32x32xf32> to vector<2x32x32xbf16>
    %495 = vector.extract_strided_slice %429 {offsets = [0, 0, 32], sizes = [2, 32, 16], strides = [1, 1, 1]} : vector<2x32x64xbf16> to vector<2x32x16xbf16>
    "tpu.trace_start"() <{level = 10 : i32, message = "bts,bsd->btd"}> : () -> ()
    %cst_173 = arith.constant dense<0.000000e+00> : vector<2x32x16xf32>
    %496 = tpu.matmul %494, %495, %cst_173 {dimension_numbers = #tpu.dot_dimension_numbers<[2], [1], [1], [2], [0, 0, 0, 1, 1, 2], [0], [0]>} : vector<2x32x32xbf16>, vector<2x32x16xbf16>, vector<2x32x16xf32> -> vector<2x32x16xf32>
    "tpu.trace_stop"() : () -> ()
    %497 = vector.shape_cast %496 : vector<2x32x16xf32> to vector<64x16xf32>
    %498 = arith.truncf %497 : vector<64x16xf32> to vector<64x16xbf16>
    %499 = vector.extract_strided_slice %431 {offsets = [32, 0], sizes = [16, 64], strides = [1, 1]} : vector<64x64xbf16> to vector<16x64xbf16>
    %cst_174 = arith.constant dense<0.000000e+00> : vector<64x64xf32>
    %500 = tpu.matmul %498, %499, %cst_174 {dimension_numbers = #tpu.dot_dimension_numbers<[1], [0], [0], [1], [0, 0, 1, 1], [], []>} : vector<64x16xbf16>, vector<16x64xbf16>, vector<64x64xf32> -> vector<64x64xf32>
    %501 = arith.addf %478, %500 : vector<64x64xf32>
    %502 = vector.extract_strided_slice %423 {offsets = [0, 0, 48], sizes = [2, 32, 16], strides = [1, 1, 1]} : vector<2x32x64xbf16> to vector<2x32x16xbf16>
    %503 = vector.extract_strided_slice %426 {offsets = [0, 0, 48], sizes = [2, 32, 16], strides = [1, 1, 1]} : vector<2x32x64xbf16> to vector<2x32x16xbf16>
    "tpu.trace_start"() <{level = 10 : i32, message = "btd,bsd->bts"}> : () -> ()
    %cst_175 = arith.constant dense<0.000000e+00> : vector<2x32x32xf32>
    %504 = tpu.matmul %502, %503, %cst_175 {dimension_numbers = #tpu.dot_dimension_numbers<[2], [2], [1], [1], [0, 0, 0, 1, 1, 1], [0], [0]>} : vector<2x32x16xbf16>, vector<2x32x16xbf16>, vector<2x32x32xf32> -> vector<2x32x32xf32>
    "tpu.trace_stop"() : () -> ()
    %505 = vector.broadcast %22 : vector<1x32x32xf32> to vector<2x32x32xf32>
    %506 = arith.addf %504, %505 : vector<2x32x32xf32>
    %cst_176 = arith.constant dense<0xFF800000> : vector<2x32xf32>
    %507 = vector.multi_reduction <maximumf>, %506, %cst_176 [2] : vector<2x32x32xf32> to vector<2x32xf32>
    %508 = vector.shape_cast %507 : vector<2x32xf32> to vector<2x32x1xf32>
    %509 = vector.broadcast %508 : vector<2x32x1xf32> to vector<2x32x32xf32>
    %510 = arith.subf %506, %509 : vector<2x32x32xf32>
    %511 = math.exp %510 : vector<2x32x32xf32>
    %cst_177 = arith.constant dense<0.000000e+00> : vector<2x32xf32>
    %512 = vector.multi_reduction <add>, %511, %cst_177 [2] : vector<2x32x32xf32> to vector<2x32xf32>
    %513 = vector.shape_cast %512 : vector<2x32xf32> to vector<2x32x1xf32>
    %514 = tpu.reciprocal %513 {approx = true} : vector<2x32x1xf32> -> vector<2x32x1xf32>
    %515 = vector.broadcast %514 : vector<2x32x1xf32> to vector<2x32x32xf32>
    %516 = arith.mulf %511, %515 : vector<2x32x32xf32>
    %517 = arith.truncf %516 : vector<2x32x32xf32> to vector<2x32x32xbf16>
    %518 = vector.extract_strided_slice %429 {offsets = [0, 0, 48], sizes = [2, 32, 16], strides = [1, 1, 1]} : vector<2x32x64xbf16> to vector<2x32x16xbf16>
    "tpu.trace_start"() <{level = 10 : i32, message = "bts,bsd->btd"}> : () -> ()
    %cst_178 = arith.constant dense<0.000000e+00> : vector<2x32x16xf32>
    %519 = tpu.matmul %517, %518, %cst_178 {dimension_numbers = #tpu.dot_dimension_numbers<[2], [1], [1], [2], [0, 0, 0, 1, 1, 2], [0], [0]>} : vector<2x32x32xbf16>, vector<2x32x16xbf16>, vector<2x32x16xf32> -> vector<2x32x16xf32>
    "tpu.trace_stop"() : () -> ()
    %520 = vector.shape_cast %519 : vector<2x32x16xf32> to vector<64x16xf32>
    %521 = arith.truncf %520 : vector<64x16xf32> to vector<64x16xbf16>
    %522 = vector.extract_strided_slice %431 {offsets = [48, 0], sizes = [16, 64], strides = [1, 1]} : vector<64x64xbf16> to vector<16x64xbf16>
    %cst_179 = arith.constant dense<0.000000e+00> : vector<64x64xf32>
    %523 = tpu.matmul %521, %522, %cst_179 {dimension_numbers = #tpu.dot_dimension_numbers<[1], [0], [0], [1], [0, 0, 1, 1], [], []>} : vector<64x16xbf16>, vector<16x64xbf16>, vector<64x64xf32> -> vector<64x64xf32>
    %524 = arith.addf %501, %523 : vector<64x64xf32>
    %525 = arith.addf %390, %524 : vector<64x64xf32>
    %c2_180 = arith.constant 2 : index
    %c0_181 = arith.constant 0 : index
    %c0_182 = arith.constant 0 : index
    %526 = vector.load %arg7[%c2_180, %c0_181, %c0_182] : memref<4x1x64xf32, #tpu.memory_space<vmem>>, vector<1x1x64xf32>
    %527 = vector.shape_cast %526 : vector<1x1x64xf32> to vector<1x64xf32>
    %528 = vector.broadcast %527 : vector<1x64xf32> to vector<64x64xf32>
    %529 = arith.addf %525, %528 : vector<64x64xf32>
    %c5 = arith.constant 5 : index
    %c0_183 = arith.constant 0 : index
    %c0_184 = arith.constant 0 : index
    %530 = vector.load %arg3[%c5, %c0_183, %c0_184] : memref<9x1x64xf32, #tpu.memory_space<vmem>>, vector<1x1x64xf32>
    %531 = vector.shape_cast %530 : vector<1x1x64xf32> to vector<1x64xf32>
    %c5_185 = arith.constant 5 : index
    %c0_186 = arith.constant 0 : index
    %c0_187 = arith.constant 0 : index
    %532 = vector.load %arg4[%c5_185, %c0_186, %c0_187] : memref<9x1x64xf32, #tpu.memory_space<vmem>>, vector<1x1x64xf32>
    %533 = vector.shape_cast %532 : vector<1x1x64xf32> to vector<1x64xf32>
    %cst_188 = arith.constant dense<0.000000e+00> : vector<64xf32>
    %534 = vector.multi_reduction <add>, %529, %cst_188 [1] : vector<64x64xf32> to vector<64xf32>
    %535 = vector.shape_cast %534 : vector<64xf32> to vector<64x1xf32>
    %cst_189 = arith.constant 6.400000e+01 : f32
    %536 = vector.broadcast %cst_189 : f32 to vector<64x1xf32>
    %537 = arith.divf %535, %536 : vector<64x1xf32>
    %538 = vector.broadcast %537 : vector<64x1xf32> to vector<64x64xf32>
    %539 = arith.subf %529, %538 : vector<64x64xf32>
    %540 = arith.mulf %539, %539 : vector<64x64xf32>
    %cst_190 = arith.constant dense<0.000000e+00> : vector<64xf32>
    %541 = vector.multi_reduction <add>, %540, %cst_190 [1] : vector<64x64xf32> to vector<64xf32>
    %542 = vector.shape_cast %541 : vector<64xf32> to vector<64x1xf32>
    %cst_191 = arith.constant 6.400000e+01 : f32
    %543 = vector.broadcast %cst_191 : f32 to vector<64x1xf32>
    %544 = arith.divf %542, %543 : vector<64x1xf32>
    %545 = vector.broadcast %537 : vector<64x1xf32> to vector<64x64xf32>
    %546 = arith.subf %529, %545 : vector<64x64xf32>
    %cst_192 = arith.constant 9.99999974E-6 : f32
    %547 = vector.broadcast %cst_192 : f32 to vector<64x1xf32>
    %548 = arith.addf %544, %547 : vector<64x1xf32>
    %549 = math.rsqrt %548 : vector<64x1xf32>
    %550 = vector.broadcast %549 : vector<64x1xf32> to vector<64x64xf32>
    %551 = arith.mulf %546, %550 : vector<64x64xf32>
    %552 = vector.broadcast %531 : vector<1x64xf32> to vector<64x64xf32>
    %553 = arith.mulf %551, %552 : vector<64x64xf32>
    %554 = vector.broadcast %533 : vector<1x64xf32> to vector<64x64xf32>
    %555 = arith.addf %553, %554 : vector<64x64xf32>
    %556 = arith.truncf %555 : vector<64x64xf32> to vector<64x64xbf16>
    %c2_193 = arith.constant 2 : index
    %c0_194 = arith.constant 0 : index
    %c0_195 = arith.constant 0 : index
    %557 = vector.load %arg8[%c2_193, %c0_194, %c0_195] : memref<4x64x256xbf16, #tpu.memory_space<vmem>>, vector<1x64x256xbf16>
    %558 = vector.shape_cast %557 : vector<1x64x256xbf16> to vector<64x256xbf16>
    %cst_196 = arith.constant dense<0.000000e+00> : vector<64x256xf32>
    %559 = tpu.matmul %556, %558, %cst_196 {dimension_numbers = #tpu.dot_dimension_numbers<[1], [0], [0], [1], [0, 0, 1, 1], [], []>} : vector<64x64xbf16>, vector<64x256xbf16>, vector<64x256xf32> -> vector<64x256xf32>
    %c2_197 = arith.constant 2 : index
    %c0_198 = arith.constant 0 : index
    %c0_199 = arith.constant 0 : index
    %560 = vector.load %arg9[%c2_197, %c0_198, %c0_199] : memref<4x1x256xf32, #tpu.memory_space<vmem>>, vector<1x1x256xf32>
    %561 = vector.shape_cast %560 : vector<1x1x256xf32> to vector<1x256xf32>
    %562 = vector.broadcast %561 : vector<1x256xf32> to vector<64x256xf32>
    %563 = arith.addf %559, %562 : vector<64x256xf32>
    %cst_200 = arith.constant 0.000000e+00 : f32
    %564 = vector.broadcast %cst_200 : f32 to vector<64x256xf32>
    %565 = arith.maximumf %563, %564 : vector<64x256xf32>
    %566 = arith.truncf %565 : vector<64x256xf32> to vector<64x256xbf16>
    %c2_201 = arith.constant 2 : index
    %c0_202 = arith.constant 0 : index
    %c0_203 = arith.constant 0 : index
    %567 = vector.load %arg10[%c2_201, %c0_202, %c0_203] : memref<4x256x64xbf16, #tpu.memory_space<vmem>>, vector<1x256x64xbf16>
    %568 = vector.shape_cast %567 : vector<1x256x64xbf16> to vector<256x64xbf16>
    %cst_204 = arith.constant dense<0.000000e+00> : vector<64x64xf32>
    %569 = tpu.matmul %566, %568, %cst_204 {dimension_numbers = #tpu.dot_dimension_numbers<[1], [0], [0], [1], [0, 0, 1, 1], [], []>} : vector<64x256xbf16>, vector<256x64xbf16>, vector<64x64xf32> -> vector<64x64xf32>
    %c2_205 = arith.constant 2 : index
    %c0_206 = arith.constant 0 : index
    %c0_207 = arith.constant 0 : index
    %570 = vector.load %arg11[%c2_205, %c0_206, %c0_207] : memref<4x1x64xf32, #tpu.memory_space<vmem>>, vector<1x1x64xf32>
    %571 = vector.shape_cast %570 : vector<1x1x64xf32> to vector<1x64xf32>
    %572 = vector.broadcast %571 : vector<1x64xf32> to vector<64x64xf32>
    %573 = arith.addf %569, %572 : vector<64x64xf32>
    %574 = arith.addf %529, %573 : vector<64x64xf32>
    %c6 = arith.constant 6 : index
    %c0_208 = arith.constant 0 : index
    %c0_209 = arith.constant 0 : index
    %575 = vector.load %arg3[%c6, %c0_208, %c0_209] : memref<9x1x64xf32, #tpu.memory_space<vmem>>, vector<1x1x64xf32>
    %576 = vector.shape_cast %575 : vector<1x1x64xf32> to vector<1x64xf32>
    %c6_210 = arith.constant 6 : index
    %c0_211 = arith.constant 0 : index
    %c0_212 = arith.constant 0 : index
    %577 = vector.load %arg4[%c6_210, %c0_211, %c0_212] : memref<9x1x64xf32, #tpu.memory_space<vmem>>, vector<1x1x64xf32>
    %578 = vector.shape_cast %577 : vector<1x1x64xf32> to vector<1x64xf32>
    %cst_213 = arith.constant dense<0.000000e+00> : vector<64xf32>
    %579 = vector.multi_reduction <add>, %574, %cst_213 [1] : vector<64x64xf32> to vector<64xf32>
    %580 = vector.shape_cast %579 : vector<64xf32> to vector<64x1xf32>
    %cst_214 = arith.constant 6.400000e+01 : f32
    %581 = vector.broadcast %cst_214 : f32 to vector<64x1xf32>
    %582 = arith.divf %580, %581 : vector<64x1xf32>
    %583 = vector.broadcast %582 : vector<64x1xf32> to vector<64x64xf32>
    %584 = arith.subf %574, %583 : vector<64x64xf32>
    %585 = arith.mulf %584, %584 : vector<64x64xf32>
    %cst_215 = arith.constant dense<0.000000e+00> : vector<64xf32>
    %586 = vector.multi_reduction <add>, %585, %cst_215 [1] : vector<64x64xf32> to vector<64xf32>
    %587 = vector.shape_cast %586 : vector<64xf32> to vector<64x1xf32>
    %cst_216 = arith.constant 6.400000e+01 : f32
    %588 = vector.broadcast %cst_216 : f32 to vector<64x1xf32>
    %589 = arith.divf %587, %588 : vector<64x1xf32>
    %590 = vector.broadcast %582 : vector<64x1xf32> to vector<64x64xf32>
    %591 = arith.subf %574, %590 : vector<64x64xf32>
    %cst_217 = arith.constant 9.99999974E-6 : f32
    %592 = vector.broadcast %cst_217 : f32 to vector<64x1xf32>
    %593 = arith.addf %589, %592 : vector<64x1xf32>
    %594 = math.rsqrt %593 : vector<64x1xf32>
    %595 = vector.broadcast %594 : vector<64x1xf32> to vector<64x64xf32>
    %596 = arith.mulf %591, %595 : vector<64x64xf32>
    %597 = vector.broadcast %576 : vector<1x64xf32> to vector<64x64xf32>
    %598 = arith.mulf %596, %597 : vector<64x64xf32>
    %599 = vector.broadcast %578 : vector<1x64xf32> to vector<64x64xf32>
    %600 = arith.addf %598, %599 : vector<64x64xf32>
    %601 = arith.truncf %600 : vector<64x64xf32> to vector<64x64xbf16>
    %c3_218 = arith.constant 3 : index
    %c0_219 = arith.constant 0 : index
    %c0_220 = arith.constant 0 : index
    %602 = vector.load %arg5[%c3_218, %c0_219, %c0_220] : memref<4x64x192xbf16, #tpu.memory_space<vmem>>, vector<1x64x192xbf16>
    %603 = vector.shape_cast %602 : vector<1x64x192xbf16> to vector<64x192xbf16>
    %cst_221 = arith.constant dense<0.000000e+00> : vector<64x192xf32>
    %604 = tpu.matmul %601, %603, %cst_221 {dimension_numbers = #tpu.dot_dimension_numbers<[1], [0], [0], [1], [0, 0, 1, 1], [], []>} : vector<64x64xbf16>, vector<64x192xbf16>, vector<64x192xf32> -> vector<64x192xf32>
    %605 = vector.extract_strided_slice %604 {offsets = [0, 0], sizes = [64, 64], strides = [1, 1]} : vector<64x192xf32> to vector<64x64xf32>
    %606 = vector.shape_cast %605 : vector<64x64xf32> to vector<2x32x64xf32>
    %607 = arith.truncf %606 : vector<2x32x64xf32> to vector<2x32x64xbf16>
    %608 = vector.extract_strided_slice %604 {offsets = [0, 64], sizes = [64, 64], strides = [1, 1]} : vector<64x192xf32> to vector<64x64xf32>
    %609 = vector.shape_cast %608 : vector<64x64xf32> to vector<2x32x64xf32>
    %610 = arith.truncf %609 : vector<2x32x64xf32> to vector<2x32x64xbf16>
    %611 = vector.extract_strided_slice %604 {offsets = [0, 128], sizes = [64, 64], strides = [1, 1]} : vector<64x192xf32> to vector<64x64xf32>
    %612 = vector.shape_cast %611 : vector<64x64xf32> to vector<2x32x64xf32>
    %613 = arith.truncf %612 : vector<2x32x64xf32> to vector<2x32x64xbf16>
    %c3_222 = arith.constant 3 : index
    %c0_223 = arith.constant 0 : index
    %c0_224 = arith.constant 0 : index
    %614 = vector.load %arg6[%c3_222, %c0_223, %c0_224] : memref<4x64x64xbf16, #tpu.memory_space<vmem>>, vector<1x64x64xbf16>
    %615 = vector.shape_cast %614 : vector<1x64x64xbf16> to vector<64x64xbf16>
    %cst_225 = arith.constant 0.000000e+00 : f32
    %616 = vector.broadcast %cst_225 : f32 to vector<64x64xf32>
    %617 = vector.extract_strided_slice %607 {offsets = [0, 0, 0], sizes = [2, 32, 16], strides = [1, 1, 1]} : vector<2x32x64xbf16> to vector<2x32x16xbf16>
    %618 = vector.extract_strided_slice %610 {offsets = [0, 0, 0], sizes = [2, 32, 16], strides = [1, 1, 1]} : vector<2x32x64xbf16> to vector<2x32x16xbf16>
    "tpu.trace_start"() <{level = 10 : i32, message = "btd,bsd->bts"}> : () -> ()
    %cst_226 = arith.constant dense<0.000000e+00> : vector<2x32x32xf32>
    %619 = tpu.matmul %617, %618, %cst_226 {dimension_numbers = #tpu.dot_dimension_numbers<[2], [2], [1], [1], [0, 0, 0, 1, 1, 1], [0], [0]>} : vector<2x32x16xbf16>, vector<2x32x16xbf16>, vector<2x32x32xf32> -> vector<2x32x32xf32>
    "tpu.trace_stop"() : () -> ()
    %620 = vector.broadcast %22 : vector<1x32x32xf32> to vector<2x32x32xf32>
    %621 = arith.addf %619, %620 : vector<2x32x32xf32>
    %cst_227 = arith.constant dense<0xFF800000> : vector<2x32xf32>
    %622 = vector.multi_reduction <maximumf>, %621, %cst_227 [2] : vector<2x32x32xf32> to vector<2x32xf32>
    %623 = vector.shape_cast %622 : vector<2x32xf32> to vector<2x32x1xf32>
    %624 = vector.broadcast %623 : vector<2x32x1xf32> to vector<2x32x32xf32>
    %625 = arith.subf %621, %624 : vector<2x32x32xf32>
    %626 = math.exp %625 : vector<2x32x32xf32>
    %cst_228 = arith.constant dense<0.000000e+00> : vector<2x32xf32>
    %627 = vector.multi_reduction <add>, %626, %cst_228 [2] : vector<2x32x32xf32> to vector<2x32xf32>
    %628 = vector.shape_cast %627 : vector<2x32xf32> to vector<2x32x1xf32>
    %629 = tpu.reciprocal %628 {approx = true} : vector<2x32x1xf32> -> vector<2x32x1xf32>
    %630 = vector.broadcast %629 : vector<2x32x1xf32> to vector<2x32x32xf32>
    %631 = arith.mulf %626, %630 : vector<2x32x32xf32>
    %632 = arith.truncf %631 : vector<2x32x32xf32> to vector<2x32x32xbf16>
    %633 = vector.extract_strided_slice %613 {offsets = [0, 0, 0], sizes = [2, 32, 16], strides = [1, 1, 1]} : vector<2x32x64xbf16> to vector<2x32x16xbf16>
    "tpu.trace_start"() <{level = 10 : i32, message = "bts,bsd->btd"}> : () -> ()
    %cst_229 = arith.constant dense<0.000000e+00> : vector<2x32x16xf32>
    %634 = tpu.matmul %632, %633, %cst_229 {dimension_numbers = #tpu.dot_dimension_numbers<[2], [1], [1], [2], [0, 0, 0, 1, 1, 2], [0], [0]>} : vector<2x32x32xbf16>, vector<2x32x16xbf16>, vector<2x32x16xf32> -> vector<2x32x16xf32>
    "tpu.trace_stop"() : () -> ()
    %635 = vector.shape_cast %634 : vector<2x32x16xf32> to vector<64x16xf32>
    %636 = arith.truncf %635 : vector<64x16xf32> to vector<64x16xbf16>
    %637 = vector.extract_strided_slice %615 {offsets = [0, 0], sizes = [16, 64], strides = [1, 1]} : vector<64x64xbf16> to vector<16x64xbf16>
    %cst_230 = arith.constant dense<0.000000e+00> : vector<64x64xf32>
    %638 = tpu.matmul %636, %637, %cst_230 {dimension_numbers = #tpu.dot_dimension_numbers<[1], [0], [0], [1], [0, 0, 1, 1], [], []>} : vector<64x16xbf16>, vector<16x64xbf16>, vector<64x64xf32> -> vector<64x64xf32>
    %639 = arith.addf %616, %638 : vector<64x64xf32>
    %640 = vector.extract_strided_slice %607 {offsets = [0, 0, 16], sizes = [2, 32, 16], strides = [1, 1, 1]} : vector<2x32x64xbf16> to vector<2x32x16xbf16>
    %641 = vector.extract_strided_slice %610 {offsets = [0, 0, 16], sizes = [2, 32, 16], strides = [1, 1, 1]} : vector<2x32x64xbf16> to vector<2x32x16xbf16>
    "tpu.trace_start"() <{level = 10 : i32, message = "btd,bsd->bts"}> : () -> ()
    %cst_231 = arith.constant dense<0.000000e+00> : vector<2x32x32xf32>
    %642 = tpu.matmul %640, %641, %cst_231 {dimension_numbers = #tpu.dot_dimension_numbers<[2], [2], [1], [1], [0, 0, 0, 1, 1, 1], [0], [0]>} : vector<2x32x16xbf16>, vector<2x32x16xbf16>, vector<2x32x32xf32> -> vector<2x32x32xf32>
    "tpu.trace_stop"() : () -> ()
    %643 = vector.broadcast %22 : vector<1x32x32xf32> to vector<2x32x32xf32>
    %644 = arith.addf %642, %643 : vector<2x32x32xf32>
    %cst_232 = arith.constant dense<0xFF800000> : vector<2x32xf32>
    %645 = vector.multi_reduction <maximumf>, %644, %cst_232 [2] : vector<2x32x32xf32> to vector<2x32xf32>
    %646 = vector.shape_cast %645 : vector<2x32xf32> to vector<2x32x1xf32>
    %647 = vector.broadcast %646 : vector<2x32x1xf32> to vector<2x32x32xf32>
    %648 = arith.subf %644, %647 : vector<2x32x32xf32>
    %649 = math.exp %648 : vector<2x32x32xf32>
    %cst_233 = arith.constant dense<0.000000e+00> : vector<2x32xf32>
    %650 = vector.multi_reduction <add>, %649, %cst_233 [2] : vector<2x32x32xf32> to vector<2x32xf32>
    %651 = vector.shape_cast %650 : vector<2x32xf32> to vector<2x32x1xf32>
    %652 = tpu.reciprocal %651 {approx = true} : vector<2x32x1xf32> -> vector<2x32x1xf32>
    %653 = vector.broadcast %652 : vector<2x32x1xf32> to vector<2x32x32xf32>
    %654 = arith.mulf %649, %653 : vector<2x32x32xf32>
    %655 = arith.truncf %654 : vector<2x32x32xf32> to vector<2x32x32xbf16>
    %656 = vector.extract_strided_slice %613 {offsets = [0, 0, 16], sizes = [2, 32, 16], strides = [1, 1, 1]} : vector<2x32x64xbf16> to vector<2x32x16xbf16>
    "tpu.trace_start"() <{level = 10 : i32, message = "bts,bsd->btd"}> : () -> ()
    %cst_234 = arith.constant dense<0.000000e+00> : vector<2x32x16xf32>
    %657 = tpu.matmul %655, %656, %cst_234 {dimension_numbers = #tpu.dot_dimension_numbers<[2], [1], [1], [2], [0, 0, 0, 1, 1, 2], [0], [0]>} : vector<2x32x32xbf16>, vector<2x32x16xbf16>, vector<2x32x16xf32> -> vector<2x32x16xf32>
    "tpu.trace_stop"() : () -> ()
    %658 = vector.shape_cast %657 : vector<2x32x16xf32> to vector<64x16xf32>
    %659 = arith.truncf %658 : vector<64x16xf32> to vector<64x16xbf16>
    %660 = vector.extract_strided_slice %615 {offsets = [16, 0], sizes = [16, 64], strides = [1, 1]} : vector<64x64xbf16> to vector<16x64xbf16>
    %cst_235 = arith.constant dense<0.000000e+00> : vector<64x64xf32>
    %661 = tpu.matmul %659, %660, %cst_235 {dimension_numbers = #tpu.dot_dimension_numbers<[1], [0], [0], [1], [0, 0, 1, 1], [], []>} : vector<64x16xbf16>, vector<16x64xbf16>, vector<64x64xf32> -> vector<64x64xf32>
    %662 = arith.addf %639, %661 : vector<64x64xf32>
    %663 = vector.extract_strided_slice %607 {offsets = [0, 0, 32], sizes = [2, 32, 16], strides = [1, 1, 1]} : vector<2x32x64xbf16> to vector<2x32x16xbf16>
    %664 = vector.extract_strided_slice %610 {offsets = [0, 0, 32], sizes = [2, 32, 16], strides = [1, 1, 1]} : vector<2x32x64xbf16> to vector<2x32x16xbf16>
    "tpu.trace_start"() <{level = 10 : i32, message = "btd,bsd->bts"}> : () -> ()
    %cst_236 = arith.constant dense<0.000000e+00> : vector<2x32x32xf32>
    %665 = tpu.matmul %663, %664, %cst_236 {dimension_numbers = #tpu.dot_dimension_numbers<[2], [2], [1], [1], [0, 0, 0, 1, 1, 1], [0], [0]>} : vector<2x32x16xbf16>, vector<2x32x16xbf16>, vector<2x32x32xf32> -> vector<2x32x32xf32>
    "tpu.trace_stop"() : () -> ()
    %666 = vector.broadcast %22 : vector<1x32x32xf32> to vector<2x32x32xf32>
    %667 = arith.addf %665, %666 : vector<2x32x32xf32>
    %cst_237 = arith.constant dense<0xFF800000> : vector<2x32xf32>
    %668 = vector.multi_reduction <maximumf>, %667, %cst_237 [2] : vector<2x32x32xf32> to vector<2x32xf32>
    %669 = vector.shape_cast %668 : vector<2x32xf32> to vector<2x32x1xf32>
    %670 = vector.broadcast %669 : vector<2x32x1xf32> to vector<2x32x32xf32>
    %671 = arith.subf %667, %670 : vector<2x32x32xf32>
    %672 = math.exp %671 : vector<2x32x32xf32>
    %cst_238 = arith.constant dense<0.000000e+00> : vector<2x32xf32>
    %673 = vector.multi_reduction <add>, %672, %cst_238 [2] : vector<2x32x32xf32> to vector<2x32xf32>
    %674 = vector.shape_cast %673 : vector<2x32xf32> to vector<2x32x1xf32>
    %675 = tpu.reciprocal %674 {approx = true} : vector<2x32x1xf32> -> vector<2x32x1xf32>
    %676 = vector.broadcast %675 : vector<2x32x1xf32> to vector<2x32x32xf32>
    %677 = arith.mulf %672, %676 : vector<2x32x32xf32>
    %678 = arith.truncf %677 : vector<2x32x32xf32> to vector<2x32x32xbf16>
    %679 = vector.extract_strided_slice %613 {offsets = [0, 0, 32], sizes = [2, 32, 16], strides = [1, 1, 1]} : vector<2x32x64xbf16> to vector<2x32x16xbf16>
    "tpu.trace_start"() <{level = 10 : i32, message = "bts,bsd->btd"}> : () -> ()
    %cst_239 = arith.constant dense<0.000000e+00> : vector<2x32x16xf32>
    %680 = tpu.matmul %678, %679, %cst_239 {dimension_numbers = #tpu.dot_dimension_numbers<[2], [1], [1], [2], [0, 0, 0, 1, 1, 2], [0], [0]>} : vector<2x32x32xbf16>, vector<2x32x16xbf16>, vector<2x32x16xf32> -> vector<2x32x16xf32>
    "tpu.trace_stop"() : () -> ()
    %681 = vector.shape_cast %680 : vector<2x32x16xf32> to vector<64x16xf32>
    %682 = arith.truncf %681 : vector<64x16xf32> to vector<64x16xbf16>
    %683 = vector.extract_strided_slice %615 {offsets = [32, 0], sizes = [16, 64], strides = [1, 1]} : vector<64x64xbf16> to vector<16x64xbf16>
    %cst_240 = arith.constant dense<0.000000e+00> : vector<64x64xf32>
    %684 = tpu.matmul %682, %683, %cst_240 {dimension_numbers = #tpu.dot_dimension_numbers<[1], [0], [0], [1], [0, 0, 1, 1], [], []>} : vector<64x16xbf16>, vector<16x64xbf16>, vector<64x64xf32> -> vector<64x64xf32>
    %685 = arith.addf %662, %684 : vector<64x64xf32>
    %686 = vector.extract_strided_slice %607 {offsets = [0, 0, 48], sizes = [2, 32, 16], strides = [1, 1, 1]} : vector<2x32x64xbf16> to vector<2x32x16xbf16>
    %687 = vector.extract_strided_slice %610 {offsets = [0, 0, 48], sizes = [2, 32, 16], strides = [1, 1, 1]} : vector<2x32x64xbf16> to vector<2x32x16xbf16>
    "tpu.trace_start"() <{level = 10 : i32, message = "btd,bsd->bts"}> : () -> ()
    %cst_241 = arith.constant dense<0.000000e+00> : vector<2x32x32xf32>
    %688 = tpu.matmul %686, %687, %cst_241 {dimension_numbers = #tpu.dot_dimension_numbers<[2], [2], [1], [1], [0, 0, 0, 1, 1, 1], [0], [0]>} : vector<2x32x16xbf16>, vector<2x32x16xbf16>, vector<2x32x32xf32> -> vector<2x32x32xf32>
    "tpu.trace_stop"() : () -> ()
    %689 = vector.broadcast %22 : vector<1x32x32xf32> to vector<2x32x32xf32>
    %690 = arith.addf %688, %689 : vector<2x32x32xf32>
    %cst_242 = arith.constant dense<0xFF800000> : vector<2x32xf32>
    %691 = vector.multi_reduction <maximumf>, %690, %cst_242 [2] : vector<2x32x32xf32> to vector<2x32xf32>
    %692 = vector.shape_cast %691 : vector<2x32xf32> to vector<2x32x1xf32>
    %693 = vector.broadcast %692 : vector<2x32x1xf32> to vector<2x32x32xf32>
    %694 = arith.subf %690, %693 : vector<2x32x32xf32>
    %695 = math.exp %694 : vector<2x32x32xf32>
    %cst_243 = arith.constant dense<0.000000e+00> : vector<2x32xf32>
    %696 = vector.multi_reduction <add>, %695, %cst_243 [2] : vector<2x32x32xf32> to vector<2x32xf32>
    %697 = vector.shape_cast %696 : vector<2x32xf32> to vector<2x32x1xf32>
    %698 = tpu.reciprocal %697 {approx = true} : vector<2x32x1xf32> -> vector<2x32x1xf32>
    %699 = vector.broadcast %698 : vector<2x32x1xf32> to vector<2x32x32xf32>
    %700 = arith.mulf %695, %699 : vector<2x32x32xf32>
    %701 = arith.truncf %700 : vector<2x32x32xf32> to vector<2x32x32xbf16>
    %702 = vector.extract_strided_slice %613 {offsets = [0, 0, 48], sizes = [2, 32, 16], strides = [1, 1, 1]} : vector<2x32x64xbf16> to vector<2x32x16xbf16>
    "tpu.trace_start"() <{level = 10 : i32, message = "bts,bsd->btd"}> : () -> ()
    %cst_244 = arith.constant dense<0.000000e+00> : vector<2x32x16xf32>
    %703 = tpu.matmul %701, %702, %cst_244 {dimension_numbers = #tpu.dot_dimension_numbers<[2], [1], [1], [2], [0, 0, 0, 1, 1, 2], [0], [0]>} : vector<2x32x32xbf16>, vector<2x32x16xbf16>, vector<2x32x16xf32> -> vector<2x32x16xf32>
    "tpu.trace_stop"() : () -> ()
    %704 = vector.shape_cast %703 : vector<2x32x16xf32> to vector<64x16xf32>
    %705 = arith.truncf %704 : vector<64x16xf32> to vector<64x16xbf16>
    %706 = vector.extract_strided_slice %615 {offsets = [48, 0], sizes = [16, 64], strides = [1, 1]} : vector<64x64xbf16> to vector<16x64xbf16>
    %cst_245 = arith.constant dense<0.000000e+00> : vector<64x64xf32>
    %707 = tpu.matmul %705, %706, %cst_245 {dimension_numbers = #tpu.dot_dimension_numbers<[1], [0], [0], [1], [0, 0, 1, 1], [], []>} : vector<64x16xbf16>, vector<16x64xbf16>, vector<64x64xf32> -> vector<64x64xf32>
    %708 = arith.addf %685, %707 : vector<64x64xf32>
    %709 = arith.addf %574, %708 : vector<64x64xf32>
    %c3_246 = arith.constant 3 : index
    %c0_247 = arith.constant 0 : index
    %c0_248 = arith.constant 0 : index
    %710 = vector.load %arg7[%c3_246, %c0_247, %c0_248] : memref<4x1x64xf32, #tpu.memory_space<vmem>>, vector<1x1x64xf32>
    %711 = vector.shape_cast %710 : vector<1x1x64xf32> to vector<1x64xf32>
    %712 = vector.broadcast %711 : vector<1x64xf32> to vector<64x64xf32>
    %713 = arith.addf %709, %712 : vector<64x64xf32>
    %c7 = arith.constant 7 : index
    %c0_249 = arith.constant 0 : index
    %c0_250 = arith.constant 0 : index
    %714 = vector.load %arg3[%c7, %c0_249, %c0_250] : memref<9x1x64xf32, #tpu.memory_space<vmem>>, vector<1x1x64xf32>
    %715 = vector.shape_cast %714 : vector<1x1x64xf32> to vector<1x64xf32>
    %c7_251 = arith.constant 7 : index
    %c0_252 = arith.constant 0 : index
    %c0_253 = arith.constant 0 : index
    %716 = vector.load %arg4[%c7_251, %c0_252, %c0_253] : memref<9x1x64xf32, #tpu.memory_space<vmem>>, vector<1x1x64xf32>
    %717 = vector.shape_cast %716 : vector<1x1x64xf32> to vector<1x64xf32>
    %cst_254 = arith.constant dense<0.000000e+00> : vector<64xf32>
    %718 = vector.multi_reduction <add>, %713, %cst_254 [1] : vector<64x64xf32> to vector<64xf32>
    %719 = vector.shape_cast %718 : vector<64xf32> to vector<64x1xf32>
    %cst_255 = arith.constant 6.400000e+01 : f32
    %720 = vector.broadcast %cst_255 : f32 to vector<64x1xf32>
    %721 = arith.divf %719, %720 : vector<64x1xf32>
    %722 = vector.broadcast %721 : vector<64x1xf32> to vector<64x64xf32>
    %723 = arith.subf %713, %722 : vector<64x64xf32>
    %724 = arith.mulf %723, %723 : vector<64x64xf32>
    %cst_256 = arith.constant dense<0.000000e+00> : vector<64xf32>
    %725 = vector.multi_reduction <add>, %724, %cst_256 [1] : vector<64x64xf32> to vector<64xf32>
    %726 = vector.shape_cast %725 : vector<64xf32> to vector<64x1xf32>
    %cst_257 = arith.constant 6.400000e+01 : f32
    %727 = vector.broadcast %cst_257 : f32 to vector<64x1xf32>
    %728 = arith.divf %726, %727 : vector<64x1xf32>
    %729 = vector.broadcast %721 : vector<64x1xf32> to vector<64x64xf32>
    %730 = arith.subf %713, %729 : vector<64x64xf32>
    %cst_258 = arith.constant 9.99999974E-6 : f32
    %731 = vector.broadcast %cst_258 : f32 to vector<64x1xf32>
    %732 = arith.addf %728, %731 : vector<64x1xf32>
    %733 = math.rsqrt %732 : vector<64x1xf32>
    %734 = vector.broadcast %733 : vector<64x1xf32> to vector<64x64xf32>
    %735 = arith.mulf %730, %734 : vector<64x64xf32>
    %736 = vector.broadcast %715 : vector<1x64xf32> to vector<64x64xf32>
    %737 = arith.mulf %735, %736 : vector<64x64xf32>
    %738 = vector.broadcast %717 : vector<1x64xf32> to vector<64x64xf32>
    %739 = arith.addf %737, %738 : vector<64x64xf32>
    %740 = arith.truncf %739 : vector<64x64xf32> to vector<64x64xbf16>
    %c3_259 = arith.constant 3 : index
    %c0_260 = arith.constant 0 : index
    %c0_261 = arith.constant 0 : index
    %741 = vector.load %arg8[%c3_259, %c0_260, %c0_261] : memref<4x64x256xbf16, #tpu.memory_space<vmem>>, vector<1x64x256xbf16>
    %742 = vector.shape_cast %741 : vector<1x64x256xbf16> to vector<64x256xbf16>
    %cst_262 = arith.constant dense<0.000000e+00> : vector<64x256xf32>
    %743 = tpu.matmul %740, %742, %cst_262 {dimension_numbers = #tpu.dot_dimension_numbers<[1], [0], [0], [1], [0, 0, 1, 1], [], []>} : vector<64x64xbf16>, vector<64x256xbf16>, vector<64x256xf32> -> vector<64x256xf32>
    %c3_263 = arith.constant 3 : index
    %c0_264 = arith.constant 0 : index
    %c0_265 = arith.constant 0 : index
    %744 = vector.load %arg9[%c3_263, %c0_264, %c0_265] : memref<4x1x256xf32, #tpu.memory_space<vmem>>, vector<1x1x256xf32>
    %745 = vector.shape_cast %744 : vector<1x1x256xf32> to vector<1x256xf32>
    %746 = vector.broadcast %745 : vector<1x256xf32> to vector<64x256xf32>
    %747 = arith.addf %743, %746 : vector<64x256xf32>
    %cst_266 = arith.constant 0.000000e+00 : f32
    %748 = vector.broadcast %cst_266 : f32 to vector<64x256xf32>
    %749 = arith.maximumf %747, %748 : vector<64x256xf32>
    %750 = arith.truncf %749 : vector<64x256xf32> to vector<64x256xbf16>
    %c3_267 = arith.constant 3 : index
    %c0_268 = arith.constant 0 : index
    %c0_269 = arith.constant 0 : index
    %751 = vector.load %arg10[%c3_267, %c0_268, %c0_269] : memref<4x256x64xbf16, #tpu.memory_space<vmem>>, vector<1x256x64xbf16>
    %752 = vector.shape_cast %751 : vector<1x256x64xbf16> to vector<256x64xbf16>
    %cst_270 = arith.constant dense<0.000000e+00> : vector<64x64xf32>
    %753 = tpu.matmul %750, %752, %cst_270 {dimension_numbers = #tpu.dot_dimension_numbers<[1], [0], [0], [1], [0, 0, 1, 1], [], []>} : vector<64x256xbf16>, vector<256x64xbf16>, vector<64x64xf32> -> vector<64x64xf32>
    %c3_271 = arith.constant 3 : index
    %c0_272 = arith.constant 0 : index
    %c0_273 = arith.constant 0 : index
    %754 = vector.load %arg11[%c3_271, %c0_272, %c0_273] : memref<4x1x64xf32, #tpu.memory_space<vmem>>, vector<1x1x64xf32>
    %755 = vector.shape_cast %754 : vector<1x1x64xf32> to vector<1x64xf32>
    %756 = vector.broadcast %755 : vector<1x64xf32> to vector<64x64xf32>
    %757 = arith.addf %753, %756 : vector<64x64xf32>
    %758 = arith.addf %713, %757 : vector<64x64xf32>
    %c8 = arith.constant 8 : index
    %c0_274 = arith.constant 0 : index
    %c0_275 = arith.constant 0 : index
    %759 = vector.load %arg3[%c8, %c0_274, %c0_275] : memref<9x1x64xf32, #tpu.memory_space<vmem>>, vector<1x1x64xf32>
    %760 = vector.shape_cast %759 : vector<1x1x64xf32> to vector<1x64xf32>
    %c8_276 = arith.constant 8 : index
    %c0_277 = arith.constant 0 : index
    %c0_278 = arith.constant 0 : index
    %761 = vector.load %arg4[%c8_276, %c0_277, %c0_278] : memref<9x1x64xf32, #tpu.memory_space<vmem>>, vector<1x1x64xf32>
    %762 = vector.shape_cast %761 : vector<1x1x64xf32> to vector<1x64xf32>
    %cst_279 = arith.constant dense<0.000000e+00> : vector<64xf32>
    %763 = vector.multi_reduction <add>, %758, %cst_279 [1] : vector<64x64xf32> to vector<64xf32>
    %764 = vector.shape_cast %763 : vector<64xf32> to vector<64x1xf32>
    %cst_280 = arith.constant 6.400000e+01 : f32
    %765 = vector.broadcast %cst_280 : f32 to vector<64x1xf32>
    %766 = arith.divf %764, %765 : vector<64x1xf32>
    %767 = vector.broadcast %766 : vector<64x1xf32> to vector<64x64xf32>
    %768 = arith.subf %758, %767 : vector<64x64xf32>
    %769 = arith.mulf %768, %768 : vector<64x64xf32>
    %cst_281 = arith.constant dense<0.000000e+00> : vector<64xf32>
    %770 = vector.multi_reduction <add>, %769, %cst_281 [1] : vector<64x64xf32> to vector<64xf32>
    %771 = vector.shape_cast %770 : vector<64xf32> to vector<64x1xf32>
    %cst_282 = arith.constant 6.400000e+01 : f32
    %772 = vector.broadcast %cst_282 : f32 to vector<64x1xf32>
    %773 = arith.divf %771, %772 : vector<64x1xf32>
    %774 = vector.broadcast %766 : vector<64x1xf32> to vector<64x64xf32>
    %775 = arith.subf %758, %774 : vector<64x64xf32>
    %cst_283 = arith.constant 9.99999974E-6 : f32
    %776 = vector.broadcast %cst_283 : f32 to vector<64x1xf32>
    %777 = arith.addf %773, %776 : vector<64x1xf32>
    %778 = math.rsqrt %777 : vector<64x1xf32>
    %779 = vector.broadcast %778 : vector<64x1xf32> to vector<64x64xf32>
    %780 = arith.mulf %775, %779 : vector<64x64xf32>
    %781 = vector.broadcast %760 : vector<1x64xf32> to vector<64x64xf32>
    %782 = arith.mulf %780, %781 : vector<64x64xf32>
    %783 = vector.broadcast %762 : vector<1x64xf32> to vector<64x64xf32>
    %784 = arith.addf %782, %783 : vector<64x64xf32>
    %785 = arith.truncf %784 : vector<64x64xf32> to vector<64x64xbf16>
    %c0_284 = arith.constant 0 : index
    %c0_285 = arith.constant 0 : index
    %786 = vector.load %arg12[%c0_284, %c0_285] : memref<64x128xbf16, #tpu.memory_space<vmem>>, vector<64x128xbf16>
    %cst_286 = arith.constant dense<0.000000e+00> : vector<64x128xf32>
    %787 = tpu.matmul %785, %786, %cst_286 {dimension_numbers = #tpu.dot_dimension_numbers<[1], [0], [0], [1], [0, 0, 1, 1], [], []>} : vector<64x64xbf16>, vector<64x128xbf16>, vector<64x128xf32> -> vector<64x128xf32>
    %c0_287 = arith.constant 0 : index
    %c0_288 = arith.constant 0 : index
    %788 = vector.load %arg13[%c0_287, %c0_288] : memref<1x128xf32, #tpu.memory_space<vmem>>, vector<1x128xf32>
    %789 = vector.broadcast %788 : vector<1x128xf32> to vector<64x128xf32>
    %790 = arith.addf %787, %789 : vector<64x128xf32>
    %c0_289 = arith.constant 0 : index
    %c0_290 = arith.constant 0 : index
    %791 = vector.load %arg14[%c0_289, %c0_290] : memref<64x128xf32, #tpu.memory_space<vmem>>, vector<64x128xf32>
    tpu.vector_store %arg14[%c0_289, %c0_290], %790 {strides = array<i32>} : memref<64x128xf32, #tpu.memory_space<vmem>>, vector<64x128xf32>,
    return
  }
}

</mosaic_0001>

<llo_original>
// kernel: _lambda_.1
$region0: #{_lambda_.1}
  #allocation0 [shape = 'u32[]', space=smem, size = 0x4, offset = 0x4, fixed_abs, tag = 'smem constant byte address 0x4 - core index']
  #allocation1 [shape = 'u32[72,128]{1,0:T(1,128)}', space=vmem, size = 0x9000, scoped, tag = 'internal scratch']
  %s0 = inlined_call_operand.vmem [shape: s32[64,1], index: 0, kind: input, shape index: {}]
  %s1 = inlined_call_operand.vmem [shape: bf16[128,64], index: 1, kind: input, shape index: {}]
  %s2 = inlined_call_operand.vmem [shape: f32[32,64], index: 2, kind: input, shape index: {}]
  %s3 = inlined_call_operand.vmem [shape: f32[9,1,64], index: 3, kind: input, shape index: {}]
  %s4 = inlined_call_operand.vmem [shape: f32[9,1,64], index: 4, kind: input, shape index: {}]
  %s5 = inlined_call_operand.vmem [shape: bf16[4,64,192], index: 5, kind: input, shape index: {}]
  %s6 = inlined_call_operand.vmem [shape: bf16[4,64,64], index: 6, kind: input, shape index: {}]
  %s7 = inlined_call_operand.vmem [shape: f32[4,1,64], index: 7, kind: input, shape index: {}]
  %s8 = inlined_call_operand.vmem [shape: bf16[4,64,256], index: 8, kind: input, shape index: {}]
  %s9 = inlined_call_operand.vmem [shape: f32[4,1,256], index: 9, kind: input, shape index: {}]
  %s10 = inlined_call_operand.vmem [shape: bf16[4,256,64], index: 10, kind: input, shape index: {}]
  %s11 = inlined_call_operand.vmem [shape: f32[4,1,64], index: 11, kind: input, shape index: {}]
  %s12 = inlined_call_operand.vmem [shape: bf16[64,128], index: 12, kind: input, shape index: {}]
  %s13 = inlined_call_operand.vmem [shape: f32[1,128], index: 13, kind: input, shape index: {}]
  %s14 = inlined_call_operand.hbm [shape: f32[64,128], index: 14, kind: output, shape index: {}]
  %s15 = sld [smem:[#allocation0]]
  $region66: #{_lambda_.1} parent=0
    _
  %s17 = ssub.s32 1, %s15
  %s18 = scalar_select 0, %s17, %s15
  $region1: #{_lambda_.1} parent=0
    #allocation2 [shape = 'u8[32768]{0}', space=vmem, size = 0x8000, scoped, tag = 'output window, operand 0, single buffered']
    #allocation3 [shape = 's32[1]{0}', space=sflag, size = 0x4, scoped, tag = 'scoped memory for _lambda_.1']
    %19 = vsyncpa [#allocation3], 0
    // Predicated region
    $region2: #{_lambda_.1} parent=1 // pred_check
      _
    $region3: #{_lambda_.1} parent=1 // pred_check_branch
      %21 = sbr.rel (0) target = $region5
    $region4: #{_lambda_.1} parent=1 // pred_region
      _
    $region5: #{_lambda_.1} parent=1 // pred_fallthru
      _
    // Predicated region
    $region6: #{_lambda_.1} parent=1 // pred_check
      _
    $region7: #{_lambda_.1} parent=1 // pred_check_branch
      %23 = sbr.rel (0) target = $region9
    $region8: #{_lambda_.1} parent=1 // pred_region
      _
    $region9: #{_lambda_.1} parent=1 // pred_fallthru
      _
    // Predicated region
    $region10: #{_lambda_.1} parent=1 // pred_check
      _
    $region11: #{_lambda_.1} parent=1 // pred_check_branch
      %25 = sbr.rel (0) target = $region13
    $region12: #{_lambda_.1} parent=1 // pred_region
      _
    $region13: #{_lambda_.1} parent=1 // pred_fallthru
      _
    // Predicated region
    $region14: #{_lambda_.1} parent=1 // pred_check
      _
    $region15: #{_lambda_.1} parent=1 // pred_check_branch
      %27 = sbr.rel (0) target = $region17
    $region16: #{_lambda_.1} parent=1 // pred_region
      _
    $region17: #{_lambda_.1} parent=1 // pred_fallthru
      _
    // Predicated region
    $region18: #{_lambda_.1} parent=1 // pred_check
      _
    $region19: #{_lambda_.1} parent=1 // pred_check_branch
      %29 = sbr.rel (0) target = $region21
    $region20: #{_lambda_.1} parent=1 // pred_region
      _
    $region21: #{_lambda_.1} parent=1 // pred_fallthru
      _
    // Predicated region
    $region22: #{_lambda_.1} parent=1 // pred_check
      _
    $region23: #{_lambda_.1} parent=1 // pred_check_branch
      %31 = sbr.rel (0) target = $region25
    $region24: #{_lambda_.1} parent=1 // pred_region
      _
    $region25: #{_lambda_.1} parent=1 // pred_fallthru
      _
    // Predicated region
    $region26: #{_lambda_.1} parent=1 // pred_check
      _
    $region27: #{_lambda_.1} parent=1 // pred_check_branch
      %33 = sbr.rel (0) target = $region29
    $region28: #{_lambda_.1} parent=1 // pred_region
      _
    $region29: #{_lambda_.1} parent=1 // pred_fallthru
      _
    // Predicated region
    $region30: #{_lambda_.1} parent=1 // pred_check
      _
    $region31: #{_lambda_.1} parent=1 // pred_check_branch
      %35 = sbr.rel (0) target = $region33
    $region32: #{_lambda_.1} parent=1 // pred_region
      _
    $region33: #{_lambda_.1} parent=1 // pred_fallthru
      _
    // Predicated region
    $region34: #{_lambda_.1} parent=1 // pred_check
      _
    $region35: #{_lambda_.1} parent=1 // pred_check_branch
      %37 = sbr.rel (0) target = $region37
    $region36: #{_lambda_.1} parent=1 // pred_region
      _
    $region37: #{_lambda_.1} parent=1 // pred_fallthru
      _
    // Predicated region
    $region38: #{_lambda_.1} parent=1 // pred_check
      _
    $region39: #{_lambda_.1} parent=1 // pred_check_branch
      %39 = sbr.rel (0) target = $region41
    $region40: #{_lambda_.1} parent=1 // pred_region
      _
    $region41: #{_lambda_.1} parent=1 // pred_fallthru
      _
    // Predicated region
    $region42: #{_lambda_.1} parent=1 // pred_check
      _
    $region43: #{_lambda_.1} parent=1 // pred_check_branch
      %41 = sbr.rel (0) target = $region45
    $region44: #{_lambda_.1} parent=1 // pred_region
      _
    $region45: #{_lambda_.1} parent=1 // pred_fallthru
      _
    // Predicated region
    $region46: #{_lambda_.1} parent=1 // pred_check
      _
    $region47: #{_lambda_.1} parent=1 // pred_check_branch
      %43 = sbr.rel (0) target = $region49
    $region48: #{_lambda_.1} parent=1 // pred_region
      _
    $region49: #{_lambda_.1} parent=1 // pred_fallthru
      _
    // Predicated region
    $region50: #{_lambda_.1} parent=1 // pred_check
      _
    $region51: #{_lambda_.1} parent=1 // pred_check_branch
      %45 = sbr.rel (0) target = $region53
    $region52: #{_lambda_.1} parent=1 // pred_region
      _
    $region53: #{_lambda_.1} parent=1 // pred_fallthru
      _
    // Predicated region
    $region54: #{_lambda_.1} parent=1 // pred_check
      _
    $region55: #{_lambda_.1} parent=1 // pred_check_branch
      %47 = sbr.rel (0) target = $region57
    $region56: #{_lambda_.1} parent=1 // pred_region
      _
    $region57: #{_lambda_.1} parent=1 // pred_fallthru
      _
    %v49 = vld [vmem:[%s0] sm:$0xff]
    %v50 = vld [vmem:[%s0 + $0x8] sm:$0xff]
    %v51 = vld [vmem:[%s0 + $0x10] sm:$0xff]
    %v52 = vld [vmem:[%s0 + $0x18] sm:$0xff]
    %v53 = vld [vmem:[%s0 + $0x20] sm:$0xff]
    %v54 = vld [vmem:[%s0 + $0x28] sm:$0xff]
    %v55 = vld [vmem:[%s0 + $0x30] sm:$0xff]
    %v56 = vld [vmem:[%s0 + $0x38] sm:$0xff]
    %v57 = vlaneseq
    %v58 = vand.u32 %v57, 127
    %59 = vset.pattern.permute.xlu0 0
    %60 = vperm.xlu0 %59, %v49
    %v61 = vpop.permute.xlu0 %60
    %62 = vset.pattern.permute.xlu0 0
    %63 = vperm.xlu0 %62, %v50
    %v64 = vpop.permute.xlu0 %63
    %65 = vset.pattern.permute.xlu0 0
    %66 = vperm.xlu0 %65, %v51
    %v67 = vpop.permute.xlu0 %66
    %68 = vset.pattern.permute.xlu0 0
    %69 = vperm.xlu0 %68, %v52
    %v70 = vpop.permute.xlu0 %69
    %71 = vset.pattern.permute.xlu0 0
    %72 = vperm.xlu0 %71, %v53
    %v73 = vpop.permute.xlu0 %72
    %74 = vset.pattern.permute.xlu0 0
    %75 = vperm.xlu0 %74, %v54
    %v76 = vpop.permute.xlu0 %75
    %77 = vset.pattern.permute.xlu0 0
    %78 = vperm.xlu0 %77, %v55
    %v79 = vpop.permute.xlu0 %78
    %80 = vset.pattern.permute.xlu0 0
    %81 = vperm.xlu0 %80, %v56
    %v82 = vpop.permute.xlu0 %81
    %vm83 = vcmp.eq.s32.totalorder %v58, %v61
    %vm84 = vcmp.eq.s32.totalorder %v58, %v64
    %vm85 = vcmp.eq.s32.totalorder %v58, %v67
    %vm86 = vcmp.eq.s32.totalorder %v58, %v70
    %vm87 = vcmp.eq.s32.totalorder %v58, %v73
    %vm88 = vcmp.eq.s32.totalorder %v58, %v76
    %vm89 = vcmp.eq.s32.totalorder %v58, %v79
    %vm90 = vcmp.eq.s32.totalorder %v58, %v82
    %v91 = vsel %vm83, 1.0, 0.0
    %v92 = vsel %vm84, 1.0, 0.0
    %v93 = vsel %vm85, 1.0, 0.0
    %v94 = vsel %vm86, 1.0, 0.0
    %v95 = vsel %vm87, 1.0, 0.0
    %v96 = vsel %vm88, 1.0, 0.0
    %v97 = vsel %vm89, 1.0, 0.0
    %v98 = vsel %vm90, 1.0, 0.0
    %v99 = vpack.c.bf16 %v92, %v91
    %v100 = vpack.c.bf16 %v94, %v93
    %v101 = vpack.c.bf16 %v96, %v95
    %v102 = vpack.c.bf16 %v98, %v97
    %v103 = vld [vmem:[%s1] sm:$0xf]
    %v104 = vld [vmem:[%s1 + $0x4] sm:$0xf]
    %v105 = vld [vmem:[%s1 + $0x8] sm:$0xf]
    %v106 = vld [vmem:[%s1 + $0xc] sm:$0xf]
    %v107 = vld [vmem:[%s1 + $0x10] sm:$0xf]
    %v108 = vld [vmem:[%s1 + $0x14] sm:$0xf]
    %v109 = vld [vmem:[%s1 + $0x18] sm:$0xf]
    %v110 = vld [vmem:[%s1 + $0x1c] sm:$0xf]
    %v111 = vld [vmem:[%s1 + $0x20] sm:$0xf]
    %v112 = vld [vmem:[%s1 + $0x24] sm:$0xf]
    %v113 = vld [vmem:[%s1 + $0x28] sm:$0xf]
    %v114 = vld [vmem:[%s1 + $0x2c] sm:$0xf]
    %v115 = vld [vmem:[%s1 + $0x30] sm:$0xf]
    %v116 = vld [vmem:[%s1 + $0x34] sm:$0xf]
    %v117 = vld [vmem:[%s1 + $0x38] sm:$0xf]
    %v118 = vld [vmem:[%s1 + $0x3c] sm:$0xf]
    %v135 = vunpack.c.l.b16 %v103
    %v136 = vunpack.c.l.b16 %v104
    %v137 = vunpack.c.l.b16 %v105
    %v138 = vunpack.c.l.b16 %v106
    %v139 = vunpack.c.l.b16 %v107
    %v140 = vunpack.c.l.b16 %v108
    %v141 = vunpack.c.l.b16 %v109
    %v142 = vunpack.c.l.b16 %v110
    %v143 = vunpack.c.l.b16 %v111
    %v144 = vunpack.c.l.b16 %v112
    %v145 = vunpack.c.l.b16 %v113
    %v146 = vunpack.c.l.b16 %v114
    %v147 = vunpack.c.l.b16 %v115
    %v148 = vunpack.c.l.b16 %v116
    %v149 = vunpack.c.l.b16 %v117
    %v150 = vunpack.c.l.b16 %v118
    %v151 = vpack.c.b16 %v136, %v135
    %v152 = vpack.c.b16 %v138, %v137
    %v153 = vpack.c.b16 %v140, %v139
    %v154 = vpack.c.b16 %v142, %v141
    %v155 = vpack.c.b16 %v144, %v143
    %v156 = vpack.c.b16 %v146, %v145
    %v157 = vpack.c.b16 %v148, %v147
    %v158 = vpack.c.b16 %v150, %v149
    %167 = vmatpush.bf16.msra.mxu0 %v158
    %168 = vmatpush.bf16.msra.mxu0 %v157
    %169 = vmatpush.bf16.msra.mxu0 %v156
    %170 = vmatpush.bf16.msra.mxu0 %v155
    %171 = vmatpush.bf16.msra.mxu0 %v154
    %172 = vmatpush.bf16.msra.mxu0 %v153
    %173 = vmatpush.bf16.msra.mxu0 %v152
    %174 = vmatpush.bf16.msra.mxu0 %v151
    %175 = vmatmul.bf16.gmra.mxu0 %v99
    %v176 = vpop.f32.mrf.mxu0
    %v177 = vadd.f32 0.0, %v176
    %v178 = vpop.f32.mrf.mxu0
    %v179 = vadd.f32 0.0, %v178
    %180 = vmatmul.bf16.gmra.mxu0 %v100
    %v181 = vpop.f32.mrf.mxu0
    %v182 = vadd.f32 0.0, %v181
    %v183 = vpop.f32.mrf.mxu0
    %v184 = vadd.f32 0.0, %v183
    %185 = vmatmul.bf16.gmra.mxu0 %v101
    %v186 = vpop.f32.mrf.mxu0
    %v187 = vadd.f32 0.0, %v186
    %v188 = vpop.f32.mrf.mxu0
    %v189 = vadd.f32 0.0, %v188
    %190 = vmatmul.bf16.gmra.mxu0 %v102
    %v191 = vpop.f32.mrf.mxu0
    %v192 = vadd.f32 0.0, %v191
    %v193 = vpop.f32.mrf.mxu0
    %v194 = vadd.f32 0.0, %v193
    %195 = vdwg.mxu0
    %v196 = vld [vmem:[%s2] sm:$0xff]
    %v197 = vld [vmem:[%s2 + $0x8] sm:$0xff]
    %v198 = vld [vmem:[%s2 + $0x10] sm:$0xff]
    %v199 = vld [vmem:[%s2 + $0x18] sm:$0xff]
    %v200 = vadd.f32 %v177, %v196
    %v201 = vadd.f32 %v179, %v197
    %v202 = vadd.f32 %v182, %v198
    %v203 = vadd.f32 %v184, %v199
    %v204 = vadd.f32 %v187, %v196
    %v205 = vadd.f32 %v189, %v197
    %v206 = vadd.f32 %v192, %v198
    %v207 = vadd.f32 %v194, %v199
    %v208 = vlaneseq
    %v209 = vshrl.u32 %v208, 7
    %v210 = vadd.s32 %v209, 8
    %v211 = vadd.s32 %v209, 16
    %v212 = vadd.s32 %v209, 24
    %vm213 = vcmp.le.s32.totalorder %v58, %v209
    %vm214 = vcmp.le.s32.totalorder %v58, %v210
    %vm215 = vcmp.le.s32.totalorder %v58, %v211
    %vm216 = vcmp.le.s32.totalorder %v58, %v212
    %v217 = vsel %vm213, 0.0, -1e+30
    %v218 = vsel %vm214, 0.0, -1e+30
    %v219 = vsel %vm215, 0.0, -1e+30
    %v220 = vsel %vm216, 0.0, -1e+30
    %v221 = vld [vmem:[%s3] sm:$0x1]
    %v222 = vld [vmem:[%s4] sm:$0x1]
    %vm223 = vcmask 523264
    %v224 = vsel %vm223, %v200, 0.0
    %225 = vadd.xlane.f32.xlu0 %v224
    %v226 = vpop.xlane.xlu0 %225
    %v227 = vsel %vm223, %v201, 0.0
    %228 = vadd.xlane.f32.xlu0 %v227
    %v229 = vpop.xlane.xlu0 %228
    %v230 = vsel %vm223, %v202, 0.0
    %231 = vadd.xlane.f32.xlu0 %v230
    %v232 = vpop.xlane.xlu0 %231
    %v233 = vsel %vm223, %v203, 0.0
    %234 = vadd.xlane.f32.xlu0 %v233
    %v235 = vpop.xlane.xlu0 %234
    %v236 = vsel %vm223, %v204, 0.0
    %237 = vadd.xlane.f32.xlu0 %v236
    %v238 = vpop.xlane.xlu0 %237
    %v239 = vsel %vm223, %v205, 0.0
    %240 = vadd.xlane.f32.xlu0 %v239
    %v241 = vpop.xlane.xlu0 %240
    %v242 = vsel %vm223, %v206, 0.0
    %243 = vadd.xlane.f32.xlu0 %v242
    %v244 = vpop.xlane.xlu0 %243
    %v245 = vsel %vm223, %v207, 0.0
    %246 = vadd.xlane.f32.xlu0 %v245
    %v247 = vpop.xlane.xlu0 %246
    %v248 = vrcp.pop 64.0
    %v249 = vmul.f32 64.0, %v248
    %v250 = vsub.f32 1.0, %v249
    %v251 = vmul.f32 %v248, %v250
    %v252 = vadd.f32 %v248, %v251
    %vm253 = vweird.f32 %v248
    %v254 = vsel %vm253, %v248, %v252
    %v255 = vmul.f32 %v226, %v254
    %v256 = vmul.f32 %v229, %v254
    %v257 = vmul.f32 %v232, %v254
    %v258 = vmul.f32 %v235, %v254
    %v259 = vmul.f32 %v238, %v254
    %v260 = vmul.f32 %v241, %v254
    %v261 = vmul.f32 %v244, %v254
    %v262 = vmul.f32 %v247, %v254
    %v263 = vsub.f32 %v200, %v255
    %v264 = vsub.f32 %v201, %v256
    %v265 = vsub.f32 %v202, %v257
    %v266 = vsub.f32 %v203, %v258
    %v267 = vsub.f32 %v204, %v259
    %v268 = vsub.f32 %v205, %v260
    %v269 = vsub.f32 %v206, %v261
    %v270 = vsub.f32 %v207, %v262
    %v271 = vmul.f32 %v263, %v263
    %v272 = vmul.f32 %v264, %v264
    %v273 = vmul.f32 %v265, %v265
    %v274 = vmul.f32 %v266, %v266
    %v275 = vmul.f32 %v267, %v267
    %v276 = vmul.f32 %v268, %v268
    %v277 = vmul.f32 %v269, %v269
    %v278 = vmul.f32 %v270, %v270
    %v279 = vsel %vm223, %v271, 0.0
    %280 = vadd.xlane.f32.xlu0 %v279
    %v281 = vpop.xlane.xlu0 %280
    %v282 = vsel %vm223, %v272, 0.0
    %283 = vadd.xlane.f32.xlu0 %v282
    %v284 = vpop.xlane.xlu0 %283
    %v285 = vsel %vm223, %v273, 0.0
    %286 = vadd.xlane.f32.xlu0 %v285
    %v287 = vpop.xlane.xlu0 %286
    %v288 = vsel %vm223, %v274, 0.0
    %289 = vadd.xlane.f32.xlu0 %v288
    %v290 = vpop.xlane.xlu0 %289
    %v291 = vsel %vm223, %v275, 0.0
    %292 = vadd.xlane.f32.xlu0 %v291
    %v293 = vpop.xlane.xlu0 %292
    %v294 = vsel %vm223, %v276, 0.0
    %295 = vadd.xlane.f32.xlu0 %v294
    %v296 = vpop.xlane.xlu0 %295
    %v297 = vsel %vm223, %v277, 0.0
    %298 = vadd.xlane.f32.xlu0 %v297
    %v299 = vpop.xlane.xlu0 %298
    %v300 = vsel %vm223, %v278, 0.0
    %301 = vadd.xlane.f32.xlu0 %v300
    %v302 = vpop.xlane.xlu0 %301
    %v303 = vmul.f32 %v281, %v254
    %v304 = vmul.f32 %v284, %v254
    %v305 = vmul.f32 %v287, %v254
    %v306 = vmul.f32 %v290, %v254
    %v307 = vmul.f32 %v293, %v254
    %v308 = vmul.f32 %v296, %v254
    %v309 = vmul.f32 %v299, %v254
    %v310 = vmul.f32 %v302, %v254
    %v311 = vadd.f32 %v303, 1e-05
    %v312 = vadd.f32 %v304, 1e-05
    %v313 = vadd.f32 %v305, 1e-05
    %v314 = vadd.f32 %v306, 1e-05
    %v315 = vadd.f32 %v307, 1e-05
    %v316 = vadd.f32 %v308, 1e-05
    %v317 = vadd.f32 %v309, 1e-05
    %v318 = vadd.f32 %v310, 1e-05
    %v319 = vrsqrt.pop %v311
    %v320 = vmul.f32 %v319, %v311
    %v321 = vmul.f32 %v320, %v319
    %v322 = vmul.f32 0.5, %v321
    %v323 = vsub.f32 1.5, %v322
    %v324 = vmul.f32 %v319, %v323
    %vm325 = vweird.f32 %v311
    %vm326 = vweird.f32 %v319
    %vm327 = vmor %vm325, %vm326
    %v328 = vsel %vm327, %v319, %v324
    %v329 = vrsqrt.pop %v312
    %v330 = vmul.f32 %v329, %v312
    %v331 = vmul.f32 %v330, %v329
    %v332 = vmul.f32 0.5, %v331
    %v333 = vsub.f32 1.5, %v332
    %v334 = vmul.f32 %v329, %v333
    %vm335 = vweird.f32 %v312
    %vm336 = vweird.f32 %v329
    %vm337 = vmor %vm335, %vm336
    %v338 = vsel %vm337, %v329, %v334
    %v339 = vrsqrt.pop %v313
    %v340 = vmul.f32 %v339, %v313
    %v341 = vmul.f32 %v340, %v339
    %v342 = vmul.f32 0.5, %v341
    %v343 = vsub.f32 1.5, %v342
    %v344 = vmul.f32 %v339, %v343
    %vm345 = vweird.f32 %v313
    %vm346 = vweird.f32 %v339
    %vm347 = vmor %vm345, %vm346
    %v348 = vsel %vm347, %v339, %v344
    %v349 = vrsqrt.pop %v314
    %v350 = vmul.f32 %v349, %v314
    %v351 = vmul.f32 %v350, %v349
    %v352 = vmul.f32 0.5, %v351
    %v353 = vsub.f32 1.5, %v352
    %v354 = vmul.f32 %v349, %v353
    %vm355 = vweird.f32 %v314
    %vm356 = vweird.f32 %v349
    %vm357 = vmor %vm355, %vm356
    %v358 = vsel %vm357, %v349, %v354
    %v359 = vrsqrt.pop %v315
    %v360 = vmul.f32 %v359, %v315
    %v361 = vmul.f32 %v360, %v359
    %v362 = vmul.f32 0.5, %v361
    %v363 = vsub.f32 1.5, %v362
    %v364 = vmul.f32 %v359, %v363
    %vm365 = vweird.f32 %v315
    %vm366 = vweird.f32 %v359
    %vm367 = vmor %vm365, %vm366
    %v368 = vsel %vm367, %v359, %v364
    %v369 = vrsqrt.pop %v316
    %v370 = vmul.f32 %v369, %v316
    %v371 = vmul.f32 %v370, %v369
    %v372 = vmul.f32 0.5, %v371
    %v373 = vsub.f32 1.5, %v372
    %v374 = vmul.f32 %v369, %v373
    %vm375 = vweird.f32 %v316
    %vm376 = vweird.f32 %v369
    %vm377 = vmor %vm375, %vm376
    %v378 = vsel %vm377, %v369, %v374
    %v379 = vrsqrt.pop %v317
    %v380 = vmul.f32 %v379, %v317
    %v381 = vmul.f32 %v380, %v379
    %v382 = vmul.f32 0.5, %v381
    %v383 = vsub.f32 1.5, %v382
    %v384 = vmul.f32 %v379, %v383
    %vm385 = vweird.f32 %v317
    %vm386 = vweird.f32 %v379
    %vm387 = vmor %vm385, %vm386
    %v388 = vsel %vm387, %v379, %v384
    %v389 = vrsqrt.pop %v318
    %v390 = vmul.f32 %v389, %v318
    %v391 = vmul.f32 %v390, %v389
    %v392 = vmul.f32 0.5, %v391
    %v393 = vsub.f32 1.5, %v392
    %v394 = vmul.f32 %v389, %v393
    %vm395 = vweird.f32 %v318
    %vm396 = vweird.f32 %v389
    %vm397 = vmor %vm395, %vm396
    %v398 = vsel %vm397, %v389, %v394
    %v399 = vmul.f32 %v263, %v328
    %v400 = vmul.f32 %v264, %v338
    %v401 = vmul.f32 %v265, %v348
    %v402 = vmul.f32 %v266, %v358
    %v403 = vmul.f32 %v267, %v368
    %v404 = vmul.f32 %v268, %v378
    %v405 = vmul.f32 %v269, %v388
    %v406 = vmul.f32 %v270, %v398
    %v408 = vperm.slane %v221, 0
    %v410 = vmul.f32 %v399, %v408
    %v411 = vmul.f32 %v400, %v408
    %v412 = vmul.f32 %v401, %v408
    %v413 = vmul.f32 %v402, %v408
    %v414 = vmul.f32 %v403, %v408
    %v415 = vmul.f32 %v404, %v408
    %v416 = vmul.f32 %v405, %v408
    %v417 = vmul.f32 %v406, %v408
    %v419 = vperm.slane %v222, 0
    %v421 = vadd.f32 %v410, %v419
    %v422 = vadd.f32 %v411, %v419
    %v423 = vadd.f32 %v412, %v419
    %v424 = vadd.f32 %v413, %v419
    %v425 = vadd.f32 %v414, %v419
    %v426 = vadd.f32 %v415, %v419
    %v427 = vadd.f32 %v416, %v419
    %v428 = vadd.f32 %v417, %v419
    %v429 = vpack.c.bf16 %v422, %v421
    %v430 = vpack.c.bf16 %v424, %v423
    %v431 = vpack.c.bf16 %v426, %v425
    %v432 = vpack.c.bf16 %v428, %v427
    %v433 = vld [vmem:[%s5] sm:$0xff]
    %v434 = vld [vmem:[%s5 + $0x8] sm:$0xff]
    %v435 = vld [vmem:[%s5 + $0x10] sm:$0xff]
    %v436 = vld [vmem:[%s5 + $0x18] sm:$0xff]
    %v437 = vld [vmem:[%s5 + $0x20] sm:$0xff]
    %v438 = vld [vmem:[%s5 + $0x28] sm:$0xff]
    %v439 = vld [vmem:[%s5 + $0x30] sm:$0xff]
    %v440 = vld [vmem:[%s5 + $0x38] sm:$0xff]
    %v449 = vunpack.c.l.b16 %v433
    %v450 = vunpack.c.h.b16 %v433
    %v451 = vunpack.c.l.b16 %v434
    %v452 = vunpack.c.h.b16 %v434
    %v453 = vunpack.c.l.b16 %v435
    %v454 = vunpack.c.h.b16 %v435
    %v455 = vunpack.c.l.b16 %v436
    %v456 = vunpack.c.h.b16 %v436
    %v457 = vunpack.c.l.b16 %v437
    %v458 = vunpack.c.h.b16 %v437
    %v459 = vunpack.c.l.b16 %v438
    %v460 = vunpack.c.h.b16 %v438
    %v461 = vunpack.c.l.b16 %v439
    %v462 = vunpack.c.h.b16 %v439
    %v463 = vunpack.c.l.b16 %v440
    %v464 = vunpack.c.h.b16 %v440
    %v465 = vpack.c.b16 %v451, %v449
    %v466 = vpack.c.b16 %v452, %v450
    %v467 = vpack.c.b16 %v455, %v453
    %v468 = vpack.c.b16 %v456, %v454
    %v469 = vpack.c.b16 %v459, %v457
    %v470 = vpack.c.b16 %v460, %v458
    %v471 = vpack.c.b16 %v463, %v461
    %v472 = vpack.c.b16 %v464, %v462
    %v482 = vsel %vm223, %v429, 0
    %v485 = vsel %vm223, %v430, 0
    %v488 = vsel %vm223, %v431, 0
    %v491 = vsel %vm223, %v432, 0
    %493 = vmatpush.bf16.msra.mxu0 0
    %494 = vmatpush.bf16.msra.mxu0 0
    %495 = vmatpush.bf16.msra.mxu0 0
    %496 = vmatpush.bf16.msra.mxu0 0
    %497 = vmatpush.bf16.msra.mxu0 %v471
    %498 = vmatpush.bf16.msra.mxu0 %v469
    %499 = vmatpush.bf16.msra.mxu0 %v467
    %500 = vmatpush.bf16.msra.mxu0 %v465
    %501 = vmatmul.bf16.gmra.mxu0 %v482
    %v502 = vpop.f32.mrf.mxu0
    %v503 = vadd.f32 0.0, %v502
    %v504 = vpop.f32.mrf.mxu0
    %v505 = vadd.f32 0.0, %v504
    %506 = vmatmul.bf16.gmra.mxu0 %v485
    %v507 = vpop.f32.mrf.mxu0
    %v508 = vadd.f32 0.0, %v507
    %v509 = vpop.f32.mrf.mxu0
    %v510 = vadd.f32 0.0, %v509
    %511 = vmatmul.bf16.gmra.mxu0 %v488
    %v512 = vpop.f32.mrf.mxu0
    %v513 = vadd.f32 0.0, %v512
    %v514 = vpop.f32.mrf.mxu0
    %v515 = vadd.f32 0.0, %v514
    %516 = vmatmul.bf16.gmra.mxu0 %v491
    %v517 = vpop.f32.mrf.mxu0
    %v518 = vadd.f32 0.0, %v517
    %v519 = vpop.f32.mrf.mxu0
    %v520 = vadd.f32 0.0, %v519
    %521 = vdwg.mxu0
    %522 = vmatpush.bf16.msra.mxu0 0
    %523 = vmatpush.bf16.msra.mxu0 0
    %524 = vmatpush.bf16.msra.mxu0 0
    %525 = vmatpush.bf16.msra.mxu0 0
    %526 = vmatpush.bf16.msra.mxu0 %v472
    %527 = vmatpush.bf16.msra.mxu0 %v470
    %528 = vmatpush.bf16.msra.mxu0 %v468
    %529 = vmatpush.bf16.msra.mxu0 %v466
    %530 = vmatmul.bf16.gmra.mxu0 %v482
    %v531 = vpop.f32.mrf.mxu0
    %v532 = vadd.f32 0.0, %v531
    %v533 = vpop.f32.mrf.mxu0
    %v534 = vadd.f32 0.0, %v533
    %535 = vmatmul.bf16.gmra.mxu0 %v485
    %v536 = vpop.f32.mrf.mxu0
    %v537 = vadd.f32 0.0, %v536
    %v538 = vpop.f32.mrf.mxu0
    %v539 = vadd.f32 0.0, %v538
    %540 = vmatmul.bf16.gmra.mxu0 %v488
    %v541 = vpop.f32.mrf.mxu0
    %v542 = vadd.f32 0.0, %v541
    %v543 = vpop.f32.mrf.mxu0
    %v544 = vadd.f32 0.0, %v543
    %545 = vmatmul.bf16.gmra.mxu0 %v491
    %v546 = vpop.f32.mrf.mxu0
    %v547 = vadd.f32 0.0, %v546
    %v548 = vpop.f32.mrf.mxu0
    %v549 = vadd.f32 0.0, %v548
    %550 = vdwg.mxu0
    %v551 = vpack.c.bf16 %v503, %v503
    %v552 = vpack.c.bf16 %v505, %v505
    %v553 = vpack.c.bf16 %v508, %v508
    %v554 = vpack.c.bf16 %v510, %v510
    %v555 = vpack.c.bf16 %v513, %v513
    %v556 = vpack.c.bf16 %v515, %v515
    %v557 = vpack.c.bf16 %v518, %v518
    %v558 = vpack.c.bf16 %v520, %v520
    %v559 = vpack.c.bf16 %v532, %v532
    %v560 = vpack.c.bf16 %v534, %v534
    %v561 = vpack.c.bf16 %v537, %v537
    %v562 = vpack.c.bf16 %v539, %v539
    %v563 = vpack.c.bf16 %v542, %v542
    %v564 = vpack.c.bf16 %v544, %v544
    %v565 = vpack.c.bf16 %v547, %v547
    %v566 = vpack.c.bf16 %v549, %v549
    %v567 = vld [vmem:[%s6] sm:$0xf]
    %v568 = vld [vmem:[%s6 + $0x4] sm:$0xf]
    %v569 = vld [vmem:[%s6 + $0x8] sm:$0xf]
    %v570 = vld [vmem:[%s6 + $0xc] sm:$0xf]
    %v571 = vld [vmem:[%s6 + $0x10] sm:$0xf]
    %v572 = vld [vmem:[%s6 + $0x14] sm:$0xf]
    %v573 = vld [vmem:[%s6 + $0x18] sm:$0xf]
    %v574 = vld [vmem:[%s6 + $0x1c] sm:$0xf]
    %v579 = vunpack.c.l.b16 %v551
    %v580 = vunpack.c.l.b16 %v552
    %v581 = vunpack.c.l.b16 %v553
    %v582 = vunpack.c.l.b16 %v554
    %v583 = vpack.c.b16 %v580, %v579
    %v584 = vpack.c.b16 %v582, %v581
    %585 = vrot.lane.b32.xlu0 %v583, 64
    %v586 = vpop.permute.xlu0 %585
    %587 = vrot.lane.b32.xlu0 %v584, 64
    %v588 = vpop.permute.xlu0 %587
    %vm589 = vcmask 130048
    %v591 = vsel %vm589, %v583, 0
    %v594 = vsel %vm589, %v584, 0
    %v597 = vsel %vm589, %v586, 0
    %v600 = vsel %vm589, %v588, 0
    %602 = vmatpush.bf16.xpose.msra.mxu0 0
    %603 = vmatpush.bf16.xpose.msra.mxu0 0
    %604 = vmatpush.bf16.xpose.msra.mxu0 0
    %605 = vmatpush.bf16.xpose.msra.mxu0 0
    %606 = vmatpush.bf16.xpose.msra.mxu0 0
    %607 = vmatpush.bf16.xpose.msra.mxu0 0
    %608 = vmatpush.bf16.xpose.msra.mxu0 %v600
    %609 = vmatpush.bf16.xpose.msra.mxu0 %v597
    %610 = vmatmul.bf16.gmra.mxu0 %v591
    %v611 = vpop.f32.mrf.mxu0
    %v612 = vadd.f32 %v217, %v611
    %v613 = vpop.f32.mrf.mxu0
    %v614 = vadd.f32 %v218, %v613
    %615 = vmatmul.bf16.gmra.mxu0 %v594
    %v616 = vpop.f32.mrf.mxu0
    %v617 = vadd.f32 %v219, %v616
    %v618 = vpop.f32.mrf.mxu0
    %v619 = vadd.f32 %v220, %v618
    %620 = vdwg.mxu0
    %v625 = vunpack.c.l.b16 %v555
    %v626 = vunpack.c.l.b16 %v556
    %v627 = vunpack.c.l.b16 %v557
    %v628 = vunpack.c.l.b16 %v558
    %v629 = vpack.c.b16 %v626, %v625
    %v630 = vpack.c.b16 %v628, %v627
    %631 = vrot.lane.b32.xlu0 %v629, 64
    %v632 = vpop.permute.xlu0 %631
    %633 = vrot.lane.b32.xlu0 %v630, 64
    %v634 = vpop.permute.xlu0 %633
    %v636 = vsel %vm589, %v629, 0
    %v639 = vsel %vm589, %v630, 0
    %v642 = vsel %vm589, %v632, 0
    %v645 = vsel %vm589, %v634, 0
    %647 = vmatpush.bf16.xpose.msra.mxu0 0
    %648 = vmatpush.bf16.xpose.msra.mxu0 0
    %649 = vmatpush.bf16.xpose.msra.mxu0 0
    %650 = vmatpush.bf16.xpose.msra.mxu0 0
    %651 = vmatpush.bf16.xpose.msra.mxu0 0
    %652 = vmatpush.bf16.xpose.msra.mxu0 0
    %653 = vmatpush.bf16.xpose.msra.mxu0 %v645
    %654 = vmatpush.bf16.xpose.msra.mxu0 %v642
    %655 = vmatmul.bf16.gmra.mxu0 %v636
    %v656 = vpop.f32.mrf.mxu0
    %v657 = vadd.f32 %v217, %v656
    %v658 = vpop.f32.mrf.mxu0
    %v659 = vadd.f32 %v218, %v658
    %660 = vmatmul.bf16.gmra.mxu0 %v639
    %v661 = vpop.f32.mrf.mxu0
    %v662 = vadd.f32 %v219, %v661
    %v663 = vpop.f32.mrf.mxu0
    %v664 = vadd.f32 %v220, %v663
    %665 = vdwg.mxu0
    %vm666 = vcmask 261120
    %v667 = vsel %vm666, %v612, -inf
    %668 = vmax.xlane.f32.xlu0 %v667
    %v669 = vpop.xlane.xlu0 %668
    %v670 = vsel %vm666, %v614, -inf
    %671 = vmax.xlane.f32.xlu0 %v670
    %v672 = vpop.xlane.xlu0 %671
    %v673 = vsel %vm666, %v617, -inf
    %674 = vmax.xlane.f32.xlu0 %v673
    %v675 = vpop.xlane.xlu0 %674
    %v676 = vsel %vm666, %v619, -inf
    %677 = vmax.xlane.f32.xlu0 %v676
    %v678 = vpop.xlane.xlu0 %677
    %v679 = vsel %vm666, %v657, -inf
    %680 = vmax.xlane.f32.xlu0 %v679
    %v681 = vpop.xlane.xlu0 %680
    %v682 = vsel %vm666, %v659, -inf
    %683 = vmax.xlane.f32.xlu0 %v682
    %v684 = vpop.xlane.xlu0 %683
    %v685 = vsel %vm666, %v662, -inf
    %686 = vmax.xlane.f32.xlu0 %v685
    %v687 = vpop.xlane.xlu0 %686
    %v688 = vsel %vm666, %v664, -inf
    %689 = vmax.xlane.f32.xlu0 %v688
    %v690 = vpop.xlane.xlu0 %689
    %v691 = vsub.f32 %v612, %v669
    %v692 = vsub.f32 %v614, %v672
    %v693 = vsub.f32 %v617, %v675
    %v694 = vsub.f32 %v619, %v678
    %v695 = vsub.f32 %v657, %v681
    %v696 = vsub.f32 %v659, %v684
    %v697 = vsub.f32 %v662, %v687
    %v698 = vsub.f32 %v664, %v690
    %v699 = vmul.f32 %v691, 1.442695
    %v700 = vpow.pop %v699
    %v701 = vmul.f32 %v692, 1.442695
    %v702 = vpow.pop %v701
    %v703 = vmul.f32 %v693, 1.442695
    %v704 = vpow.pop %v703
    %v705 = vmul.f32 %v694, 1.442695
    %v706 = vpow.pop %v705
    %v707 = vmul.f32 %v695, 1.442695
    %v708 = vpow.pop %v707
    %v709 = vmul.f32 %v696, 1.442695
    %v710 = vpow.pop %v709
    %v711 = vmul.f32 %v697, 1.442695
    %v712 = vpow.pop %v711
    %v713 = vmul.f32 %v698, 1.442695
    %v714 = vpow.pop %v713
    %v715 = vsel %vm666, %v700, 0.0
    %716 = vadd.xlane.f32.xlu0 %v715
    %v717 = vpop.xlane.xlu0 %716
    %v718 = vsel %vm666, %v702, 0.0
    %719 = vadd.xlane.f32.xlu0 %v718
    %v720 = vpop.xlane.xlu0 %719
    %v721 = vsel %vm666, %v704, 0.0
    %722 = vadd.xlane.f32.xlu0 %v721
    %v723 = vpop.xlane.xlu0 %722
    %v724 = vsel %vm666, %v706, 0.0
    %725 = vadd.xlane.f32.xlu0 %v724
    %v726 = vpop.xlane.xlu0 %725
    %v727 = vsel %vm666, %v708, 0.0
    %728 = vadd.xlane.f32.xlu0 %v727
    %v729 = vpop.xlane.xlu0 %728
    %v730 = vsel %vm666, %v710, 0.0
    %731 = vadd.xlane.f32.xlu0 %v730
    %v732 = vpop.xlane.xlu0 %731
    %v733 = vsel %vm666, %v712, 0.0
    %734 = vadd.xlane.f32.xlu0 %v733
    %v735 = vpop.xlane.xlu0 %734
    %v736 = vsel %vm666, %v714, 0.0
    %737 = vadd.xlane.f32.xlu0 %v736
    %v738 = vpop.xlane.xlu0 %737
    %v739 = vrcp.pop %v717
    %v740 = vrcp.pop %v720
    %v741 = vrcp.pop %v723
    %v742 = vrcp.pop %v726
    %v743 = vrcp.pop %v729
    %v744 = vrcp.pop %v732
    %v745 = vrcp.pop %v735
    %v746 = vrcp.pop %v738
    %v747 = vmul.f32 %v700, %v739
    %v748 = vmul.f32 %v702, %v740
    %v749 = vmul.f32 %v704, %v741
    %v750 = vmul.f32 %v706, %v742
    %v751 = vmul.f32 %v708, %v743
    %v752 = vmul.f32 %v710, %v744
    %v753 = vmul.f32 %v712, %v745
    %v754 = vmul.f32 %v714, %v746
    %v755 = vpack.c.bf16 %v747, %v747
    %v756 = vpack.c.bf16 %v748, %v748
    %v757 = vpack.c.bf16 %v749, %v749
    %v758 = vpack.c.bf16 %v750, %v750
    %v759 = vpack.c.bf16 %v751, %v751
    %v760 = vpack.c.bf16 %v752, %v752
    %v761 = vpack.c.bf16 %v753, %v753
    %v762 = vpack.c.bf16 %v754, %v754
    %v767 = vunpack.c.l.b16 %v755
    %v768 = vunpack.c.l.b16 %v756
    %v769 = vunpack.c.l.b16 %v757
    %v770 = vunpack.c.l.b16 %v758
    %v771 = vpack.c.b16 %v768, %v767
    %v772 = vpack.c.b16 %v770, %v769
    %v777 = vunpack.c.l.b16 %v559
    %v778 = vunpack.c.l.b16 %v560
    %v779 = vunpack.c.l.b16 %v561
    %v780 = vunpack.c.l.b16 %v562
    %v781 = vpack.c.b16 %v778, %v777
    %v782 = vpack.c.b16 %v780, %v779
    %v786 = vsel %vm666, %v771, 0
    %v789 = vsel %vm666, %v772, 0
    %791 = vmatpush.bf16.msra.mxu0 0
    %792 = vmatpush.bf16.msra.mxu0 0
    %793 = vmatpush.bf16.msra.mxu0 0
    %794 = vmatpush.bf16.msra.mxu0 0
    %795 = vmatpush.bf16.msra.mxu0 0
    %796 = vmatpush.bf16.msra.mxu0 0
    %797 = vmatpush.bf16.msra.mxu0 %v782
    %798 = vmatpush.bf16.msra.mxu0 %v781
    %799 = vmatmul.bf16.gmra.mxu0 %v786
    %v800 = vpop.f32.mrf.mxu0
    %v801 = vadd.f32 0.0, %v800
    %v802 = vpop.f32.mrf.mxu0
    %v803 = vadd.f32 0.0, %v802
    %804 = vmatmul.bf16.gmra.mxu0 %v789
    %v805 = vpop.f32.mrf.mxu0
    %v806 = vadd.f32 0.0, %v805
    %v807 = vpop.f32.mrf.mxu0
    %v808 = vadd.f32 0.0, %v807
    %809 = vdwg.mxu0
    %v814 = vunpack.c.l.b16 %v759
    %v815 = vunpack.c.l.b16 %v760
    %v816 = vunpack.c.l.b16 %v761
    %v817 = vunpack.c.l.b16 %v762
    %v818 = vpack.c.b16 %v815, %v814
    %v819 = vpack.c.b16 %v817, %v816
    %v824 = vunpack.c.l.b16 %v563
    %v825 = vunpack.c.l.b16 %v564
    %v826 = vunpack.c.l.b16 %v565
    %v827 = vunpack.c.l.b16 %v566
    %v828 = vpack.c.b16 %v825, %v824
    %v829 = vpack.c.b16 %v827, %v826
    %v833 = vsel %vm666, %v818, 0
    %v836 = vsel %vm666, %v819, 0
    %838 = vmatpush.bf16.msra.mxu0 0
    %839 = vmatpush.bf16.msra.mxu0 0
    %840 = vmatpush.bf16.msra.mxu0 0
    %841 = vmatpush.bf16.msra.mxu0 0
    %842 = vmatpush.bf16.msra.mxu0 0
    %843 = vmatpush.bf16.msra.mxu0 0
    %844 = vmatpush.bf16.msra.mxu0 %v829
    %845 = vmatpush.bf16.msra.mxu0 %v828
    %846 = vmatmul.bf16.gmra.mxu0 %v833
    %v847 = vpop.f32.mrf.mxu0
    %v848 = vadd.f32 0.0, %v847
    %v849 = vpop.f32.mrf.mxu0
    %v850 = vadd.f32 0.0, %v849
    %851 = vmatmul.bf16.gmra.mxu0 %v836
    %v852 = vpop.f32.mrf.mxu0
    %v853 = vadd.f32 0.0, %v852
    %v854 = vpop.f32.mrf.mxu0
    %v855 = vadd.f32 0.0, %v854
    %856 = vdwg.mxu0
    %v857 = vpack.c.bf16 %v803, %v801
    %v858 = vpack.c.bf16 %v808, %v806
    %v859 = vpack.c.bf16 %v850, %v848
    %v860 = vpack.c.bf16 %v855, %v853
    %861 = vrot.lane.b32.xlu0 %v583, 112
    %v862 = vpop.permute.xlu0 %861
    %863 = vrot.lane.b32.xlu0 %v584, 112
    %v864 = vpop.permute.xlu0 %863
    %865 = vrot.lane.b32.xlu0 %v583, 48
    %v866 = vpop.permute.xlu0 %865
    %867 = vrot.lane.b32.xlu0 %v584, 48
    %v868 = vpop.permute.xlu0 %867
    %v870 = vsel %vm589, %v862, 0
    %v873 = vsel %vm589, %v864, 0
    %v876 = vsel %vm589, %v866, 0
    %v879 = vsel %vm589, %v868, 0
    %881 = vmatpush.bf16.xpose.msra.mxu0 0
    %882 = vmatpush.bf16.xpose.msra.mxu0 0
    %883 = vmatpush.bf16.xpose.msra.mxu0 0
    %884 = vmatpush.bf16.xpose.msra.mxu0 0
    %885 = vmatpush.bf16.xpose.msra.mxu0 0
    %886 = vmatpush.bf16.xpose.msra.mxu0 0
    %887 = vmatpush.bf16.xpose.msra.mxu0 %v879
    %888 = vmatpush.bf16.xpose.msra.mxu0 %v876
    %889 = vmatmul.bf16.gmra.mxu0 %v870
    %v890 = vpop.f32.mrf.mxu0
    %v891 = vadd.f32 %v217, %v890
    %v892 = vpop.f32.mrf.mxu0
    %v893 = vadd.f32 %v218, %v892
    %894 = vmatmul.bf16.gmra.mxu0 %v873
    %v895 = vpop.f32.mrf.mxu0
    %v896 = vadd.f32 %v219, %v895
    %v897 = vpop.f32.mrf.mxu0
    %v898 = vadd.f32 %v220, %v897
    %899 = vdwg.mxu0
    %900 = vrot.lane.b32.xlu0 %v629, 112
    %v901 = vpop.permute.xlu0 %900
    %902 = vrot.lane.b32.xlu0 %v630, 112
    %v903 = vpop.permute.xlu0 %902
    %904 = vrot.lane.b32.xlu0 %v629, 48
    %v905 = vpop.permute.xlu0 %904
    %906 = vrot.lane.b32.xlu0 %v630, 48
    %v907 = vpop.permute.xlu0 %906
    %v909 = vsel %vm589, %v901, 0
    %v912 = vsel %vm589, %v903, 0
    %v915 = vsel %vm589, %v905, 0
    %v918 = vsel %vm589, %v907, 0
    %920 = vmatpush.bf16.xpose.msra.mxu0 0
    %921 = vmatpush.bf16.xpose.msra.mxu0 0
    %922 = vmatpush.bf16.xpose.msra.mxu0 0
    %923 = vmatpush.bf16.xpose.msra.mxu0 0
    %924 = vmatpush.bf16.xpose.msra.mxu0 0
    %925 = vmatpush.bf16.xpose.msra.mxu0 0
    %926 = vmatpush.bf16.xpose.msra.mxu0 %v918
    %927 = vmatpush.bf16.xpose.msra.mxu0 %v915
    %928 = vmatmul.bf16.gmra.mxu0 %v909
    %v929 = vpop.f32.mrf.mxu0
    %v930 = vadd.f32 %v217, %v929
    %v931 = vpop.f32.mrf.mxu0
    %v932 = vadd.f32 %v218, %v931
    %933 = vmatmul.bf16.gmra.mxu0 %v912
    %v934 = vpop.f32.mrf.mxu0
    %v935 = vadd.f32 %v219, %v934
    %v936 = vpop.f32.mrf.mxu0
    %v937 = vadd.f32 %v220, %v936
    %938 = vdwg.mxu0
    %v939 = vsel %vm666, %v891, -inf
    %940 = vmax.xlane.f32.xlu0 %v939
    %v941 = vpop.xlane.xlu0 %940
    %v942 = vsel %vm666, %v893, -inf
    %943 = vmax.xlane.f32.xlu0 %v942
    %v944 = vpop.xlane.xlu0 %943
    %v945 = vsel %vm666, %v896, -inf
    %946 = vmax.xlane.f32.xlu0 %v945
    %v947 = vpop.xlane.xlu0 %946
    %v948 = vsel %vm666, %v898, -inf
    %949 = vmax.xlane.f32.xlu0 %v948
    %v950 = vpop.xlane.xlu0 %949
    %v951 = vsel %vm666, %v930, -inf
    %952 = vmax.xlane.f32.xlu0 %v951
    %v953 = vpop.xlane.xlu0 %952
    %v954 = vsel %vm666, %v932, -inf
    %955 = vmax.xlane.f32.xlu0 %v954
    %v956 = vpop.xlane.xlu0 %955
    %v957 = vsel %vm666, %v935, -inf
    %958 = vmax.xlane.f32.xlu0 %v957
    %v959 = vpop.xlane.xlu0 %958
    %v960 = vsel %vm666, %v937, -inf
    %961 = vmax.xlane.f32.xlu0 %v960
    %v962 = vpop.xlane.xlu0 %961
    %v963 = vsub.f32 %v891, %v941
    %v964 = vsub.f32 %v893, %v944
    %v965 = vsub.f32 %v896, %v947
    %v966 = vsub.f32 %v898, %v950
    %v967 = vsub.f32 %v930, %v953
    %v968 = vsub.f32 %v932, %v956
    %v969 = vsub.f32 %v935, %v959
    %v970 = vsub.f32 %v937, %v962
    %v971 = vmul.f32 %v963, 1.442695
    %v972 = vpow.pop %v971
    %v973 = vmul.f32 %v964, 1.442695
    %v974 = vpow.pop %v973
    %v975 = vmul.f32 %v965, 1.442695
    %v976 = vpow.pop %v975
    %v977 = vmul.f32 %v966, 1.442695
    %v978 = vpow.pop %v977
    %v979 = vmul.f32 %v967, 1.442695
    %v980 = vpow.pop %v979
    %v981 = vmul.f32 %v968, 1.442695
    %v982 = vpow.pop %v981
    %v983 = vmul.f32 %v969, 1.442695
    %v984 = vpow.pop %v983
    %v985 = vmul.f32 %v970, 1.442695
    %v986 = vpow.pop %v985
    %v987 = vsel %vm666, %v972, 0.0
    %988 = vadd.xlane.f32.xlu0 %v987
    %v989 = vpop.xlane.xlu0 %988
    %v990 = vsel %vm666, %v974, 0.0
    %991 = vadd.xlane.f32.xlu0 %v990
    %v992 = vpop.xlane.xlu0 %991
    %v993 = vsel %vm666, %v976, 0.0
    %994 = vadd.xlane.f32.xlu0 %v993
    %v995 = vpop.xlane.xlu0 %994
    %v996 = vsel %vm666, %v978, 0.0
    %997 = vadd.xlane.f32.xlu0 %v996
    %v998 = vpop.xlane.xlu0 %997
    %v999 = vsel %vm666, %v980, 0.0
    %1000 = vadd.xlane.f32.xlu0 %v999
    %v1001 = vpop.xlane.xlu0 %1000
    %v1002 = vsel %vm666, %v982, 0.0
    %1003 = vadd.xlane.f32.xlu0 %v1002
    %v1004 = vpop.xlane.xlu0 %1003
    %v1005 = vsel %vm666, %v984, 0.0
    %1006 = vadd.xlane.f32.xlu0 %v1005
    %v1007 = vpop.xlane.xlu0 %1006
    %v1008 = vsel %vm666, %v986, 0.0
    %1009 = vadd.xlane.f32.xlu0 %v1008
    %v1010 = vpop.xlane.xlu0 %1009
    %v1011 = vrcp.pop %v989
    %v1012 = vrcp.pop %v992
    %v1013 = vrcp.pop %v995
    %v1014 = vrcp.pop %v998
    %v1015 = vrcp.pop %v1001
    %v1016 = vrcp.pop %v1004
    %v1017 = vrcp.pop %v1007
    %v1018 = vrcp.pop %v1010
    %v1019 = vmul.f32 %v972, %v1011
    %v1020 = vmul.f32 %v974, %v1012
    %v1021 = vmul.f32 %v976, %v1013
    %v1022 = vmul.f32 %v978, %v1014
    %v1023 = vmul.f32 %v980, %v1015
    %v1024 = vmul.f32 %v982, %v1016
    %v1025 = vmul.f32 %v984, %v1017
    %v1026 = vmul.f32 %v986, %v1018
    %v1027 = vpack.c.bf16 %v1019, %v1019
    %v1028 = vpack.c.bf16 %v1020, %v1020
    %v1029 = vpack.c.bf16 %v1021, %v1021
    %v1030 = vpack.c.bf16 %v1022, %v1022
    %v1031 = vpack.c.bf16 %v1023, %v1023
    %v1032 = vpack.c.bf16 %v1024, %v1024
    %v1033 = vpack.c.bf16 %v1025, %v1025
    %v1034 = vpack.c.bf16 %v1026, %v1026
    %v1039 = vunpack.c.l.b16 %v1027
    %v1040 = vunpack.c.l.b16 %v1028
    %v1041 = vunpack.c.l.b16 %v1029
    %v1042 = vunpack.c.l.b16 %v1030
    %v1043 = vpack.c.b16 %v1040, %v1039
    %v1044 = vpack.c.b16 %v1042, %v1041
    %1045 = vrot.lane.b32.xlu0 %v781, 112
    %v1046 = vpop.permute.xlu0 %1045
    %1047 = vrot.lane.b32.xlu0 %v782, 112
    %v1048 = vpop.permute.xlu0 %1047
    %v1052 = vsel %vm666, %v1043, 0
    %v1055 = vsel %vm666, %v1044, 0
    %1057 = vmatpush.bf16.msra.mxu0 0
    %1058 = vmatpush.bf16.msra.mxu0 0
    %1059 = vmatpush.bf16.msra.mxu0 0
    %1060 = vmatpush.bf16.msra.mxu0 0
    %1061 = vmatpush.bf16.msra.mxu0 0
    %1062 = vmatpush.bf16.msra.mxu0 0
    %1063 = vmatpush.bf16.msra.mxu0 %v1048
    %1064 = vmatpush.bf16.msra.mxu0 %v1046
    %1065 = vmatmul.bf16.gmra.mxu0 %v1052
    %v1066 = vpop.f32.mrf.mxu0
    %v1067 = vadd.f32 0.0, %v1066
    %v1068 = vpop.f32.mrf.mxu0
    %v1069 = vadd.f32 0.0, %v1068
    %1070 = vmatmul.bf16.gmra.mxu0 %v1055
    %v1071 = vpop.f32.mrf.mxu0
    %v1072 = vadd.f32 0.0, %v1071
    %v1073 = vpop.f32.mrf.mxu0
    %v1074 = vadd.f32 0.0, %v1073
    %1075 = vdwg.mxu0
    %v1080 = vunpack.c.l.b16 %v1031
    %v1081 = vunpack.c.l.b16 %v1032
    %v1082 = vunpack.c.l.b16 %v1033
    %v1083 = vunpack.c.l.b16 %v1034
    %v1084 = vpack.c.b16 %v1081, %v1080
    %v1085 = vpack.c.b16 %v1083, %v1082
    %1086 = vrot.lane.b32.xlu0 %v828, 112
    %v1087 = vpop.permute.xlu0 %1086
    %1088 = vrot.lane.b32.xlu0 %v829, 112
    %v1089 = vpop.permute.xlu0 %1088
    %v1093 = vsel %vm666, %v1084, 0
    %v1096 = vsel %vm666, %v1085, 0
    %1098 = vmatpush.bf16.msra.mxu0 0
    %1099 = vmatpush.bf16.msra.mxu0 0
    %1100 = vmatpush.bf16.msra.mxu0 0
    %1101 = vmatpush.bf16.msra.mxu0 0
    %1102 = vmatpush.bf16.msra.mxu0 0
    %1103 = vmatpush.bf16.msra.mxu0 0
    %1104 = vmatpush.bf16.msra.mxu0 %v1089
    %1105 = vmatpush.bf16.msra.mxu0 %v1087
    %1106 = vmatmul.bf16.gmra.mxu0 %v1093
    %v1107 = vpop.f32.mrf.mxu0
    %v1108 = vadd.f32 0.0, %v1107
    %v1109 = vpop.f32.mrf.mxu0
    %v1110 = vadd.f32 0.0, %v1109
    %1111 = vmatmul.bf16.gmra.mxu0 %v1096
    %v1112 = vpop.f32.mrf.mxu0
    %v1113 = vadd.f32 0.0, %v1112
    %v1114 = vpop.f32.mrf.mxu0
    %v1115 = vadd.f32 0.0, %v1114
    %1116 = vdwg.mxu0
    %v1117 = vpack.c.bf16 %v1069, %v1067
    %v1118 = vpack.c.bf16 %v1074, %v1072
    %v1119 = vpack.c.bf16 %v1110, %v1108
    %v1120 = vpack.c.bf16 %v1115, %v1113
    %v1123 = vunpack.c.l.b16 %v569
    %v1124 = vunpack.c.l.b16 %v570
    %v1125 = vpack.c.b16 %v1124, %v1123
    %v1128 = vsel %vm589, %v1117, 0
    %v1131 = vsel %vm589, %v1118, 0
    %v1134 = vsel %vm589, %v1119, 0
    %v1137 = vsel %vm589, %v1120, 0
    %1139 = vmatpush.bf16.msra.mxu0 0
    %1140 = vmatpush.bf16.msra.mxu0 0
    %1141 = vmatpush.bf16.msra.mxu0 0
    %1142 = vmatpush.bf16.msra.mxu0 0
    %1143 = vmatpush.bf16.msra.mxu0 0
    %1144 = vmatpush.bf16.msra.mxu0 0
    %1145 = vmatpush.bf16.msra.mxu0 0
    %1146 = vmatpush.bf16.msra.mxu0 %v1125
    %1147 = vmatmul.bf16.gmra.mxu0 %v1128
    %v1148 = vpop.f32.mrf.mxu0
    %v1149 = vadd.f32 0.0, %v1148
    %v1150 = vpop.f32.mrf.mxu0
    %v1151 = vadd.f32 0.0, %v1150
    %1152 = vmatmul.bf16.gmra.mxu0 %v1131
    %v1153 = vpop.f32.mrf.mxu0
    %v1154 = vadd.f32 0.0, %v1153
    %v1155 = vpop.f32.mrf.mxu0
    %v1156 = vadd.f32 0.0, %v1155
    %1157 = vmatmul.bf16.gmra.mxu0 %v1134
    %v1158 = vpop.f32.mrf.mxu0
    %v1159 = vadd.f32 0.0, %v1158
    %v1160 = vpop.f32.mrf.mxu0
    %v1161 = vadd.f32 0.0, %v1160
    %1162 = vmatmul.bf16.gmra.mxu0 %v1137
    %v1163 = vpop.f32.mrf.mxu0
    %v1164 = vadd.f32 0.0, %v1163
    %v1165 = vpop.f32.mrf.mxu0
    %v1166 = vadd.f32 0.0, %v1165
    %1167 = vdwg.mxu0
    %v1170 = vunpack.c.l.b16 %v567
    %v1171 = vunpack.c.l.b16 %v568
    %v1172 = vpack.c.b16 %v1171, %v1170
    %v1175 = vsel %vm589, %v857, 0
    %v1178 = vsel %vm589, %v858, 0
    %v1181 = vsel %vm589, %v859, 0
    %v1184 = vsel %vm589, %v860, 0
    %1186 = vmatpush.bf16.msra.mxu0 0
    %1187 = vmatpush.bf16.msra.mxu0 0
    %1188 = vmatpush.bf16.msra.mxu0 0
    %1189 = vmatpush.bf16.msra.mxu0 0
    %1190 = vmatpush.bf16.msra.mxu0 0
    %1191 = vmatpush.bf16.msra.mxu0 0
    %1192 = vmatpush.bf16.msra.mxu0 0
    %1193 = vmatpush.bf16.msra.mxu0 %v1172
    %1194 = vmatmul.bf16.gmra.mxu0 %v1175
    %v1195 = vpop.f32.mrf.mxu0
    %v1196 = vadd.f32 %v1149, %v1195
    %v1197 = vpop.f32.mrf.mxu0
    %v1198 = vadd.f32 %v1151, %v1197
    %1199 = vmatmul.bf16.gmra.mxu0 %v1178
    %v1200 = vpop.f32.mrf.mxu0
    %v1201 = vadd.f32 %v1154, %v1200
    %v1202 = vpop.f32.mrf.mxu0
    %v1203 = vadd.f32 %v1156, %v1202
    %1204 = vmatmul.bf16.gmra.mxu0 %v1181
    %v1205 = vpop.f32.mrf.mxu0
    %v1206 = vadd.f32 %v1159, %v1205
    %v1207 = vpop.f32.mrf.mxu0
    %v1208 = vadd.f32 %v1161, %v1207
    %1209 = vmatmul.bf16.gmra.mxu0 %v1184
    %v1210 = vpop.f32.mrf.mxu0
    %v1211 = vadd.f32 %v1164, %v1210
    %v1212 = vpop.f32.mrf.mxu0
    %v1213 = vadd.f32 %v1166, %v1212
    %1214 = vdwg.mxu0
    %1215 = vrot.lane.b32.xlu0 %v583, 96
    %v1216 = vpop.permute.xlu0 %1215
    %1217 = vrot.lane.b32.xlu0 %v584, 96
    %v1218 = vpop.permute.xlu0 %1217
    %1219 = vrot.lane.b32.xlu0 %v583, 32
    %v1220 = vpop.permute.xlu0 %1219
    %1221 = vrot.lane.b32.xlu0 %v584, 32
    %v1222 = vpop.permute.xlu0 %1221
    %v1224 = vsel %vm589, %v1216, 0
    %v1227 = vsel %vm589, %v1218, 0
    %v1230 = vsel %vm589, %v1220, 0
    %v1233 = vsel %vm589, %v1222, 0
    %1235 = vmatpush.bf16.xpose.msra.mxu0 0
    %1236 = vmatpush.bf16.xpose.msra.mxu0 0
    %1237 = vmatpush.bf16.xpose.msra.mxu0 0
    %1238 = vmatpush.bf16.xpose.msra.mxu0 0
    %1239 = vmatpush.bf16.xpose.msra.mxu0 0
    %1240 = vmatpush.bf16.xpose.msra.mxu0 0
    %1241 = vmatpush.bf16.xpose.msra.mxu0 %v1233
    %1242 = vmatpush.bf16.xpose.msra.mxu0 %v1230
    %1243 = vmatmul.bf16.gmra.mxu0 %v1224
    %v1244 = vpop.f32.mrf.mxu0
    %v1245 = vadd.f32 %v217, %v1244
    %v1246 = vpop.f32.mrf.mxu0
    %v1247 = vadd.f32 %v218, %v1246
    %1248 = vmatmul.bf16.gmra.mxu0 %v1227
    %v1249 = vpop.f32.mrf.mxu0
    %v1250 = vadd.f32 %v219, %v1249
    %v1251 = vpop.f32.mrf.mxu0
    %v1252 = vadd.f32 %v220, %v1251
    %1253 = vdwg.mxu0
    %1254 = vrot.lane.b32.xlu0 %v629, 96
    %v1255 = vpop.permute.xlu0 %1254
    %1256 = vrot.lane.b32.xlu0 %v630, 96
    %v1257 = vpop.permute.xlu0 %1256
    %1258 = vrot.lane.b32.xlu0 %v629, 32
    %v1259 = vpop.permute.xlu0 %1258
    %1260 = vrot.lane.b32.xlu0 %v630, 32
    %v1261 = vpop.permute.xlu0 %1260
    %v1263 = vsel %vm589, %v1255, 0
    %v1266 = vsel %vm589, %v1257, 0
    %v1269 = vsel %vm589, %v1259, 0
    %v1272 = vsel %vm589, %v1261, 0
    %1274 = vmatpush.bf16.xpose.msra.mxu0 0
    %1275 = vmatpush.bf16.xpose.msra.mxu0 0
    %1276 = vmatpush.bf16.xpose.msra.mxu0 0
    %1277 = vmatpush.bf16.xpose.msra.mxu0 0
    %1278 = vmatpush.bf16.xpose.msra.mxu0 0
    %1279 = vmatpush.bf16.xpose.msra.mxu0 0
    %1280 = vmatpush.bf16.xpose.msra.mxu0 %v1272
    %1281 = vmatpush.bf16.xpose.msra.mxu0 %v1269
    %1282 = vmatmul.bf16.gmra.mxu0 %v1263
    %v1283 = vpop.f32.mrf.mxu0
    %v1284 = vadd.f32 %v217, %v1283
    %v1285 = vpop.f32.mrf.mxu0
    %v1286 = vadd.f32 %v218, %v1285
    %1287 = vmatmul.bf16.gmra.mxu0 %v1266
    %v1288 = vpop.f32.mrf.mxu0
    %v1289 = vadd.f32 %v219, %v1288
    %v1290 = vpop.f32.mrf.mxu0
    %v1291 = vadd.f32 %v220, %v1290
    %1292 = vdwg.mxu0
    %v1293 = vsel %vm666, %v1245, -inf
    %1294 = vmax.xlane.f32.xlu0 %v1293
    %v1295 = vpop.xlane.xlu0 %1294
    %v1296 = vsel %vm666, %v1247, -inf
    %1297 = vmax.xlane.f32.xlu0 %v1296
    %v1298 = vpop.xlane.xlu0 %1297
    %v1299 = vsel %vm666, %v1250, -inf
    %1300 = vmax.xlane.f32.xlu0 %v1299
    %v1301 = vpop.xlane.xlu0 %1300
    %v1302 = vsel %vm666, %v1252, -inf
    %1303 = vmax.xlane.f32.xlu0 %v1302
    %v1304 = vpop.xlane.xlu0 %1303
    %v1305 = vsel %vm666, %v1284, -inf
    %1306 = vmax.xlane.f32.xlu0 %v1305
    %v1307 = vpop.xlane.xlu0 %1306
    %v1308 = vsel %vm666, %v1286, -inf
    %1309 = vmax.xlane.f32.xlu0 %v1308
    %v1310 = vpop.xlane.xlu0 %1309
    %v1311 = vsel %vm666, %v1289, -inf
    %1312 = vmax.xlane.f32.xlu0 %v1311
    %v1313 = vpop.xlane.xlu0 %1312
    %v1314 = vsel %vm666, %v1291, -inf
    %1315 = vmax.xlane.f32.xlu0 %v1314
    %v1316 = vpop.xlane.xlu0 %1315
    %v1317 = vsub.f32 %v1245, %v1295
    %v1318 = vsub.f32 %v1247, %v1298
    %v1319 = vsub.f32 %v1250, %v1301
    %v1320 = vsub.f32 %v1252, %v1304
    %v1321 = vsub.f32 %v1284, %v1307
    %v1322 = vsub.f32 %v1286, %v1310
    %v1323 = vsub.f32 %v1289, %v1313
    %v1324 = vsub.f32 %v1291, %v1316
    %v1325 = vmul.f32 %v1317, 1.442695
    %v1326 = vpow.pop %v1325
    %v1327 = vmul.f32 %v1318, 1.442695
    %v1328 = vpow.pop %v1327
    %v1329 = vmul.f32 %v1319, 1.442695
    %v1330 = vpow.pop %v1329
    %v1331 = vmul.f32 %v1320, 1.442695
    %v1332 = vpow.pop %v1331
    %v1333 = vmul.f32 %v1321, 1.442695
    %v1334 = vpow.pop %v1333
    %v1335 = vmul.f32 %v1322, 1.442695
    %v1336 = vpow.pop %v1335
    %v1337 = vmul.f32 %v1323, 1.442695
    %v1338 = vpow.pop %v1337
    %v1339 = vmul.f32 %v1324, 1.442695
    %v1340 = vpow.pop %v1339
    %v1341 = vsel %vm666, %v1326, 0.0
    %1342 = vadd.xlane.f32.xlu0 %v1341
    %v1343 = vpop.xlane.xlu0 %1342
    %v1344 = vsel %vm666, %v1328, 0.0
    %1345 = vadd.xlane.f32.xlu0 %v1344
    %v1346 = vpop.xlane.xlu0 %1345
    %v1347 = vsel %vm666, %v1330, 0.0
    %1348 = vadd.xlane.f32.xlu0 %v1347
    %v1349 = vpop.xlane.xlu0 %1348
    %v1350 = vsel %vm666, %v1332, 0.0
    %1351 = vadd.xlane.f32.xlu0 %v1350
    %v1352 = vpop.xlane.xlu0 %1351
    %v1353 = vsel %vm666, %v1334, 0.0
    %1354 = vadd.xlane.f32.xlu0 %v1353
    %v1355 = vpop.xlane.xlu0 %1354
    %v1356 = vsel %vm666, %v1336, 0.0
    %1357 = vadd.xlane.f32.xlu0 %v1356
    %v1358 = vpop.xlane.xlu0 %1357
    %v1359 = vsel %vm666, %v1338, 0.0
    %1360 = vadd.xlane.f32.xlu0 %v1359
    %v1361 = vpop.xlane.xlu0 %1360
    %v1362 = vsel %vm666, %v1340, 0.0
    %1363 = vadd.xlane.f32.xlu0 %v1362
    %v1364 = vpop.xlane.xlu0 %1363
    %v1365 = vrcp.pop %v1343
    %v1366 = vrcp.pop %v1346
    %v1367 = vrcp.pop %v1349
    %v1368 = vrcp.pop %v1352
    %v1369 = vrcp.pop %v1355
    %v1370 = vrcp.pop %v1358
    %v1371 = vrcp.pop %v1361
    %v1372 = vrcp.pop %v1364
    %v1373 = vmul.f32 %v1326, %v1365
    %v1374 = vmul.f32 %v1328, %v1366
    %v1375 = vmul.f32 %v1330, %v1367
    %v1376 = vmul.f32 %v1332, %v1368
    %v1377 = vmul.f32 %v1334, %v1369
    %v1378 = vmul.f32 %v1336, %v1370
    %v1379 = vmul.f32 %v1338, %v1371
    %v1380 = vmul.f32 %v1340, %v1372
    %v1381 = vpack.c.bf16 %v1373, %v1373
    %v1382 = vpack.c.bf16 %v1374, %v1374
    %v1383 = vpack.c.bf16 %v1375, %v1375
    %v1384 = vpack.c.bf16 %v1376, %v1376
    %v1385 = vpack.c.bf16 %v1377, %v1377
    %v1386 = vpack.c.bf16 %v1378, %v1378
    %v1387 = vpack.c.bf16 %v1379, %v1379
    %v1388 = vpack.c.bf16 %v1380, %v1380
    %v1393 = vunpack.c.l.b16 %v1381
    %v1394 = vunpack.c.l.b16 %v1382
    %v1395 = vunpack.c.l.b16 %v1383
    %v1396 = vunpack.c.l.b16 %v1384
    %v1397 = vpack.c.b16 %v1394, %v1393
    %v1398 = vpack.c.b16 %v1396, %v1395
    %1399 = vrot.lane.b32.xlu0 %v781, 96
    %v1400 = vpop.permute.xlu0 %1399
    %1401 = vrot.lane.b32.xlu0 %v782, 96
    %v1402 = vpop.permute.xlu0 %1401
    %v1406 = vsel %vm666, %v1397, 0
    %v1409 = vsel %vm666, %v1398, 0
    %1411 = vmatpush.bf16.msra.mxu0 0
    %1412 = vmatpush.bf16.msra.mxu0 0
    %1413 = vmatpush.bf16.msra.mxu0 0
    %1414 = vmatpush.bf16.msra.mxu0 0
    %1415 = vmatpush.bf16.msra.mxu0 0
    %1416 = vmatpush.bf16.msra.mxu0 0
    %1417 = vmatpush.bf16.msra.mxu0 %v1402
    %1418 = vmatpush.bf16.msra.mxu0 %v1400
    %1419 = vmatmul.bf16.gmra.mxu0 %v1406
    %v1420 = vpop.f32.mrf.mxu0
    %v1421 = vadd.f32 0.0, %v1420
    %v1422 = vpop.f32.mrf.mxu0
    %v1423 = vadd.f32 0.0, %v1422
    %1424 = vmatmul.bf16.gmra.mxu0 %v1409
    %v1425 = vpop.f32.mrf.mxu0
    %v1426 = vadd.f32 0.0, %v1425
    %v1427 = vpop.f32.mrf.mxu0
    %v1428 = vadd.f32 0.0, %v1427
    %1429 = vdwg.mxu0
    %v1434 = vunpack.c.l.b16 %v1385
    %v1435 = vunpack.c.l.b16 %v1386
    %v1436 = vunpack.c.l.b16 %v1387
    %v1437 = vunpack.c.l.b16 %v1388
    %v1438 = vpack.c.b16 %v1435, %v1434
    %v1439 = vpack.c.b16 %v1437, %v1436
    %1440 = vrot.lane.b32.xlu0 %v828, 96
    %v1441 = vpop.permute.xlu0 %1440
    %1442 = vrot.lane.b32.xlu0 %v829, 96
    %v1443 = vpop.permute.xlu0 %1442
    %v1447 = vsel %vm666, %v1438, 0
    %v1450 = vsel %vm666, %v1439, 0
    %1452 = vmatpush.bf16.msra.mxu0 0
    %1453 = vmatpush.bf16.msra.mxu0 0
    %1454 = vmatpush.bf16.msra.mxu0 0
    %1455 = vmatpush.bf16.msra.mxu0 0
    %1456 = vmatpush.bf16.msra.mxu0 0
    %1457 = vmatpush.bf16.msra.mxu0 0
    %1458 = vmatpush.bf16.msra.mxu0 %v1443
    %1459 = vmatpush.bf16.msra.mxu0 %v1441
    %1460 = vmatmul.bf16.gmra.mxu0 %v1447
    %v1461 = vpop.f32.mrf.mxu0
    %v1462 = vadd.f32 0.0, %v1461
    %v1463 = vpop.f32.mrf.mxu0
    %v1464 = vadd.f32 0.0, %v1463
    %1465 = vmatmul.bf16.gmra.mxu0 %v1450
    %v1466 = vpop.f32.mrf.mxu0
    %v1467 = vadd.f32 0.0, %v1466
    %v1468 = vpop.f32.mrf.mxu0
    %v1469 = vadd.f32 0.0, %v1468
    %1470 = vdwg.mxu0
    %v1471 = vpack.c.bf16 %v1423, %v1421
    %v1472 = vpack.c.bf16 %v1428, %v1426
    %v1473 = vpack.c.bf16 %v1464, %v1462
    %v1474 = vpack.c.bf16 %v1469, %v1467
    %v1477 = vunpack.c.l.b16 %v571
    %v1478 = vunpack.c.l.b16 %v572
    %v1479 = vpack.c.b16 %v1478, %v1477
    %v1482 = vsel %vm589, %v1471, 0
    %v1485 = vsel %vm589, %v1472, 0
    %v1488 = vsel %vm589, %v1473, 0
    %v1491 = vsel %vm589, %v1474, 0
    %1493 = vmatpush.bf16.msra.mxu0 0
    %1494 = vmatpush.bf16.msra.mxu0 0
    %1495 = vmatpush.bf16.msra.mxu0 0
    %1496 = vmatpush.bf16.msra.mxu0 0
    %1497 = vmatpush.bf16.msra.mxu0 0
    %1498 = vmatpush.bf16.msra.mxu0 0
    %1499 = vmatpush.bf16.msra.mxu0 0
    %1500 = vmatpush.bf16.msra.mxu0 %v1479
    %1501 = vmatmul.bf16.gmra.mxu0 %v1482
    %v1502 = vpop.f32.mrf.mxu0
    %v1503 = vadd.f32 0.0, %v1502
    %v1504 = vpop.f32.mrf.mxu0
    %v1505 = vadd.f32 0.0, %v1504
    %1506 = vmatmul.bf16.gmra.mxu0 %v1485
    %v1507 = vpop.f32.mrf.mxu0
    %v1508 = vadd.f32 0.0, %v1507
    %v1509 = vpop.f32.mrf.mxu0
    %v1510 = vadd.f32 0.0, %v1509
    %1511 = vmatmul.bf16.gmra.mxu0 %v1488
    %v1512 = vpop.f32.mrf.mxu0
    %v1513 = vadd.f32 0.0, %v1512
    %v1514 = vpop.f32.mrf.mxu0
    %v1515 = vadd.f32 0.0, %v1514
    %1516 = vmatmul.bf16.gmra.mxu0 %v1491
    %v1517 = vpop.f32.mrf.mxu0
    %v1518 = vadd.f32 0.0, %v1517
    %v1519 = vpop.f32.mrf.mxu0
    %v1520 = vadd.f32 0.0, %v1519
    %1521 = vdwg.mxu0
    %v1522 = vadd.f32 %v1196, %v1503
    %v1523 = vadd.f32 %v1198, %v1505
    %v1524 = vadd.f32 %v1201, %v1508
    %v1525 = vadd.f32 %v1203, %v1510
    %v1526 = vadd.f32 %v1206, %v1513
    %v1527 = vadd.f32 %v1208, %v1515
    %v1528 = vadd.f32 %v1211, %v1518
    %v1529 = vadd.f32 %v1213, %v1520
    %1530 = vrot.lane.b32.xlu0 %v583, 80
    %v1531 = vpop.permute.xlu0 %1530
    %1532 = vrot.lane.b32.xlu0 %v584, 80
    %v1533 = vpop.permute.xlu0 %1532
    %1534 = vrot.lane.b32.xlu0 %v583, 16
    %v1535 = vpop.permute.xlu0 %1534
    %1536 = vrot.lane.b32.xlu0 %v584, 16
    %v1537 = vpop.permute.xlu0 %1536
    %v1539 = vsel %vm589, %v1531, 0
    %v1542 = vsel %vm589, %v1533, 0
    %v1545 = vsel %vm589, %v1535, 0
    %v1548 = vsel %vm589, %v1537, 0
    %1550 = vmatpush.bf16.xpose.msra.mxu0 0
    %1551 = vmatpush.bf16.xpose.msra.mxu0 0
    %1552 = vmatpush.bf16.xpose.msra.mxu0 0
    %1553 = vmatpush.bf16.xpose.msra.mxu0 0
    %1554 = vmatpush.bf16.xpose.msra.mxu0 0
    %1555 = vmatpush.bf16.xpose.msra.mxu0 0
    %1556 = vmatpush.bf16.xpose.msra.mxu0 %v1548
    %1557 = vmatpush.bf16.xpose.msra.mxu0 %v1545
    %1558 = vmatmul.bf16.gmra.mxu0 %v1539
    %v1559 = vpop.f32.mrf.mxu0
    %v1560 = vadd.f32 %v217, %v1559
    %v1561 = vpop.f32.mrf.mxu0
    %v1562 = vadd.f32 %v218, %v1561
    %1563 = vmatmul.bf16.gmra.mxu0 %v1542
    %v1564 = vpop.f32.mrf.mxu0
    %v1565 = vadd.f32 %v219, %v1564
    %v1566 = vpop.f32.mrf.mxu0
    %v1567 = vadd.f32 %v220, %v1566
    %1568 = vdwg.mxu0
    %1569 = vrot.lane.b32.xlu0 %v629, 80
    %v1570 = vpop.permute.xlu0 %1569
    %1571 = vrot.lane.b32.xlu0 %v630, 80
    %v1572 = vpop.permute.xlu0 %1571
    %1573 = vrot.lane.b32.xlu0 %v629, 16
    %v1574 = vpop.permute.xlu0 %1573
    %1575 = vrot.lane.b32.xlu0 %v630, 16
    %v1576 = vpop.permute.xlu0 %1575
    %v1578 = vsel %vm589, %v1570, 0
    %v1581 = vsel %vm589, %v1572, 0
    %v1584 = vsel %vm589, %v1574, 0
    %v1587 = vsel %vm589, %v1576, 0
    %1589 = vmatpush.bf16.xpose.msra.mxu0 0
    %1590 = vmatpush.bf16.xpose.msra.mxu0 0
    %1591 = vmatpush.bf16.xpose.msra.mxu0 0
    %1592 = vmatpush.bf16.xpose.msra.mxu0 0
    %1593 = vmatpush.bf16.xpose.msra.mxu0 0
    %1594 = vmatpush.bf16.xpose.msra.mxu0 0
    %1595 = vmatpush.bf16.xpose.msra.mxu0 %v1587
    %1596 = vmatpush.bf16.xpose.msra.mxu0 %v1584
    %1597 = vmatmul.bf16.gmra.mxu0 %v1578
    %v1598 = vpop.f32.mrf.mxu0
    %v1599 = vadd.f32 %v217, %v1598
    %v1600 = vpop.f32.mrf.mxu0
    %v1601 = vadd.f32 %v218, %v1600
    %1602 = vmatmul.bf16.gmra.mxu0 %v1581
    %v1603 = vpop.f32.mrf.mxu0
    %v1604 = vadd.f32 %v219, %v1603
    %v1605 = vpop.f32.mrf.mxu0
    %v1606 = vadd.f32 %v220, %v1605
    %1607 = vdwg.mxu0
    %v1608 = vsel %vm666, %v1560, -inf
    %1609 = vmax.xlane.f32.xlu0 %v1608
    %v1610 = vpop.xlane.xlu0 %1609
    %v1611 = vsel %vm666, %v1562, -inf
    %1612 = vmax.xlane.f32.xlu0 %v1611
    %v1613 = vpop.xlane.xlu0 %1612
    %v1614 = vsel %vm666, %v1565, -inf
    %1615 = vmax.xlane.f32.xlu0 %v1614
    %v1616 = vpop.xlane.xlu0 %1615
    %v1617 = vsel %vm666, %v1567, -inf
    %1618 = vmax.xlane.f32.xlu0 %v1617
    %v1619 = vpop.xlane.xlu0 %1618
    %v1620 = vsel %vm666, %v1599, -inf
    %1621 = vmax.xlane.f32.xlu0 %v1620
    %v1622 = vpop.xlane.xlu0 %1621
    %v1623 = vsel %vm666, %v1601, -inf
    %1624 = vmax.xlane.f32.xlu0 %v1623
    %v1625 = vpop.xlane.xlu0 %1624
    %v1626 = vsel %vm666, %v1604, -inf
    %1627 = vmax.xlane.f32.xlu0 %v1626
    %v1628 = vpop.xlane.xlu0 %1627
    %v1629 = vsel %vm666, %v1606, -inf
    %1630 = vmax.xlane.f32.xlu0 %v1629
    %v1631 = vpop.xlane.xlu0 %1630
    %v1632 = vsub.f32 %v1560, %v1610
    %v1633 = vsub.f32 %v1562, %v1613
    %v1634 = vsub.f32 %v1565, %v1616
    %v1635 = vsub.f32 %v1567, %v1619
    %v1636 = vsub.f32 %v1599, %v1622
    %v1637 = vsub.f32 %v1601, %v1625
    %v1638 = vsub.f32 %v1604, %v1628
    %v1639 = vsub.f32 %v1606, %v1631
    %v1640 = vmul.f32 %v1632, 1.442695
    %v1641 = vpow.pop %v1640
    %v1642 = vmul.f32 %v1633, 1.442695
    %v1643 = vpow.pop %v1642
    %v1644 = vmul.f32 %v1634, 1.442695
    %v1645 = vpow.pop %v1644
    %v1646 = vmul.f32 %v1635, 1.442695
    %v1647 = vpow.pop %v1646
    %v1648 = vmul.f32 %v1636, 1.442695
    %v1649 = vpow.pop %v1648
    %v1650 = vmul.f32 %v1637, 1.442695
    %v1651 = vpow.pop %v1650
    %v1652 = vmul.f32 %v1638, 1.442695
    %v1653 = vpow.pop %v1652
    %v1654 = vmul.f32 %v1639, 1.442695
    %v1655 = vpow.pop %v1654
    %v1656 = vsel %vm666, %v1641, 0.0
    %1657 = vadd.xlane.f32.xlu0 %v1656
    %v1658 = vpop.xlane.xlu0 %1657
    %v1659 = vsel %vm666, %v1643, 0.0
    %1660 = vadd.xlane.f32.xlu0 %v1659
    %v1661 = vpop.xlane.xlu0 %1660
    %v1662 = vsel %vm666, %v1645, 0.0
    %1663 = vadd.xlane.f32.xlu0 %v1662
    %v1664 = vpop.xlane.xlu0 %1663
    %v1665 = vsel %vm666, %v1647, 0.0
    %1666 = vadd.xlane.f32.xlu0 %v1665
    %v1667 = vpop.xlane.xlu0 %1666
    %v1668 = vsel %vm666, %v1649, 0.0
    %1669 = vadd.xlane.f32.xlu0 %v1668
    %v1670 = vpop.xlane.xlu0 %1669
    %v1671 = vsel %vm666, %v1651, 0.0
    %1672 = vadd.xlane.f32.xlu0 %v1671
    %v1673 = vpop.xlane.xlu0 %1672
    %v1674 = vsel %vm666, %v1653, 0.0
    %1675 = vadd.xlane.f32.xlu0 %v1674
    %v1676 = vpop.xlane.xlu0 %1675
    %v1677 = vsel %vm666, %v1655, 0.0
    %1678 = vadd.xlane.f32.xlu0 %v1677
    %v1679 = vpop.xlane.xlu0 %1678
    %v1680 = vrcp.pop %v1658
    %v1681 = vrcp.pop %v1661
    %v1682 = vrcp.pop %v1664
    %v1683 = vrcp.pop %v1667
    %v1684 = vrcp.pop %v1670
    %v1685 = vrcp.pop %v1673
    %v1686 = vrcp.pop %v1676
    %v1687 = vrcp.pop %v1679
    %v1688 = vmul.f32 %v1641, %v1680
    %v1689 = vmul.f32 %v1643, %v1681
    %v1690 = vmul.f32 %v1645, %v1682
    %v1691 = vmul.f32 %v1647, %v1683
    %v1692 = vmul.f32 %v1649, %v1684
    %v1693 = vmul.f32 %v1651, %v1685
    %v1694 = vmul.f32 %v1653, %v1686
    %v1695 = vmul.f32 %v1655, %v1687
    %v1696 = vpack.c.bf16 %v1688, %v1688
    %v1697 = vpack.c.bf16 %v1689, %v1689
    %v1698 = vpack.c.bf16 %v1690, %v1690
    %v1699 = vpack.c.bf16 %v1691, %v1691
    %v1700 = vpack.c.bf16 %v1692, %v1692
    %v1701 = vpack.c.bf16 %v1693, %v1693
    %v1702 = vpack.c.bf16 %v1694, %v1694
    %v1703 = vpack.c.bf16 %v1695, %v1695
    %v1708 = vunpack.c.l.b16 %v1696
    %v1709 = vunpack.c.l.b16 %v1697
    %v1710 = vunpack.c.l.b16 %v1698
    %v1711 = vunpack.c.l.b16 %v1699
    %v1712 = vpack.c.b16 %v1709, %v1708
    %v1713 = vpack.c.b16 %v1711, %v1710
    %1714 = vrot.lane.b32.xlu0 %v781, 80
    %v1715 = vpop.permute.xlu0 %1714
    %1716 = vrot.lane.b32.xlu0 %v782, 80
    %v1717 = vpop.permute.xlu0 %1716
    %v1721 = vsel %vm666, %v1712, 0
    %v1724 = vsel %vm666, %v1713, 0
    %1726 = vmatpush.bf16.msra.mxu0 0
    %1727 = vmatpush.bf16.msra.mxu0 0
    %1728 = vmatpush.bf16.msra.mxu0 0
    %1729 = vmatpush.bf16.msra.mxu0 0
    %1730 = vmatpush.bf16.msra.mxu0 0
    %1731 = vmatpush.bf16.msra.mxu0 0
    %1732 = vmatpush.bf16.msra.mxu0 %v1717
    %1733 = vmatpush.bf16.msra.mxu0 %v1715
    %1734 = vmatmul.bf16.gmra.mxu0 %v1721
    %v1735 = vpop.f32.mrf.mxu0
    %v1736 = vadd.f32 0.0, %v1735
    %v1737 = vpop.f32.mrf.mxu0
    %v1738 = vadd.f32 0.0, %v1737
    %1739 = vmatmul.bf16.gmra.mxu0 %v1724
    %v1740 = vpop.f32.mrf.mxu0
    %v1741 = vadd.f32 0.0, %v1740
    %v1742 = vpop.f32.mrf.mxu0
    %v1743 = vadd.f32 0.0, %v1742
    %1744 = vdwg.mxu0
    %v1749 = vunpack.c.l.b16 %v1700
    %v1750 = vunpack.c.l.b16 %v1701
    %v1751 = vunpack.c.l.b16 %v1702
    %v1752 = vunpack.c.l.b16 %v1703
    %v1753 = vpack.c.b16 %v1750, %v1749
    %v1754 = vpack.c.b16 %v1752, %v1751
    %1755 = vrot.lane.b32.xlu0 %v828, 80
    %v1756 = vpop.permute.xlu0 %1755
    %1757 = vrot.lane.b32.xlu0 %v829, 80
    %v1758 = vpop.permute.xlu0 %1757
    %v1762 = vsel %vm666, %v1753, 0
    %v1765 = vsel %vm666, %v1754, 0
    %1767 = vmatpush.bf16.msra.mxu0 0
    %1768 = vmatpush.bf16.msra.mxu0 0
    %1769 = vmatpush.bf16.msra.mxu0 0
    %1770 = vmatpush.bf16.msra.mxu0 0
    %1771 = vmatpush.bf16.msra.mxu0 0
    %1772 = vmatpush.bf16.msra.mxu0 0
    %1773 = vmatpush.bf16.msra.mxu0 %v1758
    %1774 = vmatpush.bf16.msra.mxu0 %v1756
    %1775 = vmatmul.bf16.gmra.mxu0 %v1762
    %v1776 = vpop.f32.mrf.mxu0
    %v1777 = vadd.f32 0.0, %v1776
    %v1778 = vpop.f32.mrf.mxu0
    %v1779 = vadd.f32 0.0, %v1778
    %1780 = vmatmul.bf16.gmra.mxu0 %v1765
    %v1781 = vpop.f32.mrf.mxu0
    %v1782 = vadd.f32 0.0, %v1781
    %v1783 = vpop.f32.mrf.mxu0
    %v1784 = vadd.f32 0.0, %v1783
    %1785 = vdwg.mxu0
    %v1786 = vpack.c.bf16 %v1738, %v1736
    %v1787 = vpack.c.bf16 %v1743, %v1741
    %v1788 = vpack.c.bf16 %v1779, %v1777
    %v1789 = vpack.c.bf16 %v1784, %v1782
    %v1792 = vunpack.c.l.b16 %v573
    %v1793 = vunpack.c.l.b16 %v574
    %v1794 = vpack.c.b16 %v1793, %v1792
    %v1797 = vsel %vm589, %v1786, 0
    %v1800 = vsel %vm589, %v1787, 0
    %v1803 = vsel %vm589, %v1788, 0
    %v1806 = vsel %vm589, %v1789, 0
    %1808 = vmatpush.bf16.msra.mxu0 0
    %1809 = vmatpush.bf16.msra.mxu0 0
    %1810 = vmatpush.bf16.msra.mxu0 0
    %1811 = vmatpush.bf16.msra.mxu0 0
    %1812 = vmatpush.bf16.msra.mxu0 0
    %1813 = vmatpush.bf16.msra.mxu0 0
    %1814 = vmatpush.bf16.msra.mxu0 0
    %1815 = vmatpush.bf16.msra.mxu0 %v1794
    %1816 = vmatmul.bf16.gmra.mxu0 %v1797
    %v1817 = vpop.f32.mrf.mxu0
    %v1818 = vadd.f32 0.0, %v1817
    %v1819 = vpop.f32.mrf.mxu0
    %v1820 = vadd.f32 0.0, %v1819
    %1821 = vmatmul.bf16.gmra.mxu0 %v1800
    %v1822 = vpop.f32.mrf.mxu0
    %v1823 = vadd.f32 0.0, %v1822
    %v1824 = vpop.f32.mrf.mxu0
    %v1825 = vadd.f32 0.0, %v1824
    %1826 = vmatmul.bf16.gmra.mxu0 %v1803
    %v1827 = vpop.f32.mrf.mxu0
    %v1828 = vadd.f32 0.0, %v1827
    %v1829 = vpop.f32.mrf.mxu0
    %v1830 = vadd.f32 0.0, %v1829
    %1831 = vmatmul.bf16.gmra.mxu0 %v1806
    %v1832 = vpop.f32.mrf.mxu0
    %v1833 = vadd.f32 0.0, %v1832
    %v1834 = vpop.f32.mrf.mxu0
    %v1835 = vadd.f32 0.0, %v1834
    %1836 = vdwg.mxu0
    %v1837 = vadd.f32 %v1522, %v1818
    %v1838 = vadd.f32 %v1523, %v1820
    %v1839 = vadd.f32 %v1524, %v1823
    %v1840 = vadd.f32 %v1525, %v1825
    %v1841 = vadd.f32 %v1526, %v1828
    %v1842 = vadd.f32 %v1527, %v1830
    %v1843 = vadd.f32 %v1528, %v1833
    %v1844 = vadd.f32 %v1529, %v1835
    %v1845 = vadd.f32 %v200, %v1837
    %v1846 = vadd.f32 %v201, %v1838
    %v1847 = vadd.f32 %v202, %v1839
    %v1848 = vadd.f32 %v203, %v1840
    %v1849 = vadd.f32 %v204, %v1841
    %v1850 = vadd.f32 %v205, %v1842
    %v1851 = vadd.f32 %v206, %v1843
    %v1852 = vadd.f32 %v207, %v1844
    %v1853 = vld [vmem:[%s7] sm:$0x1]
    %v1855 = vperm.slane %v1853, 0
    %v1857 = vadd.f32 %v1845, %v1855
    %v1858 = vadd.f32 %v1846, %v1855
    %v1859 = vadd.f32 %v1847, %v1855
    %v1860 = vadd.f32 %v1848, %v1855
    %v1861 = vadd.f32 %v1849, %v1855
    %v1862 = vadd.f32 %v1850, %v1855
    %v1863 = vadd.f32 %v1851, %v1855
    %v1864 = vadd.f32 %v1852, %v1855
    %s1865 = scalar_lea.vmem %s3, 1
    %v1866 = vld [vmem:[%s1865] sm:$0x1]
    %s1867 = scalar_lea.vmem %s4, 1
    %v1868 = vld [vmem:[%s1867] sm:$0x1]
    %v1869 = vsel %vm223, %v1857, 0.0
    %1870 = vadd.xlane.f32.xlu0 %v1869
    %v1871 = vpop.xlane.xlu0 %1870
    %v1872 = vsel %vm223, %v1858, 0.0
    %1873 = vadd.xlane.f32.xlu0 %v1872
    %v1874 = vpop.xlane.xlu0 %1873
    %v1875 = vsel %vm223, %v1859, 0.0
    %1876 = vadd.xlane.f32.xlu0 %v1875
    %v1877 = vpop.xlane.xlu0 %1876
    %v1878 = vsel %vm223, %v1860, 0.0
    %1879 = vadd.xlane.f32.xlu0 %v1878
    %v1880 = vpop.xlane.xlu0 %1879
    %v1881 = vsel %vm223, %v1861, 0.0
    %1882 = vadd.xlane.f32.xlu0 %v1881
    %v1883 = vpop.xlane.xlu0 %1882
    %v1884 = vsel %vm223, %v1862, 0.0
    %1885 = vadd.xlane.f32.xlu0 %v1884
    %v1886 = vpop.xlane.xlu0 %1885
    %v1887 = vsel %vm223, %v1863, 0.0
    %1888 = vadd.xlane.f32.xlu0 %v1887
    %v1889 = vpop.xlane.xlu0 %1888
    %v1890 = vsel %vm223, %v1864, 0.0
    %1891 = vadd.xlane.f32.xlu0 %v1890
    %v1892 = vpop.xlane.xlu0 %1891
    %v1893 = vmul.f32 %v1871, %v254
    %v1894 = vmul.f32 %v1874, %v254
    %v1895 = vmul.f32 %v1877, %v254
    %v1896 = vmul.f32 %v1880, %v254
    %v1897 = vmul.f32 %v1883, %v254
    %v1898 = vmul.f32 %v1886, %v254
    %v1899 = vmul.f32 %v1889, %v254
    %v1900 = vmul.f32 %v1892, %v254
    %v1901 = vsub.f32 %v1857, %v1893
    %v1902 = vsub.f32 %v1858, %v1894
    %v1903 = vsub.f32 %v1859, %v1895
    %v1904 = vsub.f32 %v1860, %v1896
    %v1905 = vsub.f32 %v1861, %v1897
    %v1906 = vsub.f32 %v1862, %v1898
    %v1907 = vsub.f32 %v1863, %v1899
    %v1908 = vsub.f32 %v1864, %v1900
    %v1909 = vmul.f32 %v1901, %v1901
    %v1910 = vmul.f32 %v1902, %v1902
    %v1911 = vmul.f32 %v1903, %v1903
    %v1912 = vmul.f32 %v1904, %v1904
    %v1913 = vmul.f32 %v1905, %v1905
    %v1914 = vmul.f32 %v1906, %v1906
    %v1915 = vmul.f32 %v1907, %v1907
    %v1916 = vmul.f32 %v1908, %v1908
    %v1917 = vsel %vm223, %v1909, 0.0
    %1918 = vadd.xlane.f32.xlu0 %v1917
    %v1919 = vpop.xlane.xlu0 %1918
    %v1920 = vsel %vm223, %v1910, 0.0
    %1921 = vadd.xlane.f32.xlu0 %v1920
    %v1922 = vpop.xlane.xlu0 %1921
    %v1923 = vsel %vm223, %v1911, 0.0
    %1924 = vadd.xlane.f32.xlu0 %v1923
    %v1925 = vpop.xlane.xlu0 %1924
    %v1926 = vsel %vm223, %v1912, 0.0
    %1927 = vadd.xlane.f32.xlu0 %v1926
    %v1928 = vpop.xlane.xlu0 %1927
    %v1929 = vsel %vm223, %v1913, 0.0
    %1930 = vadd.xlane.f32.xlu0 %v1929
    %v1931 = vpop.xlane.xlu0 %1930
    %v1932 = vsel %vm223, %v1914, 0.0
    %1933 = vadd.xlane.f32.xlu0 %v1932
    %v1934 = vpop.xlane.xlu0 %1933
    %v1935 = vsel %vm223, %v1915, 0.0
    %1936 = vadd.xlane.f32.xlu0 %v1935
    %v1937 = vpop.xlane.xlu0 %1936
    %v1938 = vsel %vm223, %v1916, 0.0
    %1939 = vadd.xlane.f32.xlu0 %v1938
    %v1940 = vpop.xlane.xlu0 %1939
    %v1941 = vmul.f32 %v1919, %v254
    %v1942 = vmul.f32 %v1922, %v254
    %v1943 = vmul.f32 %v1925, %v254
    %v1944 = vmul.f32 %v1928, %v254
    %v1945 = vmul.f32 %v1931, %v254
    %v1946 = vmul.f32 %v1934, %v254
    %v1947 = vmul.f32 %v1937, %v254
    %v1948 = vmul.f32 %v1940, %v254
    %v1949 = vadd.f32 %v1941, 1e-05
    %v1950 = vadd.f32 %v1942, 1e-05
    %v1951 = vadd.f32 %v1943, 1e-05
    %v1952 = vadd.f32 %v1944, 1e-05
    %v1953 = vadd.f32 %v1945, 1e-05
    %v1954 = vadd.f32 %v1946, 1e-05
    %v1955 = vadd.f32 %v1947, 1e-05
    %v1956 = vadd.f32 %v1948, 1e-05
    %v1957 = vrsqrt.pop %v1949
    %v1958 = vmul.f32 %v1957, %v1949
    %v1959 = vmul.f32 %v1958, %v1957
    %v1960 = vmul.f32 0.5, %v1959
    %v1961 = vsub.f32 1.5, %v1960
    %v1962 = vmul.f32 %v1957, %v1961
    %vm1963 = vweird.f32 %v1949
    %vm1964 = vweird.f32 %v1957
    %vm1965 = vmor %vm1963, %vm1964
    %v1966 = vsel %vm1965, %v1957, %v1962
    %v1967 = vrsqrt.pop %v1950
    %v1968 = vmul.f32 %v1967, %v1950
    %v1969 = vmul.f32 %v1968, %v1967
    %v1970 = vmul.f32 0.5, %v1969
    %v1971 = vsub.f32 1.5, %v1970
    %v1972 = vmul.f32 %v1967, %v1971
    %vm1973 = vweird.f32 %v1950
    %vm1974 = vweird.f32 %v1967
    %vm1975 = vmor %vm1973, %vm1974
    %v1976 = vsel %vm1975, %v1967, %v1972
    %v1977 = vrsqrt.pop %v1951
    %v1978 = vmul.f32 %v1977, %v1951
    %v1979 = vmul.f32 %v1978, %v1977
    %v1980 = vmul.f32 0.5, %v1979
    %v1981 = vsub.f32 1.5, %v1980
    %v1982 = vmul.f32 %v1977, %v1981
    %vm1983 = vweird.f32 %v1951
    %vm1984 = vweird.f32 %v1977
    %vm1985 = vmor %vm1983, %vm1984
    %v1986 = vsel %vm1985, %v1977, %v1982
    %v1987 = vrsqrt.pop %v1952
    %v1988 = vmul.f32 %v1987, %v1952
    %v1989 = vmul.f32 %v1988, %v1987
    %v1990 = vmul.f32 0.5, %v1989
    %v1991 = vsub.f32 1.5, %v1990
    %v1992 = vmul.f32 %v1987, %v1991
    %vm1993 = vweird.f32 %v1952
    %vm1994 = vweird.f32 %v1987
    %vm1995 = vmor %vm1993, %vm1994
    %v1996 = vsel %vm1995, %v1987, %v1992
    %v1997 = vrsqrt.pop %v1953
    %v1998 = vmul.f32 %v1997, %v1953
    %v1999 = vmul.f32 %v1998, %v1997
    %v2000 = vmul.f32 0.5, %v1999
    %v2001 = vsub.f32 1.5, %v2000
    %v2002 = vmul.f32 %v1997, %v2001
    %vm2003 = vweird.f32 %v1953
    %vm2004 = vweird.f32 %v1997
    %vm2005 = vmor %vm2003, %vm2004
    %v2006 = vsel %vm2005, %v1997, %v2002
    %v2007 = vrsqrt.pop %v1954
    %v2008 = vmul.f32 %v2007, %v1954
    %v2009 = vmul.f32 %v2008, %v2007
    %v2010 = vmul.f32 0.5, %v2009
    %v2011 = vsub.f32 1.5, %v2010
    %v2012 = vmul.f32 %v2007, %v2011
    %vm2013 = vweird.f32 %v1954
    %vm2014 = vweird.f32 %v2007
    %vm2015 = vmor %vm2013, %vm2014
    %v2016 = vsel %vm2015, %v2007, %v2012
    %v2017 = vrsqrt.pop %v1955
    %v2018 = vmul.f32 %v2017, %v1955
    %v2019 = vmul.f32 %v2018, %v2017
    %v2020 = vmul.f32 0.5, %v2019
    %v2021 = vsub.f32 1.5, %v2020
    %v2022 = vmul.f32 %v2017, %v2021
    %vm2023 = vweird.f32 %v1955
    %vm2024 = vweird.f32 %v2017
    %vm2025 = vmor %vm2023, %vm2024
    %v2026 = vsel %vm2025, %v2017, %v2022
    %v2027 = vrsqrt.pop %v1956
    %v2028 = vmul.f32 %v2027, %v1956
    %v2029 = vmul.f32 %v2028, %v2027
    %v2030 = vmul.f32 0.5, %v2029
    %v2031 = vsub.f32 1.5, %v2030
    %v2032 = vmul.f32 %v2027, %v2031
    %vm2033 = vweird.f32 %v1956
    %vm2034 = vweird.f32 %v2027
    %vm2035 = vmor %vm2033, %vm2034
    %v2036 = vsel %vm2035, %v2027, %v2032
    %v2037 = vmul.f32 %v1901, %v1966
    %v2038 = vmul.f32 %v1902, %v1976
    %v2039 = vmul.f32 %v1903, %v1986
    %v2040 = vmul.f32 %v1904, %v1996
    %v2041 = vmul.f32 %v1905, %v2006
    %v2042 = vmul.f32 %v1906, %v2016
    %v2043 = vmul.f32 %v1907, %v2026
    %v2044 = vmul.f32 %v1908, %v2036
    %v2046 = vperm.slane %v1866, 0
    %v2048 = vmul.f32 %v2037, %v2046
    %v2049 = vmul.f32 %v2038, %v2046
    %v2050 = vmul.f32 %v2039, %v2046
    %v2051 = vmul.f32 %v2040, %v2046
    %v2052 = vmul.f32 %v2041, %v2046
    %v2053 = vmul.f32 %v2042, %v2046
    %v2054 = vmul.f32 %v2043, %v2046
    %v2055 = vmul.f32 %v2044, %v2046
    %v2057 = vperm.slane %v1868, 0
    %v2059 = vadd.f32 %v2048, %v2057
    %v2060 = vadd.f32 %v2049, %v2057
    %v2061 = vadd.f32 %v2050, %v2057
    %v2062 = vadd.f32 %v2051, %v2057
    %v2063 = vadd.f32 %v2052, %v2057
    %v2064 = vadd.f32 %v2053, %v2057
    %v2065 = vadd.f32 %v2054, %v2057
    %v2066 = vadd.f32 %v2055, %v2057
    %v2067 = vpack.c.bf16 %v2060, %v2059
    %v2068 = vpack.c.bf16 %v2062, %v2061
    %v2069 = vpack.c.bf16 %v2064, %v2063
    %v2070 = vpack.c.bf16 %v2066, %v2065
    %v2071 = vld [vmem:[%s8] sm:$0xff]
    %v2072 = vld [vmem:[%s8 + $0x8] sm:$0xff]
    %v2073 = vld [vmem:[%s8 + $0x10] sm:$0xff]
    %v2074 = vld [vmem:[%s8 + $0x18] sm:$0xff]
    %v2075 = vld [vmem:[%s8 + $0x20] sm:$0xff]
    %v2076 = vld [vmem:[%s8 + $0x28] sm:$0xff]
    %v2077 = vld [vmem:[%s8 + $0x30] sm:$0xff]
    %v2078 = vld [vmem:[%s8 + $0x38] sm:$0xff]
    %v2079 = vld [vmem:[%s9] sm:$0x3]
    %v2081 = vperm.slane %v2079, 0
    %v2082 = vperm.slane %v2079, 1
    %v2093 = vunpack.c.l.b16 %v2071
    %v2094 = vunpack.c.h.b16 %v2071
    %v2095 = vunpack.c.l.b16 %v2072
    %v2096 = vunpack.c.h.b16 %v2072
    %v2097 = vunpack.c.l.b16 %v2073
    %v2098 = vunpack.c.h.b16 %v2073
    %v2099 = vunpack.c.l.b16 %v2074
    %v2100 = vunpack.c.h.b16 %v2074
    %v2101 = vunpack.c.l.b16 %v2075
    %v2102 = vunpack.c.h.b16 %v2075
    %v2103 = vunpack.c.l.b16 %v2076
    %v2104 = vunpack.c.h.b16 %v2076
    %v2105 = vunpack.c.l.b16 %v2077
    %v2106 = vunpack.c.h.b16 %v2077
    %v2107 = vunpack.c.l.b16 %v2078
    %v2108 = vunpack.c.h.b16 %v2078
    %v2109 = vpack.c.b16 %v2095, %v2093
    %v2110 = vpack.c.b16 %v2096, %v2094
    %v2111 = vpack.c.b16 %v2099, %v2097
    %v2112 = vpack.c.b16 %v2100, %v2098
    %v2113 = vpack.c.b16 %v2103, %v2101
    %v2114 = vpack.c.b16 %v2104, %v2102
    %v2115 = vpack.c.b16 %v2107, %v2105
    %v2116 = vpack.c.b16 %v2108, %v2106
    %v2126 = vsel %vm223, %v2067, 0
    %v2129 = vsel %vm223, %v2068, 0
    %v2132 = vsel %vm223, %v2069, 0
    %v2135 = vsel %vm223, %v2070, 0
    %2137 = vmatpush.bf16.msra.mxu0 0
    %2138 = vmatpush.bf16.msra.mxu0 0
    %2139 = vmatpush.bf16.msra.mxu0 0
    %2140 = vmatpush.bf16.msra.mxu0 0
    %2141 = vmatpush.bf16.msra.mxu0 %v2115
    %2142 = vmatpush.bf16.msra.mxu0 %v2113
    %2143 = vmatpush.bf16.msra.mxu0 %v2111
    %2144 = vmatpush.bf16.msra.mxu0 %v2109
    %2145 = vmatmul.bf16.gmra.mxu0 %v2126
    %v2146 = vpop.f32.mrf.mxu0
    %v2147 = vadd.f32 %v2081, %v2146
    %v2148 = vpop.f32.mrf.mxu0
    %v2149 = vadd.f32 %v2081, %v2148
    %2150 = vmatmul.bf16.gmra.mxu0 %v2129
    %v2151 = vpop.f32.mrf.mxu0
    %v2152 = vadd.f32 %v2081, %v2151
    %v2153 = vpop.f32.mrf.mxu0
    %v2154 = vadd.f32 %v2081, %v2153
    %2155 = vmatmul.bf16.gmra.mxu0 %v2132
    %v2156 = vpop.f32.mrf.mxu0
    %v2157 = vadd.f32 %v2081, %v2156
    %v2158 = vpop.f32.mrf.mxu0
    %v2159 = vadd.f32 %v2081, %v2158
    %2160 = vmatmul.bf16.gmra.mxu0 %v2135
    %v2161 = vpop.f32.mrf.mxu0
    %v2162 = vadd.f32 %v2081, %v2161
    %v2163 = vpop.f32.mrf.mxu0
    %v2164 = vadd.f32 %v2081, %v2163
    %2165 = vdwg.mxu0
    %2166 = vmatpush.bf16.msra.mxu0 0
    %2167 = vmatpush.bf16.msra.mxu0 0
    %2168 = vmatpush.bf16.msra.mxu0 0
    %2169 = vmatpush.bf16.msra.mxu0 0
    %2170 = vmatpush.bf16.msra.mxu0 %v2116
    %2171 = vmatpush.bf16.msra.mxu0 %v2114
    %2172 = vmatpush.bf16.msra.mxu0 %v2112
    %2173 = vmatpush.bf16.msra.mxu0 %v2110
    %2174 = vmatmul.bf16.gmra.mxu0 %v2126
    %v2175 = vpop.f32.mrf.mxu0
    %v2176 = vadd.f32 %v2082, %v2175
    %v2177 = vpop.f32.mrf.mxu0
    %v2178 = vadd.f32 %v2082, %v2177
    %2179 = vmatmul.bf16.gmra.mxu0 %v2129
    %v2180 = vpop.f32.mrf.mxu0
    %v2181 = vadd.f32 %v2082, %v2180
    %v2182 = vpop.f32.mrf.mxu0
    %v2183 = vadd.f32 %v2082, %v2182
    %2184 = vmatmul.bf16.gmra.mxu0 %v2132
    %v2185 = vpop.f32.mrf.mxu0
    %v2186 = vadd.f32 %v2082, %v2185
    %v2187 = vpop.f32.mrf.mxu0
    %v2188 = vadd.f32 %v2082, %v2187
    %2189 = vmatmul.bf16.gmra.mxu0 %v2135
    %v2190 = vpop.f32.mrf.mxu0
    %v2191 = vadd.f32 %v2082, %v2190
    %v2192 = vpop.f32.mrf.mxu0
    %v2193 = vadd.f32 %v2082, %v2192
    %2194 = vdwg.mxu0
    %v2195 = vmax.f32 %v2147, 0.0
    %v2196 = vmax.f32 %v2176, 0.0
    %v2197 = vmax.f32 %v2149, 0.0
    %v2198 = vmax.f32 %v2178, 0.0
    %v2199 = vmax.f32 %v2152, 0.0
    %v2200 = vmax.f32 %v2181, 0.0
    %v2201 = vmax.f32 %v2154, 0.0
    %v2202 = vmax.f32 %v2183, 0.0
    %v2203 = vmax.f32 %v2157, 0.0
    %v2204 = vmax.f32 %v2186, 0.0
    %v2205 = vmax.f32 %v2159, 0.0
    %v2206 = vmax.f32 %v2188, 0.0
    %v2207 = vmax.f32 %v2162, 0.0
    %v2208 = vmax.f32 %v2191, 0.0
    %v2209 = vmax.f32 %v2164, 0.0
    %v2210 = vmax.f32 %v2193, 0.0
    %v2211 = vpack.c.bf16 %v2197, %v2195
    %v2212 = vpack.c.bf16 %v2198, %v2196
    %v2213 = vpack.c.bf16 %v2201, %v2199
    %v2214 = vpack.c.bf16 %v2202, %v2200
    %v2215 = vpack.c.bf16 %v2205, %v2203
    %v2216 = vpack.c.bf16 %v2206, %v2204
    %v2217 = vpack.c.bf16 %v2209, %v2207
    %v2218 = vpack.c.bf16 %v2210, %v2208
    %v2219 = vld [vmem:[%s10] sm:$0xf]
    %v2220 = vld [vmem:[%s10 + $0x4] sm:$0xf]
    %v2221 = vld [vmem:[%s10 + $0x8] sm:$0xf]
    %v2222 = vld [vmem:[%s10 + $0xc] sm:$0xf]
    %v2223 = vld [vmem:[%s10 + $0x10] sm:$0xf]
    %v2224 = vld [vmem:[%s10 + $0x14] sm:$0xf]
    %v2225 = vld [vmem:[%s10 + $0x18] sm:$0xf]
    %v2226 = vld [vmem:[%s10 + $0x1c] sm:$0xf]
    %v2227 = vld [vmem:[%s10 + $0x20] sm:$0xf]
    %v2228 = vld [vmem:[%s10 + $0x24] sm:$0xf]
    %v2229 = vld [vmem:[%s10 + $0x28] sm:$0xf]
    %v2230 = vld [vmem:[%s10 + $0x2c] sm:$0xf]
    %v2231 = vld [vmem:[%s10 + $0x30] sm:$0xf]
    %v2232 = vld [vmem:[%s10 + $0x34] sm:$0xf]
    %v2233 = vld [vmem:[%s10 + $0x38] sm:$0xf]
    %v2234 = vld [vmem:[%s10 + $0x3c] sm:$0xf]
    %v2235 = vld [vmem:[%s10 + $0x40] sm:$0xf]
    %v2236 = vld [vmem:[%s10 + $0x44] sm:$0xf]
    %v2237 = vld [vmem:[%s10 + $0x48] sm:$0xf]
    %v2238 = vld [vmem:[%s10 + $0x4c] sm:$0xf]
    %v2239 = vld [vmem:[%s10 + $0x50] sm:$0xf]
    %v2240 = vld [vmem:[%s10 + $0x54] sm:$0xf]
    %v2241 = vld [vmem:[%s10 + $0x58] sm:$0xf]
    %v2242 = vld [vmem:[%s10 + $0x5c] sm:$0xf]
    %v2243 = vld [vmem:[%s10 + $0x60] sm:$0xf]
    %v2244 = vld [vmem:[%s10 + $0x64] sm:$0xf]
    %v2245 = vld [vmem:[%s10 + $0x68] sm:$0xf]
    %v2246 = vld [vmem:[%s10 + $0x6c] sm:$0xf]
    %v2247 = vld [vmem:[%s10 + $0x70] sm:$0xf]
    %v2248 = vld [vmem:[%s10 + $0x74] sm:$0xf]
    %v2249 = vld [vmem:[%s10 + $0x78] sm:$0xf]
    %v2250 = vld [vmem:[%s10 + $0x7c] sm:$0xf]
    %v2251 = vld [vmem:[%s11] sm:$0x1]
    %v2253 = vperm.slane %v2251, 0
    %v2287 = vunpack.c.l.b16 %v2219
    %v2288 = vunpack.c.l.b16 %v2220
    %v2289 = vunpack.c.l.b16 %v2221
    %v2290 = vunpack.c.l.b16 %v2222
    %v2291 = vunpack.c.l.b16 %v2223
    %v2292 = vunpack.c.l.b16 %v2224
    %v2293 = vunpack.c.l.b16 %v2225
    %v2294 = vunpack.c.l.b16 %v2226
    %v2295 = vunpack.c.l.b16 %v2227
    %v2296 = vunpack.c.l.b16 %v2228
    %v2297 = vunpack.c.l.b16 %v2229
    %v2298 = vunpack.c.l.b16 %v2230
    %v2299 = vunpack.c.l.b16 %v2231
    %v2300 = vunpack.c.l.b16 %v2232
    %v2301 = vunpack.c.l.b16 %v2233
    %v2302 = vunpack.c.l.b16 %v2234
    %v2303 = vunpack.c.l.b16 %v2235
    %v2304 = vunpack.c.l.b16 %v2236
    %v2305 = vunpack.c.l.b16 %v2237
    %v2306 = vunpack.c.l.b16 %v2238
    %v2307 = vunpack.c.l.b16 %v2239
    %v2308 = vunpack.c.l.b16 %v2240
    %v2309 = vunpack.c.l.b16 %v2241
    %v2310 = vunpack.c.l.b16 %v2242
    %v2311 = vunpack.c.l.b16 %v2243
    %v2312 = vunpack.c.l.b16 %v2244
    %v2313 = vunpack.c.l.b16 %v2245
    %v2314 = vunpack.c.l.b16 %v2246
    %v2315 = vunpack.c.l.b16 %v2247
    %v2316 = vunpack.c.l.b16 %v2248
    %v2317 = vunpack.c.l.b16 %v2249
    %v2318 = vunpack.c.l.b16 %v2250
    %v2319 = vpack.c.b16 %v2288, %v2287
    %v2320 = vpack.c.b16 %v2290, %v2289
    %v2321 = vpack.c.b16 %v2292, %v2291
    %v2322 = vpack.c.b16 %v2294, %v2293
    %v2323 = vpack.c.b16 %v2296, %v2295
    %v2324 = vpack.c.b16 %v2298, %v2297
    %v2325 = vpack.c.b16 %v2300, %v2299
    %v2326 = vpack.c.b16 %v2302, %v2301
    %v2327 = vpack.c.b16 %v2304, %v2303
    %v2328 = vpack.c.b16 %v2306, %v2305
    %v2329 = vpack.c.b16 %v2308, %v2307
    %v2330 = vpack.c.b16 %v2310, %v2309
    %v2331 = vpack.c.b16 %v2312, %v2311
    %v2332 = vpack.c.b16 %v2314, %v2313
    %v2333 = vpack.c.b16 %v2316, %v2315
    %v2334 = vpack.c.b16 %v2318, %v2317
    %2351 = vmatpush.bf16.msra.mxu0 %v2326
    %2352 = vmatpush.bf16.msra.mxu0 %v2325
    %2353 = vmatpush.bf16.msra.mxu0 %v2324
    %2354 = vmatpush.bf16.msra.mxu0 %v2323
    %2355 = vmatpush.bf16.msra.mxu0 %v2322
    %2356 = vmatpush.bf16.msra.mxu0 %v2321
    %2357 = vmatpush.bf16.msra.mxu0 %v2320
    %2358 = vmatpush.bf16.msra.mxu0 %v2319
    %2359 = vmatmul.bf16.gmra.mxu0 %v2211
    %v2360 = vpop.f32.mrf.mxu0
    %v2361 = vadd.f32 %v2253, %v2360
    %v2362 = vpop.f32.mrf.mxu0
    %v2363 = vadd.f32 %v2253, %v2362
    %2364 = vmatmul.bf16.gmra.mxu0 %v2213
    %v2365 = vpop.f32.mrf.mxu0
    %v2366 = vadd.f32 %v2253, %v2365
    %v2367 = vpop.f32.mrf.mxu0
    %v2368 = vadd.f32 %v2253, %v2367
    %2369 = vmatmul.bf16.gmra.mxu0 %v2215
    %v2370 = vpop.f32.mrf.mxu0
    %v2371 = vadd.f32 %v2253, %v2370
    %v2372 = vpop.f32.mrf.mxu0
    %v2373 = vadd.f32 %v2253, %v2372
    %2374 = vmatmul.bf16.gmra.mxu0 %v2217
    %v2375 = vpop.f32.mrf.mxu0
    %v2376 = vadd.f32 %v2253, %v2375
    %v2377 = vpop.f32.mrf.mxu0
    %v2378 = vadd.f32 %v2253, %v2377
    %2379 = vdwg.mxu0
    %2380 = vmatpush.bf16.msra.mxu0 %v2334
    %2381 = vmatpush.bf16.msra.mxu0 %v2333
    %2382 = vmatpush.bf16.msra.mxu0 %v2332
    %2383 = vmatpush.bf16.msra.mxu0 %v2331
    %2384 = vmatpush.bf16.msra.mxu0 %v2330
    %2385 = vmatpush.bf16.msra.mxu0 %v2329
    %2386 = vmatpush.bf16.msra.mxu0 %v2328
    %2387 = vmatpush.bf16.msra.mxu0 %v2327
    %2388 = vmatmul.bf16.gmra.mxu0 %v2212
    %v2389 = vpop.f32.mrf.mxu0
    %v2390 = vadd.f32 %v2361, %v2389
    %v2391 = vpop.f32.mrf.mxu0
    %v2392 = vadd.f32 %v2363, %v2391
    %2393 = vmatmul.bf16.gmra.mxu0 %v2214
    %v2394 = vpop.f32.mrf.mxu0
    %v2395 = vadd.f32 %v2366, %v2394
    %v2396 = vpop.f32.mrf.mxu0
    %v2397 = vadd.f32 %v2368, %v2396
    %2398 = vmatmul.bf16.gmra.mxu0 %v2216
    %v2399 = vpop.f32.mrf.mxu0
    %v2400 = vadd.f32 %v2371, %v2399
    %v2401 = vpop.f32.mrf.mxu0
    %v2402 = vadd.f32 %v2373, %v2401
    %2403 = vmatmul.bf16.gmra.mxu0 %v2218
    %v2404 = vpop.f32.mrf.mxu0
    %v2405 = vadd.f32 %v2376, %v2404
    %v2406 = vpop.f32.mrf.mxu0
    %v2407 = vadd.f32 %v2378, %v2406
    %2408 = vdwg.mxu0
    %v2409 = vadd.f32 %v1857, %v2390
    %v2410 = vadd.f32 %v1858, %v2392
    %v2411 = vadd.f32 %v1859, %v2395
    %v2412 = vadd.f32 %v1860, %v2397
    %v2413 = vadd.f32 %v1861, %v2400
    %v2414 = vadd.f32 %v1862, %v2402
    %v2415 = vadd.f32 %v1863, %v2405
    %v2416 = vadd.f32 %v1864, %v2407
    %s2417 = scalar_lea.vmem %s3, 2
    %v2418 = vld [vmem:[%s2417] sm:$0x1]
    %s2419 = scalar_lea.vmem %s4, 2
    %v2420 = vld [vmem:[%s2419] sm:$0x1]
    %v2421 = vsel %vm223, %v2409, 0.0
    %2422 = vadd.xlane.f32.xlu0 %v2421
    %v2423 = vpop.xlane.xlu0 %2422
    %v2424 = vsel %vm223, %v2410, 0.0
    %2425 = vadd.xlane.f32.xlu0 %v2424
    %v2426 = vpop.xlane.xlu0 %2425
    %v2427 = vsel %vm223, %v2411, 0.0
    %2428 = vadd.xlane.f32.xlu0 %v2427
    %v2429 = vpop.xlane.xlu0 %2428
    %v2430 = vsel %vm223, %v2412, 0.0
    %2431 = vadd.xlane.f32.xlu0 %v2430
    %v2432 = vpop.xlane.xlu0 %2431
    %v2433 = vsel %vm223, %v2413, 0.0
    %2434 = vadd.xlane.f32.xlu0 %v2433
    %v2435 = vpop.xlane.xlu0 %2434
    %v2436 = vsel %vm223, %v2414, 0.0
    %2437 = vadd.xlane.f32.xlu0 %v2436
    %v2438 = vpop.xlane.xlu0 %2437
    %v2439 = vsel %vm223, %v2415, 0.0
    %2440 = vadd.xlane.f32.xlu0 %v2439
    %v2441 = vpop.xlane.xlu0 %2440
    %v2442 = vsel %vm223, %v2416, 0.0
    %2443 = vadd.xlane.f32.xlu0 %v2442
    %v2444 = vpop.xlane.xlu0 %2443
    %v2445 = vmul.f32 %v2423, %v254
    %v2446 = vmul.f32 %v2426, %v254
    %v2447 = vmul.f32 %v2429, %v254
    %v2448 = vmul.f32 %v2432, %v254
    %v2449 = vmul.f32 %v2435, %v254
    %v2450 = vmul.f32 %v2438, %v254
    %v2451 = vmul.f32 %v2441, %v254
    %v2452 = vmul.f32 %v2444, %v254
    %v2453 = vsub.f32 %v2409, %v2445
    %v2454 = vsub.f32 %v2410, %v2446
    %v2455 = vsub.f32 %v2411, %v2447
    %v2456 = vsub.f32 %v2412, %v2448
    %v2457 = vsub.f32 %v2413, %v2449
    %v2458 = vsub.f32 %v2414, %v2450
    %v2459 = vsub.f32 %v2415, %v2451
    %v2460 = vsub.f32 %v2416, %v2452
    %v2461 = vmul.f32 %v2453, %v2453
    %v2462 = vmul.f32 %v2454, %v2454
    %v2463 = vmul.f32 %v2455, %v2455
    %v2464 = vmul.f32 %v2456, %v2456
    %v2465 = vmul.f32 %v2457, %v2457
    %v2466 = vmul.f32 %v2458, %v2458
    %v2467 = vmul.f32 %v2459, %v2459
    %v2468 = vmul.f32 %v2460, %v2460
    %v2469 = vsel %vm223, %v2461, 0.0
    %2470 = vadd.xlane.f32.xlu0 %v2469
    %v2471 = vpop.xlane.xlu0 %2470
    %v2472 = vsel %vm223, %v2462, 0.0
    %2473 = vadd.xlane.f32.xlu0 %v2472
    %v2474 = vpop.xlane.xlu0 %2473
    %v2475 = vsel %vm223, %v2463, 0.0
    %2476 = vadd.xlane.f32.xlu0 %v2475
    %v2477 = vpop.xlane.xlu0 %2476
    %v2478 = vsel %vm223, %v2464, 0.0
    %2479 = vadd.xlane.f32.xlu0 %v2478
    %v2480 = vpop.xlane.xlu0 %2479
    %v2481 = vsel %vm223, %v2465, 0.0
    %2482 = vadd.xlane.f32.xlu0 %v2481
    %v2483 = vpop.xlane.xlu0 %2482
    %v2484 = vsel %vm223, %v2466, 0.0
    %2485 = vadd.xlane.f32.xlu0 %v2484
    %v2486 = vpop.xlane.xlu0 %2485
    %v2487 = vsel %vm223, %v2467, 0.0
    %2488 = vadd.xlane.f32.xlu0 %v2487
    %v2489 = vpop.xlane.xlu0 %2488
    %v2490 = vsel %vm223, %v2468, 0.0
    %2491 = vadd.xlane.f32.xlu0 %v2490
    %v2492 = vpop.xlane.xlu0 %2491
    %v2493 = vmul.f32 %v2471, %v254
    %v2494 = vmul.f32 %v2474, %v254
    %v2495 = vmul.f32 %v2477, %v254
    %v2496 = vmul.f32 %v2480, %v254
    %v2497 = vmul.f32 %v2483, %v254
    %v2498 = vmul.f32 %v2486, %v254
    %v2499 = vmul.f32 %v2489, %v254
    %v2500 = vmul.f32 %v2492, %v254
    %v2501 = vadd.f32 %v2493, 1e-05
    %v2502 = vadd.f32 %v2494, 1e-05
    %v2503 = vadd.f32 %v2495, 1e-05
    %v2504 = vadd.f32 %v2496, 1e-05
    %v2505 = vadd.f32 %v2497, 1e-05
    %v2506 = vadd.f32 %v2498, 1e-05
    %v2507 = vadd.f32 %v2499, 1e-05
    %v2508 = vadd.f32 %v2500, 1e-05
    %v2509 = vrsqrt.pop %v2501
    %v2510 = vmul.f32 %v2509, %v2501
    %v2511 = vmul.f32 %v2510, %v2509
    %v2512 = vmul.f32 0.5, %v2511
    %v2513 = vsub.f32 1.5, %v2512
    %v2514 = vmul.f32 %v2509, %v2513
    %vm2515 = vweird.f32 %v2501
    %vm2516 = vweird.f32 %v2509
    %vm2517 = vmor %vm2515, %vm2516
    %v2518 = vsel %vm2517, %v2509, %v2514
    %v2519 = vrsqrt.pop %v2502
    %v2520 = vmul.f32 %v2519, %v2502
    %v2521 = vmul.f32 %v2520, %v2519
    %v2522 = vmul.f32 0.5, %v2521
    %v2523 = vsub.f32 1.5, %v2522
    %v2524 = vmul.f32 %v2519, %v2523
    %vm2525 = vweird.f32 %v2502
    %vm2526 = vweird.f32 %v2519
    %vm2527 = vmor %vm2525, %vm2526
    %v2528 = vsel %vm2527, %v2519, %v2524
    %v2529 = vrsqrt.pop %v2503
    %v2530 = vmul.f32 %v2529, %v2503
    %v2531 = vmul.f32 %v2530, %v2529
    %v2532 = vmul.f32 0.5, %v2531
    %v2533 = vsub.f32 1.5, %v2532
    %v2534 = vmul.f32 %v2529, %v2533
    %vm2535 = vweird.f32 %v2503
    %vm2536 = vweird.f32 %v2529
    %vm2537 = vmor %vm2535, %vm2536
    %v2538 = vsel %vm2537, %v2529, %v2534
    %v2539 = vrsqrt.pop %v2504
    %v2540 = vmul.f32 %v2539, %v2504
    %v2541 = vmul.f32 %v2540, %v2539
    %v2542 = vmul.f32 0.5, %v2541
    %v2543 = vsub.f32 1.5, %v2542
    %v2544 = vmul.f32 %v2539, %v2543
    %vm2545 = vweird.f32 %v2504
    %vm2546 = vweird.f32 %v2539
    %vm2547 = vmor %vm2545, %vm2546
    %v2548 = vsel %vm2547, %v2539, %v2544
    %v2549 = vrsqrt.pop %v2505
    %v2550 = vmul.f32 %v2549, %v2505
    %v2551 = vmul.f32 %v2550, %v2549
    %v2552 = vmul.f32 0.5, %v2551
    %v2553 = vsub.f32 1.5, %v2552
    %v2554 = vmul.f32 %v2549, %v2553
    %vm2555 = vweird.f32 %v2505
    %vm2556 = vweird.f32 %v2549
    %vm2557 = vmor %vm2555, %vm2556
    %v2558 = vsel %vm2557, %v2549, %v2554
    %v2559 = vrsqrt.pop %v2506
    %v2560 = vmul.f32 %v2559, %v2506
    %v2561 = vmul.f32 %v2560, %v2559
    %v2562 = vmul.f32 0.5, %v2561
    %v2563 = vsub.f32 1.5, %v2562
    %v2564 = vmul.f32 %v2559, %v2563
    %vm2565 = vweird.f32 %v2506
    %vm2566 = vweird.f32 %v2559
    %vm2567 = vmor %vm2565, %vm2566
    %v2568 = vsel %vm2567, %v2559, %v2564
    %v2569 = vrsqrt.pop %v2507
    %v2570 = vmul.f32 %v2569, %v2507
    %v2571 = vmul.f32 %v2570, %v2569
    %v2572 = vmul.f32 0.5, %v2571
    %v2573 = vsub.f32 1.5, %v2572
    %v2574 = vmul.f32 %v2569, %v2573
    %vm2575 = vweird.f32 %v2507
    %vm2576 = vweird.f32 %v2569
    %vm2577 = vmor %vm2575, %vm2576
    %v2578 = vsel %vm2577, %v2569, %v2574
    %v2579 = vrsqrt.pop %v2508
    %v2580 = vmul.f32 %v2579, %v2508
    %v2581 = vmul.f32 %v2580, %v2579
    %v2582 = vmul.f32 0.5, %v2581
    %v2583 = vsub.f32 1.5, %v2582
    %v2584 = vmul.f32 %v2579, %v2583
    %vm2585 = vweird.f32 %v2508
    %vm2586 = vweird.f32 %v2579
    %vm2587 = vmor %vm2585, %vm2586
    %v2588 = vsel %vm2587, %v2579, %v2584
    %v2589 = vmul.f32 %v2453, %v2518
    %v2590 = vmul.f32 %v2454, %v2528
    %v2591 = vmul.f32 %v2455, %v2538
    %v2592 = vmul.f32 %v2456, %v2548
    %v2593 = vmul.f32 %v2457, %v2558
    %v2594 = vmul.f32 %v2458, %v2568
    %v2595 = vmul.f32 %v2459, %v2578
    %v2596 = vmul.f32 %v2460, %v2588
    %v2598 = vperm.slane %v2418, 0
    %v2600 = vmul.f32 %v2589, %v2598
    %v2601 = vmul.f32 %v2590, %v2598
    %v2602 = vmul.f32 %v2591, %v2598
    %v2603 = vmul.f32 %v2592, %v2598
    %v2604 = vmul.f32 %v2593, %v2598
    %v2605 = vmul.f32 %v2594, %v2598
    %v2606 = vmul.f32 %v2595, %v2598
    %v2607 = vmul.f32 %v2596, %v2598
    %v2609 = vperm.slane %v2420, 0
    %v2611 = vadd.f32 %v2600, %v2609
    %v2612 = vadd.f32 %v2601, %v2609
    %v2613 = vadd.f32 %v2602, %v2609
    %v2614 = vadd.f32 %v2603, %v2609
    %v2615 = vadd.f32 %v2604, %v2609
    %v2616 = vadd.f32 %v2605, %v2609
    %v2617 = vadd.f32 %v2606, %v2609
    %v2618 = vadd.f32 %v2607, %v2609
    %v2619 = vpack.c.bf16 %v2612, %v2611
    %v2620 = vpack.c.bf16 %v2614, %v2613
    %v2621 = vpack.c.bf16 %v2616, %v2615
    %v2622 = vpack.c.bf16 %v2618, %v2617
    %s2623 = scalar_lea.vmem %s5, 64
    %v2624 = vld [vmem:[%s2623] sm:$0xff]
    %v2625 = vld [vmem:[%s2623 + $0x8] sm:$0xff]
    %v2626 = vld [vmem:[%s2623 + $0x10] sm:$0xff]
    %v2627 = vld [vmem:[%s2623 + $0x18] sm:$0xff]
    %v2628 = vld [vmem:[%s2623 + $0x20] sm:$0xff]
    %v2629 = vld [vmem:[%s2623 + $0x28] sm:$0xff]
    %v2630 = vld [vmem:[%s2623 + $0x30] sm:$0xff]
    %v2631 = vld [vmem:[%s2623 + $0x38] sm:$0xff]
    %v2640 = vunpack.c.l.b16 %v2624
    %v2641 = vunpack.c.h.b16 %v2624
    %v2642 = vunpack.c.l.b16 %v2625
    %v2643 = vunpack.c.h.b16 %v2625
    %v2644 = vunpack.c.l.b16 %v2626
    %v2645 = vunpack.c.h.b16 %v2626
    %v2646 = vunpack.c.l.b16 %v2627
    %v2647 = vunpack.c.h.b16 %v2627
    %v2648 = vunpack.c.l.b16 %v2628
    %v2649 = vunpack.c.h.b16 %v2628
    %v2650 = vunpack.c.l.b16 %v2629
    %v2651 = vunpack.c.h.b16 %v2629
    %v2652 = vunpack.c.l.b16 %v2630
    %v2653 = vunpack.c.h.b16 %v2630
    %v2654 = vunpack.c.l.b16 %v2631
    %v2655 = vunpack.c.h.b16 %v2631
    %v2656 = vpack.c.b16 %v2642, %v2640
    %v2657 = vpack.c.b16 %v2643, %v2641
    %v2658 = vpack.c.b16 %v2646, %v2644
    %v2659 = vpack.c.b16 %v2647, %v2645
    %v2660 = vpack.c.b16 %v2650, %v2648
    %v2661 = vpack.c.b16 %v2651, %v2649
    %v2662 = vpack.c.b16 %v2654, %v2652
    %v2663 = vpack.c.b16 %v2655, %v2653
    %v2673 = vsel %vm223, %v2619, 0
    %v2676 = vsel %vm223, %v2620, 0
    %v2679 = vsel %vm223, %v2621, 0
    %v2682 = vsel %vm223, %v2622, 0
    %2684 = vmatpush.bf16.msra.mxu0 0
    %2685 = vmatpush.bf16.msra.mxu0 0
    %2686 = vmatpush.bf16.msra.mxu0 0
    %2687 = vmatpush.bf16.msra.mxu0 0
    %2688 = vmatpush.bf16.msra.mxu0 %v2662
    %2689 = vmatpush.bf16.msra.mxu0 %v2660
    %2690 = vmatpush.bf16.msra.mxu0 %v2658
    %2691 = vmatpush.bf16.msra.mxu0 %v2656
    %2692 = vmatmul.bf16.gmra.mxu0 %v2673
    %v2693 = vpop.f32.mrf.mxu0
    %v2694 = vadd.f32 0.0, %v2693
    %v2695 = vpop.f32.mrf.mxu0
    %v2696 = vadd.f32 0.0, %v2695
    %2697 = vmatmul.bf16.gmra.mxu0 %v2676
    %v2698 = vpop.f32.mrf.mxu0
    %v2699 = vadd.f32 0.0, %v2698
    %v2700 = vpop.f32.mrf.mxu0
    %v2701 = vadd.f32 0.0, %v2700
    %2702 = vmatmul.bf16.gmra.mxu0 %v2679
    %v2703 = vpop.f32.mrf.mxu0
    %v2704 = vadd.f32 0.0, %v2703
    %v2705 = vpop.f32.mrf.mxu0
    %v2706 = vadd.f32 0.0, %v2705
    %2707 = vmatmul.bf16.gmra.mxu0 %v2682
    %v2708 = vpop.f32.mrf.mxu0
    %v2709 = vadd.f32 0.0, %v2708
    %v2710 = vpop.f32.mrf.mxu0
    %v2711 = vadd.f32 0.0, %v2710
    %2712 = vdwg.mxu0
    %2713 = vmatpush.bf16.msra.mxu0 0
    %2714 = vmatpush.bf16.msra.mxu0 0
    %2715 = vmatpush.bf16.msra.mxu0 0
    %2716 = vmatpush.bf16.msra.mxu0 0
    %2717 = vmatpush.bf16.msra.mxu0 %v2663
    %2718 = vmatpush.bf16.msra.mxu0 %v2661
    %2719 = vmatpush.bf16.msra.mxu0 %v2659
    %2720 = vmatpush.bf16.msra.mxu0 %v2657
    %2721 = vmatmul.bf16.gmra.mxu0 %v2673
    %v2722 = vpop.f32.mrf.mxu0
    %v2723 = vadd.f32 0.0, %v2722
    %v2724 = vpop.f32.mrf.mxu0
    %v2725 = vadd.f32 0.0, %v2724
    %2726 = vmatmul.bf16.gmra.mxu0 %v2676
    %v2727 = vpop.f32.mrf.mxu0
    %v2728 = vadd.f32 0.0, %v2727
    %v2729 = vpop.f32.mrf.mxu0
    %v2730 = vadd.f32 0.0, %v2729
    %2731 = vmatmul.bf16.gmra.mxu0 %v2679
    %v2732 = vpop.f32.mrf.mxu0
    %v2733 = vadd.f32 0.0, %v2732
    %v2734 = vpop.f32.mrf.mxu0
    %v2735 = vadd.f32 0.0, %v2734
    %2736 = vmatmul.bf16.gmra.mxu0 %v2682
    %v2737 = vpop.f32.mrf.mxu0
    %v2738 = vadd.f32 0.0, %v2737
    %v2739 = vpop.f32.mrf.mxu0
    %v2740 = vadd.f32 0.0, %v2739
    %2741 = vdwg.mxu0
    %v2742 = vpack.c.bf16 %v2694, %v2694
    %v2743 = vpack.c.bf16 %v2696, %v2696
    %v2744 = vpack.c.bf16 %v2699, %v2699
    %v2745 = vpack.c.bf16 %v2701, %v2701
    %v2746 = vpack.c.bf16 %v2704, %v2704
    %v2747 = vpack.c.bf16 %v2706, %v2706
    %v2748 = vpack.c.bf16 %v2709, %v2709
    %v2749 = vpack.c.bf16 %v2711, %v2711
    %v2750 = vpack.c.bf16 %v2723, %v2723
    %v2751 = vpack.c.bf16 %v2725, %v2725
    %v2752 = vpack.c.bf16 %v2728, %v2728
    %v2753 = vpack.c.bf16 %v2730, %v2730
    %v2754 = vpack.c.bf16 %v2733, %v2733
    %v2755 = vpack.c.bf16 %v2735, %v2735
    %v2756 = vpack.c.bf16 %v2738, %v2738
    %v2757 = vpack.c.bf16 %v2740, %v2740
    %s2758 = scalar_lea.vmem %s6, 32
    %v2759 = vld [vmem:[%s2758] sm:$0xf]
    %v2760 = vld [vmem:[%s2758 + $0x4] sm:$0xf]
    %v2761 = vld [vmem:[%s2758 + $0x8] sm:$0xf]
    %v2762 = vld [vmem:[%s2758 + $0xc] sm:$0xf]
    %v2763 = vld [vmem:[%s2758 + $0x10] sm:$0xf]
    %v2764 = vld [vmem:[%s2758 + $0x14] sm:$0xf]
    %v2765 = vld [vmem:[%s2758 + $0x18] sm:$0xf]
    %v2766 = vld [vmem:[%s2758 + $0x1c] sm:$0xf]
    %v2771 = vunpack.c.l.b16 %v2742
    %v2772 = vunpack.c.l.b16 %v2743
    %v2773 = vunpack.c.l.b16 %v2744
    %v2774 = vunpack.c.l.b16 %v2745
    %v2775 = vpack.c.b16 %v2772, %v2771
    %v2776 = vpack.c.b16 %v2774, %v2773
    %2777 = vrot.lane.b32.xlu0 %v2775, 64
    %v2778 = vpop.permute.xlu0 %2777
    %2779 = vrot.lane.b32.xlu0 %v2776, 64
    %v2780 = vpop.permute.xlu0 %2779
    %v2782 = vsel %vm589, %v2775, 0
    %v2785 = vsel %vm589, %v2776, 0
    %v2788 = vsel %vm589, %v2778, 0
    %v2791 = vsel %vm589, %v2780, 0
    %2793 = vmatpush.bf16.xpose.msra.mxu0 0
    %2794 = vmatpush.bf16.xpose.msra.mxu0 0
    %2795 = vmatpush.bf16.xpose.msra.mxu0 0
    %2796 = vmatpush.bf16.xpose.msra.mxu0 0
    %2797 = vmatpush.bf16.xpose.msra.mxu0 0
    %2798 = vmatpush.bf16.xpose.msra.mxu0 0
    %2799 = vmatpush.bf16.xpose.msra.mxu0 %v2791
    %2800 = vmatpush.bf16.xpose.msra.mxu0 %v2788
    %2801 = vmatmul.bf16.gmra.mxu0 %v2782
    %v2802 = vpop.f32.mrf.mxu0
    %v2803 = vadd.f32 %v217, %v2802
    %v2804 = vpop.f32.mrf.mxu0
    %v2805 = vadd.f32 %v218, %v2804
    %2806 = vmatmul.bf16.gmra.mxu0 %v2785
    %v2807 = vpop.f32.mrf.mxu0
    %v2808 = vadd.f32 %v219, %v2807
    %v2809 = vpop.f32.mrf.mxu0
    %v2810 = vadd.f32 %v220, %v2809
    %2811 = vdwg.mxu0
    %v2816 = vunpack.c.l.b16 %v2746
    %v2817 = vunpack.c.l.b16 %v2747
    %v2818 = vunpack.c.l.b16 %v2748
    %v2819 = vunpack.c.l.b16 %v2749
    %v2820 = vpack.c.b16 %v2817, %v2816
    %v2821 = vpack.c.b16 %v2819, %v2818
    %2822 = vrot.lane.b32.xlu0 %v2820, 64
    %v2823 = vpop.permute.xlu0 %2822
    %2824 = vrot.lane.b32.xlu0 %v2821, 64
    %v2825 = vpop.permute.xlu0 %2824
    %v2827 = vsel %vm589, %v2820, 0
    %v2830 = vsel %vm589, %v2821, 0
    %v2833 = vsel %vm589, %v2823, 0
    %v2836 = vsel %vm589, %v2825, 0
    %2838 = vmatpush.bf16.xpose.msra.mxu0 0
    %2839 = vmatpush.bf16.xpose.msra.mxu0 0
    %2840 = vmatpush.bf16.xpose.msra.mxu0 0
    %2841 = vmatpush.bf16.xpose.msra.mxu0 0
    %2842 = vmatpush.bf16.xpose.msra.mxu0 0
    %2843 = vmatpush.bf16.xpose.msra.mxu0 0
    %2844 = vmatpush.bf16.xpose.msra.mxu0 %v2836
    %2845 = vmatpush.bf16.xpose.msra.mxu0 %v2833
    %2846 = vmatmul.bf16.gmra.mxu0 %v2827
    %v2847 = vpop.f32.mrf.mxu0
    %v2848 = vadd.f32 %v217, %v2847
    %v2849 = vpop.f32.mrf.mxu0
    %v2850 = vadd.f32 %v218, %v2849
    %2851 = vmatmul.bf16.gmra.mxu0 %v2830
    %v2852 = vpop.f32.mrf.mxu0
    %v2853 = vadd.f32 %v219, %v2852
    %v2854 = vpop.f32.mrf.mxu0
    %v2855 = vadd.f32 %v220, %v2854
    %2856 = vdwg.mxu0
    %v2857 = vsel %vm666, %v2803, -inf
    %2858 = vmax.xlane.f32.xlu0 %v2857
    %v2859 = vpop.xlane.xlu0 %2858
    %v2860 = vsel %vm666, %v2805, -inf
    %2861 = vmax.xlane.f32.xlu0 %v2860
    %v2862 = vpop.xlane.xlu0 %2861
    %v2863 = vsel %vm666, %v2808, -inf
    %2864 = vmax.xlane.f32.xlu0 %v2863
    %v2865 = vpop.xlane.xlu0 %2864
    %v2866 = vsel %vm666, %v2810, -inf
    %2867 = vmax.xlane.f32.xlu0 %v2866
    %v2868 = vpop.xlane.xlu0 %2867
    %v2869 = vsel %vm666, %v2848, -inf
    %2870 = vmax.xlane.f32.xlu0 %v2869
    %v2871 = vpop.xlane.xlu0 %2870
    %v2872 = vsel %vm666, %v2850, -inf
    %2873 = vmax.xlane.f32.xlu0 %v2872
    %v2874 = vpop.xlane.xlu0 %2873
    %v2875 = vsel %vm666, %v2853, -inf
    %2876 = vmax.xlane.f32.xlu0 %v2875
    %v2877 = vpop.xlane.xlu0 %2876
    %v2878 = vsel %vm666, %v2855, -inf
    %2879 = vmax.xlane.f32.xlu0 %v2878
    %v2880 = vpop.xlane.xlu0 %2879
    %v2881 = vsub.f32 %v2803, %v2859
    %v2882 = vsub.f32 %v2805, %v2862
    %v2883 = vsub.f32 %v2808, %v2865
    %v2884 = vsub.f32 %v2810, %v2868
    %v2885 = vsub.f32 %v2848, %v2871
    %v2886 = vsub.f32 %v2850, %v2874
    %v2887 = vsub.f32 %v2853, %v2877
    %v2888 = vsub.f32 %v2855, %v2880
    %v2889 = vmul.f32 %v2881, 1.442695
    %v2890 = vpow.pop %v2889
    %v2891 = vmul.f32 %v2882, 1.442695
    %v2892 = vpow.pop %v2891
    %v2893 = vmul.f32 %v2883, 1.442695
    %v2894 = vpow.pop %v2893
    %v2895 = vmul.f32 %v2884, 1.442695
    %v2896 = vpow.pop %v2895
    %v2897 = vmul.f32 %v2885, 1.442695
    %v2898 = vpow.pop %v2897
    %v2899 = vmul.f32 %v2886, 1.442695
    %v2900 = vpow.pop %v2899
    %v2901 = vmul.f32 %v2887, 1.442695
    %v2902 = vpow.pop %v2901
    %v2903 = vmul.f32 %v2888, 1.442695
    %v2904 = vpow.pop %v2903
    %v2905 = vsel %vm666, %v2890, 0.0
    %2906 = vadd.xlane.f32.xlu0 %v2905
    %v2907 = vpop.xlane.xlu0 %2906
    %v2908 = vsel %vm666, %v2892, 0.0
    %2909 = vadd.xlane.f32.xlu0 %v2908
    %v2910 = vpop.xlane.xlu0 %2909
    %v2911 = vsel %vm666, %v2894, 0.0
    %2912 = vadd.xlane.f32.xlu0 %v2911
    %v2913 = vpop.xlane.xlu0 %2912
    %v2914 = vsel %vm666, %v2896, 0.0
    %2915 = vadd.xlane.f32.xlu0 %v2914
    %v2916 = vpop.xlane.xlu0 %2915
    %v2917 = vsel %vm666, %v2898, 0.0
    %2918 = vadd.xlane.f32.xlu0 %v2917
    %v2919 = vpop.xlane.xlu0 %2918
    %v2920 = vsel %vm666, %v2900, 0.0
    %2921 = vadd.xlane.f32.xlu0 %v2920
    %v2922 = vpop.xlane.xlu0 %2921
    %v2923 = vsel %vm666, %v2902, 0.0
    %2924 = vadd.xlane.f32.xlu0 %v2923
    %v2925 = vpop.xlane.xlu0 %2924
    %v2926 = vsel %vm666, %v2904, 0.0
    %2927 = vadd.xlane.f32.xlu0 %v2926
    %v2928 = vpop.xlane.xlu0 %2927
    %v2929 = vrcp.pop %v2907
    %v2930 = vrcp.pop %v2910
    %v2931 = vrcp.pop %v2913
    %v2932 = vrcp.pop %v2916
    %v2933 = vrcp.pop %v2919
    %v2934 = vrcp.pop %v2922
    %v2935 = vrcp.pop %v2925
    %v2936 = vrcp.pop %v2928
    %v2937 = vmul.f32 %v2890, %v2929
    %v2938 = vmul.f32 %v2892, %v2930
    %v2939 = vmul.f32 %v2894, %v2931
    %v2940 = vmul.f32 %v2896, %v2932
    %v2941 = vmul.f32 %v2898, %v2933
    %v2942 = vmul.f32 %v2900, %v2934
    %v2943 = vmul.f32 %v2902, %v2935
    %v2944 = vmul.f32 %v2904, %v2936
    %v2945 = vpack.c.bf16 %v2937, %v2937
    %v2946 = vpack.c.bf16 %v2938, %v2938
    %v2947 = vpack.c.bf16 %v2939, %v2939
    %v2948 = vpack.c.bf16 %v2940, %v2940
    %v2949 = vpack.c.bf16 %v2941, %v2941
    %v2950 = vpack.c.bf16 %v2942, %v2942
    %v2951 = vpack.c.bf16 %v2943, %v2943
    %v2952 = vpack.c.bf16 %v2944, %v2944
    %v2957 = vunpack.c.l.b16 %v2945
    %v2958 = vunpack.c.l.b16 %v2946
    %v2959 = vunpack.c.l.b16 %v2947
    %v2960 = vunpack.c.l.b16 %v2948
    %v2961 = vpack.c.b16 %v2958, %v2957
    %v2962 = vpack.c.b16 %v2960, %v2959
    %v2967 = vunpack.c.l.b16 %v2750
    %v2968 = vunpack.c.l.b16 %v2751
    %v2969 = vunpack.c.l.b16 %v2752
    %v2970 = vunpack.c.l.b16 %v2753
    %v2971 = vpack.c.b16 %v2968, %v2967
    %v2972 = vpack.c.b16 %v2970, %v2969
    %v2976 = vsel %vm666, %v2961, 0
    %v2979 = vsel %vm666, %v2962, 0
    %2981 = vmatpush.bf16.msra.mxu0 0
    %2982 = vmatpush.bf16.msra.mxu0 0
    %2983 = vmatpush.bf16.msra.mxu0 0
    %2984 = vmatpush.bf16.msra.mxu0 0
    %2985 = vmatpush.bf16.msra.mxu0 0
    %2986 = vmatpush.bf16.msra.mxu0 0
    %2987 = vmatpush.bf16.msra.mxu0 %v2972
    %2988 = vmatpush.bf16.msra.mxu0 %v2971
    %2989 = vmatmul.bf16.gmra.mxu0 %v2976
    %v2990 = vpop.f32.mrf.mxu0
    %v2991 = vadd.f32 0.0, %v2990
    %v2992 = vpop.f32.mrf.mxu0
    %v2993 = vadd.f32 0.0, %v2992
    %2994 = vmatmul.bf16.gmra.mxu0 %v2979
    %v2995 = vpop.f32.mrf.mxu0
    %v2996 = vadd.f32 0.0, %v2995
    %v2997 = vpop.f32.mrf.mxu0
    %v2998 = vadd.f32 0.0, %v2997
    %2999 = vdwg.mxu0
    %v3004 = vunpack.c.l.b16 %v2949
    %v3005 = vunpack.c.l.b16 %v2950
    %v3006 = vunpack.c.l.b16 %v2951
    %v3007 = vunpack.c.l.b16 %v2952
    %v3008 = vpack.c.b16 %v3005, %v3004
    %v3009 = vpack.c.b16 %v3007, %v3006
    %v3014 = vunpack.c.l.b16 %v2754
    %v3015 = vunpack.c.l.b16 %v2755
    %v3016 = vunpack.c.l.b16 %v2756
    %v3017 = vunpack.c.l.b16 %v2757
    %v3018 = vpack.c.b16 %v3015, %v3014
    %v3019 = vpack.c.b16 %v3017, %v3016
    %v3023 = vsel %vm666, %v3008, 0
    %v3026 = vsel %vm666, %v3009, 0
    %3028 = vmatpush.bf16.msra.mxu0 0
    %3029 = vmatpush.bf16.msra.mxu0 0
    %3030 = vmatpush.bf16.msra.mxu0 0
    %3031 = vmatpush.bf16.msra.mxu0 0
    %3032 = vmatpush.bf16.msra.mxu0 0
    %3033 = vmatpush.bf16.msra.mxu0 0
    %3034 = vmatpush.bf16.msra.mxu0 %v3019
    %3035 = vmatpush.bf16.msra.mxu0 %v3018
    %3036 = vmatmul.bf16.gmra.mxu0 %v3023
    %v3037 = vpop.f32.mrf.mxu0
    %v3038 = vadd.f32 0.0, %v3037
    %v3039 = vpop.f32.mrf.mxu0
    %v3040 = vadd.f32 0.0, %v3039
    %3041 = vmatmul.bf16.gmra.mxu0 %v3026
    %v3042 = vpop.f32.mrf.mxu0
    %v3043 = vadd.f32 0.0, %v3042
    %v3044 = vpop.f32.mrf.mxu0
    %v3045 = vadd.f32 0.0, %v3044
    %3046 = vdwg.mxu0
    %v3047 = vpack.c.bf16 %v2993, %v2991
    %v3048 = vpack.c.bf16 %v2998, %v2996
    %v3049 = vpack.c.bf16 %v3040, %v3038
    %v3050 = vpack.c.bf16 %v3045, %v3043
    %3051 = vrot.lane.b32.xlu0 %v2775, 112
    %v3052 = vpop.permute.xlu0 %3051
    %3053 = vrot.lane.b32.xlu0 %v2776, 112
    %v3054 = vpop.permute.xlu0 %3053
    %3055 = vrot.lane.b32.xlu0 %v2775, 48
    %v3056 = vpop.permute.xlu0 %3055
    %3057 = vrot.lane.b32.xlu0 %v2776, 48
    %v3058 = vpop.permute.xlu0 %3057
    %v3060 = vsel %vm589, %v3052, 0
    %v3063 = vsel %vm589, %v3054, 0
    %v3066 = vsel %vm589, %v3056, 0
    %v3069 = vsel %vm589, %v3058, 0
    %3071 = vmatpush.bf16.xpose.msra.mxu0 0
    %3072 = vmatpush.bf16.xpose.msra.mxu0 0
    %3073 = vmatpush.bf16.xpose.msra.mxu0 0
    %3074 = vmatpush.bf16.xpose.msra.mxu0 0
    %3075 = vmatpush.bf16.xpose.msra.mxu0 0
    %3076 = vmatpush.bf16.xpose.msra.mxu0 0
    %3077 = vmatpush.bf16.xpose.msra.mxu0 %v3069
    %3078 = vmatpush.bf16.xpose.msra.mxu0 %v3066
    %3079 = vmatmul.bf16.gmra.mxu0 %v3060
    %v3080 = vpop.f32.mrf.mxu0
    %v3081 = vadd.f32 %v217, %v3080
    %v3082 = vpop.f32.mrf.mxu0
    %v3083 = vadd.f32 %v218, %v3082
    %3084 = vmatmul.bf16.gmra.mxu0 %v3063
    %v3085 = vpop.f32.mrf.mxu0
    %v3086 = vadd.f32 %v219, %v3085
    %v3087 = vpop.f32.mrf.mxu0
    %v3088 = vadd.f32 %v220, %v3087
    %3089 = vdwg.mxu0
    %3090 = vrot.lane.b32.xlu0 %v2820, 112
    %v3091 = vpop.permute.xlu0 %3090
    %3092 = vrot.lane.b32.xlu0 %v2821, 112
    %v3093 = vpop.permute.xlu0 %3092
    %3094 = vrot.lane.b32.xlu0 %v2820, 48
    %v3095 = vpop.permute.xlu0 %3094
    %3096 = vrot.lane.b32.xlu0 %v2821, 48
    %v3097 = vpop.permute.xlu0 %3096
    %v3099 = vsel %vm589, %v3091, 0
    %v3102 = vsel %vm589, %v3093, 0
    %v3105 = vsel %vm589, %v3095, 0
    %v3108 = vsel %vm589, %v3097, 0
    %3110 = vmatpush.bf16.xpose.msra.mxu0 0
    %3111 = vmatpush.bf16.xpose.msra.mxu0 0
    %3112 = vmatpush.bf16.xpose.msra.mxu0 0
    %3113 = vmatpush.bf16.xpose.msra.mxu0 0
    %3114 = vmatpush.bf16.xpose.msra.mxu0 0
    %3115 = vmatpush.bf16.xpose.msra.mxu0 0
    %3116 = vmatpush.bf16.xpose.msra.mxu0 %v3108
    %3117 = vmatpush.bf16.xpose.msra.mxu0 %v3105
    %3118 = vmatmul.bf16.gmra.mxu0 %v3099
    %v3119 = vpop.f32.mrf.mxu0
    %v3120 = vadd.f32 %v217, %v3119
    %v3121 = vpop.f32.mrf.mxu0
    %v3122 = vadd.f32 %v218, %v3121
    %3123 = vmatmul.bf16.gmra.mxu0 %v3102
    %v3124 = vpop.f32.mrf.mxu0
    %v3125 = vadd.f32 %v219, %v3124
    %v3126 = vpop.f32.mrf.mxu0
    %v3127 = vadd.f32 %v220, %v3126
    %3128 = vdwg.mxu0
    %v3129 = vsel %vm666, %v3081, -inf
    %3130 = vmax.xlane.f32.xlu0 %v3129
    %v3131 = vpop.xlane.xlu0 %3130
    %v3132 = vsel %vm666, %v3083, -inf
    %3133 = vmax.xlane.f32.xlu0 %v3132
    %v3134 = vpop.xlane.xlu0 %3133
    %v3135 = vsel %vm666, %v3086, -inf
    %3136 = vmax.xlane.f32.xlu0 %v3135
    %v3137 = vpop.xlane.xlu0 %3136
    %v3138 = vsel %vm666, %v3088, -inf
    %3139 = vmax.xlane.f32.xlu0 %v3138
    %v3140 = vpop.xlane.xlu0 %3139
    %v3141 = vsel %vm666, %v3120, -inf
    %3142 = vmax.xlane.f32.xlu0 %v3141
    %v3143 = vpop.xlane.xlu0 %3142
    %v3144 = vsel %vm666, %v3122, -inf
    %3145 = vmax.xlane.f32.xlu0 %v3144
    %v3146 = vpop.xlane.xlu0 %3145
    %v3147 = vsel %vm666, %v3125, -inf
    %3148 = vmax.xlane.f32.xlu0 %v3147
    %v3149 = vpop.xlane.xlu0 %3148
    %v3150 = vsel %vm666, %v3127, -inf
    %3151 = vmax.xlane.f32.xlu0 %v3150
    %v3152 = vpop.xlane.xlu0 %3151
    %v3153 = vsub.f32 %v3081, %v3131
    %v3154 = vsub.f32 %v3083, %v3134
    %v3155 = vsub.f32 %v3086, %v3137
    %v3156 = vsub.f32 %v3088, %v3140
    %v3157 = vsub.f32 %v3120, %v3143
    %v3158 = vsub.f32 %v3122, %v3146
    %v3159 = vsub.f32 %v3125, %v3149
    %v3160 = vsub.f32 %v3127, %v3152
    %v3161 = vmul.f32 %v3153, 1.442695
    %v3162 = vpow.pop %v3161
    %v3163 = vmul.f32 %v3154, 1.442695
    %v3164 = vpow.pop %v3163
    %v3165 = vmul.f32 %v3155, 1.442695
    %v3166 = vpow.pop %v3165
    %v3167 = vmul.f32 %v3156, 1.442695
    %v3168 = vpow.pop %v3167
    %v3169 = vmul.f32 %v3157, 1.442695
    %v3170 = vpow.pop %v3169
    %v3171 = vmul.f32 %v3158, 1.442695
    %v3172 = vpow.pop %v3171
    %v3173 = vmul.f32 %v3159, 1.442695
    %v3174 = vpow.pop %v3173
    %v3175 = vmul.f32 %v3160, 1.442695
    %v3176 = vpow.pop %v3175
    %v3177 = vsel %vm666, %v3162, 0.0
    %3178 = vadd.xlane.f32.xlu0 %v3177
    %v3179 = vpop.xlane.xlu0 %3178
    %v3180 = vsel %vm666, %v3164, 0.0
    %3181 = vadd.xlane.f32.xlu0 %v3180
    %v3182 = vpop.xlane.xlu0 %3181
    %v3183 = vsel %vm666, %v3166, 0.0
    %3184 = vadd.xlane.f32.xlu0 %v3183
    %v3185 = vpop.xlane.xlu0 %3184
    %v3186 = vsel %vm666, %v3168, 0.0
    %3187 = vadd.xlane.f32.xlu0 %v3186
    %v3188 = vpop.xlane.xlu0 %3187
    %v3189 = vsel %vm666, %v3170, 0.0
    %3190 = vadd.xlane.f32.xlu0 %v3189
    %v3191 = vpop.xlane.xlu0 %3190
    %v3192 = vsel %vm666, %v3172, 0.0
    %3193 = vadd.xlane.f32.xlu0 %v3192
    %v3194 = vpop.xlane.xlu0 %3193
    %v3195 = vsel %vm666, %v3174, 0.0
    %3196 = vadd.xlane.f32.xlu0 %v3195
    %v3197 = vpop.xlane.xlu0 %3196
    %v3198 = vsel %vm666, %v3176, 0.0
    %3199 = vadd.xlane.f32.xlu0 %v3198
    %v3200 = vpop.xlane.xlu0 %3199
    %v3201 = vrcp.pop %v3179
    %v3202 = vrcp.pop %v3182
    %v3203 = vrcp.pop %v3185
    %v3204 = vrcp.pop %v3188
    %v3205 = vrcp.pop %v3191
    %v3206 = vrcp.pop %v3194
    %v3207 = vrcp.pop %v3197
    %v3208 = vrcp.pop %v3200
    %v3209 = vmul.f32 %v3162, %v3201
    %v3210 = vmul.f32 %v3164, %v3202
    %v3211 = vmul.f32 %v3166, %v3203
    %v3212 = vmul.f32 %v3168, %v3204
    %v3213 = vmul.f32 %v3170, %v3205
    %v3214 = vmul.f32 %v3172, %v3206
    %v3215 = vmul.f32 %v3174, %v3207
    %v3216 = vmul.f32 %v3176, %v3208
    %v3217 = vpack.c.bf16 %v3209, %v3209
    %v3218 = vpack.c.bf16 %v3210, %v3210
    %v3219 = vpack.c.bf16 %v3211, %v3211
    %v3220 = vpack.c.bf16 %v3212, %v3212
    %v3221 = vpack.c.bf16 %v3213, %v3213
    %v3222 = vpack.c.bf16 %v3214, %v3214
    %v3223 = vpack.c.bf16 %v3215, %v3215
    %v3224 = vpack.c.bf16 %v3216, %v3216
    %v3229 = vunpack.c.l.b16 %v3217
    %v3230 = vunpack.c.l.b16 %v3218
    %v3231 = vunpack.c.l.b16 %v3219
    %v3232 = vunpack.c.l.b16 %v3220
    %v3233 = vpack.c.b16 %v3230, %v3229
    %v3234 = vpack.c.b16 %v3232, %v3231
    %3235 = vrot.lane.b32.xlu0 %v2971, 112
    %v3236 = vpop.permute.xlu0 %3235
    %3237 = vrot.lane.b32.xlu0 %v2972, 112
    %v3238 = vpop.permute.xlu0 %3237
    %v3242 = vsel %vm666, %v3233, 0
    %v3245 = vsel %vm666, %v3234, 0
    %3247 = vmatpush.bf16.msra.mxu0 0
    %3248 = vmatpush.bf16.msra.mxu0 0
    %3249 = vmatpush.bf16.msra.mxu0 0
    %3250 = vmatpush.bf16.msra.mxu0 0
    %3251 = vmatpush.bf16.msra.mxu0 0
    %3252 = vmatpush.bf16.msra.mxu0 0
    %3253 = vmatpush.bf16.msra.mxu0 %v3238
    %3254 = vmatpush.bf16.msra.mxu0 %v3236
    %3255 = vmatmul.bf16.gmra.mxu0 %v3242
    %v3256 = vpop.f32.mrf.mxu0
    %v3257 = vadd.f32 0.0, %v3256
    %v3258 = vpop.f32.mrf.mxu0
    %v3259 = vadd.f32 0.0, %v3258
    %3260 = vmatmul.bf16.gmra.mxu0 %v3245
    %v3261 = vpop.f32.mrf.mxu0
    %v3262 = vadd.f32 0.0, %v3261
    %v3263 = vpop.f32.mrf.mxu0
    %v3264 = vadd.f32 0.0, %v3263
    %3265 = vdwg.mxu0
    %v3270 = vunpack.c.l.b16 %v3221
    %v3271 = vunpack.c.l.b16 %v3222
    %v3272 = vunpack.c.l.b16 %v3223
    %v3273 = vunpack.c.l.b16 %v3224
    %v3274 = vpack.c.b16 %v3271, %v3270
    %v3275 = vpack.c.b16 %v3273, %v3272
    %3276 = vrot.lane.b32.xlu0 %v3018, 112
    %v3277 = vpop.permute.xlu0 %3276
    %3278 = vrot.lane.b32.xlu0 %v3019, 112
    %v3279 = vpop.permute.xlu0 %3278
    %v3283 = vsel %vm666, %v3274, 0
    %v3286 = vsel %vm666, %v3275, 0
    %3288 = vmatpush.bf16.msra.mxu0 0
    %3289 = vmatpush.bf16.msra.mxu0 0
    %3290 = vmatpush.bf16.msra.mxu0 0
    %3291 = vmatpush.bf16.msra.mxu0 0
    %3292 = vmatpush.bf16.msra.mxu0 0
    %3293 = vmatpush.bf16.msra.mxu0 0
    %3294 = vmatpush.bf16.msra.mxu0 %v3279
    %3295 = vmatpush.bf16.msra.mxu0 %v3277
    %3296 = vmatmul.bf16.gmra.mxu0 %v3283
    %v3297 = vpop.f32.mrf.mxu0
    %v3298 = vadd.f32 0.0, %v3297
    %v3299 = vpop.f32.mrf.mxu0
    %v3300 = vadd.f32 0.0, %v3299
    %3301 = vmatmul.bf16.gmra.mxu0 %v3286
    %v3302 = vpop.f32.mrf.mxu0
    %v3303 = vadd.f32 0.0, %v3302
    %v3304 = vpop.f32.mrf.mxu0
    %v3305 = vadd.f32 0.0, %v3304
    %3306 = vdwg.mxu0
    %v3307 = vpack.c.bf16 %v3259, %v3257
    %v3308 = vpack.c.bf16 %v3264, %v3262
    %v3309 = vpack.c.bf16 %v3300, %v3298
    %v3310 = vpack.c.bf16 %v3305, %v3303
    %v3313 = vunpack.c.l.b16 %v2761
    %v3314 = vunpack.c.l.b16 %v2762
    %v3315 = vpack.c.b16 %v3314, %v3313
    %v3318 = vsel %vm589, %v3307, 0
    %v3321 = vsel %vm589, %v3308, 0
    %v3324 = vsel %vm589, %v3309, 0
    %v3327 = vsel %vm589, %v3310, 0
    %3329 = vmatpush.bf16.msra.mxu0 0
    %3330 = vmatpush.bf16.msra.mxu0 0
    %3331 = vmatpush.bf16.msra.mxu0 0
    %3332 = vmatpush.bf16.msra.mxu0 0
    %3333 = vmatpush.bf16.msra.mxu0 0
    %3334 = vmatpush.bf16.msra.mxu0 0
    %3335 = vmatpush.bf16.msra.mxu0 0
    %3336 = vmatpush.bf16.msra.mxu0 %v3315
    %3337 = vmatmul.bf16.gmra.mxu0 %v3318
    %v3338 = vpop.f32.mrf.mxu0
    %v3339 = vadd.f32 0.0, %v3338
    %v3340 = vpop.f32.mrf.mxu0
    %v3341 = vadd.f32 0.0, %v3340
    %3342 = vmatmul.bf16.gmra.mxu0 %v3321
    %v3343 = vpop.f32.mrf.mxu0
    %v3344 = vadd.f32 0.0, %v3343
    %v3345 = vpop.f32.mrf.mxu0
    %v3346 = vadd.f32 0.0, %v3345
    %3347 = vmatmul.bf16.gmra.mxu0 %v3324
    %v3348 = vpop.f32.mrf.mxu0
    %v3349 = vadd.f32 0.0, %v3348
    %v3350 = vpop.f32.mrf.mxu0
    %v3351 = vadd.f32 0.0, %v3350
    %3352 = vmatmul.bf16.gmra.mxu0 %v3327
    %v3353 = vpop.f32.mrf.mxu0
    %v3354 = vadd.f32 0.0, %v3353
    %v3355 = vpop.f32.mrf.mxu0
    %v3356 = vadd.f32 0.0, %v3355
    %3357 = vdwg.mxu0
    %v3360 = vunpack.c.l.b16 %v2759
    %v3361 = vunpack.c.l.b16 %v2760
    %v3362 = vpack.c.b16 %v3361, %v3360
    %v3365 = vsel %vm589, %v3047, 0
    %v3368 = vsel %vm589, %v3048, 0
    %v3371 = vsel %vm589, %v3049, 0
    %v3374 = vsel %vm589, %v3050, 0
    %3376 = vmatpush.bf16.msra.mxu0 0
    %3377 = vmatpush.bf16.msra.mxu0 0
    %3378 = vmatpush.bf16.msra.mxu0 0
    %3379 = vmatpush.bf16.msra.mxu0 0
    %3380 = vmatpush.bf16.msra.mxu0 0
    %3381 = vmatpush.bf16.msra.mxu0 0
    %3382 = vmatpush.bf16.msra.mxu0 0
    %3383 = vmatpush.bf16.msra.mxu0 %v3362
    %3384 = vmatmul.bf16.gmra.mxu0 %v3365
    %v3385 = vpop.f32.mrf.mxu0
    %v3386 = vadd.f32 %v3339, %v3385
    %v3387 = vpop.f32.mrf.mxu0
    %v3388 = vadd.f32 %v3341, %v3387
    %3389 = vmatmul.bf16.gmra.mxu0 %v3368
    %v3390 = vpop.f32.mrf.mxu0
    %v3391 = vadd.f32 %v3344, %v3390
    %v3392 = vpop.f32.mrf.mxu0
    %v3393 = vadd.f32 %v3346, %v3392
    %3394 = vmatmul.bf16.gmra.mxu0 %v3371
    %v3395 = vpop.f32.mrf.mxu0
    %v3396 = vadd.f32 %v3349, %v3395
    %v3397 = vpop.f32.mrf.mxu0
    %v3398 = vadd.f32 %v3351, %v3397
    %3399 = vmatmul.bf16.gmra.mxu0 %v3374
    %v3400 = vpop.f32.mrf.mxu0
    %v3401 = vadd.f32 %v3354, %v3400
    %v3402 = vpop.f32.mrf.mxu0
    %v3403 = vadd.f32 %v3356, %v3402
    %3404 = vdwg.mxu0
    %3405 = vrot.lane.b32.xlu0 %v2775, 96
    %v3406 = vpop.permute.xlu0 %3405
    %3407 = vrot.lane.b32.xlu0 %v2776, 96
    %v3408 = vpop.permute.xlu0 %3407
    %3409 = vrot.lane.b32.xlu0 %v2775, 32
    %v3410 = vpop.permute.xlu0 %3409
    %3411 = vrot.lane.b32.xlu0 %v2776, 32
    %v3412 = vpop.permute.xlu0 %3411
    %v3414 = vsel %vm589, %v3406, 0
    %v3417 = vsel %vm589, %v3408, 0
    %v3420 = vsel %vm589, %v3410, 0
    %v3423 = vsel %vm589, %v3412, 0
    %3425 = vmatpush.bf16.xpose.msra.mxu0 0
    %3426 = vmatpush.bf16.xpose.msra.mxu0 0
    %3427 = vmatpush.bf16.xpose.msra.mxu0 0
    %3428 = vmatpush.bf16.xpose.msra.mxu0 0
    %3429 = vmatpush.bf16.xpose.msra.mxu0 0
    %3430 = vmatpush.bf16.xpose.msra.mxu0 0
    %3431 = vmatpush.bf16.xpose.msra.mxu0 %v3423
    %3432 = vmatpush.bf16.xpose.msra.mxu0 %v3420
    %3433 = vmatmul.bf16.gmra.mxu0 %v3414
    %v3434 = vpop.f32.mrf.mxu0
    %v3435 = vadd.f32 %v217, %v3434
    %v3436 = vpop.f32.mrf.mxu0
    %v3437 = vadd.f32 %v218, %v3436
    %3438 = vmatmul.bf16.gmra.mxu0 %v3417
    %v3439 = vpop.f32.mrf.mxu0
    %v3440 = vadd.f32 %v219, %v3439
    %v3441 = vpop.f32.mrf.mxu0
    %v3442 = vadd.f32 %v220, %v3441
    %3443 = vdwg.mxu0
    %3444 = vrot.lane.b32.xlu0 %v2820, 96
    %v3445 = vpop.permute.xlu0 %3444
    %3446 = vrot.lane.b32.xlu0 %v2821, 96
    %v3447 = vpop.permute.xlu0 %3446
    %3448 = vrot.lane.b32.xlu0 %v2820, 32
    %v3449 = vpop.permute.xlu0 %3448
    %3450 = vrot.lane.b32.xlu0 %v2821, 32
    %v3451 = vpop.permute.xlu0 %3450
    %v3453 = vsel %vm589, %v3445, 0
    %v3456 = vsel %vm589, %v3447, 0
    %v3459 = vsel %vm589, %v3449, 0
    %v3462 = vsel %vm589, %v3451, 0
    %3464 = vmatpush.bf16.xpose.msra.mxu0 0
    %3465 = vmatpush.bf16.xpose.msra.mxu0 0
    %3466 = vmatpush.bf16.xpose.msra.mxu0 0
    %3467 = vmatpush.bf16.xpose.msra.mxu0 0
    %3468 = vmatpush.bf16.xpose.msra.mxu0 0
    %3469 = vmatpush.bf16.xpose.msra.mxu0 0
    %3470 = vmatpush.bf16.xpose.msra.mxu0 %v3462
    %3471 = vmatpush.bf16.xpose.msra.mxu0 %v3459
    %3472 = vmatmul.bf16.gmra.mxu0 %v3453
    %v3473 = vpop.f32.mrf.mxu0
    %v3474 = vadd.f32 %v217, %v3473
    %v3475 = vpop.f32.mrf.mxu0
    %v3476 = vadd.f32 %v218, %v3475
    %3477 = vmatmul.bf16.gmra.mxu0 %v3456
    %v3478 = vpop.f32.mrf.mxu0
    %v3479 = vadd.f32 %v219, %v3478
    %v3480 = vpop.f32.mrf.mxu0
    %v3481 = vadd.f32 %v220, %v3480
    %3482 = vdwg.mxu0
    %v3483 = vsel %vm666, %v3435, -inf
    %3484 = vmax.xlane.f32.xlu0 %v3483
    %v3485 = vpop.xlane.xlu0 %3484
    %v3486 = vsel %vm666, %v3437, -inf
    %3487 = vmax.xlane.f32.xlu0 %v3486
    %v3488 = vpop.xlane.xlu0 %3487
    %v3489 = vsel %vm666, %v3440, -inf
    %3490 = vmax.xlane.f32.xlu0 %v3489
    %v3491 = vpop.xlane.xlu0 %3490
    %v3492 = vsel %vm666, %v3442, -inf
    %3493 = vmax.xlane.f32.xlu0 %v3492
    %v3494 = vpop.xlane.xlu0 %3493
    %v3495 = vsel %vm666, %v3474, -inf
    %3496 = vmax.xlane.f32.xlu0 %v3495
    %v3497 = vpop.xlane.xlu0 %3496
    %v3498 = vsel %vm666, %v3476, -inf
    %3499 = vmax.xlane.f32.xlu0 %v3498
    %v3500 = vpop.xlane.xlu0 %3499
    %v3501 = vsel %vm666, %v3479, -inf
    %3502 = vmax.xlane.f32.xlu0 %v3501
    %v3503 = vpop.xlane.xlu0 %3502
    %v3504 = vsel %vm666, %v3481, -inf
    %3505 = vmax.xlane.f32.xlu0 %v3504
    %v3506 = vpop.xlane.xlu0 %3505
    %v3507 = vsub.f32 %v3435, %v3485
    %v3508 = vsub.f32 %v3437, %v3488
    %v3509 = vsub.f32 %v3440, %v3491
    %v3510 = vsub.f32 %v3442, %v3494
    %v3511 = vsub.f32 %v3474, %v3497
    %v3512 = vsub.f32 %v3476, %v3500
    %v3513 = vsub.f32 %v3479, %v3503
    %v3514 = vsub.f32 %v3481, %v3506
    %v3515 = vmul.f32 %v3507, 1.442695
    %v3516 = vpow.pop %v3515
    %v3517 = vmul.f32 %v3508, 1.442695
    %v3518 = vpow.pop %v3517
    %v3519 = vmul.f32 %v3509, 1.442695
    %v3520 = vpow.pop %v3519
    %v3521 = vmul.f32 %v3510, 1.442695
    %v3522 = vpow.pop %v3521
    %v3523 = vmul.f32 %v3511, 1.442695
    %v3524 = vpow.pop %v3523
    %v3525 = vmul.f32 %v3512, 1.442695
    %v3526 = vpow.pop %v3525
    %v3527 = vmul.f32 %v3513, 1.442695
    %v3528 = vpow.pop %v3527
    %v3529 = vmul.f32 %v3514, 1.442695
    %v3530 = vpow.pop %v3529
    %v3531 = vsel %vm666, %v3516, 0.0
    %3532 = vadd.xlane.f32.xlu0 %v3531
    %v3533 = vpop.xlane.xlu0 %3532
    %v3534 = vsel %vm666, %v3518, 0.0
    %3535 = vadd.xlane.f32.xlu0 %v3534
    %v3536 = vpop.xlane.xlu0 %3535
    %v3537 = vsel %vm666, %v3520, 0.0
    %3538 = vadd.xlane.f32.xlu0 %v3537
    %v3539 = vpop.xlane.xlu0 %3538
    %v3540 = vsel %vm666, %v3522, 0.0
    %3541 = vadd.xlane.f32.xlu0 %v3540
    %v3542 = vpop.xlane.xlu0 %3541
    %v3543 = vsel %vm666, %v3524, 0.0
    %3544 = vadd.xlane.f32.xlu0 %v3543
    %v3545 = vpop.xlane.xlu0 %3544
    %v3546 = vsel %vm666, %v3526, 0.0
    %3547 = vadd.xlane.f32.xlu0 %v3546
    %v3548 = vpop.xlane.xlu0 %3547
    %v3549 = vsel %vm666, %v3528, 0.0
    %3550 = vadd.xlane.f32.xlu0 %v3549
    %v3551 = vpop.xlane.xlu0 %3550
    %v3552 = vsel %vm666, %v3530, 0.0
    %3553 = vadd.xlane.f32.xlu0 %v3552
    %v3554 = vpop.xlane.xlu0 %3553
    %v3555 = vrcp.pop %v3533
    %v3556 = vrcp.pop %v3536
    %v3557 = vrcp.pop %v3539
    %v3558 = vrcp.pop %v3542
    %v3559 = vrcp.pop %v3545
    %v3560 = vrcp.pop %v3548
    %v3561 = vrcp.pop %v3551
    %v3562 = vrcp.pop %v3554
    %v3563 = vmul.f32 %v3516, %v3555
    %v3564 = vmul.f32 %v3518, %v3556
    %v3565 = vmul.f32 %v3520, %v3557
    %v3566 = vmul.f32 %v3522, %v3558
    %v3567 = vmul.f32 %v3524, %v3559
    %v3568 = vmul.f32 %v3526, %v3560
    %v3569 = vmul.f32 %v3528, %v3561
    %v3570 = vmul.f32 %v3530, %v3562
    %v3571 = vpack.c.bf16 %v3563, %v3563
    %v3572 = vpack.c.bf16 %v3564, %v3564
    %v3573 = vpack.c.bf16 %v3565, %v3565
    %v3574 = vpack.c.bf16 %v3566, %v3566
    %v3575 = vpack.c.bf16 %v3567, %v3567
    %v3576 = vpack.c.bf16 %v3568, %v3568
    %v3577 = vpack.c.bf16 %v3569, %v3569
    %v3578 = vpack.c.bf16 %v3570, %v3570
    %v3583 = vunpack.c.l.b16 %v3571
    %v3584 = vunpack.c.l.b16 %v3572
    %v3585 = vunpack.c.l.b16 %v3573
    %v3586 = vunpack.c.l.b16 %v3574
    %v3587 = vpack.c.b16 %v3584, %v3583
    %v3588 = vpack.c.b16 %v3586, %v3585
    %3589 = vrot.lane.b32.xlu0 %v2971, 96
    %v3590 = vpop.permute.xlu0 %3589
    %3591 = vrot.lane.b32.xlu0 %v2972, 96
    %v3592 = vpop.permute.xlu0 %3591
    %v3596 = vsel %vm666, %v3587, 0
    %v3599 = vsel %vm666, %v3588, 0
    %3601 = vmatpush.bf16.msra.mxu0 0
    %3602 = vmatpush.bf16.msra.mxu0 0
    %3603 = vmatpush.bf16.msra.mxu0 0
    %3604 = vmatpush.bf16.msra.mxu0 0
    %3605 = vmatpush.bf16.msra.mxu0 0
    %3606 = vmatpush.bf16.msra.mxu0 0
    %3607 = vmatpush.bf16.msra.mxu0 %v3592
    %3608 = vmatpush.bf16.msra.mxu0 %v3590
    %3609 = vmatmul.bf16.gmra.mxu0 %v3596
    %v3610 = vpop.f32.mrf.mxu0
    %v3611 = vadd.f32 0.0, %v3610
    %v3612 = vpop.f32.mrf.mxu0
    %v3613 = vadd.f32 0.0, %v3612
    %3614 = vmatmul.bf16.gmra.mxu0 %v3599
    %v3615 = vpop.f32.mrf.mxu0
    %v3616 = vadd.f32 0.0, %v3615
    %v3617 = vpop.f32.mrf.mxu0
    %v3618 = vadd.f32 0.0, %v3617
    %3619 = vdwg.mxu0
    %v3624 = vunpack.c.l.b16 %v3575
    %v3625 = vunpack.c.l.b16 %v3576
    %v3626 = vunpack.c.l.b16 %v3577
    %v3627 = vunpack.c.l.b16 %v3578
    %v3628 = vpack.c.b16 %v3625, %v3624
    %v3629 = vpack.c.b16 %v3627, %v3626
    %3630 = vrot.lane.b32.xlu0 %v3018, 96
    %v3631 = vpop.permute.xlu0 %3630
    %3632 = vrot.lane.b32.xlu0 %v3019, 96
    %v3633 = vpop.permute.xlu0 %3632
    %v3637 = vsel %vm666, %v3628, 0
    %v3640 = vsel %vm666, %v3629, 0
    %3642 = vmatpush.bf16.msra.mxu0 0
    %3643 = vmatpush.bf16.msra.mxu0 0
    %3644 = vmatpush.bf16.msra.mxu0 0
    %3645 = vmatpush.bf16.msra.mxu0 0
    %3646 = vmatpush.bf16.msra.mxu0 0
    %3647 = vmatpush.bf16.msra.mxu0 0
    %3648 = vmatpush.bf16.msra.mxu0 %v3633
    %3649 = vmatpush.bf16.msra.mxu0 %v3631
    %3650 = vmatmul.bf16.gmra.mxu0 %v3637
    %v3651 = vpop.f32.mrf.mxu0
    %v3652 = vadd.f32 0.0, %v3651
    %v3653 = vpop.f32.mrf.mxu0
    %v3654 = vadd.f32 0.0, %v3653
    %3655 = vmatmul.bf16.gmra.mxu0 %v3640
    %v3656 = vpop.f32.mrf.mxu0
    %v3657 = vadd.f32 0.0, %v3656
    %v3658 = vpop.f32.mrf.mxu0
    %v3659 = vadd.f32 0.0, %v3658
    %3660 = vdwg.mxu0
    %v3661 = vpack.c.bf16 %v3613, %v3611
    %v3662 = vpack.c.bf16 %v3618, %v3616
    %v3663 = vpack.c.bf16 %v3654, %v3652
    %v3664 = vpack.c.bf16 %v3659, %v3657
    %v3667 = vunpack.c.l.b16 %v2763
    %v3668 = vunpack.c.l.b16 %v2764
    %v3669 = vpack.c.b16 %v3668, %v3667
    %v3672 = vsel %vm589, %v3661, 0
    %v3675 = vsel %vm589, %v3662, 0
    %v3678 = vsel %vm589, %v3663, 0
    %v3681 = vsel %vm589, %v3664, 0
    %3683 = vmatpush.bf16.msra.mxu0 0
    %3684 = vmatpush.bf16.msra.mxu0 0
    %3685 = vmatpush.bf16.msra.mxu0 0
    %3686 = vmatpush.bf16.msra.mxu0 0
    %3687 = vmatpush.bf16.msra.mxu0 0
    %3688 = vmatpush.bf16.msra.mxu0 0
    %3689 = vmatpush.bf16.msra.mxu0 0
    %3690 = vmatpush.bf16.msra.mxu0 %v3669
    %3691 = vmatmul.bf16.gmra.mxu0 %v3672
    %v3692 = vpop.f32.mrf.mxu0
    %v3693 = vadd.f32 0.0, %v3692
    %v3694 = vpop.f32.mrf.mxu0
    %v3695 = vadd.f32 0.0, %v3694
    %3696 = vmatmul.bf16.gmra.mxu0 %v3675
    %v3697 = vpop.f32.mrf.mxu0
    %v3698 = vadd.f32 0.0, %v3697
    %v3699 = vpop.f32.mrf.mxu0
    %v3700 = vadd.f32 0.0, %v3699
    %3701 = vmatmul.bf16.gmra.mxu0 %v3678
    %v3702 = vpop.f32.mrf.mxu0
    %v3703 = vadd.f32 0.0, %v3702
    %v3704 = vpop.f32.mrf.mxu0
    %v3705 = vadd.f32 0.0, %v3704
    %3706 = vmatmul.bf16.gmra.mxu0 %v3681
    %v3707 = vpop.f32.mrf.mxu0
    %v3708 = vadd.f32 0.0, %v3707
    %v3709 = vpop.f32.mrf.mxu0
    %v3710 = vadd.f32 0.0, %v3709
    %3711 = vdwg.mxu0
    %v3712 = vadd.f32 %v3386, %v3693
    %v3713 = vadd.f32 %v3388, %v3695
    %v3714 = vadd.f32 %v3391, %v3698
    %v3715 = vadd.f32 %v3393, %v3700
    %v3716 = vadd.f32 %v3396, %v3703
    %v3717 = vadd.f32 %v3398, %v3705
    %v3718 = vadd.f32 %v3401, %v3708
    %v3719 = vadd.f32 %v3403, %v3710
    %3720 = vrot.lane.b32.xlu0 %v2775, 80
    %v3721 = vpop.permute.xlu0 %3720
    %3722 = vrot.lane.b32.xlu0 %v2776, 80
    %v3723 = vpop.permute.xlu0 %3722
    %3724 = vrot.lane.b32.xlu0 %v2775, 16
    %v3725 = vpop.permute.xlu0 %3724
    %3726 = vrot.lane.b32.xlu0 %v2776, 16
    %v3727 = vpop.permute.xlu0 %3726
    %v3729 = vsel %vm589, %v3721, 0
    %v3732 = vsel %vm589, %v3723, 0
    %v3735 = vsel %vm589, %v3725, 0
    %v3738 = vsel %vm589, %v3727, 0
    %3740 = vmatpush.bf16.xpose.msra.mxu0 0
    %3741 = vmatpush.bf16.xpose.msra.mxu0 0
    %3742 = vmatpush.bf16.xpose.msra.mxu0 0
    %3743 = vmatpush.bf16.xpose.msra.mxu0 0
    %3744 = vmatpush.bf16.xpose.msra.mxu0 0
    %3745 = vmatpush.bf16.xpose.msra.mxu0 0
    %3746 = vmatpush.bf16.xpose.msra.mxu0 %v3738
    %3747 = vmatpush.bf16.xpose.msra.mxu0 %v3735
    %3748 = vmatmul.bf16.gmra.mxu0 %v3729
    %v3749 = vpop.f32.mrf.mxu0
    %v3750 = vadd.f32 %v217, %v3749
    %v3751 = vpop.f32.mrf.mxu0
    %v3752 = vadd.f32 %v218, %v3751
    %3753 = vmatmul.bf16.gmra.mxu0 %v3732
    %v3754 = vpop.f32.mrf.mxu0
    %v3755 = vadd.f32 %v219, %v3754
    %v3756 = vpop.f32.mrf.mxu0
    %v3757 = vadd.f32 %v220, %v3756
    %3758 = vdwg.mxu0
    %3759 = vrot.lane.b32.xlu0 %v2820, 80
    %v3760 = vpop.permute.xlu0 %3759
    %3761 = vrot.lane.b32.xlu0 %v2821, 80
    %v3762 = vpop.permute.xlu0 %3761
    %3763 = vrot.lane.b32.xlu0 %v2820, 16
    %v3764 = vpop.permute.xlu0 %3763
    %3765 = vrot.lane.b32.xlu0 %v2821, 16
    %v3766 = vpop.permute.xlu0 %3765
    %v3768 = vsel %vm589, %v3760, 0
    %v3771 = vsel %vm589, %v3762, 0
    %v3774 = vsel %vm589, %v3764, 0
    %v3777 = vsel %vm589, %v3766, 0
    %3779 = vmatpush.bf16.xpose.msra.mxu0 0
    %3780 = vmatpush.bf16.xpose.msra.mxu0 0
    %3781 = vmatpush.bf16.xpose.msra.mxu0 0
    %3782 = vmatpush.bf16.xpose.msra.mxu0 0
    %3783 = vmatpush.bf16.xpose.msra.mxu0 0
    %3784 = vmatpush.bf16.xpose.msra.mxu0 0
    %3785 = vmatpush.bf16.xpose.msra.mxu0 %v3777
    %3786 = vmatpush.bf16.xpose.msra.mxu0 %v3774
    %3787 = vmatmul.bf16.gmra.mxu0 %v3768
    %v3788 = vpop.f32.mrf.mxu0
    %v3789 = vadd.f32 %v217, %v3788
    %v3790 = vpop.f32.mrf.mxu0
    %v3791 = vadd.f32 %v218, %v3790
    %3792 = vmatmul.bf16.gmra.mxu0 %v3771
    %v3793 = vpop.f32.mrf.mxu0
    %v3794 = vadd.f32 %v219, %v3793
    %v3795 = vpop.f32.mrf.mxu0
    %v3796 = vadd.f32 %v220, %v3795
    %3797 = vdwg.mxu0
    %v3798 = vsel %vm666, %v3750, -inf
    %3799 = vmax.xlane.f32.xlu0 %v3798
    %v3800 = vpop.xlane.xlu0 %3799
    %v3801 = vsel %vm666, %v3752, -inf
    %3802 = vmax.xlane.f32.xlu0 %v3801
    %v3803 = vpop.xlane.xlu0 %3802
    %v3804 = vsel %vm666, %v3755, -inf
    %3805 = vmax.xlane.f32.xlu0 %v3804
    %v3806 = vpop.xlane.xlu0 %3805
    %v3807 = vsel %vm666, %v3757, -inf
    %3808 = vmax.xlane.f32.xlu0 %v3807
    %v3809 = vpop.xlane.xlu0 %3808
    %v3810 = vsel %vm666, %v3789, -inf
    %3811 = vmax.xlane.f32.xlu0 %v3810
    %v3812 = vpop.xlane.xlu0 %3811
    %v3813 = vsel %vm666, %v3791, -inf
    %3814 = vmax.xlane.f32.xlu0 %v3813
    %v3815 = vpop.xlane.xlu0 %3814
    %v3816 = vsel %vm666, %v3794, -inf
    %3817 = vmax.xlane.f32.xlu0 %v3816
    %v3818 = vpop.xlane.xlu0 %3817
    %v3819 = vsel %vm666, %v3796, -inf
    %3820 = vmax.xlane.f32.xlu0 %v3819
    %v3821 = vpop.xlane.xlu0 %3820
    %v3822 = vsub.f32 %v3750, %v3800
    %v3823 = vsub.f32 %v3752, %v3803
    %v3824 = vsub.f32 %v3755, %v3806
    %v3825 = vsub.f32 %v3757, %v3809
    %v3826 = vsub.f32 %v3789, %v3812
    %v3827 = vsub.f32 %v3791, %v3815
    %v3828 = vsub.f32 %v3794, %v3818
    %v3829 = vsub.f32 %v3796, %v3821
    %v3830 = vmul.f32 %v3822, 1.442695
    %v3831 = vpow.pop %v3830
    %v3832 = vmul.f32 %v3823, 1.442695
    %v3833 = vpow.pop %v3832
    %v3834 = vmul.f32 %v3824, 1.442695
    %v3835 = vpow.pop %v3834
    %v3836 = vmul.f32 %v3825, 1.442695
    %v3837 = vpow.pop %v3836
    %v3838 = vmul.f32 %v3826, 1.442695
    %v3839 = vpow.pop %v3838
    %v3840 = vmul.f32 %v3827, 1.442695
    %v3841 = vpow.pop %v3840
    %v3842 = vmul.f32 %v3828, 1.442695
    %v3843 = vpow.pop %v3842
    %v3844 = vmul.f32 %v3829, 1.442695
    %v3845 = vpow.pop %v3844
    %v3846 = vsel %vm666, %v3831, 0.0
    %3847 = vadd.xlane.f32.xlu0 %v3846
    %v3848 = vpop.xlane.xlu0 %3847
    %v3849 = vsel %vm666, %v3833, 0.0
    %3850 = vadd.xlane.f32.xlu0 %v3849
    %v3851 = vpop.xlane.xlu0 %3850
    %v3852 = vsel %vm666, %v3835, 0.0
    %3853 = vadd.xlane.f32.xlu0 %v3852
    %v3854 = vpop.xlane.xlu0 %3853
    %v3855 = vsel %vm666, %v3837, 0.0
    %3856 = vadd.xlane.f32.xlu0 %v3855
    %v3857 = vpop.xlane.xlu0 %3856
    %v3858 = vsel %vm666, %v3839, 0.0
    %3859 = vadd.xlane.f32.xlu0 %v3858
    %v3860 = vpop.xlane.xlu0 %3859
    %v3861 = vsel %vm666, %v3841, 0.0
    %3862 = vadd.xlane.f32.xlu0 %v3861
    %v3863 = vpop.xlane.xlu0 %3862
    %v3864 = vsel %vm666, %v3843, 0.0
    %3865 = vadd.xlane.f32.xlu0 %v3864
    %v3866 = vpop.xlane.xlu0 %3865
    %v3867 = vsel %vm666, %v3845, 0.0
    %3868 = vadd.xlane.f32.xlu0 %v3867
    %v3869 = vpop.xlane.xlu0 %3868
    %v3870 = vrcp.pop %v3848
    %v3871 = vrcp.pop %v3851
    %v3872 = vrcp.pop %v3854
    %v3873 = vrcp.pop %v3857
    %v3874 = vrcp.pop %v3860
    %v3875 = vrcp.pop %v3863
    %v3876 = vrcp.pop %v3866
    %v3877 = vrcp.pop %v3869
    %v3878 = vmul.f32 %v3831, %v3870
    %v3879 = vmul.f32 %v3833, %v3871
    %v3880 = vmul.f32 %v3835, %v3872
    %v3881 = vmul.f32 %v3837, %v3873
    %v3882 = vmul.f32 %v3839, %v3874
    %v3883 = vmul.f32 %v3841, %v3875
    %v3884 = vmul.f32 %v3843, %v3876
    %v3885 = vmul.f32 %v3845, %v3877
    %v3886 = vpack.c.bf16 %v3878, %v3878
    %v3887 = vpack.c.bf16 %v3879, %v3879
    %v3888 = vpack.c.bf16 %v3880, %v3880
    %v3889 = vpack.c.bf16 %v3881, %v3881
    %v3890 = vpack.c.bf16 %v3882, %v3882
    %v3891 = vpack.c.bf16 %v3883, %v3883
    %v3892 = vpack.c.bf16 %v3884, %v3884
    %v3893 = vpack.c.bf16 %v3885, %v3885
    %v3898 = vunpack.c.l.b16 %v3886
    %v3899 = vunpack.c.l.b16 %v3887
    %v3900 = vunpack.c.l.b16 %v3888
    %v3901 = vunpack.c.l.b16 %v3889
    %v3902 = vpack.c.b16 %v3899, %v3898
    %v3903 = vpack.c.b16 %v3901, %v3900
    %3904 = vrot.lane.b32.xlu0 %v2971, 80
    %v3905 = vpop.permute.xlu0 %3904
    %3906 = vrot.lane.b32.xlu0 %v2972, 80
    %v3907 = vpop.permute.xlu0 %3906
    %v3911 = vsel %vm666, %v3902, 0
    %v3914 = vsel %vm666, %v3903, 0
    %3916 = vmatpush.bf16.msra.mxu0 0
    %3917 = vmatpush.bf16.msra.mxu0 0
    %3918 = vmatpush.bf16.msra.mxu0 0
    %3919 = vmatpush.bf16.msra.mxu0 0
    %3920 = vmatpush.bf16.msra.mxu0 0
    %3921 = vmatpush.bf16.msra.mxu0 0
    %3922 = vmatpush.bf16.msra.mxu0 %v3907
    %3923 = vmatpush.bf16.msra.mxu0 %v3905
    %3924 = vmatmul.bf16.gmra.mxu0 %v3911
    %v3925 = vpop.f32.mrf.mxu0
    %v3926 = vadd.f32 0.0, %v3925
    %v3927 = vpop.f32.mrf.mxu0
    %v3928 = vadd.f32 0.0, %v3927
    %3929 = vmatmul.bf16.gmra.mxu0 %v3914
    %v3930 = vpop.f32.mrf.mxu0
    %v3931 = vadd.f32 0.0, %v3930
    %v3932 = vpop.f32.mrf.mxu0
    %v3933 = vadd.f32 0.0, %v3932
    %3934 = vdwg.mxu0
    %v3939 = vunpack.c.l.b16 %v3890
    %v3940 = vunpack.c.l.b16 %v3891
    %v3941 = vunpack.c.l.b16 %v3892
    %v3942 = vunpack.c.l.b16 %v3893
    %v3943 = vpack.c.b16 %v3940, %v3939
    %v3944 = vpack.c.b16 %v3942, %v3941
    %3945 = vrot.lane.b32.xlu0 %v3018, 80
    %v3946 = vpop.permute.xlu0 %3945
    %3947 = vrot.lane.b32.xlu0 %v3019, 80
    %v3948 = vpop.permute.xlu0 %3947
    %v3952 = vsel %vm666, %v3943, 0
    %v3955 = vsel %vm666, %v3944, 0
    %3957 = vmatpush.bf16.msra.mxu0 0
    %3958 = vmatpush.bf16.msra.mxu0 0
    %3959 = vmatpush.bf16.msra.mxu0 0
    %3960 = vmatpush.bf16.msra.mxu0 0
    %3961 = vmatpush.bf16.msra.mxu0 0
    %3962 = vmatpush.bf16.msra.mxu0 0
    %3963 = vmatpush.bf16.msra.mxu0 %v3948
    %3964 = vmatpush.bf16.msra.mxu0 %v3946
    %3965 = vmatmul.bf16.gmra.mxu0 %v3952
    %v3966 = vpop.f32.mrf.mxu0
    %v3967 = vadd.f32 0.0, %v3966
    %v3968 = vpop.f32.mrf.mxu0
    %v3969 = vadd.f32 0.0, %v3968
    %3970 = vmatmul.bf16.gmra.mxu0 %v3955
    %v3971 = vpop.f32.mrf.mxu0
    %v3972 = vadd.f32 0.0, %v3971
    %v3973 = vpop.f32.mrf.mxu0
    %v3974 = vadd.f32 0.0, %v3973
    %3975 = vdwg.mxu0
    %v3976 = vpack.c.bf16 %v3928, %v3926
    %v3977 = vpack.c.bf16 %v3933, %v3931
    %v3978 = vpack.c.bf16 %v3969, %v3967
    %v3979 = vpack.c.bf16 %v3974, %v3972
    %v3982 = vunpack.c.l.b16 %v2765
    %v3983 = vunpack.c.l.b16 %v2766
    %v3984 = vpack.c.b16 %v3983, %v3982
    %v3987 = vsel %vm589, %v3976, 0
    %v3990 = vsel %vm589, %v3977, 0
    %v3993 = vsel %vm589, %v3978, 0
    %v3996 = vsel %vm589, %v3979, 0
    %3998 = vmatpush.bf16.msra.mxu0 0
    %3999 = vmatpush.bf16.msra.mxu0 0
    %4000 = vmatpush.bf16.msra.mxu0 0
    %4001 = vmatpush.bf16.msra.mxu0 0
    %4002 = vmatpush.bf16.msra.mxu0 0
    %4003 = vmatpush.bf16.msra.mxu0 0
    %4004 = vmatpush.bf16.msra.mxu0 0
    %4005 = vmatpush.bf16.msra.mxu0 %v3984
    %4006 = vmatmul.bf16.gmra.mxu0 %v3987
    %v4007 = vpop.f32.mrf.mxu0
    %v4008 = vadd.f32 0.0, %v4007
    %v4009 = vpop.f32.mrf.mxu0
    %v4010 = vadd.f32 0.0, %v4009
    %4011 = vmatmul.bf16.gmra.mxu0 %v3990
    %v4012 = vpop.f32.mrf.mxu0
    %v4013 = vadd.f32 0.0, %v4012
    %v4014 = vpop.f32.mrf.mxu0
    %v4015 = vadd.f32 0.0, %v4014
    %4016 = vmatmul.bf16.gmra.mxu0 %v3993
    %v4017 = vpop.f32.mrf.mxu0
    %v4018 = vadd.f32 0.0, %v4017
    %v4019 = vpop.f32.mrf.mxu0
    %v4020 = vadd.f32 0.0, %v4019
    %4021 = vmatmul.bf16.gmra.mxu0 %v3996
    %v4022 = vpop.f32.mrf.mxu0
    %v4023 = vadd.f32 0.0, %v4022
    %v4024 = vpop.f32.mrf.mxu0
    %v4025 = vadd.f32 0.0, %v4024
    %4026 = vdwg.mxu0
    %v4027 = vadd.f32 %v3712, %v4008
    %v4028 = vadd.f32 %v3713, %v4010
    %v4029 = vadd.f32 %v3714, %v4013
    %v4030 = vadd.f32 %v3715, %v4015
    %v4031 = vadd.f32 %v3716, %v4018
    %v4032 = vadd.f32 %v3717, %v4020
    %v4033 = vadd.f32 %v3718, %v4023
    %v4034 = vadd.f32 %v3719, %v4025
    %v4035 = vadd.f32 %v2409, %v4027
    %v4036 = vadd.f32 %v2410, %v4028
    %v4037 = vadd.f32 %v2411, %v4029
    %v4038 = vadd.f32 %v2412, %v4030
    %v4039 = vadd.f32 %v2413, %v4031
    %v4040 = vadd.f32 %v2414, %v4032
    %v4041 = vadd.f32 %v2415, %v4033
    %v4042 = vadd.f32 %v2416, %v4034
    %s4043 = scalar_lea.vmem %s7, 1
    %v4044 = vld [vmem:[%s4043] sm:$0x1]
    %v4046 = vperm.slane %v4044, 0
    %v4048 = vadd.f32 %v4035, %v4046
    %v4049 = vadd.f32 %v4036, %v4046
    %v4050 = vadd.f32 %v4037, %v4046
    %v4051 = vadd.f32 %v4038, %v4046
    %v4052 = vadd.f32 %v4039, %v4046
    %v4053 = vadd.f32 %v4040, %v4046
    %v4054 = vadd.f32 %v4041, %v4046
    %v4055 = vadd.f32 %v4042, %v4046
    %s4056 = scalar_lea.vmem %s3, 3
    %v4057 = vld [vmem:[%s4056] sm:$0x1]
    %s4058 = scalar_lea.vmem %s4, 3
    %v4059 = vld [vmem:[%s4058] sm:$0x1]
    %v4060 = vsel %vm223, %v4048, 0.0
    %4061 = vadd.xlane.f32.xlu0 %v4060
    %v4062 = vpop.xlane.xlu0 %4061
    %v4063 = vsel %vm223, %v4049, 0.0
    %4064 = vadd.xlane.f32.xlu0 %v4063
    %v4065 = vpop.xlane.xlu0 %4064
    %v4066 = vsel %vm223, %v4050, 0.0
    %4067 = vadd.xlane.f32.xlu0 %v4066
    %v4068 = vpop.xlane.xlu0 %4067
    %v4069 = vsel %vm223, %v4051, 0.0
    %4070 = vadd.xlane.f32.xlu0 %v4069
    %v4071 = vpop.xlane.xlu0 %4070
    %v4072 = vsel %vm223, %v4052, 0.0
    %4073 = vadd.xlane.f32.xlu0 %v4072
    %v4074 = vpop.xlane.xlu0 %4073
    %v4075 = vsel %vm223, %v4053, 0.0
    %4076 = vadd.xlane.f32.xlu0 %v4075
    %v4077 = vpop.xlane.xlu0 %4076
    %v4078 = vsel %vm223, %v4054, 0.0
    %4079 = vadd.xlane.f32.xlu0 %v4078
    %v4080 = vpop.xlane.xlu0 %4079
    %v4081 = vsel %vm223, %v4055, 0.0
    %4082 = vadd.xlane.f32.xlu0 %v4081
    %v4083 = vpop.xlane.xlu0 %4082
    %v4084 = vmul.f32 %v4062, %v254
    %v4085 = vmul.f32 %v4065, %v254
    %v4086 = vmul.f32 %v4068, %v254
    %v4087 = vmul.f32 %v4071, %v254
    %v4088 = vmul.f32 %v4074, %v254
    %v4089 = vmul.f32 %v4077, %v254
    %v4090 = vmul.f32 %v4080, %v254
    %v4091 = vmul.f32 %v4083, %v254
    %v4092 = vsub.f32 %v4048, %v4084
    %v4093 = vsub.f32 %v4049, %v4085
    %v4094 = vsub.f32 %v4050, %v4086
    %v4095 = vsub.f32 %v4051, %v4087
    %v4096 = vsub.f32 %v4052, %v4088
    %v4097 = vsub.f32 %v4053, %v4089
    %v4098 = vsub.f32 %v4054, %v4090
    %v4099 = vsub.f32 %v4055, %v4091
    %v4100 = vmul.f32 %v4092, %v4092
    %v4101 = vmul.f32 %v4093, %v4093
    %v4102 = vmul.f32 %v4094, %v4094
    %v4103 = vmul.f32 %v4095, %v4095
    %v4104 = vmul.f32 %v4096, %v4096
    %v4105 = vmul.f32 %v4097, %v4097
    %v4106 = vmul.f32 %v4098, %v4098
    %v4107 = vmul.f32 %v4099, %v4099
    %v4108 = vsel %vm223, %v4100, 0.0
    %4109 = vadd.xlane.f32.xlu0 %v4108
    %v4110 = vpop.xlane.xlu0 %4109
    %v4111 = vsel %vm223, %v4101, 0.0
    %4112 = vadd.xlane.f32.xlu0 %v4111
    %v4113 = vpop.xlane.xlu0 %4112
    %v4114 = vsel %vm223, %v4102, 0.0
    %4115 = vadd.xlane.f32.xlu0 %v4114
    %v4116 = vpop.xlane.xlu0 %4115
    %v4117 = vsel %vm223, %v4103, 0.0
    %4118 = vadd.xlane.f32.xlu0 %v4117
    %v4119 = vpop.xlane.xlu0 %4118
    %v4120 = vsel %vm223, %v4104, 0.0
    %4121 = vadd.xlane.f32.xlu0 %v4120
    %v4122 = vpop.xlane.xlu0 %4121
    %v4123 = vsel %vm223, %v4105, 0.0
    %4124 = vadd.xlane.f32.xlu0 %v4123
    %v4125 = vpop.xlane.xlu0 %4124
    %v4126 = vsel %vm223, %v4106, 0.0
    %4127 = vadd.xlane.f32.xlu0 %v4126
    %v4128 = vpop.xlane.xlu0 %4127
    %v4129 = vsel %vm223, %v4107, 0.0
    %4130 = vadd.xlane.f32.xlu0 %v4129
    %v4131 = vpop.xlane.xlu0 %4130
    %v4132 = vmul.f32 %v4110, %v254
    %v4133 = vmul.f32 %v4113, %v254
    %v4134 = vmul.f32 %v4116, %v254
    %v4135 = vmul.f32 %v4119, %v254
    %v4136 = vmul.f32 %v4122, %v254
    %v4137 = vmul.f32 %v4125, %v254
    %v4138 = vmul.f32 %v4128, %v254
    %v4139 = vmul.f32 %v4131, %v254
    %v4140 = vadd.f32 %v4132, 1e-05
    %v4141 = vadd.f32 %v4133, 1e-05
    %v4142 = vadd.f32 %v4134, 1e-05
    %v4143 = vadd.f32 %v4135, 1e-05
    %v4144 = vadd.f32 %v4136, 1e-05
    %v4145 = vadd.f32 %v4137, 1e-05
    %v4146 = vadd.f32 %v4138, 1e-05
    %v4147 = vadd.f32 %v4139, 1e-05
    %v4148 = vrsqrt.pop %v4140
    %v4149 = vmul.f32 %v4148, %v4140
    %v4150 = vmul.f32 %v4149, %v4148
    %v4151 = vmul.f32 0.5, %v4150
    %v4152 = vsub.f32 1.5, %v4151
    %v4153 = vmul.f32 %v4148, %v4152
    %vm4154 = vweird.f32 %v4140
    %vm4155 = vweird.f32 %v4148
    %vm4156 = vmor %vm4154, %vm4155
    %v4157 = vsel %vm4156, %v4148, %v4153
    %v4158 = vrsqrt.pop %v4141
    %v4159 = vmul.f32 %v4158, %v4141
    %v4160 = vmul.f32 %v4159, %v4158
    %v4161 = vmul.f32 0.5, %v4160
    %v4162 = vsub.f32 1.5, %v4161
    %v4163 = vmul.f32 %v4158, %v4162
    %vm4164 = vweird.f32 %v4141
    %vm4165 = vweird.f32 %v4158
    %vm4166 = vmor %vm4164, %vm4165
    %v4167 = vsel %vm4166, %v4158, %v4163
    %v4168 = vrsqrt.pop %v4142
    %v4169 = vmul.f32 %v4168, %v4142
    %v4170 = vmul.f32 %v4169, %v4168
    %v4171 = vmul.f32 0.5, %v4170
    %v4172 = vsub.f32 1.5, %v4171
    %v4173 = vmul.f32 %v4168, %v4172
    %vm4174 = vweird.f32 %v4142
    %vm4175 = vweird.f32 %v4168
    %vm4176 = vmor %vm4174, %vm4175
    %v4177 = vsel %vm4176, %v4168, %v4173
    %v4178 = vrsqrt.pop %v4143
    %v4179 = vmul.f32 %v4178, %v4143
    %v4180 = vmul.f32 %v4179, %v4178
    %v4181 = vmul.f32 0.5, %v4180
    %v4182 = vsub.f32 1.5, %v4181
    %v4183 = vmul.f32 %v4178, %v4182
    %vm4184 = vweird.f32 %v4143
    %vm4185 = vweird.f32 %v4178
    %vm4186 = vmor %vm4184, %vm4185
    %v4187 = vsel %vm4186, %v4178, %v4183
    %v4188 = vrsqrt.pop %v4144
    %v4189 = vmul.f32 %v4188, %v4144
    %v4190 = vmul.f32 %v4189, %v4188
    %v4191 = vmul.f32 0.5, %v4190
    %v4192 = vsub.f32 1.5, %v4191
    %v4193 = vmul.f32 %v4188, %v4192
    %vm4194 = vweird.f32 %v4144
    %vm4195 = vweird.f32 %v4188
    %vm4196 = vmor %vm4194, %vm4195
    %v4197 = vsel %vm4196, %v4188, %v4193
    %v4198 = vrsqrt.pop %v4145
    %v4199 = vmul.f32 %v4198, %v4145
    %v4200 = vmul.f32 %v4199, %v4198
    %v4201 = vmul.f32 0.5, %v4200
    %v4202 = vsub.f32 1.5, %v4201
    %v4203 = vmul.f32 %v4198, %v4202
    %vm4204 = vweird.f32 %v4145
    %vm4205 = vweird.f32 %v4198
    %vm4206 = vmor %vm4204, %vm4205
    %v4207 = vsel %vm4206, %v4198, %v4203
    %v4208 = vrsqrt.pop %v4146
    %v4209 = vmul.f32 %v4208, %v4146
    %v4210 = vmul.f32 %v4209, %v4208
    %v4211 = vmul.f32 0.5, %v4210
    %v4212 = vsub.f32 1.5, %v4211
    %v4213 = vmul.f32 %v4208, %v4212
    %vm4214 = vweird.f32 %v4146
    %vm4215 = vweird.f32 %v4208
    %vm4216 = vmor %vm4214, %vm4215
    %v4217 = vsel %vm4216, %v4208, %v4213
    %v4218 = vrsqrt.pop %v4147
    %v4219 = vmul.f32 %v4218, %v4147
    %v4220 = vmul.f32 %v4219, %v4218
    %v4221 = vmul.f32 0.5, %v4220
    %v4222 = vsub.f32 1.5, %v4221
    %v4223 = vmul.f32 %v4218, %v4222
    %vm4224 = vweird.f32 %v4147
    %vm4225 = vweird.f32 %v4218
    %vm4226 = vmor %vm4224, %vm4225
    %v4227 = vsel %vm4226, %v4218, %v4223
    %v4228 = vmul.f32 %v4092, %v4157
    %v4229 = vmul.f32 %v4093, %v4167
    %v4230 = vmul.f32 %v4094, %v4177
    %v4231 = vmul.f32 %v4095, %v4187
    %v4232 = vmul.f32 %v4096, %v4197
    %v4233 = vmul.f32 %v4097, %v4207
    %v4234 = vmul.f32 %v4098, %v4217
    %v4235 = vmul.f32 %v4099, %v4227
    %v4237 = vperm.slane %v4057, 0
    %v4239 = vmul.f32 %v4228, %v4237
    %v4240 = vmul.f32 %v4229, %v4237
    %v4241 = vmul.f32 %v4230, %v4237
    %v4242 = vmul.f32 %v4231, %v4237
    %v4243 = vmul.f32 %v4232, %v4237
    %v4244 = vmul.f32 %v4233, %v4237
    %v4245 = vmul.f32 %v4234, %v4237
    %v4246 = vmul.f32 %v4235, %v4237
    %v4248 = vperm.slane %v4059, 0
    %v4250 = vadd.f32 %v4239, %v4248
    %v4251 = vadd.f32 %v4240, %v4248
    %v4252 = vadd.f32 %v4241, %v4248
    %v4253 = vadd.f32 %v4242, %v4248
    %v4254 = vadd.f32 %v4243, %v4248
    %v4255 = vadd.f32 %v4244, %v4248
    %v4256 = vadd.f32 %v4245, %v4248
    %v4257 = vadd.f32 %v4246, %v4248
    %v4258 = vpack.c.bf16 %v4251, %v4250
    %v4259 = vpack.c.bf16 %v4253, %v4252
    %v4260 = vpack.c.bf16 %v4255, %v4254
    %v4261 = vpack.c.bf16 %v4257, %v4256
    %s4262 = scalar_lea.vmem %s8, 64
    %v4263 = vld [vmem:[%s4262] sm:$0xff]
    %v4264 = vld [vmem:[%s4262 + $0x8] sm:$0xff]
    %v4265 = vld [vmem:[%s4262 + $0x10] sm:$0xff]
    %v4266 = vld [vmem:[%s4262 + $0x18] sm:$0xff]
    %v4267 = vld [vmem:[%s4262 + $0x20] sm:$0xff]
    %v4268 = vld [vmem:[%s4262 + $0x28] sm:$0xff]
    %v4269 = vld [vmem:[%s4262 + $0x30] sm:$0xff]
    %v4270 = vld [vmem:[%s4262 + $0x38] sm:$0xff]
    %s4271 = scalar_lea.vmem %s9, 2
    %v4272 = vld [vmem:[%s4271] sm:$0x3]
    %v4274 = vperm.slane %v4272, 0
    %v4275 = vperm.slane %v4272, 1
    %v4286 = vunpack.c.l.b16 %v4263
    %v4287 = vunpack.c.h.b16 %v4263
    %v4288 = vunpack.c.l.b16 %v4264
    %v4289 = vunpack.c.h.b16 %v4264
    %v4290 = vunpack.c.l.b16 %v4265
    %v4291 = vunpack.c.h.b16 %v4265
    %v4292 = vunpack.c.l.b16 %v4266
    %v4293 = vunpack.c.h.b16 %v4266
    %v4294 = vunpack.c.l.b16 %v4267
    %v4295 = vunpack.c.h.b16 %v4267
    %v4296 = vunpack.c.l.b16 %v4268
    %v4297 = vunpack.c.h.b16 %v4268
    %v4298 = vunpack.c.l.b16 %v4269
    %v4299 = vunpack.c.h.b16 %v4269
    %v4300 = vunpack.c.l.b16 %v4270
    %v4301 = vunpack.c.h.b16 %v4270
    %v4302 = vpack.c.b16 %v4288, %v4286
    %v4303 = vpack.c.b16 %v4289, %v4287
    %v4304 = vpack.c.b16 %v4292, %v4290
    %v4305 = vpack.c.b16 %v4293, %v4291
    %v4306 = vpack.c.b16 %v4296, %v4294
    %v4307 = vpack.c.b16 %v4297, %v4295
    %v4308 = vpack.c.b16 %v4300, %v4298
    %v4309 = vpack.c.b16 %v4301, %v4299
    %v4319 = vsel %vm223, %v4258, 0
    %v4322 = vsel %vm223, %v4259, 0
    %v4325 = vsel %vm223, %v4260, 0
    %v4328 = vsel %vm223, %v4261, 0
    %4330 = vmatpush.bf16.msra.mxu0 0
    %4331 = vmatpush.bf16.msra.mxu0 0
    %4332 = vmatpush.bf16.msra.mxu0 0
    %4333 = vmatpush.bf16.msra.mxu0 0
    %4334 = vmatpush.bf16.msra.mxu0 %v4308
    %4335 = vmatpush.bf16.msra.mxu0 %v4306
    %4336 = vmatpush.bf16.msra.mxu0 %v4304
    %4337 = vmatpush.bf16.msra.mxu0 %v4302
    %4338 = vmatmul.bf16.gmra.mxu0 %v4319
    %v4339 = vpop.f32.mrf.mxu0
    %v4340 = vadd.f32 %v4274, %v4339
    %v4341 = vpop.f32.mrf.mxu0
    %v4342 = vadd.f32 %v4274, %v4341
    %4343 = vmatmul.bf16.gmra.mxu0 %v4322
    %v4344 = vpop.f32.mrf.mxu0
    %v4345 = vadd.f32 %v4274, %v4344
    %v4346 = vpop.f32.mrf.mxu0
    %v4347 = vadd.f32 %v4274, %v4346
    %4348 = vmatmul.bf16.gmra.mxu0 %v4325
    %v4349 = vpop.f32.mrf.mxu0
    %v4350 = vadd.f32 %v4274, %v4349
    %v4351 = vpop.f32.mrf.mxu0
    %v4352 = vadd.f32 %v4274, %v4351
    %4353 = vmatmul.bf16.gmra.mxu0 %v4328
    %v4354 = vpop.f32.mrf.mxu0
    %v4355 = vadd.f32 %v4274, %v4354
    %v4356 = vpop.f32.mrf.mxu0
    %v4357 = vadd.f32 %v4274, %v4356
    %4358 = vdwg.mxu0
    %4359 = vmatpush.bf16.msra.mxu0 0
    %4360 = vmatpush.bf16.msra.mxu0 0
    %4361 = vmatpush.bf16.msra.mxu0 0
    %4362 = vmatpush.bf16.msra.mxu0 0
    %4363 = vmatpush.bf16.msra.mxu0 %v4309
    %4364 = vmatpush.bf16.msra.mxu0 %v4307
    %4365 = vmatpush.bf16.msra.mxu0 %v4305
    %4366 = vmatpush.bf16.msra.mxu0 %v4303
    %4367 = vmatmul.bf16.gmra.mxu0 %v4319
    %v4368 = vpop.f32.mrf.mxu0
    %v4369 = vadd.f32 %v4275, %v4368
    %v4370 = vpop.f32.mrf.mxu0
    %v4371 = vadd.f32 %v4275, %v4370
    %4372 = vmatmul.bf16.gmra.mxu0 %v4322
    %v4373 = vpop.f32.mrf.mxu0
    %v4374 = vadd.f32 %v4275, %v4373
    %v4375 = vpop.f32.mrf.mxu0
    %v4376 = vadd.f32 %v4275, %v4375
    %4377 = vmatmul.bf16.gmra.mxu0 %v4325
    %v4378 = vpop.f32.mrf.mxu0
    %v4379 = vadd.f32 %v4275, %v4378
    %v4380 = vpop.f32.mrf.mxu0
    %v4381 = vadd.f32 %v4275, %v4380
    %4382 = vmatmul.bf16.gmra.mxu0 %v4328
    %v4383 = vpop.f32.mrf.mxu0
    %v4384 = vadd.f32 %v4275, %v4383
    %v4385 = vpop.f32.mrf.mxu0
    %v4386 = vadd.f32 %v4275, %v4385
    %4387 = vdwg.mxu0
    %v4388 = vmax.f32 %v4340, 0.0
    %v4389 = vmax.f32 %v4369, 0.0
    %v4390 = vmax.f32 %v4342, 0.0
    %v4391 = vmax.f32 %v4371, 0.0
    %v4392 = vmax.f32 %v4345, 0.0
    %v4393 = vmax.f32 %v4374, 0.0
    %v4394 = vmax.f32 %v4347, 0.0
    %v4395 = vmax.f32 %v4376, 0.0
    %v4396 = vmax.f32 %v4350, 0.0
    %v4397 = vmax.f32 %v4379, 0.0
    %v4398 = vmax.f32 %v4352, 0.0
    %v4399 = vmax.f32 %v4381, 0.0
    %v4400 = vmax.f32 %v4355, 0.0
    %v4401 = vmax.f32 %v4384, 0.0
    %v4402 = vmax.f32 %v4357, 0.0
    %v4403 = vmax.f32 %v4386, 0.0
    %v4404 = vpack.c.bf16 %v4390, %v4388
    %v4405 = vpack.c.bf16 %v4391, %v4389
    %v4406 = vpack.c.bf16 %v4394, %v4392
    %v4407 = vpack.c.bf16 %v4395, %v4393
    %v4408 = vpack.c.bf16 %v4398, %v4396
    %v4409 = vpack.c.bf16 %v4399, %v4397
    %v4410 = vpack.c.bf16 %v4402, %v4400
    %v4411 = vpack.c.bf16 %v4403, %v4401
    %s4412 = scalar_lea.vmem %s10, 128
    %v4413 = vld [vmem:[%s4412] sm:$0xf]
    %v4414 = vld [vmem:[%s4412 + $0x4] sm:$0xf]
    %v4415 = vld [vmem:[%s4412 + $0x8] sm:$0xf]
    %v4416 = vld [vmem:[%s4412 + $0xc] sm:$0xf]
    %v4417 = vld [vmem:[%s4412 + $0x10] sm:$0xf]
    %v4418 = vld [vmem:[%s4412 + $0x14] sm:$0xf]
    %v4419 = vld [vmem:[%s4412 + $0x18] sm:$0xf]
    %v4420 = vld [vmem:[%s4412 + $0x1c] sm:$0xf]
    %v4421 = vld [vmem:[%s4412 + $0x20] sm:$0xf]
    %v4422 = vld [vmem:[%s4412 + $0x24] sm:$0xf]
    %v4423 = vld [vmem:[%s4412 + $0x28] sm:$0xf]
    %v4424 = vld [vmem:[%s4412 + $0x2c] sm:$0xf]
    %v4425 = vld [vmem:[%s4412 + $0x30] sm:$0xf]
    %v4426 = vld [vmem:[%s4412 + $0x34] sm:$0xf]
    %v4427 = vld [vmem:[%s4412 + $0x38] sm:$0xf]
    %v4428 = vld [vmem:[%s4412 + $0x3c] sm:$0xf]
    %v4429 = vld [vmem:[%s4412 + $0x40] sm:$0xf]
    %v4430 = vld [vmem:[%s4412 + $0x44] sm:$0xf]
    %v4431 = vld [vmem:[%s4412 + $0x48] sm:$0xf]
    %v4432 = vld [vmem:[%s4412 + $0x4c] sm:$0xf]
    %v4433 = vld [vmem:[%s4412 + $0x50] sm:$0xf]
    %v4434 = vld [vmem:[%s4412 + $0x54] sm:$0xf]
    %v4435 = vld [vmem:[%s4412 + $0x58] sm:$0xf]
    %v4436 = vld [vmem:[%s4412 + $0x5c] sm:$0xf]
    %v4437 = vld [vmem:[%s4412 + $0x60] sm:$0xf]
    %v4438 = vld [vmem:[%s4412 + $0x64] sm:$0xf]
    %v4439 = vld [vmem:[%s4412 + $0x68] sm:$0xf]
    %v4440 = vld [vmem:[%s4412 + $0x6c] sm:$0xf]
    %v4441 = vld [vmem:[%s4412 + $0x70] sm:$0xf]
    %v4442 = vld [vmem:[%s4412 + $0x74] sm:$0xf]
    %v4443 = vld [vmem:[%s4412 + $0x78] sm:$0xf]
    %v4444 = vld [vmem:[%s4412 + $0x7c] sm:$0xf]
    %s4445 = scalar_lea.vmem %s11, 1
    %v4446 = vld [vmem:[%s4445] sm:$0x1]
    %v4448 = vperm.slane %v4446, 0
    %v4482 = vunpack.c.l.b16 %v4413
    %v4483 = vunpack.c.l.b16 %v4414
    %v4484 = vunpack.c.l.b16 %v4415
    %v4485 = vunpack.c.l.b16 %v4416
    %v4486 = vunpack.c.l.b16 %v4417
    %v4487 = vunpack.c.l.b16 %v4418
    %v4488 = vunpack.c.l.b16 %v4419
    %v4489 = vunpack.c.l.b16 %v4420
    %v4490 = vunpack.c.l.b16 %v4421
    %v4491 = vunpack.c.l.b16 %v4422
    %v4492 = vunpack.c.l.b16 %v4423
    %v4493 = vunpack.c.l.b16 %v4424
    %v4494 = vunpack.c.l.b16 %v4425
    %v4495 = vunpack.c.l.b16 %v4426
    %v4496 = vunpack.c.l.b16 %v4427
    %v4497 = vunpack.c.l.b16 %v4428
    %v4498 = vunpack.c.l.b16 %v4429
    %v4499 = vunpack.c.l.b16 %v4430
    %v4500 = vunpack.c.l.b16 %v4431
    %v4501 = vunpack.c.l.b16 %v4432
    %v4502 = vunpack.c.l.b16 %v4433
    %v4503 = vunpack.c.l.b16 %v4434
    %v4504 = vunpack.c.l.b16 %v4435
    %v4505 = vunpack.c.l.b16 %v4436
    %v4506 = vunpack.c.l.b16 %v4437
    %v4507 = vunpack.c.l.b16 %v4438
    %v4508 = vunpack.c.l.b16 %v4439
    %v4509 = vunpack.c.l.b16 %v4440
    %v4510 = vunpack.c.l.b16 %v4441
    %v4511 = vunpack.c.l.b16 %v4442
    %v4512 = vunpack.c.l.b16 %v4443
    %v4513 = vunpack.c.l.b16 %v4444
    %v4514 = vpack.c.b16 %v4483, %v4482
    %v4515 = vpack.c.b16 %v4485, %v4484
    %v4516 = vpack.c.b16 %v4487, %v4486
    %v4517 = vpack.c.b16 %v4489, %v4488
    %v4518 = vpack.c.b16 %v4491, %v4490
    %v4519 = vpack.c.b16 %v4493, %v4492
    %v4520 = vpack.c.b16 %v4495, %v4494
    %v4521 = vpack.c.b16 %v4497, %v4496
    %v4522 = vpack.c.b16 %v4499, %v4498
    %v4523 = vpack.c.b16 %v4501, %v4500
    %v4524 = vpack.c.b16 %v4503, %v4502
    %v4525 = vpack.c.b16 %v4505, %v4504
    %v4526 = vpack.c.b16 %v4507, %v4506
    %v4527 = vpack.c.b16 %v4509, %v4508
    %v4528 = vpack.c.b16 %v4511, %v4510
    %v4529 = vpack.c.b16 %v4513, %v4512
    %4546 = vmatpush.bf16.msra.mxu0 %v4521
    %4547 = vmatpush.bf16.msra.mxu0 %v4520
    %4548 = vmatpush.bf16.msra.mxu0 %v4519
    %4549 = vmatpush.bf16.msra.mxu0 %v4518
    %4550 = vmatpush.bf16.msra.mxu0 %v4517
    %4551 = vmatpush.bf16.msra.mxu0 %v4516
    %4552 = vmatpush.bf16.msra.mxu0 %v4515
    %4553 = vmatpush.bf16.msra.mxu0 %v4514
    %4554 = vmatmul.bf16.gmra.mxu0 %v4404
    %v4555 = vpop.f32.mrf.mxu0
    %v4556 = vadd.f32 %v4448, %v4555
    %v4557 = vpop.f32.mrf.mxu0
    %v4558 = vadd.f32 %v4448, %v4557
    %4559 = vmatmul.bf16.gmra.mxu0 %v4406
    %v4560 = vpop.f32.mrf.mxu0
    %v4561 = vadd.f32 %v4448, %v4560
    %v4562 = vpop.f32.mrf.mxu0
    %v4563 = vadd.f32 %v4448, %v4562
    %4564 = vmatmul.bf16.gmra.mxu0 %v4408
    %v4565 = vpop.f32.mrf.mxu0
    %v4566 = vadd.f32 %v4448, %v4565
    %v4567 = vpop.f32.mrf.mxu0
    %v4568 = vadd.f32 %v4448, %v4567
    %4569 = vmatmul.bf16.gmra.mxu0 %v4410
    %v4570 = vpop.f32.mrf.mxu0
    %v4571 = vadd.f32 %v4448, %v4570
    %v4572 = vpop.f32.mrf.mxu0
    %v4573 = vadd.f32 %v4448, %v4572
    %4574 = vdwg.mxu0
    %4575 = vmatpush.bf16.msra.mxu0 %v4529
    %4576 = vmatpush.bf16.msra.mxu0 %v4528
    %4577 = vmatpush.bf16.msra.mxu0 %v4527
    %4578 = vmatpush.bf16.msra.mxu0 %v4526
    %4579 = vmatpush.bf16.msra.mxu0 %v4525
    %4580 = vmatpush.bf16.msra.mxu0 %v4524
    %4581 = vmatpush.bf16.msra.mxu0 %v4523
    %4582 = vmatpush.bf16.msra.mxu0 %v4522
    %4583 = vmatmul.bf16.gmra.mxu0 %v4405
    %v4584 = vpop.f32.mrf.mxu0
    %v4585 = vadd.f32 %v4556, %v4584
    %v4586 = vpop.f32.mrf.mxu0
    %v4587 = vadd.f32 %v4558, %v4586
    %4588 = vmatmul.bf16.gmra.mxu0 %v4407
    %v4589 = vpop.f32.mrf.mxu0
    %v4590 = vadd.f32 %v4561, %v4589
    %v4591 = vpop.f32.mrf.mxu0
    %v4592 = vadd.f32 %v4563, %v4591
    %4593 = vmatmul.bf16.gmra.mxu0 %v4409
    %v4594 = vpop.f32.mrf.mxu0
    %v4595 = vadd.f32 %v4566, %v4594
    %v4596 = vpop.f32.mrf.mxu0
    %v4597 = vadd.f32 %v4568, %v4596
    %4598 = vmatmul.bf16.gmra.mxu0 %v4411
    %v4599 = vpop.f32.mrf.mxu0
    %v4600 = vadd.f32 %v4571, %v4599
    %v4601 = vpop.f32.mrf.mxu0
    %v4602 = vadd.f32 %v4573, %v4601
    %4603 = vdwg.mxu0
    %v4604 = vadd.f32 %v4048, %v4585
    %v4605 = vadd.f32 %v4049, %v4587
    %v4606 = vadd.f32 %v4050, %v4590
    %v4607 = vadd.f32 %v4051, %v4592
    %v4608 = vadd.f32 %v4052, %v4595
    %v4609 = vadd.f32 %v4053, %v4597
    %v4610 = vadd.f32 %v4054, %v4600
    %v4611 = vadd.f32 %v4055, %v4602
    %s4612 = scalar_lea.vmem %s3, 4
    %v4613 = vld [vmem:[%s4612] sm:$0x1]
    %s4614 = scalar_lea.vmem %s4, 4
    %v4615 = vld [vmem:[%s4614] sm:$0x1]
    %v4616 = vsel %vm223, %v4604, 0.0
    %4617 = vadd.xlane.f32.xlu0 %v4616
    %v4618 = vpop.xlane.xlu0 %4617
    %v4619 = vsel %vm223, %v4605, 0.0
    %4620 = vadd.xlane.f32.xlu0 %v4619
    %v4621 = vpop.xlane.xlu0 %4620
    %v4622 = vsel %vm223, %v4606, 0.0
    %4623 = vadd.xlane.f32.xlu0 %v4622
    %v4624 = vpop.xlane.xlu0 %4623
    %v4625 = vsel %vm223, %v4607, 0.0
    %4626 = vadd.xlane.f32.xlu0 %v4625
    %v4627 = vpop.xlane.xlu0 %4626
    %v4628 = vsel %vm223, %v4608, 0.0
    %4629 = vadd.xlane.f32.xlu0 %v4628
    %v4630 = vpop.xlane.xlu0 %4629
    %v4631 = vsel %vm223, %v4609, 0.0
    %4632 = vadd.xlane.f32.xlu0 %v4631
    %v4633 = vpop.xlane.xlu0 %4632
    %v4634 = vsel %vm223, %v4610, 0.0
    %4635 = vadd.xlane.f32.xlu0 %v4634
    %v4636 = vpop.xlane.xlu0 %4635
    %v4637 = vsel %vm223, %v4611, 0.0
    %4638 = vadd.xlane.f32.xlu0 %v4637
    %v4639 = vpop.xlane.xlu0 %4638
    %v4640 = vmul.f32 %v4618, %v254
    %v4641 = vmul.f32 %v4621, %v254
    %v4642 = vmul.f32 %v4624, %v254
    %v4643 = vmul.f32 %v4627, %v254
    %v4644 = vmul.f32 %v4630, %v254
    %v4645 = vmul.f32 %v4633, %v254
    %v4646 = vmul.f32 %v4636, %v254
    %v4647 = vmul.f32 %v4639, %v254
    %v4648 = vsub.f32 %v4604, %v4640
    %v4649 = vsub.f32 %v4605, %v4641
    %v4650 = vsub.f32 %v4606, %v4642
    %v4651 = vsub.f32 %v4607, %v4643
    %v4652 = vsub.f32 %v4608, %v4644
    %v4653 = vsub.f32 %v4609, %v4645
    %v4654 = vsub.f32 %v4610, %v4646
    %v4655 = vsub.f32 %v4611, %v4647
    %v4656 = vmul.f32 %v4648, %v4648
    %v4657 = vmul.f32 %v4649, %v4649
    %v4658 = vmul.f32 %v4650, %v4650
    %v4659 = vmul.f32 %v4651, %v4651
    %v4660 = vmul.f32 %v4652, %v4652
    %v4661 = vmul.f32 %v4653, %v4653
    %v4662 = vmul.f32 %v4654, %v4654
    %v4663 = vmul.f32 %v4655, %v4655
    %v4664 = vsel %vm223, %v4656, 0.0
    %4665 = vadd.xlane.f32.xlu0 %v4664
    %v4666 = vpop.xlane.xlu0 %4665
    %v4667 = vsel %vm223, %v4657, 0.0
    %4668 = vadd.xlane.f32.xlu0 %v4667
    %v4669 = vpop.xlane.xlu0 %4668
    %v4670 = vsel %vm223, %v4658, 0.0
    %4671 = vadd.xlane.f32.xlu0 %v4670
    %v4672 = vpop.xlane.xlu0 %4671
    %v4673 = vsel %vm223, %v4659, 0.0
    %4674 = vadd.xlane.f32.xlu0 %v4673
    %v4675 = vpop.xlane.xlu0 %4674
    %v4676 = vsel %vm223, %v4660, 0.0
    %4677 = vadd.xlane.f32.xlu0 %v4676
    %v4678 = vpop.xlane.xlu0 %4677
    %v4679 = vsel %vm223, %v4661, 0.0
    %4680 = vadd.xlane.f32.xlu0 %v4679
    %v4681 = vpop.xlane.xlu0 %4680
    %v4682 = vsel %vm223, %v4662, 0.0
    %4683 = vadd.xlane.f32.xlu0 %v4682
    %v4684 = vpop.xlane.xlu0 %4683
    %v4685 = vsel %vm223, %v4663, 0.0
    %4686 = vadd.xlane.f32.xlu0 %v4685
    %v4687 = vpop.xlane.xlu0 %4686
    %v4688 = vmul.f32 %v4666, %v254
    %v4689 = vmul.f32 %v4669, %v254
    %v4690 = vmul.f32 %v4672, %v254
    %v4691 = vmul.f32 %v4675, %v254
    %v4692 = vmul.f32 %v4678, %v254
    %v4693 = vmul.f32 %v4681, %v254
    %v4694 = vmul.f32 %v4684, %v254
    %v4695 = vmul.f32 %v4687, %v254
    %v4696 = vadd.f32 %v4688, 1e-05
    %v4697 = vadd.f32 %v4689, 1e-05
    %v4698 = vadd.f32 %v4690, 1e-05
    %v4699 = vadd.f32 %v4691, 1e-05
    %v4700 = vadd.f32 %v4692, 1e-05
    %v4701 = vadd.f32 %v4693, 1e-05
    %v4702 = vadd.f32 %v4694, 1e-05
    %v4703 = vadd.f32 %v4695, 1e-05
    %v4704 = vrsqrt.pop %v4696
    %v4705 = vmul.f32 %v4704, %v4696
    %v4706 = vmul.f32 %v4705, %v4704
    %v4707 = vmul.f32 0.5, %v4706
    %v4708 = vsub.f32 1.5, %v4707
    %v4709 = vmul.f32 %v4704, %v4708
    %vm4710 = vweird.f32 %v4696
    %vm4711 = vweird.f32 %v4704
    %vm4712 = vmor %vm4710, %vm4711
    %v4713 = vsel %vm4712, %v4704, %v4709
    %v4714 = vrsqrt.pop %v4697
    %v4715 = vmul.f32 %v4714, %v4697
    %v4716 = vmul.f32 %v4715, %v4714
    %v4717 = vmul.f32 0.5, %v4716
    %v4718 = vsub.f32 1.5, %v4717
    %v4719 = vmul.f32 %v4714, %v4718
    %vm4720 = vweird.f32 %v4697
    %vm4721 = vweird.f32 %v4714
    %vm4722 = vmor %vm4720, %vm4721
    %v4723 = vsel %vm4722, %v4714, %v4719
    %v4724 = vrsqrt.pop %v4698
    %v4725 = vmul.f32 %v4724, %v4698
    %v4726 = vmul.f32 %v4725, %v4724
    %v4727 = vmul.f32 0.5, %v4726
    %v4728 = vsub.f32 1.5, %v4727
    %v4729 = vmul.f32 %v4724, %v4728
    %vm4730 = vweird.f32 %v4698
    %vm4731 = vweird.f32 %v4724
    %vm4732 = vmor %vm4730, %vm4731
    %v4733 = vsel %vm4732, %v4724, %v4729
    %v4734 = vrsqrt.pop %v4699
    %v4735 = vmul.f32 %v4734, %v4699
    %v4736 = vmul.f32 %v4735, %v4734
    %v4737 = vmul.f32 0.5, %v4736
    %v4738 = vsub.f32 1.5, %v4737
    %v4739 = vmul.f32 %v4734, %v4738
    %vm4740 = vweird.f32 %v4699
    %vm4741 = vweird.f32 %v4734
    %vm4742 = vmor %vm4740, %vm4741
    %v4743 = vsel %vm4742, %v4734, %v4739
    %v4744 = vrsqrt.pop %v4700
    %v4745 = vmul.f32 %v4744, %v4700
    %v4746 = vmul.f32 %v4745, %v4744
    %v4747 = vmul.f32 0.5, %v4746
    %v4748 = vsub.f32 1.5, %v4747
    %v4749 = vmul.f32 %v4744, %v4748
    %vm4750 = vweird.f32 %v4700
    %vm4751 = vweird.f32 %v4744
    %vm4752 = vmor %vm4750, %vm4751
    %v4753 = vsel %vm4752, %v4744, %v4749
    %v4754 = vrsqrt.pop %v4701
    %v4755 = vmul.f32 %v4754, %v4701
    %v4756 = vmul.f32 %v4755, %v4754
    %v4757 = vmul.f32 0.5, %v4756
    %v4758 = vsub.f32 1.5, %v4757
    %v4759 = vmul.f32 %v4754, %v4758
    %vm4760 = vweird.f32 %v4701
    %vm4761 = vweird.f32 %v4754
    %vm4762 = vmor %vm4760, %vm4761
    %v4763 = vsel %vm4762, %v4754, %v4759
    %v4764 = vrsqrt.pop %v4702
    %v4765 = vmul.f32 %v4764, %v4702
    %v4766 = vmul.f32 %v4765, %v4764
    %v4767 = vmul.f32 0.5, %v4766
    %v4768 = vsub.f32 1.5, %v4767
    %v4769 = vmul.f32 %v4764, %v4768
    %vm4770 = vweird.f32 %v4702
    %vm4771 = vweird.f32 %v4764
    %vm4772 = vmor %vm4770, %vm4771
    %v4773 = vsel %vm4772, %v4764, %v4769
    %v4774 = vrsqrt.pop %v4703
    %v4775 = vmul.f32 %v4774, %v4703
    %v4776 = vmul.f32 %v4775, %v4774
    %v4777 = vmul.f32 0.5, %v4776
    %v4778 = vsub.f32 1.5, %v4777
    %v4779 = vmul.f32 %v4774, %v4778
    %vm4780 = vweird.f32 %v4703
    %vm4781 = vweird.f32 %v4774
    %vm4782 = vmor %vm4780, %vm4781
    %v4783 = vsel %vm4782, %v4774, %v4779
    %v4784 = vmul.f32 %v4648, %v4713
    %v4785 = vmul.f32 %v4649, %v4723
    %v4786 = vmul.f32 %v4650, %v4733
    %v4787 = vmul.f32 %v4651, %v4743
    %v4788 = vmul.f32 %v4652, %v4753
    %v4789 = vmul.f32 %v4653, %v4763
    %v4790 = vmul.f32 %v4654, %v4773
    %v4791 = vmul.f32 %v4655, %v4783
    %v4793 = vperm.slane %v4613, 0
    %v4795 = vmul.f32 %v4784, %v4793
    %v4796 = vmul.f32 %v4785, %v4793
    %v4797 = vmul.f32 %v4786, %v4793
    %v4798 = vmul.f32 %v4787, %v4793
    %v4799 = vmul.f32 %v4788, %v4793
    %v4800 = vmul.f32 %v4789, %v4793
    %v4801 = vmul.f32 %v4790, %v4793
    %v4802 = vmul.f32 %v4791, %v4793
    %v4804 = vperm.slane %v4615, 0
    %v4806 = vadd.f32 %v4795, %v4804
    %v4807 = vadd.f32 %v4796, %v4804
    %v4808 = vadd.f32 %v4797, %v4804
    %v4809 = vadd.f32 %v4798, %v4804
    %v4810 = vadd.f32 %v4799, %v4804
    %v4811 = vadd.f32 %v4800, %v4804
    %v4812 = vadd.f32 %v4801, %v4804
    %v4813 = vadd.f32 %v4802, %v4804
    %v4814 = vpack.c.bf16 %v4807, %v4806
    %v4815 = vpack.c.bf16 %v4809, %v4808
    %v4816 = vpack.c.bf16 %v4811, %v4810
    %v4817 = vpack.c.bf16 %v4813, %v4812
    %s4818 = scalar_lea.vmem %s5, 128
    %v4819 = vld [vmem:[%s4818] sm:$0xff]
    %v4820 = vld [vmem:[%s4818 + $0x8] sm:$0xff]
    %v4821 = vld [vmem:[%s4818 + $0x10] sm:$0xff]
    %v4822 = vld [vmem:[%s4818 + $0x18] sm:$0xff]
    %v4823 = vld [vmem:[%s4818 + $0x20] sm:$0xff]
    %v4824 = vld [vmem:[%s4818 + $0x28] sm:$0xff]
    %v4825 = vld [vmem:[%s4818 + $0x30] sm:$0xff]
    %v4826 = vld [vmem:[%s4818 + $0x38] sm:$0xff]
    %v4835 = vunpack.c.l.b16 %v4819
    %v4836 = vunpack.c.h.b16 %v4819
    %v4837 = vunpack.c.l.b16 %v4820
    %v4838 = vunpack.c.h.b16 %v4820
    %v4839 = vunpack.c.l.b16 %v4821
    %v4840 = vunpack.c.h.b16 %v4821
    %v4841 = vunpack.c.l.b16 %v4822
    %v4842 = vunpack.c.h.b16 %v4822
    %v4843 = vunpack.c.l.b16 %v4823
    %v4844 = vunpack.c.h.b16 %v4823
    %v4845 = vunpack.c.l.b16 %v4824
    %v4846 = vunpack.c.h.b16 %v4824
    %v4847 = vunpack.c.l.b16 %v4825
    %v4848 = vunpack.c.h.b16 %v4825
    %v4849 = vunpack.c.l.b16 %v4826
    %v4850 = vunpack.c.h.b16 %v4826
    %v4851 = vpack.c.b16 %v4837, %v4835
    %v4852 = vpack.c.b16 %v4838, %v4836
    %v4853 = vpack.c.b16 %v4841, %v4839
    %v4854 = vpack.c.b16 %v4842, %v4840
    %v4855 = vpack.c.b16 %v4845, %v4843
    %v4856 = vpack.c.b16 %v4846, %v4844
    %v4857 = vpack.c.b16 %v4849, %v4847
    %v4858 = vpack.c.b16 %v4850, %v4848
    %v4868 = vsel %vm223, %v4814, 0
    %v4871 = vsel %vm223, %v4815, 0
    %v4874 = vsel %vm223, %v4816, 0
    %v4877 = vsel %vm223, %v4817, 0
    %4879 = vmatpush.bf16.msra.mxu0 0
    %4880 = vmatpush.bf16.msra.mxu0 0
    %4881 = vmatpush.bf16.msra.mxu0 0
    %4882 = vmatpush.bf16.msra.mxu0 0
    %4883 = vmatpush.bf16.msra.mxu0 %v4857
    %4884 = vmatpush.bf16.msra.mxu0 %v4855
    %4885 = vmatpush.bf16.msra.mxu0 %v4853
    %4886 = vmatpush.bf16.msra.mxu0 %v4851
    %4887 = vmatmul.bf16.gmra.mxu0 %v4868
    %v4888 = vpop.f32.mrf.mxu0
    %v4889 = vadd.f32 0.0, %v4888
    %v4890 = vpop.f32.mrf.mxu0
    %v4891 = vadd.f32 0.0, %v4890
    %4892 = vmatmul.bf16.gmra.mxu0 %v4871
    %v4893 = vpop.f32.mrf.mxu0
    %v4894 = vadd.f32 0.0, %v4893
    %v4895 = vpop.f32.mrf.mxu0
    %v4896 = vadd.f32 0.0, %v4895
    %4897 = vmatmul.bf16.gmra.mxu0 %v4874
    %v4898 = vpop.f32.mrf.mxu0
    %v4899 = vadd.f32 0.0, %v4898
    %v4900 = vpop.f32.mrf.mxu0
    %v4901 = vadd.f32 0.0, %v4900
    %4902 = vmatmul.bf16.gmra.mxu0 %v4877
    %v4903 = vpop.f32.mrf.mxu0
    %v4904 = vadd.f32 0.0, %v4903
    %v4905 = vpop.f32.mrf.mxu0
    %v4906 = vadd.f32 0.0, %v4905
    %4907 = vdwg.mxu0
    %4908 = vmatpush.bf16.msra.mxu0 0
    %4909 = vmatpush.bf16.msra.mxu0 0
    %4910 = vmatpush.bf16.msra.mxu0 0
    %4911 = vmatpush.bf16.msra.mxu0 0
    %4912 = vmatpush.bf16.msra.mxu0 %v4858
    %4913 = vmatpush.bf16.msra.mxu0 %v4856
    %4914 = vmatpush.bf16.msra.mxu0 %v4854
    %4915 = vmatpush.bf16.msra.mxu0 %v4852
    %4916 = vmatmul.bf16.gmra.mxu0 %v4868
    %v4917 = vpop.f32.mrf.mxu0
    %v4918 = vadd.f32 0.0, %v4917
    %v4919 = vpop.f32.mrf.mxu0
    %v4920 = vadd.f32 0.0, %v4919
    %4921 = vmatmul.bf16.gmra.mxu0 %v4871
    %v4922 = vpop.f32.mrf.mxu0
    %v4923 = vadd.f32 0.0, %v4922
    %v4924 = vpop.f32.mrf.mxu0
    %v4925 = vadd.f32 0.0, %v4924
    %4926 = vmatmul.bf16.gmra.mxu0 %v4874
    %v4927 = vpop.f32.mrf.mxu0
    %v4928 = vadd.f32 0.0, %v4927
    %v4929 = vpop.f32.mrf.mxu0
    %v4930 = vadd.f32 0.0, %v4929
    %4931 = vmatmul.bf16.gmra.mxu0 %v4877
    %v4932 = vpop.f32.mrf.mxu0
    %v4933 = vadd.f32 0.0, %v4932
    %v4934 = vpop.f32.mrf.mxu0
    %v4935 = vadd.f32 0.0, %v4934
    %4936 = vdwg.mxu0
    %v4937 = vpack.c.bf16 %v4889, %v4889
    %v4938 = vpack.c.bf16 %v4891, %v4891
    %v4939 = vpack.c.bf16 %v4894, %v4894
    %v4940 = vpack.c.bf16 %v4896, %v4896
    %v4941 = vpack.c.bf16 %v4899, %v4899
    %v4942 = vpack.c.bf16 %v4901, %v4901
    %v4943 = vpack.c.bf16 %v4904, %v4904
    %v4944 = vpack.c.bf16 %v4906, %v4906
    %v4945 = vpack.c.bf16 %v4918, %v4918
    %v4946 = vpack.c.bf16 %v4920, %v4920
    %v4947 = vpack.c.bf16 %v4923, %v4923
    %v4948 = vpack.c.bf16 %v4925, %v4925
    %v4949 = vpack.c.bf16 %v4928, %v4928
    %v4950 = vpack.c.bf16 %v4930, %v4930
    %v4951 = vpack.c.bf16 %v4933, %v4933
    %v4952 = vpack.c.bf16 %v4935, %v4935
    %s4953 = scalar_lea.vmem %s6, 64
    %v4954 = vld [vmem:[%s4953] sm:$0xf]
    %v4955 = vld [vmem:[%s4953 + $0x4] sm:$0xf]
    %v4956 = vld [vmem:[%s4953 + $0x8] sm:$0xf]
    %v4957 = vld [vmem:[%s4953 + $0xc] sm:$0xf]
    %v4958 = vld [vmem:[%s4953 + $0x10] sm:$0xf]
    %v4959 = vld [vmem:[%s4953 + $0x14] sm:$0xf]
    %v4960 = vld [vmem:[%s4953 + $0x18] sm:$0xf]
    %v4961 = vld [vmem:[%s4953 + $0x1c] sm:$0xf]
    %v4966 = vunpack.c.l.b16 %v4937
    %v4967 = vunpack.c.l.b16 %v4938
    %v4968 = vunpack.c.l.b16 %v4939
    %v4969 = vunpack.c.l.b16 %v4940
    %v4970 = vpack.c.b16 %v4967, %v4966
    %v4971 = vpack.c.b16 %v4969, %v4968
    %4972 = vrot.lane.b32.xlu0 %v4970, 64
    %v4973 = vpop.permute.xlu0 %4972
    %4974 = vrot.lane.b32.xlu0 %v4971, 64
    %v4975 = vpop.permute.xlu0 %4974
    %v4977 = vsel %vm589, %v4970, 0
    %v4980 = vsel %vm589, %v4971, 0
    %v4983 = vsel %vm589, %v4973, 0
    %v4986 = vsel %vm589, %v4975, 0
    %4988 = vmatpush.bf16.xpose.msra.mxu0 0
    %4989 = vmatpush.bf16.xpose.msra.mxu0 0
    %4990 = vmatpush.bf16.xpose.msra.mxu0 0
    %4991 = vmatpush.bf16.xpose.msra.mxu0 0
    %4992 = vmatpush.bf16.xpose.msra.mxu0 0
    %4993 = vmatpush.bf16.xpose.msra.mxu0 0
    %4994 = vmatpush.bf16.xpose.msra.mxu0 %v4986
    %4995 = vmatpush.bf16.xpose.msra.mxu0 %v4983
    %4996 = vmatmul.bf16.gmra.mxu0 %v4977
    %v4997 = vpop.f32.mrf.mxu0
    %v4998 = vadd.f32 %v217, %v4997
    %v4999 = vpop.f32.mrf.mxu0
    %v5000 = vadd.f32 %v218, %v4999
    %5001 = vmatmul.bf16.gmra.mxu0 %v4980
    %v5002 = vpop.f32.mrf.mxu0
    %v5003 = vadd.f32 %v219, %v5002
    %v5004 = vpop.f32.mrf.mxu0
    %v5005 = vadd.f32 %v220, %v5004
    %5006 = vdwg.mxu0
    %v5011 = vunpack.c.l.b16 %v4941
    %v5012 = vunpack.c.l.b16 %v4942
    %v5013 = vunpack.c.l.b16 %v4943
    %v5014 = vunpack.c.l.b16 %v4944
    %v5015 = vpack.c.b16 %v5012, %v5011
    %v5016 = vpack.c.b16 %v5014, %v5013
    %5017 = vrot.lane.b32.xlu0 %v5015, 64
    %v5018 = vpop.permute.xlu0 %5017
    %5019 = vrot.lane.b32.xlu0 %v5016, 64
    %v5020 = vpop.permute.xlu0 %5019
    %v5022 = vsel %vm589, %v5015, 0
    %v5025 = vsel %vm589, %v5016, 0
    %v5028 = vsel %vm589, %v5018, 0
    %v5031 = vsel %vm589, %v5020, 0
    %5033 = vmatpush.bf16.xpose.msra.mxu0 0
    %5034 = vmatpush.bf16.xpose.msra.mxu0 0
    %5035 = vmatpush.bf16.xpose.msra.mxu0 0
    %5036 = vmatpush.bf16.xpose.msra.mxu0 0
    %5037 = vmatpush.bf16.xpose.msra.mxu0 0
    %5038 = vmatpush.bf16.xpose.msra.mxu0 0
    %5039 = vmatpush.bf16.xpose.msra.mxu0 %v5031
    %5040 = vmatpush.bf16.xpose.msra.mxu0 %v5028
    %5041 = vmatmul.bf16.gmra.mxu0 %v5022
    %v5042 = vpop.f32.mrf.mxu0
    %v5043 = vadd.f32 %v217, %v5042
    %v5044 = vpop.f32.mrf.mxu0
    %v5045 = vadd.f32 %v218, %v5044
    %5046 = vmatmul.bf16.gmra.mxu0 %v5025
    %v5047 = vpop.f32.mrf.mxu0
    %v5048 = vadd.f32 %v219, %v5047
    %v5049 = vpop.f32.mrf.mxu0
    %v5050 = vadd.f32 %v220, %v5049
    %5051 = vdwg.mxu0
    %v5052 = vsel %vm666, %v4998, -inf
    %5053 = vmax.xlane.f32.xlu0 %v5052
    %v5054 = vpop.xlane.xlu0 %5053
    %v5055 = vsel %vm666, %v5000, -inf
    %5056 = vmax.xlane.f32.xlu0 %v5055
    %v5057 = vpop.xlane.xlu0 %5056
    %v5058 = vsel %vm666, %v5003, -inf
    %5059 = vmax.xlane.f32.xlu0 %v5058
    %v5060 = vpop.xlane.xlu0 %5059
    %v5061 = vsel %vm666, %v5005, -inf
    %5062 = vmax.xlane.f32.xlu0 %v5061
    %v5063 = vpop.xlane.xlu0 %5062
    %v5064 = vsel %vm666, %v5043, -inf
    %5065 = vmax.xlane.f32.xlu0 %v5064
    %v5066 = vpop.xlane.xlu0 %5065
    %v5067 = vsel %vm666, %v5045, -inf
    %5068 = vmax.xlane.f32.xlu0 %v5067
    %v5069 = vpop.xlane.xlu0 %5068
    %v5070 = vsel %vm666, %v5048, -inf
    %5071 = vmax.xlane.f32.xlu0 %v5070
    %v5072 = vpop.xlane.xlu0 %5071
    %v5073 = vsel %vm666, %v5050, -inf
    %5074 = vmax.xlane.f32.xlu0 %v5073
    %v5075 = vpop.xlane.xlu0 %5074
    %v5076 = vsub.f32 %v4998, %v5054
    %v5077 = vsub.f32 %v5000, %v5057
    %v5078 = vsub.f32 %v5003, %v5060
    %v5079 = vsub.f32 %v5005, %v5063
    %v5080 = vsub.f32 %v5043, %v5066
    %v5081 = vsub.f32 %v5045, %v5069
    %v5082 = vsub.f32 %v5048, %v5072
    %v5083 = vsub.f32 %v5050, %v5075
    %v5084 = vmul.f32 %v5076, 1.442695
    %v5085 = vpow.pop %v5084
    %v5086 = vmul.f32 %v5077, 1.442695
    %v5087 = vpow.pop %v5086
    %v5088 = vmul.f32 %v5078, 1.442695
    %v5089 = vpow.pop %v5088
    %v5090 = vmul.f32 %v5079, 1.442695
    %v5091 = vpow.pop %v5090
    %v5092 = vmul.f32 %v5080, 1.442695
    %v5093 = vpow.pop %v5092
    %v5094 = vmul.f32 %v5081, 1.442695
    %v5095 = vpow.pop %v5094
    %v5096 = vmul.f32 %v5082, 1.442695
    %v5097 = vpow.pop %v5096
    %v5098 = vmul.f32 %v5083, 1.442695
    %v5099 = vpow.pop %v5098
    %v5100 = vsel %vm666, %v5085, 0.0
    %5101 = vadd.xlane.f32.xlu0 %v5100
    %v5102 = vpop.xlane.xlu0 %5101
    %v5103 = vsel %vm666, %v5087, 0.0
    %5104 = vadd.xlane.f32.xlu0 %v5103
    %v5105 = vpop.xlane.xlu0 %5104
    %v5106 = vsel %vm666, %v5089, 0.0
    %5107 = vadd.xlane.f32.xlu0 %v5106
    %v5108 = vpop.xlane.xlu0 %5107
    %v5109 = vsel %vm666, %v5091, 0.0
    %5110 = vadd.xlane.f32.xlu0 %v5109
    %v5111 = vpop.xlane.xlu0 %5110
    %v5112 = vsel %vm666, %v5093, 0.0
    %5113 = vadd.xlane.f32.xlu0 %v5112
    %v5114 = vpop.xlane.xlu0 %5113
    %v5115 = vsel %vm666, %v5095, 0.0
    %5116 = vadd.xlane.f32.xlu0 %v5115
    %v5117 = vpop.xlane.xlu0 %5116
    %v5118 = vsel %vm666, %v5097, 0.0
    %5119 = vadd.xlane.f32.xlu0 %v5118
    %v5120 = vpop.xlane.xlu0 %5119
    %v5121 = vsel %vm666, %v5099, 0.0
    %5122 = vadd.xlane.f32.xlu0 %v5121
    %v5123 = vpop.xlane.xlu0 %5122
    %v5124 = vrcp.pop %v5102
    %v5125 = vrcp.pop %v5105
    %v5126 = vrcp.pop %v5108
    %v5127 = vrcp.pop %v5111
    %v5128 = vrcp.pop %v5114
    %v5129 = vrcp.pop %v5117
    %v5130 = vrcp.pop %v5120
    %v5131 = vrcp.pop %v5123
    %v5132 = vmul.f32 %v5085, %v5124
    %v5133 = vmul.f32 %v5087, %v5125
    %v5134 = vmul.f32 %v5089, %v5126
    %v5135 = vmul.f32 %v5091, %v5127
    %v5136 = vmul.f32 %v5093, %v5128
    %v5137 = vmul.f32 %v5095, %v5129
    %v5138 = vmul.f32 %v5097, %v5130
    %v5139 = vmul.f32 %v5099, %v5131
    %v5140 = vpack.c.bf16 %v5132, %v5132
    %v5141 = vpack.c.bf16 %v5133, %v5133
    %v5142 = vpack.c.bf16 %v5134, %v5134
    %v5143 = vpack.c.bf16 %v5135, %v5135
    %v5144 = vpack.c.bf16 %v5136, %v5136
    %v5145 = vpack.c.bf16 %v5137, %v5137
    %v5146 = vpack.c.bf16 %v5138, %v5138
    %v5147 = vpack.c.bf16 %v5139, %v5139
    %v5152 = vunpack.c.l.b16 %v5140
    %v5153 = vunpack.c.l.b16 %v5141
    %v5154 = vunpack.c.l.b16 %v5142
    %v5155 = vunpack.c.l.b16 %v5143
    %v5156 = vpack.c.b16 %v5153, %v5152
    %v5157 = vpack.c.b16 %v5155, %v5154
    %v5162 = vunpack.c.l.b16 %v4945
    %v5163 = vunpack.c.l.b16 %v4946
    %v5164 = vunpack.c.l.b16 %v4947
    %v5165 = vunpack.c.l.b16 %v4948
    %v5166 = vpack.c.b16 %v5163, %v5162
    %v5167 = vpack.c.b16 %v5165, %v5164
    %v5171 = vsel %vm666, %v5156, 0
    %v5174 = vsel %vm666, %v5157, 0
    %5176 = vmatpush.bf16.msra.mxu0 0
    %5177 = vmatpush.bf16.msra.mxu0 0
    %5178 = vmatpush.bf16.msra.mxu0 0
    %5179 = vmatpush.bf16.msra.mxu0 0
    %5180 = vmatpush.bf16.msra.mxu0 0
    %5181 = vmatpush.bf16.msra.mxu0 0
    %5182 = vmatpush.bf16.msra.mxu0 %v5167
    %5183 = vmatpush.bf16.msra.mxu0 %v5166
    %5184 = vmatmul.bf16.gmra.mxu0 %v5171
    %v5185 = vpop.f32.mrf.mxu0
    %v5186 = vadd.f32 0.0, %v5185
    %v5187 = vpop.f32.mrf.mxu0
    %v5188 = vadd.f32 0.0, %v5187
    %5189 = vmatmul.bf16.gmra.mxu0 %v5174
    %v5190 = vpop.f32.mrf.mxu0
    %v5191 = vadd.f32 0.0, %v5190
    %v5192 = vpop.f32.mrf.mxu0
    %v5193 = vadd.f32 0.0, %v5192
    %5194 = vdwg.mxu0
    %v5199 = vunpack.c.l.b16 %v5144
    %v5200 = vunpack.c.l.b16 %v5145
    %v5201 = vunpack.c.l.b16 %v5146
    %v5202 = vunpack.c.l.b16 %v5147
    %v5203 = vpack.c.b16 %v5200, %v5199
    %v5204 = vpack.c.b16 %v5202, %v5201
    %v5209 = vunpack.c.l.b16 %v4949
    %v5210 = vunpack.c.l.b16 %v4950
    %v5211 = vunpack.c.l.b16 %v4951
    %v5212 = vunpack.c.l.b16 %v4952
    %v5213 = vpack.c.b16 %v5210, %v5209
    %v5214 = vpack.c.b16 %v5212, %v5211
    %v5218 = vsel %vm666, %v5203, 0
    %v5221 = vsel %vm666, %v5204, 0
    %5223 = vmatpush.bf16.msra.mxu0 0
    %5224 = vmatpush.bf16.msra.mxu0 0
    %5225 = vmatpush.bf16.msra.mxu0 0
    %5226 = vmatpush.bf16.msra.mxu0 0
    %5227 = vmatpush.bf16.msra.mxu0 0
    %5228 = vmatpush.bf16.msra.mxu0 0
    %5229 = vmatpush.bf16.msra.mxu0 %v5214
    %5230 = vmatpush.bf16.msra.mxu0 %v5213
    %5231 = vmatmul.bf16.gmra.mxu0 %v5218
    %v5232 = vpop.f32.mrf.mxu0
    %v5233 = vadd.f32 0.0, %v5232
    %v5234 = vpop.f32.mrf.mxu0
    %v5235 = vadd.f32 0.0, %v5234
    %5236 = vmatmul.bf16.gmra.mxu0 %v5221
    %v5237 = vpop.f32.mrf.mxu0
    %v5238 = vadd.f32 0.0, %v5237
    %v5239 = vpop.f32.mrf.mxu0
    %v5240 = vadd.f32 0.0, %v5239
    %5241 = vdwg.mxu0
    %v5242 = vpack.c.bf16 %v5188, %v5186
    %v5243 = vpack.c.bf16 %v5193, %v5191
    %v5244 = vpack.c.bf16 %v5235, %v5233
    %v5245 = vpack.c.bf16 %v5240, %v5238
    %5246 = vrot.lane.b32.xlu0 %v4970, 112
    %v5247 = vpop.permute.xlu0 %5246
    %5248 = vrot.lane.b32.xlu0 %v4971, 112
    %v5249 = vpop.permute.xlu0 %5248
    %5250 = vrot.lane.b32.xlu0 %v4970, 48
    %v5251 = vpop.permute.xlu0 %5250
    %5252 = vrot.lane.b32.xlu0 %v4971, 48
    %v5253 = vpop.permute.xlu0 %5252
    %v5255 = vsel %vm589, %v5247, 0
    %v5258 = vsel %vm589, %v5249, 0
    %v5261 = vsel %vm589, %v5251, 0
    %v5264 = vsel %vm589, %v5253, 0
    %5266 = vmatpush.bf16.xpose.msra.mxu0 0
    %5267 = vmatpush.bf16.xpose.msra.mxu0 0
    %5268 = vmatpush.bf16.xpose.msra.mxu0 0
    %5269 = vmatpush.bf16.xpose.msra.mxu0 0
    %5270 = vmatpush.bf16.xpose.msra.mxu0 0
    %5271 = vmatpush.bf16.xpose.msra.mxu0 0
    %5272 = vmatpush.bf16.xpose.msra.mxu0 %v5264
    %5273 = vmatpush.bf16.xpose.msra.mxu0 %v5261
    %5274 = vmatmul.bf16.gmra.mxu0 %v5255
    %v5275 = vpop.f32.mrf.mxu0
    %v5276 = vadd.f32 %v217, %v5275
    %v5277 = vpop.f32.mrf.mxu0
    %v5278 = vadd.f32 %v218, %v5277
    %5279 = vmatmul.bf16.gmra.mxu0 %v5258
    %v5280 = vpop.f32.mrf.mxu0
    %v5281 = vadd.f32 %v219, %v5280
    %v5282 = vpop.f32.mrf.mxu0
    %v5283 = vadd.f32 %v220, %v5282
    %5284 = vdwg.mxu0
    %5285 = vrot.lane.b32.xlu0 %v5015, 112
    %v5286 = vpop.permute.xlu0 %5285
    %5287 = vrot.lane.b32.xlu0 %v5016, 112
    %v5288 = vpop.permute.xlu0 %5287
    %5289 = vrot.lane.b32.xlu0 %v5015, 48
    %v5290 = vpop.permute.xlu0 %5289
    %5291 = vrot.lane.b32.xlu0 %v5016, 48
    %v5292 = vpop.permute.xlu0 %5291
    %v5294 = vsel %vm589, %v5286, 0
    %v5297 = vsel %vm589, %v5288, 0
    %v5300 = vsel %vm589, %v5290, 0
    %v5303 = vsel %vm589, %v5292, 0
    %5305 = vmatpush.bf16.xpose.msra.mxu0 0
    %5306 = vmatpush.bf16.xpose.msra.mxu0 0
    %5307 = vmatpush.bf16.xpose.msra.mxu0 0
    %5308 = vmatpush.bf16.xpose.msra.mxu0 0
    %5309 = vmatpush.bf16.xpose.msra.mxu0 0
    %5310 = vmatpush.bf16.xpose.msra.mxu0 0
    %5311 = vmatpush.bf16.xpose.msra.mxu0 %v5303
    %5312 = vmatpush.bf16.xpose.msra.mxu0 %v5300
    %5313 = vmatmul.bf16.gmra.mxu0 %v5294
    %v5314 = vpop.f32.mrf.mxu0
    %v5315 = vadd.f32 %v217, %v5314
    %v5316 = vpop.f32.mrf.mxu0
    %v5317 = vadd.f32 %v218, %v5316
    %5318 = vmatmul.bf16.gmra.mxu0 %v5297
    %v5319 = vpop.f32.mrf.mxu0
    %v5320 = vadd.f32 %v219, %v5319
    %v5321 = vpop.f32.mrf.mxu0
    %v5322 = vadd.f32 %v220, %v5321
    %5323 = vdwg.mxu0
    %v5324 = vsel %vm666, %v5276, -inf
    %5325 = vmax.xlane.f32.xlu0 %v5324
    %v5326 = vpop.xlane.xlu0 %5325
    %v5327 = vsel %vm666, %v5278, -inf
    %5328 = vmax.xlane.f32.xlu0 %v5327
    %v5329 = vpop.xlane.xlu0 %5328
    %v5330 = vsel %vm666, %v5281, -inf
    %5331 = vmax.xlane.f32.xlu0 %v5330
    %v5332 = vpop.xlane.xlu0 %5331
    %v5333 = vsel %vm666, %v5283, -inf
    %5334 = vmax.xlane.f32.xlu0 %v5333
    %v5335 = vpop.xlane.xlu0 %5334
    %v5336 = vsel %vm666, %v5315, -inf
    %5337 = vmax.xlane.f32.xlu0 %v5336
    %v5338 = vpop.xlane.xlu0 %5337
    %v5339 = vsel %vm666, %v5317, -inf
    %5340 = vmax.xlane.f32.xlu0 %v5339
    %v5341 = vpop.xlane.xlu0 %5340
    %v5342 = vsel %vm666, %v5320, -inf
    %5343 = vmax.xlane.f32.xlu0 %v5342
    %v5344 = vpop.xlane.xlu0 %5343
    %v5345 = vsel %vm666, %v5322, -inf
    %5346 = vmax.xlane.f32.xlu0 %v5345
    %v5347 = vpop.xlane.xlu0 %5346
    %v5348 = vsub.f32 %v5276, %v5326
    %v5349 = vsub.f32 %v5278, %v5329
    %v5350 = vsub.f32 %v5281, %v5332
    %v5351 = vsub.f32 %v5283, %v5335
    %v5352 = vsub.f32 %v5315, %v5338
    %v5353 = vsub.f32 %v5317, %v5341
    %v5354 = vsub.f32 %v5320, %v5344
    %v5355 = vsub.f32 %v5322, %v5347
    %v5356 = vmul.f32 %v5348, 1.442695
    %v5357 = vpow.pop %v5356
    %v5358 = vmul.f32 %v5349, 1.442695
    %v5359 = vpow.pop %v5358
    %v5360 = vmul.f32 %v5350, 1.442695
    %v5361 = vpow.pop %v5360
    %v5362 = vmul.f32 %v5351, 1.442695
    %v5363 = vpow.pop %v5362
    %v5364 = vmul.f32 %v5352, 1.442695
    %v5365 = vpow.pop %v5364
    %v5366 = vmul.f32 %v5353, 1.442695
    %v5367 = vpow.pop %v5366
    %v5368 = vmul.f32 %v5354, 1.442695
    %v5369 = vpow.pop %v5368
    %v5370 = vmul.f32 %v5355, 1.442695
    %v5371 = vpow.pop %v5370
    %v5372 = vsel %vm666, %v5357, 0.0
    %5373 = vadd.xlane.f32.xlu0 %v5372
    %v5374 = vpop.xlane.xlu0 %5373
    %v5375 = vsel %vm666, %v5359, 0.0
    %5376 = vadd.xlane.f32.xlu0 %v5375
    %v5377 = vpop.xlane.xlu0 %5376
    %v5378 = vsel %vm666, %v5361, 0.0
    %5379 = vadd.xlane.f32.xlu0 %v5378
    %v5380 = vpop.xlane.xlu0 %5379
    %v5381 = vsel %vm666, %v5363, 0.0
    %5382 = vadd.xlane.f32.xlu0 %v5381
    %v5383 = vpop.xlane.xlu0 %5382
    %v5384 = vsel %vm666, %v5365, 0.0
    %5385 = vadd.xlane.f32.xlu0 %v5384
    %v5386 = vpop.xlane.xlu0 %5385
    %v5387 = vsel %vm666, %v5367, 0.0
    %5388 = vadd.xlane.f32.xlu0 %v5387
    %v5389 = vpop.xlane.xlu0 %5388
    %v5390 = vsel %vm666, %v5369, 0.0
    %5391 = vadd.xlane.f32.xlu0 %v5390
    %v5392 = vpop.xlane.xlu0 %5391
    %v5393 = vsel %vm666, %v5371, 0.0
    %5394 = vadd.xlane.f32.xlu0 %v5393
    %v5395 = vpop.xlane.xlu0 %5394
    %v5396 = vrcp.pop %v5374
    %v5397 = vrcp.pop %v5377
    %v5398 = vrcp.pop %v5380
    %v5399 = vrcp.pop %v5383
    %v5400 = vrcp.pop %v5386
    %v5401 = vrcp.pop %v5389
    %v5402 = vrcp.pop %v5392
    %v5403 = vrcp.pop %v5395
    %v5404 = vmul.f32 %v5357, %v5396
    %v5405 = vmul.f32 %v5359, %v5397
    %v5406 = vmul.f32 %v5361, %v5398
    %v5407 = vmul.f32 %v5363, %v5399
    %v5408 = vmul.f32 %v5365, %v5400
    %v5409 = vmul.f32 %v5367, %v5401
    %v5410 = vmul.f32 %v5369, %v5402
    %v5411 = vmul.f32 %v5371, %v5403
    %v5412 = vpack.c.bf16 %v5404, %v5404
    %v5413 = vpack.c.bf16 %v5405, %v5405
    %v5414 = vpack.c.bf16 %v5406, %v5406
    %v5415 = vpack.c.bf16 %v5407, %v5407
    %v5416 = vpack.c.bf16 %v5408, %v5408
    %v5417 = vpack.c.bf16 %v5409, %v5409
    %v5418 = vpack.c.bf16 %v5410, %v5410
    %v5419 = vpack.c.bf16 %v5411, %v5411
    %v5424 = vunpack.c.l.b16 %v5412
    %v5425 = vunpack.c.l.b16 %v5413
    %v5426 = vunpack.c.l.b16 %v5414
    %v5427 = vunpack.c.l.b16 %v5415
    %v5428 = vpack.c.b16 %v5425, %v5424
    %v5429 = vpack.c.b16 %v5427, %v5426
    %5430 = vrot.lane.b32.xlu0 %v5166, 112
    %v5431 = vpop.permute.xlu0 %5430
    %5432 = vrot.lane.b32.xlu0 %v5167, 112
    %v5433 = vpop.permute.xlu0 %5432
    %v5437 = vsel %vm666, %v5428, 0
    %v5440 = vsel %vm666, %v5429, 0
    %5442 = vmatpush.bf16.msra.mxu0 0
    %5443 = vmatpush.bf16.msra.mxu0 0
    %5444 = vmatpush.bf16.msra.mxu0 0
    %5445 = vmatpush.bf16.msra.mxu0 0
    %5446 = vmatpush.bf16.msra.mxu0 0
    %5447 = vmatpush.bf16.msra.mxu0 0
    %5448 = vmatpush.bf16.msra.mxu0 %v5433
    %5449 = vmatpush.bf16.msra.mxu0 %v5431
    %5450 = vmatmul.bf16.gmra.mxu0 %v5437
    %v5451 = vpop.f32.mrf.mxu0
    %v5452 = vadd.f32 0.0, %v5451
    %v5453 = vpop.f32.mrf.mxu0
    %v5454 = vadd.f32 0.0, %v5453
    %5455 = vmatmul.bf16.gmra.mxu0 %v5440
    %v5456 = vpop.f32.mrf.mxu0
    %v5457 = vadd.f32 0.0, %v5456
    %v5458 = vpop.f32.mrf.mxu0
    %v5459 = vadd.f32 0.0, %v5458
    %5460 = vdwg.mxu0
    %v5465 = vunpack.c.l.b16 %v5416
    %v5466 = vunpack.c.l.b16 %v5417
    %v5467 = vunpack.c.l.b16 %v5418
    %v5468 = vunpack.c.l.b16 %v5419
    %v5469 = vpack.c.b16 %v5466, %v5465
    %v5470 = vpack.c.b16 %v5468, %v5467
    %5471 = vrot.lane.b32.xlu0 %v5213, 112
    %v5472 = vpop.permute.xlu0 %5471
    %5473 = vrot.lane.b32.xlu0 %v5214, 112
    %v5474 = vpop.permute.xlu0 %5473
    %v5478 = vsel %vm666, %v5469, 0
    %v5481 = vsel %vm666, %v5470, 0
    %5483 = vmatpush.bf16.msra.mxu0 0
    %5484 = vmatpush.bf16.msra.mxu0 0
    %5485 = vmatpush.bf16.msra.mxu0 0
    %5486 = vmatpush.bf16.msra.mxu0 0
    %5487 = vmatpush.bf16.msra.mxu0 0
    %5488 = vmatpush.bf16.msra.mxu0 0
    %5489 = vmatpush.bf16.msra.mxu0 %v5474
    %5490 = vmatpush.bf16.msra.mxu0 %v5472
    %5491 = vmatmul.bf16.gmra.mxu0 %v5478
    %v5492 = vpop.f32.mrf.mxu0
    %v5493 = vadd.f32 0.0, %v5492
    %v5494 = vpop.f32.mrf.mxu0
    %v5495 = vadd.f32 0.0, %v5494
    %5496 = vmatmul.bf16.gmra.mxu0 %v5481
    %v5497 = vpop.f32.mrf.mxu0
    %v5498 = vadd.f32 0.0, %v5497
    %v5499 = vpop.f32.mrf.mxu0
    %v5500 = vadd.f32 0.0, %v5499
    %5501 = vdwg.mxu0
    %v5502 = vpack.c.bf16 %v5454, %v5452
    %v5503 = vpack.c.bf16 %v5459, %v5457
    %v5504 = vpack.c.bf16 %v5495, %v5493
    %v5505 = vpack.c.bf16 %v5500, %v5498
    %v5508 = vunpack.c.l.b16 %v4956
    %v5509 = vunpack.c.l.b16 %v4957
    %v5510 = vpack.c.b16 %v5509, %v5508
    %v5513 = vsel %vm589, %v5502, 0
    %v5516 = vsel %vm589, %v5503, 0
    %v5519 = vsel %vm589, %v5504, 0
    %v5522 = vsel %vm589, %v5505, 0
    %5524 = vmatpush.bf16.msra.mxu0 0
    %5525 = vmatpush.bf16.msra.mxu0 0
    %5526 = vmatpush.bf16.msra.mxu0 0
    %5527 = vmatpush.bf16.msra.mxu0 0
    %5528 = vmatpush.bf16.msra.mxu0 0
    %5529 = vmatpush.bf16.msra.mxu0 0
    %5530 = vmatpush.bf16.msra.mxu0 0
    %5531 = vmatpush.bf16.msra.mxu0 %v5510
    %5532 = vmatmul.bf16.gmra.mxu0 %v5513
    %v5533 = vpop.f32.mrf.mxu0
    %v5534 = vadd.f32 0.0, %v5533
    %v5535 = vpop.f32.mrf.mxu0
    %v5536 = vadd.f32 0.0, %v5535
    %5537 = vmatmul.bf16.gmra.mxu0 %v5516
    %v5538 = vpop.f32.mrf.mxu0
    %v5539 = vadd.f32 0.0, %v5538
    %v5540 = vpop.f32.mrf.mxu0
    %v5541 = vadd.f32 0.0, %v5540
    %5542 = vmatmul.bf16.gmra.mxu0 %v5519
    %v5543 = vpop.f32.mrf.mxu0
    %v5544 = vadd.f32 0.0, %v5543
    %v5545 = vpop.f32.mrf.mxu0
    %v5546 = vadd.f32 0.0, %v5545
    %5547 = vmatmul.bf16.gmra.mxu0 %v5522
    %v5548 = vpop.f32.mrf.mxu0
    %v5549 = vadd.f32 0.0, %v5548
    %v5550 = vpop.f32.mrf.mxu0
    %v5551 = vadd.f32 0.0, %v5550
    %5552 = vdwg.mxu0
    %v5555 = vunpack.c.l.b16 %v4954
    %v5556 = vunpack.c.l.b16 %v4955
    %v5557 = vpack.c.b16 %v5556, %v5555
    %v5560 = vsel %vm589, %v5242, 0
    %v5563 = vsel %vm589, %v5243, 0
    %v5566 = vsel %vm589, %v5244, 0
    %v5569 = vsel %vm589, %v5245, 0
    %5571 = vmatpush.bf16.msra.mxu0 0
    %5572 = vmatpush.bf16.msra.mxu0 0
    %5573 = vmatpush.bf16.msra.mxu0 0
    %5574 = vmatpush.bf16.msra.mxu0 0
    %5575 = vmatpush.bf16.msra.mxu0 0
    %5576 = vmatpush.bf16.msra.mxu0 0
    %5577 = vmatpush.bf16.msra.mxu0 0
    %5578 = vmatpush.bf16.msra.mxu0 %v5557
    %5579 = vmatmul.bf16.gmra.mxu0 %v5560
    %v5580 = vpop.f32.mrf.mxu0
    %v5581 = vadd.f32 %v5534, %v5580
    %v5582 = vpop.f32.mrf.mxu0
    %v5583 = vadd.f32 %v5536, %v5582
    %5584 = vmatmul.bf16.gmra.mxu0 %v5563
    %v5585 = vpop.f32.mrf.mxu0
    %v5586 = vadd.f32 %v5539, %v5585
    %v5587 = vpop.f32.mrf.mxu0
    %v5588 = vadd.f32 %v5541, %v5587
    %5589 = vmatmul.bf16.gmra.mxu0 %v5566
    %v5590 = vpop.f32.mrf.mxu0
    %v5591 = vadd.f32 %v5544, %v5590
    %v5592 = vpop.f32.mrf.mxu0
    %v5593 = vadd.f32 %v5546, %v5592
    %5594 = vmatmul.bf16.gmra.mxu0 %v5569
    %v5595 = vpop.f32.mrf.mxu0
    %v5596 = vadd.f32 %v5549, %v5595
    %v5597 = vpop.f32.mrf.mxu0
    %v5598 = vadd.f32 %v5551, %v5597
    %5599 = vdwg.mxu0
    %5600 = vrot.lane.b32.xlu0 %v4970, 96
    %v5601 = vpop.permute.xlu0 %5600
    %5602 = vrot.lane.b32.xlu0 %v4971, 96
    %v5603 = vpop.permute.xlu0 %5602
    %5604 = vrot.lane.b32.xlu0 %v4970, 32
    %v5605 = vpop.permute.xlu0 %5604
    %5606 = vrot.lane.b32.xlu0 %v4971, 32
    %v5607 = vpop.permute.xlu0 %5606
    %v5609 = vsel %vm589, %v5601, 0
    %v5612 = vsel %vm589, %v5603, 0
    %v5615 = vsel %vm589, %v5605, 0
    %v5618 = vsel %vm589, %v5607, 0
    %5620 = vmatpush.bf16.xpose.msra.mxu0 0
    %5621 = vmatpush.bf16.xpose.msra.mxu0 0
    %5622 = vmatpush.bf16.xpose.msra.mxu0 0
    %5623 = vmatpush.bf16.xpose.msra.mxu0 0
    %5624 = vmatpush.bf16.xpose.msra.mxu0 0
    %5625 = vmatpush.bf16.xpose.msra.mxu0 0
    %5626 = vmatpush.bf16.xpose.msra.mxu0 %v5618
    %5627 = vmatpush.bf16.xpose.msra.mxu0 %v5615
    %5628 = vmatmul.bf16.gmra.mxu0 %v5609
    %v5629 = vpop.f32.mrf.mxu0
    %v5630 = vadd.f32 %v217, %v5629
    %v5631 = vpop.f32.mrf.mxu0
    %v5632 = vadd.f32 %v218, %v5631
    %5633 = vmatmul.bf16.gmra.mxu0 %v5612
    %v5634 = vpop.f32.mrf.mxu0
    %v5635 = vadd.f32 %v219, %v5634
    %v5636 = vpop.f32.mrf.mxu0
    %v5637 = vadd.f32 %v220, %v5636
    %5638 = vdwg.mxu0
    %5639 = vrot.lane.b32.xlu0 %v5015, 96
    %v5640 = vpop.permute.xlu0 %5639
    %5641 = vrot.lane.b32.xlu0 %v5016, 96
    %v5642 = vpop.permute.xlu0 %5641
    %5643 = vrot.lane.b32.xlu0 %v5015, 32
    %v5644 = vpop.permute.xlu0 %5643
    %5645 = vrot.lane.b32.xlu0 %v5016, 32
    %v5646 = vpop.permute.xlu0 %5645
    %v5648 = vsel %vm589, %v5640, 0
    %v5651 = vsel %vm589, %v5642, 0
    %v5654 = vsel %vm589, %v5644, 0
    %v5657 = vsel %vm589, %v5646, 0
    %5659 = vmatpush.bf16.xpose.msra.mxu0 0
    %5660 = vmatpush.bf16.xpose.msra.mxu0 0
    %5661 = vmatpush.bf16.xpose.msra.mxu0 0
    %5662 = vmatpush.bf16.xpose.msra.mxu0 0
    %5663 = vmatpush.bf16.xpose.msra.mxu0 0
    %5664 = vmatpush.bf16.xpose.msra.mxu0 0
    %5665 = vmatpush.bf16.xpose.msra.mxu0 %v5657
    %5666 = vmatpush.bf16.xpose.msra.mxu0 %v5654
    %5667 = vmatmul.bf16.gmra.mxu0 %v5648
    %v5668 = vpop.f32.mrf.mxu0
    %v5669 = vadd.f32 %v217, %v5668
    %v5670 = vpop.f32.mrf.mxu0
    %v5671 = vadd.f32 %v218, %v5670
    %5672 = vmatmul.bf16.gmra.mxu0 %v5651
    %v5673 = vpop.f32.mrf.mxu0
    %v5674 = vadd.f32 %v219, %v5673
    %v5675 = vpop.f32.mrf.mxu0
    %v5676 = vadd.f32 %v220, %v5675
    %5677 = vdwg.mxu0
    %v5678 = vsel %vm666, %v5630, -inf
    %5679 = vmax.xlane.f32.xlu0 %v5678
    %v5680 = vpop.xlane.xlu0 %5679
    %v5681 = vsel %vm666, %v5632, -inf
    %5682 = vmax.xlane.f32.xlu0 %v5681
    %v5683 = vpop.xlane.xlu0 %5682
    %v5684 = vsel %vm666, %v5635, -inf
    %5685 = vmax.xlane.f32.xlu0 %v5684
    %v5686 = vpop.xlane.xlu0 %5685
    %v5687 = vsel %vm666, %v5637, -inf
    %5688 = vmax.xlane.f32.xlu0 %v5687
    %v5689 = vpop.xlane.xlu0 %5688
    %v5690 = vsel %vm666, %v5669, -inf
    %5691 = vmax.xlane.f32.xlu0 %v5690
    %v5692 = vpop.xlane.xlu0 %5691
    %v5693 = vsel %vm666, %v5671, -inf
    %5694 = vmax.xlane.f32.xlu0 %v5693
    %v5695 = vpop.xlane.xlu0 %5694
    %v5696 = vsel %vm666, %v5674, -inf
    %5697 = vmax.xlane.f32.xlu0 %v5696
    %v5698 = vpop.xlane.xlu0 %5697
    %v5699 = vsel %vm666, %v5676, -inf
    %5700 = vmax.xlane.f32.xlu0 %v5699
    %v5701 = vpop.xlane.xlu0 %5700
    %v5702 = vsub.f32 %v5630, %v5680
    %v5703 = vsub.f32 %v5632, %v5683
    %v5704 = vsub.f32 %v5635, %v5686
    %v5705 = vsub.f32 %v5637, %v5689
    %v5706 = vsub.f32 %v5669, %v5692
    %v5707 = vsub.f32 %v5671, %v5695
    %v5708 = vsub.f32 %v5674, %v5698
    %v5709 = vsub.f32 %v5676, %v5701
    %v5710 = vmul.f32 %v5702, 1.442695
    %v5711 = vpow.pop %v5710
    %v5712 = vmul.f32 %v5703, 1.442695
    %v5713 = vpow.pop %v5712
    %v5714 = vmul.f32 %v5704, 1.442695
    %v5715 = vpow.pop %v5714
    %v5716 = vmul.f32 %v5705, 1.442695
    %v5717 = vpow.pop %v5716
    %v5718 = vmul.f32 %v5706, 1.442695
    %v5719 = vpow.pop %v5718
    %v5720 = vmul.f32 %v5707, 1.442695
    %v5721 = vpow.pop %v5720
    %v5722 = vmul.f32 %v5708, 1.442695
    %v5723 = vpow.pop %v5722
    %v5724 = vmul.f32 %v5709, 1.442695
    %v5725 = vpow.pop %v5724
    %v5726 = vsel %vm666, %v5711, 0.0
    %5727 = vadd.xlane.f32.xlu0 %v5726
    %v5728 = vpop.xlane.xlu0 %5727
    %v5729 = vsel %vm666, %v5713, 0.0
    %5730 = vadd.xlane.f32.xlu0 %v5729
    %v5731 = vpop.xlane.xlu0 %5730
    %v5732 = vsel %vm666, %v5715, 0.0
    %5733 = vadd.xlane.f32.xlu0 %v5732
    %v5734 = vpop.xlane.xlu0 %5733
    %v5735 = vsel %vm666, %v5717, 0.0
    %5736 = vadd.xlane.f32.xlu0 %v5735
    %v5737 = vpop.xlane.xlu0 %5736
    %v5738 = vsel %vm666, %v5719, 0.0
    %5739 = vadd.xlane.f32.xlu0 %v5738
    %v5740 = vpop.xlane.xlu0 %5739
    %v5741 = vsel %vm666, %v5721, 0.0
    %5742 = vadd.xlane.f32.xlu0 %v5741
    %v5743 = vpop.xlane.xlu0 %5742
    %v5744 = vsel %vm666, %v5723, 0.0
    %5745 = vadd.xlane.f32.xlu0 %v5744
    %v5746 = vpop.xlane.xlu0 %5745
    %v5747 = vsel %vm666, %v5725, 0.0
    %5748 = vadd.xlane.f32.xlu0 %v5747
    %v5749 = vpop.xlane.xlu0 %5748
    %v5750 = vrcp.pop %v5728
    %v5751 = vrcp.pop %v5731
    %v5752 = vrcp.pop %v5734
    %v5753 = vrcp.pop %v5737
    %v5754 = vrcp.pop %v5740
    %v5755 = vrcp.pop %v5743
    %v5756 = vrcp.pop %v5746
    %v5757 = vrcp.pop %v5749
    %v5758 = vmul.f32 %v5711, %v5750
    %v5759 = vmul.f32 %v5713, %v5751
    %v5760 = vmul.f32 %v5715, %v5752
    %v5761 = vmul.f32 %v5717, %v5753
    %v5762 = vmul.f32 %v5719, %v5754
    %v5763 = vmul.f32 %v5721, %v5755
    %v5764 = vmul.f32 %v5723, %v5756
    %v5765 = vmul.f32 %v5725, %v5757
    %v5766 = vpack.c.bf16 %v5758, %v5758
    %v5767 = vpack.c.bf16 %v5759, %v5759
    %v5768 = vpack.c.bf16 %v5760, %v5760
    %v5769 = vpack.c.bf16 %v5761, %v5761
    %v5770 = vpack.c.bf16 %v5762, %v5762
    %v5771 = vpack.c.bf16 %v5763, %v5763
    %v5772 = vpack.c.bf16 %v5764, %v5764
    %v5773 = vpack.c.bf16 %v5765, %v5765
    %v5778 = vunpack.c.l.b16 %v5766
    %v5779 = vunpack.c.l.b16 %v5767
    %v5780 = vunpack.c.l.b16 %v5768
    %v5781 = vunpack.c.l.b16 %v5769
    %v5782 = vpack.c.b16 %v5779, %v5778
    %v5783 = vpack.c.b16 %v5781, %v5780
    %5784 = vrot.lane.b32.xlu0 %v5166, 96
    %v5785 = vpop.permute.xlu0 %5784
    %5786 = vrot.lane.b32.xlu0 %v5167, 96
    %v5787 = vpop.permute.xlu0 %5786
    %v5791 = vsel %vm666, %v5782, 0
    %v5794 = vsel %vm666, %v5783, 0
    %5796 = vmatpush.bf16.msra.mxu0 0
    %5797 = vmatpush.bf16.msra.mxu0 0
    %5798 = vmatpush.bf16.msra.mxu0 0
    %5799 = vmatpush.bf16.msra.mxu0 0
    %5800 = vmatpush.bf16.msra.mxu0 0
    %5801 = vmatpush.bf16.msra.mxu0 0
    %5802 = vmatpush.bf16.msra.mxu0 %v5787
    %5803 = vmatpush.bf16.msra.mxu0 %v5785
    %5804 = vmatmul.bf16.gmra.mxu0 %v5791
    %v5805 = vpop.f32.mrf.mxu0
    %v5806 = vadd.f32 0.0, %v5805
    %v5807 = vpop.f32.mrf.mxu0
    %v5808 = vadd.f32 0.0, %v5807
    %5809 = vmatmul.bf16.gmra.mxu0 %v5794
    %v5810 = vpop.f32.mrf.mxu0
    %v5811 = vadd.f32 0.0, %v5810
    %v5812 = vpop.f32.mrf.mxu0
    %v5813 = vadd.f32 0.0, %v5812
    %5814 = vdwg.mxu0
    %v5819 = vunpack.c.l.b16 %v5770
    %v5820 = vunpack.c.l.b16 %v5771
    %v5821 = vunpack.c.l.b16 %v5772
    %v5822 = vunpack.c.l.b16 %v5773
    %v5823 = vpack.c.b16 %v5820, %v5819
    %v5824 = vpack.c.b16 %v5822, %v5821
    %5825 = vrot.lane.b32.xlu0 %v5213, 96
    %v5826 = vpop.permute.xlu0 %5825
    %5827 = vrot.lane.b32.xlu0 %v5214, 96
    %v5828 = vpop.permute.xlu0 %5827
    %v5832 = vsel %vm666, %v5823, 0
    %v5835 = vsel %vm666, %v5824, 0
    %5837 = vmatpush.bf16.msra.mxu0 0
    %5838 = vmatpush.bf16.msra.mxu0 0
    %5839 = vmatpush.bf16.msra.mxu0 0
    %5840 = vmatpush.bf16.msra.mxu0 0
    %5841 = vmatpush.bf16.msra.mxu0 0
    %5842 = vmatpush.bf16.msra.mxu0 0
    %5843 = vmatpush.bf16.msra.mxu0 %v5828
    %5844 = vmatpush.bf16.msra.mxu0 %v5826
    %5845 = vmatmul.bf16.gmra.mxu0 %v5832
    %v5846 = vpop.f32.mrf.mxu0
    %v5847 = vadd.f32 0.0, %v5846
    %v5848 = vpop.f32.mrf.mxu0
    %v5849 = vadd.f32 0.0, %v5848
    %5850 = vmatmul.bf16.gmra.mxu0 %v5835
    %v5851 = vpop.f32.mrf.mxu0
    %v5852 = vadd.f32 0.0, %v5851
    %v5853 = vpop.f32.mrf.mxu0
    %v5854 = vadd.f32 0.0, %v5853
    %5855 = vdwg.mxu0
    %v5856 = vpack.c.bf16 %v5808, %v5806
    %v5857 = vpack.c.bf16 %v5813, %v5811
    %v5858 = vpack.c.bf16 %v5849, %v5847
    %v5859 = vpack.c.bf16 %v5854, %v5852
    %v5862 = vunpack.c.l.b16 %v4958
    %v5863 = vunpack.c.l.b16 %v4959
    %v5864 = vpack.c.b16 %v5863, %v5862
    %v5867 = vsel %vm589, %v5856, 0
    %v5870 = vsel %vm589, %v5857, 0
    %v5873 = vsel %vm589, %v5858, 0
    %v5876 = vsel %vm589, %v5859, 0
    %5878 = vmatpush.bf16.msra.mxu0 0
    %5879 = vmatpush.bf16.msra.mxu0 0
    %5880 = vmatpush.bf16.msra.mxu0 0
    %5881 = vmatpush.bf16.msra.mxu0 0
    %5882 = vmatpush.bf16.msra.mxu0 0
    %5883 = vmatpush.bf16.msra.mxu0 0
    %5884 = vmatpush.bf16.msra.mxu0 0
    %5885 = vmatpush.bf16.msra.mxu0 %v5864
    %5886 = vmatmul.bf16.gmra.mxu0 %v5867
    %v5887 = vpop.f32.mrf.mxu0
    %v5888 = vadd.f32 0.0, %v5887
    %v5889 = vpop.f32.mrf.mxu0
    %v5890 = vadd.f32 0.0, %v5889
    %5891 = vmatmul.bf16.gmra.mxu0 %v5870
    %v5892 = vpop.f32.mrf.mxu0
    %v5893 = vadd.f32 0.0, %v5892
    %v5894 = vpop.f32.mrf.mxu0
    %v5895 = vadd.f32 0.0, %v5894
    %5896 = vmatmul.bf16.gmra.mxu0 %v5873
    %v5897 = vpop.f32.mrf.mxu0
    %v5898 = vadd.f32 0.0, %v5897
    %v5899 = vpop.f32.mrf.mxu0
    %v5900 = vadd.f32 0.0, %v5899
    %5901 = vmatmul.bf16.gmra.mxu0 %v5876
    %v5902 = vpop.f32.mrf.mxu0
    %v5903 = vadd.f32 0.0, %v5902
    %v5904 = vpop.f32.mrf.mxu0
    %v5905 = vadd.f32 0.0, %v5904
    %5906 = vdwg.mxu0
    %v5907 = vadd.f32 %v5581, %v5888
    %v5908 = vadd.f32 %v5583, %v5890
    %v5909 = vadd.f32 %v5586, %v5893
    %v5910 = vadd.f32 %v5588, %v5895
    %v5911 = vadd.f32 %v5591, %v5898
    %v5912 = vadd.f32 %v5593, %v5900
    %v5913 = vadd.f32 %v5596, %v5903
    %v5914 = vadd.f32 %v5598, %v5905
    %5915 = vrot.lane.b32.xlu0 %v4970, 80
    %v5916 = vpop.permute.xlu0 %5915
    %5917 = vrot.lane.b32.xlu0 %v4971, 80
    %v5918 = vpop.permute.xlu0 %5917
    %5919 = vrot.lane.b32.xlu0 %v4970, 16
    %v5920 = vpop.permute.xlu0 %5919
    %5921 = vrot.lane.b32.xlu0 %v4971, 16
    %v5922 = vpop.permute.xlu0 %5921
    %v5924 = vsel %vm589, %v5916, 0
    %v5927 = vsel %vm589, %v5918, 0
    %v5930 = vsel %vm589, %v5920, 0
    %v5933 = vsel %vm589, %v5922, 0
    %5935 = vmatpush.bf16.xpose.msra.mxu0 0
    %5936 = vmatpush.bf16.xpose.msra.mxu0 0
    %5937 = vmatpush.bf16.xpose.msra.mxu0 0
    %5938 = vmatpush.bf16.xpose.msra.mxu0 0
    %5939 = vmatpush.bf16.xpose.msra.mxu0 0
    %5940 = vmatpush.bf16.xpose.msra.mxu0 0
    %5941 = vmatpush.bf16.xpose.msra.mxu0 %v5933
    %5942 = vmatpush.bf16.xpose.msra.mxu0 %v5930
    %5943 = vmatmul.bf16.gmra.mxu0 %v5924
    %v5944 = vpop.f32.mrf.mxu0
    %v5945 = vadd.f32 %v217, %v5944
    %v5946 = vpop.f32.mrf.mxu0
    %v5947 = vadd.f32 %v218, %v5946
    %5948 = vmatmul.bf16.gmra.mxu0 %v5927
    %v5949 = vpop.f32.mrf.mxu0
    %v5950 = vadd.f32 %v219, %v5949
    %v5951 = vpop.f32.mrf.mxu0
    %v5952 = vadd.f32 %v220, %v5951
    %5953 = vdwg.mxu0
    %5954 = vrot.lane.b32.xlu0 %v5015, 80
    %v5955 = vpop.permute.xlu0 %5954
    %5956 = vrot.lane.b32.xlu0 %v5016, 80
    %v5957 = vpop.permute.xlu0 %5956
    %5958 = vrot.lane.b32.xlu0 %v5015, 16
    %v5959 = vpop.permute.xlu0 %5958
    %5960 = vrot.lane.b32.xlu0 %v5016, 16
    %v5961 = vpop.permute.xlu0 %5960
    %v5963 = vsel %vm589, %v5955, 0
    %v5966 = vsel %vm589, %v5957, 0
    %v5969 = vsel %vm589, %v5959, 0
    %v5972 = vsel %vm589, %v5961, 0
    %5974 = vmatpush.bf16.xpose.msra.mxu0 0
    %5975 = vmatpush.bf16.xpose.msra.mxu0 0
    %5976 = vmatpush.bf16.xpose.msra.mxu0 0
    %5977 = vmatpush.bf16.xpose.msra.mxu0 0
    %5978 = vmatpush.bf16.xpose.msra.mxu0 0
    %5979 = vmatpush.bf16.xpose.msra.mxu0 0
    %5980 = vmatpush.bf16.xpose.msra.mxu0 %v5972
    %5981 = vmatpush.bf16.xpose.msra.mxu0 %v5969
    %5982 = vmatmul.bf16.gmra.mxu0 %v5963
    %v5983 = vpop.f32.mrf.mxu0
    %v5984 = vadd.f32 %v217, %v5983
    %v5985 = vpop.f32.mrf.mxu0
    %v5986 = vadd.f32 %v218, %v5985
    %5987 = vmatmul.bf16.gmra.mxu0 %v5966
    %v5988 = vpop.f32.mrf.mxu0
    %v5989 = vadd.f32 %v219, %v5988
    %v5990 = vpop.f32.mrf.mxu0
    %v5991 = vadd.f32 %v220, %v5990
    %5992 = vdwg.mxu0
    %v5993 = vsel %vm666, %v5945, -inf
    %5994 = vmax.xlane.f32.xlu0 %v5993
    %v5995 = vpop.xlane.xlu0 %5994
    %v5996 = vsel %vm666, %v5947, -inf
    %5997 = vmax.xlane.f32.xlu0 %v5996
    %v5998 = vpop.xlane.xlu0 %5997
    %v5999 = vsel %vm666, %v5950, -inf
    %6000 = vmax.xlane.f32.xlu0 %v5999
    %v6001 = vpop.xlane.xlu0 %6000
    %v6002 = vsel %vm666, %v5952, -inf
    %6003 = vmax.xlane.f32.xlu0 %v6002
    %v6004 = vpop.xlane.xlu0 %6003
    %v6005 = vsel %vm666, %v5984, -inf
    %6006 = vmax.xlane.f32.xlu0 %v6005
    %v6007 = vpop.xlane.xlu0 %6006
    %v6008 = vsel %vm666, %v5986, -inf
    %6009 = vmax.xlane.f32.xlu0 %v6008
    %v6010 = vpop.xlane.xlu0 %6009
    %v6011 = vsel %vm666, %v5989, -inf
    %6012 = vmax.xlane.f32.xlu0 %v6011
    %v6013 = vpop.xlane.xlu0 %6012
    %v6014 = vsel %vm666, %v5991, -inf
    %6015 = vmax.xlane.f32.xlu0 %v6014
    %v6016 = vpop.xlane.xlu0 %6015
    %v6017 = vsub.f32 %v5945, %v5995
    %v6018 = vsub.f32 %v5947, %v5998
    %v6019 = vsub.f32 %v5950, %v6001
    %v6020 = vsub.f32 %v5952, %v6004
    %v6021 = vsub.f32 %v5984, %v6007
    %v6022 = vsub.f32 %v5986, %v6010
    %v6023 = vsub.f32 %v5989, %v6013
    %v6024 = vsub.f32 %v5991, %v6016
    %v6025 = vmul.f32 %v6017, 1.442695
    %v6026 = vpow.pop %v6025
    %v6027 = vmul.f32 %v6018, 1.442695
    %v6028 = vpow.pop %v6027
    %v6029 = vmul.f32 %v6019, 1.442695
    %v6030 = vpow.pop %v6029
    %v6031 = vmul.f32 %v6020, 1.442695
    %v6032 = vpow.pop %v6031
    %v6033 = vmul.f32 %v6021, 1.442695
    %v6034 = vpow.pop %v6033
    %v6035 = vmul.f32 %v6022, 1.442695
    %v6036 = vpow.pop %v6035
    %v6037 = vmul.f32 %v6023, 1.442695
    %v6038 = vpow.pop %v6037
    %v6039 = vmul.f32 %v6024, 1.442695
    %v6040 = vpow.pop %v6039
    %v6041 = vsel %vm666, %v6026, 0.0
    %6042 = vadd.xlane.f32.xlu0 %v6041
    %v6043 = vpop.xlane.xlu0 %6042
    %v6044 = vsel %vm666, %v6028, 0.0
    %6045 = vadd.xlane.f32.xlu0 %v6044
    %v6046 = vpop.xlane.xlu0 %6045
    %v6047 = vsel %vm666, %v6030, 0.0
    %6048 = vadd.xlane.f32.xlu0 %v6047
    %v6049 = vpop.xlane.xlu0 %6048
    %v6050 = vsel %vm666, %v6032, 0.0
    %6051 = vadd.xlane.f32.xlu0 %v6050
    %v6052 = vpop.xlane.xlu0 %6051
    %v6053 = vsel %vm666, %v6034, 0.0
    %6054 = vadd.xlane.f32.xlu0 %v6053
    %v6055 = vpop.xlane.xlu0 %6054
    %v6056 = vsel %vm666, %v6036, 0.0
    %6057 = vadd.xlane.f32.xlu0 %v6056
    %v6058 = vpop.xlane.xlu0 %6057
    %v6059 = vsel %vm666, %v6038, 0.0
    %6060 = vadd.xlane.f32.xlu0 %v6059
    %v6061 = vpop.xlane.xlu0 %6060
    %v6062 = vsel %vm666, %v6040, 0.0
    %6063 = vadd.xlane.f32.xlu0 %v6062
    %v6064 = vpop.xlane.xlu0 %6063
    %v6065 = vrcp.pop %v6043
    %v6066 = vrcp.pop %v6046
    %v6067 = vrcp.pop %v6049
    %v6068 = vrcp.pop %v6052
    %v6069 = vrcp.pop %v6055
    %v6070 = vrcp.pop %v6058
    %v6071 = vrcp.pop %v6061
    %v6072 = vrcp.pop %v6064
    %v6073 = vmul.f32 %v6026, %v6065
    %v6074 = vmul.f32 %v6028, %v6066
    %v6075 = vmul.f32 %v6030, %v6067
    %v6076 = vmul.f32 %v6032, %v6068
    %v6077 = vmul.f32 %v6034, %v6069
    %v6078 = vmul.f32 %v6036, %v6070
    %v6079 = vmul.f32 %v6038, %v6071
    %v6080 = vmul.f32 %v6040, %v6072
    %v6081 = vpack.c.bf16 %v6073, %v6073
    %v6082 = vpack.c.bf16 %v6074, %v6074
    %v6083 = vpack.c.bf16 %v6075, %v6075
    %v6084 = vpack.c.bf16 %v6076, %v6076
    %v6085 = vpack.c.bf16 %v6077, %v6077
    %v6086 = vpack.c.bf16 %v6078, %v6078
    %v6087 = vpack.c.bf16 %v6079, %v6079
    %v6088 = vpack.c.bf16 %v6080, %v6080
    %v6093 = vunpack.c.l.b16 %v6081
    %v6094 = vunpack.c.l.b16 %v6082
    %v6095 = vunpack.c.l.b16 %v6083
    %v6096 = vunpack.c.l.b16 %v6084
    %v6097 = vpack.c.b16 %v6094, %v6093
    %v6098 = vpack.c.b16 %v6096, %v6095
    %6099 = vrot.lane.b32.xlu0 %v5166, 80
    %v6100 = vpop.permute.xlu0 %6099
    %6101 = vrot.lane.b32.xlu0 %v5167, 80
    %v6102 = vpop.permute.xlu0 %6101
    %v6106 = vsel %vm666, %v6097, 0
    %v6109 = vsel %vm666, %v6098, 0
    %6111 = vmatpush.bf16.msra.mxu0 0
    %6112 = vmatpush.bf16.msra.mxu0 0
    %6113 = vmatpush.bf16.msra.mxu0 0
    %6114 = vmatpush.bf16.msra.mxu0 0
    %6115 = vmatpush.bf16.msra.mxu0 0
    %6116 = vmatpush.bf16.msra.mxu0 0
    %6117 = vmatpush.bf16.msra.mxu0 %v6102
    %6118 = vmatpush.bf16.msra.mxu0 %v6100
    %6119 = vmatmul.bf16.gmra.mxu0 %v6106
    %v6120 = vpop.f32.mrf.mxu0
    %v6121 = vadd.f32 0.0, %v6120
    %v6122 = vpop.f32.mrf.mxu0
    %v6123 = vadd.f32 0.0, %v6122
    %6124 = vmatmul.bf16.gmra.mxu0 %v6109
    %v6125 = vpop.f32.mrf.mxu0
    %v6126 = vadd.f32 0.0, %v6125
    %v6127 = vpop.f32.mrf.mxu0
    %v6128 = vadd.f32 0.0, %v6127
    %6129 = vdwg.mxu0
    %v6134 = vunpack.c.l.b16 %v6085
    %v6135 = vunpack.c.l.b16 %v6086
    %v6136 = vunpack.c.l.b16 %v6087
    %v6137 = vunpack.c.l.b16 %v6088
    %v6138 = vpack.c.b16 %v6135, %v6134
    %v6139 = vpack.c.b16 %v6137, %v6136
    %6140 = vrot.lane.b32.xlu0 %v5213, 80
    %v6141 = vpop.permute.xlu0 %6140
    %6142 = vrot.lane.b32.xlu0 %v5214, 80
    %v6143 = vpop.permute.xlu0 %6142
    %v6147 = vsel %vm666, %v6138, 0
    %v6150 = vsel %vm666, %v6139, 0
    %6152 = vmatpush.bf16.msra.mxu0 0
    %6153 = vmatpush.bf16.msra.mxu0 0
    %6154 = vmatpush.bf16.msra.mxu0 0
    %6155 = vmatpush.bf16.msra.mxu0 0
    %6156 = vmatpush.bf16.msra.mxu0 0
    %6157 = vmatpush.bf16.msra.mxu0 0
    %6158 = vmatpush.bf16.msra.mxu0 %v6143
    %6159 = vmatpush.bf16.msra.mxu0 %v6141
    %6160 = vmatmul.bf16.gmra.mxu0 %v6147
    %v6161 = vpop.f32.mrf.mxu0
    %v6162 = vadd.f32 0.0, %v6161
    %v6163 = vpop.f32.mrf.mxu0
    %v6164 = vadd.f32 0.0, %v6163
    %6165 = vmatmul.bf16.gmra.mxu0 %v6150
    %v6166 = vpop.f32.mrf.mxu0
    %v6167 = vadd.f32 0.0, %v6166
    %v6168 = vpop.f32.mrf.mxu0
    %v6169 = vadd.f32 0.0, %v6168
    %6170 = vdwg.mxu0
    %v6171 = vpack.c.bf16 %v6123, %v6121
    %v6172 = vpack.c.bf16 %v6128, %v6126
    %v6173 = vpack.c.bf16 %v6164, %v6162
    %v6174 = vpack.c.bf16 %v6169, %v6167
    %v6177 = vunpack.c.l.b16 %v4960
    %v6178 = vunpack.c.l.b16 %v4961
    %v6179 = vpack.c.b16 %v6178, %v6177
    %v6182 = vsel %vm589, %v6171, 0
    %v6185 = vsel %vm589, %v6172, 0
    %v6188 = vsel %vm589, %v6173, 0
    %v6191 = vsel %vm589, %v6174, 0
    %6193 = vmatpush.bf16.msra.mxu0 0
    %6194 = vmatpush.bf16.msra.mxu0 0
    %6195 = vmatpush.bf16.msra.mxu0 0
    %6196 = vmatpush.bf16.msra.mxu0 0
    %6197 = vmatpush.bf16.msra.mxu0 0
    %6198 = vmatpush.bf16.msra.mxu0 0
    %6199 = vmatpush.bf16.msra.mxu0 0
    %6200 = vmatpush.bf16.msra.mxu0 %v6179
    %6201 = vmatmul.bf16.gmra.mxu0 %v6182
    %v6202 = vpop.f32.mrf.mxu0
    %v6203 = vadd.f32 0.0, %v6202
    %v6204 = vpop.f32.mrf.mxu0
    %v6205 = vadd.f32 0.0, %v6204
    %6206 = vmatmul.bf16.gmra.mxu0 %v6185
    %v6207 = vpop.f32.mrf.mxu0
    %v6208 = vadd.f32 0.0, %v6207
    %v6209 = vpop.f32.mrf.mxu0
    %v6210 = vadd.f32 0.0, %v6209
    %6211 = vmatmul.bf16.gmra.mxu0 %v6188
    %v6212 = vpop.f32.mrf.mxu0
    %v6213 = vadd.f32 0.0, %v6212
    %v6214 = vpop.f32.mrf.mxu0
    %v6215 = vadd.f32 0.0, %v6214
    %6216 = vmatmul.bf16.gmra.mxu0 %v6191
    %v6217 = vpop.f32.mrf.mxu0
    %v6218 = vadd.f32 0.0, %v6217
    %v6219 = vpop.f32.mrf.mxu0
    %v6220 = vadd.f32 0.0, %v6219
    %6221 = vdwg.mxu0
    %v6222 = vadd.f32 %v5907, %v6203
    %v6223 = vadd.f32 %v5908, %v6205
    %v6224 = vadd.f32 %v5909, %v6208
    %v6225 = vadd.f32 %v5910, %v6210
    %v6226 = vadd.f32 %v5911, %v6213
    %v6227 = vadd.f32 %v5912, %v6215
    %v6228 = vadd.f32 %v5913, %v6218
    %v6229 = vadd.f32 %v5914, %v6220
    %v6230 = vadd.f32 %v4604, %v6222
    %v6231 = vadd.f32 %v4605, %v6223
    %v6232 = vadd.f32 %v4606, %v6224
    %v6233 = vadd.f32 %v4607, %v6225
    %v6234 = vadd.f32 %v4608, %v6226
    %v6235 = vadd.f32 %v4609, %v6227
    %v6236 = vadd.f32 %v4610, %v6228
    %v6237 = vadd.f32 %v4611, %v6229
    %s6238 = scalar_lea.vmem %s7, 2
    %v6239 = vld [vmem:[%s6238] sm:$0x1]
    %v6241 = vperm.slane %v6239, 0
    %v6243 = vadd.f32 %v6230, %v6241
    %v6244 = vadd.f32 %v6231, %v6241
    %v6245 = vadd.f32 %v6232, %v6241
    %v6246 = vadd.f32 %v6233, %v6241
    %v6247 = vadd.f32 %v6234, %v6241
    %v6248 = vadd.f32 %v6235, %v6241
    %v6249 = vadd.f32 %v6236, %v6241
    %v6250 = vadd.f32 %v6237, %v6241
    %s6251 = scalar_lea.vmem %s3, 5
    %v6252 = vld [vmem:[%s6251] sm:$0x1]
    %s6253 = scalar_lea.vmem %s4, 5
    %v6254 = vld [vmem:[%s6253] sm:$0x1]
    %v6255 = vsel %vm223, %v6243, 0.0
    %6256 = vadd.xlane.f32.xlu0 %v6255
    %v6257 = vpop.xlane.xlu0 %6256
    %v6258 = vsel %vm223, %v6244, 0.0
    %6259 = vadd.xlane.f32.xlu0 %v6258
    %v6260 = vpop.xlane.xlu0 %6259
    %v6261 = vsel %vm223, %v6245, 0.0
    %6262 = vadd.xlane.f32.xlu0 %v6261
    %v6263 = vpop.xlane.xlu0 %6262
    %v6264 = vsel %vm223, %v6246, 0.0
    %6265 = vadd.xlane.f32.xlu0 %v6264
    %v6266 = vpop.xlane.xlu0 %6265
    %v6267 = vsel %vm223, %v6247, 0.0
    %6268 = vadd.xlane.f32.xlu0 %v6267
    %v6269 = vpop.xlane.xlu0 %6268
    %v6270 = vsel %vm223, %v6248, 0.0
    %6271 = vadd.xlane.f32.xlu0 %v6270
    %v6272 = vpop.xlane.xlu0 %6271
    %v6273 = vsel %vm223, %v6249, 0.0
    %6274 = vadd.xlane.f32.xlu0 %v6273
    %v6275 = vpop.xlane.xlu0 %6274
    %v6276 = vsel %vm223, %v6250, 0.0
    %6277 = vadd.xlane.f32.xlu0 %v6276
    %v6278 = vpop.xlane.xlu0 %6277
    %v6279 = vmul.f32 %v6257, %v254
    %v6280 = vmul.f32 %v6260, %v254
    %v6281 = vmul.f32 %v6263, %v254
    %v6282 = vmul.f32 %v6266, %v254
    %v6283 = vmul.f32 %v6269, %v254
    %v6284 = vmul.f32 %v6272, %v254
    %v6285 = vmul.f32 %v6275, %v254
    %v6286 = vmul.f32 %v6278, %v254
    %v6287 = vsub.f32 %v6243, %v6279
    %v6288 = vsub.f32 %v6244, %v6280
    %v6289 = vsub.f32 %v6245, %v6281
    %v6290 = vsub.f32 %v6246, %v6282
    %v6291 = vsub.f32 %v6247, %v6283
    %v6292 = vsub.f32 %v6248, %v6284
    %v6293 = vsub.f32 %v6249, %v6285
    %v6294 = vsub.f32 %v6250, %v6286
    %v6295 = vmul.f32 %v6287, %v6287
    %v6296 = vmul.f32 %v6288, %v6288
    %v6297 = vmul.f32 %v6289, %v6289
    %v6298 = vmul.f32 %v6290, %v6290
    %v6299 = vmul.f32 %v6291, %v6291
    %v6300 = vmul.f32 %v6292, %v6292
    %v6301 = vmul.f32 %v6293, %v6293
    %v6302 = vmul.f32 %v6294, %v6294
    %v6303 = vsel %vm223, %v6295, 0.0
    %6304 = vadd.xlane.f32.xlu0 %v6303
    %v6305 = vpop.xlane.xlu0 %6304
    %v6306 = vsel %vm223, %v6296, 0.0
    %6307 = vadd.xlane.f32.xlu0 %v6306
    %v6308 = vpop.xlane.xlu0 %6307
    %v6309 = vsel %vm223, %v6297, 0.0
    %6310 = vadd.xlane.f32.xlu0 %v6309
    %v6311 = vpop.xlane.xlu0 %6310
    %v6312 = vsel %vm223, %v6298, 0.0
    %6313 = vadd.xlane.f32.xlu0 %v6312
    %v6314 = vpop.xlane.xlu0 %6313
    %v6315 = vsel %vm223, %v6299, 0.0
    %6316 = vadd.xlane.f32.xlu0 %v6315
    %v6317 = vpop.xlane.xlu0 %6316
    %v6318 = vsel %vm223, %v6300, 0.0
    %6319 = vadd.xlane.f32.xlu0 %v6318
    %v6320 = vpop.xlane.xlu0 %6319
    %v6321 = vsel %vm223, %v6301, 0.0
    %6322 = vadd.xlane.f32.xlu0 %v6321
    %v6323 = vpop.xlane.xlu0 %6322
    %v6324 = vsel %vm223, %v6302, 0.0
    %6325 = vadd.xlane.f32.xlu0 %v6324
    %v6326 = vpop.xlane.xlu0 %6325
    %v6327 = vmul.f32 %v6305, %v254
    %v6328 = vmul.f32 %v6308, %v254
    %v6329 = vmul.f32 %v6311, %v254
    %v6330 = vmul.f32 %v6314, %v254
    %v6331 = vmul.f32 %v6317, %v254
    %v6332 = vmul.f32 %v6320, %v254
    %v6333 = vmul.f32 %v6323, %v254
    %v6334 = vmul.f32 %v6326, %v254
    %v6335 = vadd.f32 %v6327, 1e-05
    %v6336 = vadd.f32 %v6328, 1e-05
    %v6337 = vadd.f32 %v6329, 1e-05
    %v6338 = vadd.f32 %v6330, 1e-05
    %v6339 = vadd.f32 %v6331, 1e-05
    %v6340 = vadd.f32 %v6332, 1e-05
    %v6341 = vadd.f32 %v6333, 1e-05
    %v6342 = vadd.f32 %v6334, 1e-05
    %v6343 = vrsqrt.pop %v6335
    %v6344 = vmul.f32 %v6343, %v6335
    %v6345 = vmul.f32 %v6344, %v6343
    %v6346 = vmul.f32 0.5, %v6345
    %v6347 = vsub.f32 1.5, %v6346
    %v6348 = vmul.f32 %v6343, %v6347
    %vm6349 = vweird.f32 %v6335
    %vm6350 = vweird.f32 %v6343
    %vm6351 = vmor %vm6349, %vm6350
    %v6352 = vsel %vm6351, %v6343, %v6348
    %v6353 = vrsqrt.pop %v6336
    %v6354 = vmul.f32 %v6353, %v6336
    %v6355 = vmul.f32 %v6354, %v6353
    %v6356 = vmul.f32 0.5, %v6355
    %v6357 = vsub.f32 1.5, %v6356
    %v6358 = vmul.f32 %v6353, %v6357
    %vm6359 = vweird.f32 %v6336
    %vm6360 = vweird.f32 %v6353
    %vm6361 = vmor %vm6359, %vm6360
    %v6362 = vsel %vm6361, %v6353, %v6358
    %v6363 = vrsqrt.pop %v6337
    %v6364 = vmul.f32 %v6363, %v6337
    %v6365 = vmul.f32 %v6364, %v6363
    %v6366 = vmul.f32 0.5, %v6365
    %v6367 = vsub.f32 1.5, %v6366
    %v6368 = vmul.f32 %v6363, %v6367
    %vm6369 = vweird.f32 %v6337
    %vm6370 = vweird.f32 %v6363
    %vm6371 = vmor %vm6369, %vm6370
    %v6372 = vsel %vm6371, %v6363, %v6368
    %v6373 = vrsqrt.pop %v6338
    %v6374 = vmul.f32 %v6373, %v6338
    %v6375 = vmul.f32 %v6374, %v6373
    %v6376 = vmul.f32 0.5, %v6375
    %v6377 = vsub.f32 1.5, %v6376
    %v6378 = vmul.f32 %v6373, %v6377
    %vm6379 = vweird.f32 %v6338
    %vm6380 = vweird.f32 %v6373
    %vm6381 = vmor %vm6379, %vm6380
    %v6382 = vsel %vm6381, %v6373, %v6378
    %v6383 = vrsqrt.pop %v6339
    %v6384 = vmul.f32 %v6383, %v6339
    %v6385 = vmul.f32 %v6384, %v6383
    %v6386 = vmul.f32 0.5, %v6385
    %v6387 = vsub.f32 1.5, %v6386
    %v6388 = vmul.f32 %v6383, %v6387
    %vm6389 = vweird.f32 %v6339
    %vm6390 = vweird.f32 %v6383
    %vm6391 = vmor %vm6389, %vm6390
    %v6392 = vsel %vm6391, %v6383, %v6388
    %v6393 = vrsqrt.pop %v6340
    %v6394 = vmul.f32 %v6393, %v6340
    %v6395 = vmul.f32 %v6394, %v6393
    %v6396 = vmul.f32 0.5, %v6395
    %v6397 = vsub.f32 1.5, %v6396
    %v6398 = vmul.f32 %v6393, %v6397
    %vm6399 = vweird.f32 %v6340
    %vm6400 = vweird.f32 %v6393
    %vm6401 = vmor %vm6399, %vm6400
    %v6402 = vsel %vm6401, %v6393, %v6398
    %v6403 = vrsqrt.pop %v6341
    %v6404 = vmul.f32 %v6403, %v6341
    %v6405 = vmul.f32 %v6404, %v6403
    %v6406 = vmul.f32 0.5, %v6405
    %v6407 = vsub.f32 1.5, %v6406
    %v6408 = vmul.f32 %v6403, %v6407
    %vm6409 = vweird.f32 %v6341
    %vm6410 = vweird.f32 %v6403
    %vm6411 = vmor %vm6409, %vm6410
    %v6412 = vsel %vm6411, %v6403, %v6408
    %v6413 = vrsqrt.pop %v6342
    %v6414 = vmul.f32 %v6413, %v6342
    %v6415 = vmul.f32 %v6414, %v6413
    %v6416 = vmul.f32 0.5, %v6415
    %v6417 = vsub.f32 1.5, %v6416
    %v6418 = vmul.f32 %v6413, %v6417
    %vm6419 = vweird.f32 %v6342
    %vm6420 = vweird.f32 %v6413
    %vm6421 = vmor %vm6419, %vm6420
    %v6422 = vsel %vm6421, %v6413, %v6418
    %v6423 = vmul.f32 %v6287, %v6352
    %v6424 = vmul.f32 %v6288, %v6362
    %v6425 = vmul.f32 %v6289, %v6372
    %v6426 = vmul.f32 %v6290, %v6382
    %v6427 = vmul.f32 %v6291, %v6392
    %v6428 = vmul.f32 %v6292, %v6402
    %v6429 = vmul.f32 %v6293, %v6412
    %v6430 = vmul.f32 %v6294, %v6422
    %v6432 = vperm.slane %v6252, 0
    %v6434 = vmul.f32 %v6423, %v6432
    %v6435 = vmul.f32 %v6424, %v6432
    %v6436 = vmul.f32 %v6425, %v6432
    %v6437 = vmul.f32 %v6426, %v6432
    %v6438 = vmul.f32 %v6427, %v6432
    %v6439 = vmul.f32 %v6428, %v6432
    %v6440 = vmul.f32 %v6429, %v6432
    %v6441 = vmul.f32 %v6430, %v6432
    %v6443 = vperm.slane %v6254, 0
    %v6445 = vadd.f32 %v6434, %v6443
    %v6446 = vadd.f32 %v6435, %v6443
    %v6447 = vadd.f32 %v6436, %v6443
    %v6448 = vadd.f32 %v6437, %v6443
    %v6449 = vadd.f32 %v6438, %v6443
    %v6450 = vadd.f32 %v6439, %v6443
    %v6451 = vadd.f32 %v6440, %v6443
    %v6452 = vadd.f32 %v6441, %v6443
    %v6453 = vpack.c.bf16 %v6446, %v6445
    %v6454 = vpack.c.bf16 %v6448, %v6447
    %v6455 = vpack.c.bf16 %v6450, %v6449
    %v6456 = vpack.c.bf16 %v6452, %v6451
    %s6457 = scalar_lea.vmem %s8, 128
    %v6458 = vld [vmem:[%s6457] sm:$0xff]
    %v6459 = vld [vmem:[%s6457 + $0x8] sm:$0xff]
    %v6460 = vld [vmem:[%s6457 + $0x10] sm:$0xff]
    %v6461 = vld [vmem:[%s6457 + $0x18] sm:$0xff]
    %v6462 = vld [vmem:[%s6457 + $0x20] sm:$0xff]
    %v6463 = vld [vmem:[%s6457 + $0x28] sm:$0xff]
    %v6464 = vld [vmem:[%s6457 + $0x30] sm:$0xff]
    %v6465 = vld [vmem:[%s6457 + $0x38] sm:$0xff]
    %s6466 = scalar_lea.vmem %s9, 4
    %v6467 = vld [vmem:[%s6466] sm:$0x3]
    %v6469 = vperm.slane %v6467, 0
    %v6470 = vperm.slane %v6467, 1
    %v6481 = vunpack.c.l.b16 %v6458
    %v6482 = vunpack.c.h.b16 %v6458
    %v6483 = vunpack.c.l.b16 %v6459
    %v6484 = vunpack.c.h.b16 %v6459
    %v6485 = vunpack.c.l.b16 %v6460
    %v6486 = vunpack.c.h.b16 %v6460
    %v6487 = vunpack.c.l.b16 %v6461
    %v6488 = vunpack.c.h.b16 %v6461
    %v6489 = vunpack.c.l.b16 %v6462
    %v6490 = vunpack.c.h.b16 %v6462
    %v6491 = vunpack.c.l.b16 %v6463
    %v6492 = vunpack.c.h.b16 %v6463
    %v6493 = vunpack.c.l.b16 %v6464
    %v6494 = vunpack.c.h.b16 %v6464
    %v6495 = vunpack.c.l.b16 %v6465
    %v6496 = vunpack.c.h.b16 %v6465
    %v6497 = vpack.c.b16 %v6483, %v6481
    %v6498 = vpack.c.b16 %v6484, %v6482
    %v6499 = vpack.c.b16 %v6487, %v6485
    %v6500 = vpack.c.b16 %v6488, %v6486
    %v6501 = vpack.c.b16 %v6491, %v6489
    %v6502 = vpack.c.b16 %v6492, %v6490
    %v6503 = vpack.c.b16 %v6495, %v6493
    %v6504 = vpack.c.b16 %v6496, %v6494
    %v6514 = vsel %vm223, %v6453, 0
    %v6517 = vsel %vm223, %v6454, 0
    %v6520 = vsel %vm223, %v6455, 0
    %v6523 = vsel %vm223, %v6456, 0
    %6525 = vmatpush.bf16.msra.mxu0 0
    %6526 = vmatpush.bf16.msra.mxu0 0
    %6527 = vmatpush.bf16.msra.mxu0 0
    %6528 = vmatpush.bf16.msra.mxu0 0
    %6529 = vmatpush.bf16.msra.mxu0 %v6503
    %6530 = vmatpush.bf16.msra.mxu0 %v6501
    %6531 = vmatpush.bf16.msra.mxu0 %v6499
    %6532 = vmatpush.bf16.msra.mxu0 %v6497
    %6533 = vmatmul.bf16.gmra.mxu0 %v6514
    %v6534 = vpop.f32.mrf.mxu0
    %v6535 = vadd.f32 %v6469, %v6534
    %v6536 = vpop.f32.mrf.mxu0
    %v6537 = vadd.f32 %v6469, %v6536
    %6538 = vmatmul.bf16.gmra.mxu0 %v6517
    %v6539 = vpop.f32.mrf.mxu0
    %v6540 = vadd.f32 %v6469, %v6539
    %v6541 = vpop.f32.mrf.mxu0
    %v6542 = vadd.f32 %v6469, %v6541
    %6543 = vmatmul.bf16.gmra.mxu0 %v6520
    %v6544 = vpop.f32.mrf.mxu0
    %v6545 = vadd.f32 %v6469, %v6544
    %v6546 = vpop.f32.mrf.mxu0
    %v6547 = vadd.f32 %v6469, %v6546
    %6548 = vmatmul.bf16.gmra.mxu0 %v6523
    %v6549 = vpop.f32.mrf.mxu0
    %v6550 = vadd.f32 %v6469, %v6549
    %v6551 = vpop.f32.mrf.mxu0
    %v6552 = vadd.f32 %v6469, %v6551
    %6553 = vdwg.mxu0
    %6554 = vmatpush.bf16.msra.mxu0 0
    %6555 = vmatpush.bf16.msra.mxu0 0
    %6556 = vmatpush.bf16.msra.mxu0 0
    %6557 = vmatpush.bf16.msra.mxu0 0
    %6558 = vmatpush.bf16.msra.mxu0 %v6504
    %6559 = vmatpush.bf16.msra.mxu0 %v6502
    %6560 = vmatpush.bf16.msra.mxu0 %v6500
    %6561 = vmatpush.bf16.msra.mxu0 %v6498
    %6562 = vmatmul.bf16.gmra.mxu0 %v6514
    %v6563 = vpop.f32.mrf.mxu0
    %v6564 = vadd.f32 %v6470, %v6563
    %v6565 = vpop.f32.mrf.mxu0
    %v6566 = vadd.f32 %v6470, %v6565
    %6567 = vmatmul.bf16.gmra.mxu0 %v6517
    %v6568 = vpop.f32.mrf.mxu0
    %v6569 = vadd.f32 %v6470, %v6568
    %v6570 = vpop.f32.mrf.mxu0
    %v6571 = vadd.f32 %v6470, %v6570
    %6572 = vmatmul.bf16.gmra.mxu0 %v6520
    %v6573 = vpop.f32.mrf.mxu0
    %v6574 = vadd.f32 %v6470, %v6573
    %v6575 = vpop.f32.mrf.mxu0
    %v6576 = vadd.f32 %v6470, %v6575
    %6577 = vmatmul.bf16.gmra.mxu0 %v6523
    %v6578 = vpop.f32.mrf.mxu0
    %v6579 = vadd.f32 %v6470, %v6578
    %v6580 = vpop.f32.mrf.mxu0
    %v6581 = vadd.f32 %v6470, %v6580
    %6582 = vdwg.mxu0
    %v6583 = vmax.f32 %v6535, 0.0
    %v6584 = vmax.f32 %v6564, 0.0
    %v6585 = vmax.f32 %v6537, 0.0
    %v6586 = vmax.f32 %v6566, 0.0
    %v6587 = vmax.f32 %v6540, 0.0
    %v6588 = vmax.f32 %v6569, 0.0
    %v6589 = vmax.f32 %v6542, 0.0
    %v6590 = vmax.f32 %v6571, 0.0
    %v6591 = vmax.f32 %v6545, 0.0
    %v6592 = vmax.f32 %v6574, 0.0
    %v6593 = vmax.f32 %v6547, 0.0
    %v6594 = vmax.f32 %v6576, 0.0
    %v6595 = vmax.f32 %v6550, 0.0
    %v6596 = vmax.f32 %v6579, 0.0
    %v6597 = vmax.f32 %v6552, 0.0
    %v6598 = vmax.f32 %v6581, 0.0
    %v6599 = vpack.c.bf16 %v6585, %v6583
    %v6600 = vpack.c.bf16 %v6586, %v6584
    %v6601 = vpack.c.bf16 %v6589, %v6587
    %v6602 = vpack.c.bf16 %v6590, %v6588
    %v6603 = vpack.c.bf16 %v6593, %v6591
    %v6604 = vpack.c.bf16 %v6594, %v6592
    %v6605 = vpack.c.bf16 %v6597, %v6595
    %v6606 = vpack.c.bf16 %v6598, %v6596
    %s6607 = scalar_lea.vmem %s10, 256
    %v6608 = vld [vmem:[%s6607] sm:$0xf]
    %v6609 = vld [vmem:[%s6607 + $0x4] sm:$0xf]
    %v6610 = vld [vmem:[%s6607 + $0x8] sm:$0xf]
    %v6611 = vld [vmem:[%s6607 + $0xc] sm:$0xf]
    %v6612 = vld [vmem:[%s6607 + $0x10] sm:$0xf]
    %v6613 = vld [vmem:[%s6607 + $0x14] sm:$0xf]
    %v6614 = vld [vmem:[%s6607 + $0x18] sm:$0xf]
    %v6615 = vld [vmem:[%s6607 + $0x1c] sm:$0xf]
    %v6616 = vld [vmem:[%s6607 + $0x20] sm:$0xf]
    %v6617 = vld [vmem:[%s6607 + $0x24] sm:$0xf]
    %v6618 = vld [vmem:[%s6607 + $0x28] sm:$0xf]
    %v6619 = vld [vmem:[%s6607 + $0x2c] sm:$0xf]
    %v6620 = vld [vmem:[%s6607 + $0x30] sm:$0xf]
    %v6621 = vld [vmem:[%s6607 + $0x34] sm:$0xf]
    %v6622 = vld [vmem:[%s6607 + $0x38] sm:$0xf]
    %v6623 = vld [vmem:[%s6607 + $0x3c] sm:$0xf]
    %v6624 = vld [vmem:[%s6607 + $0x40] sm:$0xf]
    %v6625 = vld [vmem:[%s6607 + $0x44] sm:$0xf]
    %v6626 = vld [vmem:[%s6607 + $0x48] sm:$0xf]
    %v6627 = vld [vmem:[%s6607 + $0x4c] sm:$0xf]
    %v6628 = vld [vmem:[%s6607 + $0x50] sm:$0xf]
    %v6629 = vld [vmem:[%s6607 + $0x54] sm:$0xf]
    %v6630 = vld [vmem:[%s6607 + $0x58] sm:$0xf]
    %v6631 = vld [vmem:[%s6607 + $0x5c] sm:$0xf]
    %v6632 = vld [vmem:[%s6607 + $0x60] sm:$0xf]
    %v6633 = vld [vmem:[%s6607 + $0x64] sm:$0xf]
    %v6634 = vld [vmem:[%s6607 + $0x68] sm:$0xf]
    %v6635 = vld [vmem:[%s6607 + $0x6c] sm:$0xf]
    %v6636 = vld [vmem:[%s6607 + $0x70] sm:$0xf]
    %v6637 = vld [vmem:[%s6607 + $0x74] sm:$0xf]
    %v6638 = vld [vmem:[%s6607 + $0x78] sm:$0xf]
    %v6639 = vld [vmem:[%s6607 + $0x7c] sm:$0xf]
    %s6640 = scalar_lea.vmem %s11, 2
    %v6641 = vld [vmem:[%s6640] sm:$0x1]
    %v6643 = vperm.slane %v6641, 0
    %v6677 = vunpack.c.l.b16 %v6608
    %v6678 = vunpack.c.l.b16 %v6609
    %v6679 = vunpack.c.l.b16 %v6610
    %v6680 = vunpack.c.l.b16 %v6611
    %v6681 = vunpack.c.l.b16 %v6612
    %v6682 = vunpack.c.l.b16 %v6613
    %v6683 = vunpack.c.l.b16 %v6614
    %v6684 = vunpack.c.l.b16 %v6615
    %v6685 = vunpack.c.l.b16 %v6616
    %v6686 = vunpack.c.l.b16 %v6617
    %v6687 = vunpack.c.l.b16 %v6618
    %v6688 = vunpack.c.l.b16 %v6619
    %v6689 = vunpack.c.l.b16 %v6620
    %v6690 = vunpack.c.l.b16 %v6621
    %v6691 = vunpack.c.l.b16 %v6622
    %v6692 = vunpack.c.l.b16 %v6623
    %v6693 = vunpack.c.l.b16 %v6624
    %v6694 = vunpack.c.l.b16 %v6625
    %v6695 = vunpack.c.l.b16 %v6626
    %v6696 = vunpack.c.l.b16 %v6627
    %v6697 = vunpack.c.l.b16 %v6628
    %v6698 = vunpack.c.l.b16 %v6629
    %v6699 = vunpack.c.l.b16 %v6630
    %v6700 = vunpack.c.l.b16 %v6631
    %v6701 = vunpack.c.l.b16 %v6632
    %v6702 = vunpack.c.l.b16 %v6633
    %v6703 = vunpack.c.l.b16 %v6634
    %v6704 = vunpack.c.l.b16 %v6635
    %v6705 = vunpack.c.l.b16 %v6636
    %v6706 = vunpack.c.l.b16 %v6637
    %v6707 = vunpack.c.l.b16 %v6638
    %v6708 = vunpack.c.l.b16 %v6639
    %v6709 = vpack.c.b16 %v6678, %v6677
    %v6710 = vpack.c.b16 %v6680, %v6679
    %v6711 = vpack.c.b16 %v6682, %v6681
    %v6712 = vpack.c.b16 %v6684, %v6683
    %v6713 = vpack.c.b16 %v6686, %v6685
    %v6714 = vpack.c.b16 %v6688, %v6687
    %v6715 = vpack.c.b16 %v6690, %v6689
    %v6716 = vpack.c.b16 %v6692, %v6691
    %v6717 = vpack.c.b16 %v6694, %v6693
    %v6718 = vpack.c.b16 %v6696, %v6695
    %v6719 = vpack.c.b16 %v6698, %v6697
    %v6720 = vpack.c.b16 %v6700, %v6699
    %v6721 = vpack.c.b16 %v6702, %v6701
    %v6722 = vpack.c.b16 %v6704, %v6703
    %v6723 = vpack.c.b16 %v6706, %v6705
    %v6724 = vpack.c.b16 %v6708, %v6707
    %6741 = vmatpush.bf16.msra.mxu0 %v6716
    %6742 = vmatpush.bf16.msra.mxu0 %v6715
    %6743 = vmatpush.bf16.msra.mxu0 %v6714
    %6744 = vmatpush.bf16.msra.mxu0 %v6713
    %6745 = vmatpush.bf16.msra.mxu0 %v6712
    %6746 = vmatpush.bf16.msra.mxu0 %v6711
    %6747 = vmatpush.bf16.msra.mxu0 %v6710
    %6748 = vmatpush.bf16.msra.mxu0 %v6709
    %6749 = vmatmul.bf16.gmra.mxu0 %v6599
    %v6750 = vpop.f32.mrf.mxu0
    %v6751 = vadd.f32 %v6643, %v6750
    %v6752 = vpop.f32.mrf.mxu0
    %v6753 = vadd.f32 %v6643, %v6752
    %6754 = vmatmul.bf16.gmra.mxu0 %v6601
    %v6755 = vpop.f32.mrf.mxu0
    %v6756 = vadd.f32 %v6643, %v6755
    %v6757 = vpop.f32.mrf.mxu0
    %v6758 = vadd.f32 %v6643, %v6757
    %6759 = vmatmul.bf16.gmra.mxu0 %v6603
    %v6760 = vpop.f32.mrf.mxu0
    %v6761 = vadd.f32 %v6643, %v6760
    %v6762 = vpop.f32.mrf.mxu0
    %v6763 = vadd.f32 %v6643, %v6762
    %6764 = vmatmul.bf16.gmra.mxu0 %v6605
    %v6765 = vpop.f32.mrf.mxu0
    %v6766 = vadd.f32 %v6643, %v6765
    %v6767 = vpop.f32.mrf.mxu0
    %v6768 = vadd.f32 %v6643, %v6767
    %6769 = vdwg.mxu0
    %6770 = vmatpush.bf16.msra.mxu0 %v6724
    %6771 = vmatpush.bf16.msra.mxu0 %v6723
    %6772 = vmatpush.bf16.msra.mxu0 %v6722
    %6773 = vmatpush.bf16.msra.mxu0 %v6721
    %6774 = vmatpush.bf16.msra.mxu0 %v6720
    %6775 = vmatpush.bf16.msra.mxu0 %v6719
    %6776 = vmatpush.bf16.msra.mxu0 %v6718
    %6777 = vmatpush.bf16.msra.mxu0 %v6717
    %6778 = vmatmul.bf16.gmra.mxu0 %v6600
    %v6779 = vpop.f32.mrf.mxu0
    %v6780 = vadd.f32 %v6751, %v6779
    %v6781 = vpop.f32.mrf.mxu0
    %v6782 = vadd.f32 %v6753, %v6781
    %6783 = vmatmul.bf16.gmra.mxu0 %v6602
    %v6784 = vpop.f32.mrf.mxu0
    %v6785 = vadd.f32 %v6756, %v6784
    %v6786 = vpop.f32.mrf.mxu0
    %v6787 = vadd.f32 %v6758, %v6786
    %6788 = vmatmul.bf16.gmra.mxu0 %v6604
    %v6789 = vpop.f32.mrf.mxu0
    %v6790 = vadd.f32 %v6761, %v6789
    %v6791 = vpop.f32.mrf.mxu0
    %v6792 = vadd.f32 %v6763, %v6791
    %6793 = vmatmul.bf16.gmra.mxu0 %v6606
    %v6794 = vpop.f32.mrf.mxu0
    %v6795 = vadd.f32 %v6766, %v6794
    %v6796 = vpop.f32.mrf.mxu0
    %v6797 = vadd.f32 %v6768, %v6796
    %6798 = vdwg.mxu0
    %v6799 = vadd.f32 %v6243, %v6780
    %v6800 = vadd.f32 %v6244, %v6782
    %v6801 = vadd.f32 %v6245, %v6785
    %v6802 = vadd.f32 %v6246, %v6787
    %v6803 = vadd.f32 %v6247, %v6790
    %v6804 = vadd.f32 %v6248, %v6792
    %v6805 = vadd.f32 %v6249, %v6795
    %v6806 = vadd.f32 %v6250, %v6797
    %s6807 = scalar_lea.vmem %s3, 6
    %v6808 = vld [vmem:[%s6807] sm:$0x1]
    %s6809 = scalar_lea.vmem %s4, 6
    %v6810 = vld [vmem:[%s6809] sm:$0x1]
    %v6811 = vsel %vm223, %v6799, 0.0
    %6812 = vadd.xlane.f32.xlu0 %v6811
    %v6813 = vpop.xlane.xlu0 %6812
    %v6814 = vsel %vm223, %v6800, 0.0
    %6815 = vadd.xlane.f32.xlu0 %v6814
    %v6816 = vpop.xlane.xlu0 %6815
    %v6817 = vsel %vm223, %v6801, 0.0
    %6818 = vadd.xlane.f32.xlu0 %v6817
    %v6819 = vpop.xlane.xlu0 %6818
    %v6820 = vsel %vm223, %v6802, 0.0
    %6821 = vadd.xlane.f32.xlu0 %v6820
    %v6822 = vpop.xlane.xlu0 %6821
    %v6823 = vsel %vm223, %v6803, 0.0
    %6824 = vadd.xlane.f32.xlu0 %v6823
    %v6825 = vpop.xlane.xlu0 %6824
    %v6826 = vsel %vm223, %v6804, 0.0
    %6827 = vadd.xlane.f32.xlu0 %v6826
    %v6828 = vpop.xlane.xlu0 %6827
    %v6829 = vsel %vm223, %v6805, 0.0
    %6830 = vadd.xlane.f32.xlu0 %v6829
    %v6831 = vpop.xlane.xlu0 %6830
    %v6832 = vsel %vm223, %v6806, 0.0
    %6833 = vadd.xlane.f32.xlu0 %v6832
    %v6834 = vpop.xlane.xlu0 %6833
    %v6835 = vmul.f32 %v6813, %v254
    %v6836 = vmul.f32 %v6816, %v254
    %v6837 = vmul.f32 %v6819, %v254
    %v6838 = vmul.f32 %v6822, %v254
    %v6839 = vmul.f32 %v6825, %v254
    %v6840 = vmul.f32 %v6828, %v254
    %v6841 = vmul.f32 %v6831, %v254
    %v6842 = vmul.f32 %v6834, %v254
    %v6843 = vsub.f32 %v6799, %v6835
    %v6844 = vsub.f32 %v6800, %v6836
    %v6845 = vsub.f32 %v6801, %v6837
    %v6846 = vsub.f32 %v6802, %v6838
    %v6847 = vsub.f32 %v6803, %v6839
    %v6848 = vsub.f32 %v6804, %v6840
    %v6849 = vsub.f32 %v6805, %v6841
    %v6850 = vsub.f32 %v6806, %v6842
    %v6851 = vmul.f32 %v6843, %v6843
    %v6852 = vmul.f32 %v6844, %v6844
    %v6853 = vmul.f32 %v6845, %v6845
    %v6854 = vmul.f32 %v6846, %v6846
    %v6855 = vmul.f32 %v6847, %v6847
    %v6856 = vmul.f32 %v6848, %v6848
    %v6857 = vmul.f32 %v6849, %v6849
    %v6858 = vmul.f32 %v6850, %v6850
    %v6859 = vsel %vm223, %v6851, 0.0
    %6860 = vadd.xlane.f32.xlu0 %v6859
    %v6861 = vpop.xlane.xlu0 %6860
    %v6862 = vsel %vm223, %v6852, 0.0
    %6863 = vadd.xlane.f32.xlu0 %v6862
    %v6864 = vpop.xlane.xlu0 %6863
    %v6865 = vsel %vm223, %v6853, 0.0
    %6866 = vadd.xlane.f32.xlu0 %v6865
    %v6867 = vpop.xlane.xlu0 %6866
    %v6868 = vsel %vm223, %v6854, 0.0
    %6869 = vadd.xlane.f32.xlu0 %v6868
    %v6870 = vpop.xlane.xlu0 %6869
    %v6871 = vsel %vm223, %v6855, 0.0
    %6872 = vadd.xlane.f32.xlu0 %v6871
    %v6873 = vpop.xlane.xlu0 %6872
    %v6874 = vsel %vm223, %v6856, 0.0
    %6875 = vadd.xlane.f32.xlu0 %v6874
    %v6876 = vpop.xlane.xlu0 %6875
    %v6877 = vsel %vm223, %v6857, 0.0
    %6878 = vadd.xlane.f32.xlu0 %v6877
    %v6879 = vpop.xlane.xlu0 %6878
    %v6880 = vsel %vm223, %v6858, 0.0
    %6881 = vadd.xlane.f32.xlu0 %v6880
    %v6882 = vpop.xlane.xlu0 %6881
    %v6883 = vmul.f32 %v6861, %v254
    %v6884 = vmul.f32 %v6864, %v254
    %v6885 = vmul.f32 %v6867, %v254
    %v6886 = vmul.f32 %v6870, %v254
    %v6887 = vmul.f32 %v6873, %v254
    %v6888 = vmul.f32 %v6876, %v254
    %v6889 = vmul.f32 %v6879, %v254
    %v6890 = vmul.f32 %v6882, %v254
    %v6891 = vadd.f32 %v6883, 1e-05
    %v6892 = vadd.f32 %v6884, 1e-05
    %v6893 = vadd.f32 %v6885, 1e-05
    %v6894 = vadd.f32 %v6886, 1e-05
    %v6895 = vadd.f32 %v6887, 1e-05
    %v6896 = vadd.f32 %v6888, 1e-05
    %v6897 = vadd.f32 %v6889, 1e-05
    %v6898 = vadd.f32 %v6890, 1e-05
    %v6899 = vrsqrt.pop %v6891
    %v6900 = vmul.f32 %v6899, %v6891
    %v6901 = vmul.f32 %v6900, %v6899
    %v6902 = vmul.f32 0.5, %v6901
    %v6903 = vsub.f32 1.5, %v6902
    %v6904 = vmul.f32 %v6899, %v6903
    %vm6905 = vweird.f32 %v6891
    %vm6906 = vweird.f32 %v6899
    %vm6907 = vmor %vm6905, %vm6906
    %v6908 = vsel %vm6907, %v6899, %v6904
    %v6909 = vrsqrt.pop %v6892
    %v6910 = vmul.f32 %v6909, %v6892
    %v6911 = vmul.f32 %v6910, %v6909
    %v6912 = vmul.f32 0.5, %v6911
    %v6913 = vsub.f32 1.5, %v6912
    %v6914 = vmul.f32 %v6909, %v6913
    %vm6915 = vweird.f32 %v6892
    %vm6916 = vweird.f32 %v6909
    %vm6917 = vmor %vm6915, %vm6916
    %v6918 = vsel %vm6917, %v6909, %v6914
    %v6919 = vrsqrt.pop %v6893
    %v6920 = vmul.f32 %v6919, %v6893
    %v6921 = vmul.f32 %v6920, %v6919
    %v6922 = vmul.f32 0.5, %v6921
    %v6923 = vsub.f32 1.5, %v6922
    %v6924 = vmul.f32 %v6919, %v6923
    %vm6925 = vweird.f32 %v6893
    %vm6926 = vweird.f32 %v6919
    %vm6927 = vmor %vm6925, %vm6926
    %v6928 = vsel %vm6927, %v6919, %v6924
    %v6929 = vrsqrt.pop %v6894
    %v6930 = vmul.f32 %v6929, %v6894
    %v6931 = vmul.f32 %v6930, %v6929
    %v6932 = vmul.f32 0.5, %v6931
    %v6933 = vsub.f32 1.5, %v6932
    %v6934 = vmul.f32 %v6929, %v6933
    %vm6935 = vweird.f32 %v6894
    %vm6936 = vweird.f32 %v6929
    %vm6937 = vmor %vm6935, %vm6936
    %v6938 = vsel %vm6937, %v6929, %v6934
    %v6939 = vrsqrt.pop %v6895
    %v6940 = vmul.f32 %v6939, %v6895
    %v6941 = vmul.f32 %v6940, %v6939
    %v6942 = vmul.f32 0.5, %v6941
    %v6943 = vsub.f32 1.5, %v6942
    %v6944 = vmul.f32 %v6939, %v6943
    %vm6945 = vweird.f32 %v6895
    %vm6946 = vweird.f32 %v6939
    %vm6947 = vmor %vm6945, %vm6946
    %v6948 = vsel %vm6947, %v6939, %v6944
    %v6949 = vrsqrt.pop %v6896
    %v6950 = vmul.f32 %v6949, %v6896
    %v6951 = vmul.f32 %v6950, %v6949
    %v6952 = vmul.f32 0.5, %v6951
    %v6953 = vsub.f32 1.5, %v6952
    %v6954 = vmul.f32 %v6949, %v6953
    %vm6955 = vweird.f32 %v6896
    %vm6956 = vweird.f32 %v6949
    %vm6957 = vmor %vm6955, %vm6956
    %v6958 = vsel %vm6957, %v6949, %v6954
    %v6959 = vrsqrt.pop %v6897
    %v6960 = vmul.f32 %v6959, %v6897
    %v6961 = vmul.f32 %v6960, %v6959
    %v6962 = vmul.f32 0.5, %v6961
    %v6963 = vsub.f32 1.5, %v6962
    %v6964 = vmul.f32 %v6959, %v6963
    %vm6965 = vweird.f32 %v6897
    %vm6966 = vweird.f32 %v6959
    %vm6967 = vmor %vm6965, %vm6966
    %v6968 = vsel %vm6967, %v6959, %v6964
    %v6969 = vrsqrt.pop %v6898
    %v6970 = vmul.f32 %v6969, %v6898
    %v6971 = vmul.f32 %v6970, %v6969
    %v6972 = vmul.f32 0.5, %v6971
    %v6973 = vsub.f32 1.5, %v6972
    %v6974 = vmul.f32 %v6969, %v6973
    %vm6975 = vweird.f32 %v6898
    %vm6976 = vweird.f32 %v6969
    %vm6977 = vmor %vm6975, %vm6976
    %v6978 = vsel %vm6977, %v6969, %v6974
    %v6979 = vmul.f32 %v6843, %v6908
    %v6980 = vmul.f32 %v6844, %v6918
    %v6981 = vmul.f32 %v6845, %v6928
    %v6982 = vmul.f32 %v6846, %v6938
    %v6983 = vmul.f32 %v6847, %v6948
    %v6984 = vmul.f32 %v6848, %v6958
    %v6985 = vmul.f32 %v6849, %v6968
    %v6986 = vmul.f32 %v6850, %v6978
    %v6988 = vperm.slane %v6808, 0
    %v6990 = vmul.f32 %v6979, %v6988
    %v6991 = vmul.f32 %v6980, %v6988
    %v6992 = vmul.f32 %v6981, %v6988
    %v6993 = vmul.f32 %v6982, %v6988
    %v6994 = vmul.f32 %v6983, %v6988
    %v6995 = vmul.f32 %v6984, %v6988
    %v6996 = vmul.f32 %v6985, %v6988
    %v6997 = vmul.f32 %v6986, %v6988
    %v6999 = vperm.slane %v6810, 0
    %v7001 = vadd.f32 %v6990, %v6999
    %v7002 = vadd.f32 %v6991, %v6999
    %v7003 = vadd.f32 %v6992, %v6999
    %v7004 = vadd.f32 %v6993, %v6999
    %v7005 = vadd.f32 %v6994, %v6999
    %v7006 = vadd.f32 %v6995, %v6999
    %v7007 = vadd.f32 %v6996, %v6999
    %v7008 = vadd.f32 %v6997, %v6999
    %v7009 = vpack.c.bf16 %v7002, %v7001
    %v7010 = vpack.c.bf16 %v7004, %v7003
    %v7011 = vpack.c.bf16 %v7006, %v7005
    %v7012 = vpack.c.bf16 %v7008, %v7007
    %s7013 = scalar_lea.vmem %s5, 192
    %v7014 = vld [vmem:[%s7013] sm:$0xff]
    %v7015 = vld [vmem:[%s7013 + $0x8] sm:$0xff]
    %v7016 = vld [vmem:[%s7013 + $0x10] sm:$0xff]
    %v7017 = vld [vmem:[%s7013 + $0x18] sm:$0xff]
    %v7018 = vld [vmem:[%s7013 + $0x20] sm:$0xff]
    %v7019 = vld [vmem:[%s7013 + $0x28] sm:$0xff]
    %v7020 = vld [vmem:[%s7013 + $0x30] sm:$0xff]
    %v7021 = vld [vmem:[%s7013 + $0x38] sm:$0xff]
    %v7030 = vunpack.c.l.b16 %v7014
    %v7031 = vunpack.c.h.b16 %v7014
    %v7032 = vunpack.c.l.b16 %v7015
    %v7033 = vunpack.c.h.b16 %v7015
    %v7034 = vunpack.c.l.b16 %v7016
    %v7035 = vunpack.c.h.b16 %v7016
    %v7036 = vunpack.c.l.b16 %v7017
    %v7037 = vunpack.c.h.b16 %v7017
    %v7038 = vunpack.c.l.b16 %v7018
    %v7039 = vunpack.c.h.b16 %v7018
    %v7040 = vunpack.c.l.b16 %v7019
    %v7041 = vunpack.c.h.b16 %v7019
    %v7042 = vunpack.c.l.b16 %v7020
    %v7043 = vunpack.c.h.b16 %v7020
    %v7044 = vunpack.c.l.b16 %v7021
    %v7045 = vunpack.c.h.b16 %v7021
    %v7046 = vpack.c.b16 %v7032, %v7030
    %v7047 = vpack.c.b16 %v7033, %v7031
    %v7048 = vpack.c.b16 %v7036, %v7034
    %v7049 = vpack.c.b16 %v7037, %v7035
    %v7050 = vpack.c.b16 %v7040, %v7038
    %v7051 = vpack.c.b16 %v7041, %v7039
    %v7052 = vpack.c.b16 %v7044, %v7042
    %v7053 = vpack.c.b16 %v7045, %v7043
    %v7063 = vsel %vm223, %v7009, 0
    %v7066 = vsel %vm223, %v7010, 0
    %v7069 = vsel %vm223, %v7011, 0
    %v7072 = vsel %vm223, %v7012, 0
    %7074 = vmatpush.bf16.msra.mxu0 0
    %7075 = vmatpush.bf16.msra.mxu0 0
    %7076 = vmatpush.bf16.msra.mxu0 0
    %7077 = vmatpush.bf16.msra.mxu0 0
    %7078 = vmatpush.bf16.msra.mxu0 %v7052
    %7079 = vmatpush.bf16.msra.mxu0 %v7050
    %7080 = vmatpush.bf16.msra.mxu0 %v7048
    %7081 = vmatpush.bf16.msra.mxu0 %v7046
    %7082 = vmatmul.bf16.gmra.mxu0 %v7063
    %v7083 = vpop.f32.mrf.mxu0
    %v7084 = vadd.f32 0.0, %v7083
    %v7085 = vpop.f32.mrf.mxu0
    %v7086 = vadd.f32 0.0, %v7085
    %7087 = vmatmul.bf16.gmra.mxu0 %v7066
    %v7088 = vpop.f32.mrf.mxu0
    %v7089 = vadd.f32 0.0, %v7088
    %v7090 = vpop.f32.mrf.mxu0
    %v7091 = vadd.f32 0.0, %v7090
    %7092 = vmatmul.bf16.gmra.mxu0 %v7069
    %v7093 = vpop.f32.mrf.mxu0
    %v7094 = vadd.f32 0.0, %v7093
    %v7095 = vpop.f32.mrf.mxu0
    %v7096 = vadd.f32 0.0, %v7095
    %7097 = vmatmul.bf16.gmra.mxu0 %v7072
    %v7098 = vpop.f32.mrf.mxu0
    %v7099 = vadd.f32 0.0, %v7098
    %v7100 = vpop.f32.mrf.mxu0
    %v7101 = vadd.f32 0.0, %v7100
    %7102 = vdwg.mxu0
    %7103 = vmatpush.bf16.msra.mxu0 0
    %7104 = vmatpush.bf16.msra.mxu0 0
    %7105 = vmatpush.bf16.msra.mxu0 0
    %7106 = vmatpush.bf16.msra.mxu0 0
    %7107 = vmatpush.bf16.msra.mxu0 %v7053
    %7108 = vmatpush.bf16.msra.mxu0 %v7051
    %7109 = vmatpush.bf16.msra.mxu0 %v7049
    %7110 = vmatpush.bf16.msra.mxu0 %v7047
    %7111 = vmatmul.bf16.gmra.mxu0 %v7063
    %v7112 = vpop.f32.mrf.mxu0
    %v7113 = vadd.f32 0.0, %v7112
    %v7114 = vpop.f32.mrf.mxu0
    %v7115 = vadd.f32 0.0, %v7114
    %7116 = vmatmul.bf16.gmra.mxu0 %v7066
    %v7117 = vpop.f32.mrf.mxu0
    %v7118 = vadd.f32 0.0, %v7117
    %v7119 = vpop.f32.mrf.mxu0
    %v7120 = vadd.f32 0.0, %v7119
    %7121 = vmatmul.bf16.gmra.mxu0 %v7069
    %v7122 = vpop.f32.mrf.mxu0
    %v7123 = vadd.f32 0.0, %v7122
    %v7124 = vpop.f32.mrf.mxu0
    %v7125 = vadd.f32 0.0, %v7124
    %7126 = vmatmul.bf16.gmra.mxu0 %v7072
    %v7127 = vpop.f32.mrf.mxu0
    %v7128 = vadd.f32 0.0, %v7127
    %v7129 = vpop.f32.mrf.mxu0
    %v7130 = vadd.f32 0.0, %v7129
    %7131 = vdwg.mxu0
    %v7132 = vpack.c.bf16 %v7084, %v7084
    %v7133 = vpack.c.bf16 %v7086, %v7086
    %v7134 = vpack.c.bf16 %v7089, %v7089
    %v7135 = vpack.c.bf16 %v7091, %v7091
    %v7136 = vpack.c.bf16 %v7094, %v7094
    %v7137 = vpack.c.bf16 %v7096, %v7096
    %v7138 = vpack.c.bf16 %v7099, %v7099
    %v7139 = vpack.c.bf16 %v7101, %v7101
    %v7140 = vpack.c.bf16 %v7113, %v7113
    %v7141 = vpack.c.bf16 %v7115, %v7115
    %v7142 = vpack.c.bf16 %v7118, %v7118
    %v7143 = vpack.c.bf16 %v7120, %v7120
    %v7144 = vpack.c.bf16 %v7123, %v7123
    %v7145 = vpack.c.bf16 %v7125, %v7125
    %v7146 = vpack.c.bf16 %v7128, %v7128
    %v7147 = vpack.c.bf16 %v7130, %v7130
    %s7148 = scalar_lea.vmem %s6, 96
    %v7149 = vld [vmem:[%s7148] sm:$0xf]
    %v7150 = vld [vmem:[%s7148 + $0x4] sm:$0xf]
    %v7151 = vld [vmem:[%s7148 + $0x8] sm:$0xf]
    %v7152 = vld [vmem:[%s7148 + $0xc] sm:$0xf]
    %v7153 = vld [vmem:[%s7148 + $0x10] sm:$0xf]
    %v7154 = vld [vmem:[%s7148 + $0x14] sm:$0xf]
    %v7155 = vld [vmem:[%s7148 + $0x18] sm:$0xf]
    %v7156 = vld [vmem:[%s7148 + $0x1c] sm:$0xf]
    %v7161 = vunpack.c.l.b16 %v7132
    %v7162 = vunpack.c.l.b16 %v7133
    %v7163 = vunpack.c.l.b16 %v7134
    %v7164 = vunpack.c.l.b16 %v7135
    %v7165 = vpack.c.b16 %v7162, %v7161
    %v7166 = vpack.c.b16 %v7164, %v7163
    %7167 = vrot.lane.b32.xlu0 %v7165, 64
    %v7168 = vpop.permute.xlu0 %7167
    %7169 = vrot.lane.b32.xlu0 %v7166, 64
    %v7170 = vpop.permute.xlu0 %7169
    %v7172 = vsel %vm589, %v7165, 0
    %v7175 = vsel %vm589, %v7166, 0
    %v7178 = vsel %vm589, %v7168, 0
    %v7181 = vsel %vm589, %v7170, 0
    %7183 = vmatpush.bf16.xpose.msra.mxu0 0
    %7184 = vmatpush.bf16.xpose.msra.mxu0 0
    %7185 = vmatpush.bf16.xpose.msra.mxu0 0
    %7186 = vmatpush.bf16.xpose.msra.mxu0 0
    %7187 = vmatpush.bf16.xpose.msra.mxu0 0
    %7188 = vmatpush.bf16.xpose.msra.mxu0 0
    %7189 = vmatpush.bf16.xpose.msra.mxu0 %v7181
    %7190 = vmatpush.bf16.xpose.msra.mxu0 %v7178
    %7191 = vmatmul.bf16.gmra.mxu0 %v7172
    %v7192 = vpop.f32.mrf.mxu0
    %v7193 = vadd.f32 %v217, %v7192
    %v7194 = vpop.f32.mrf.mxu0
    %v7195 = vadd.f32 %v218, %v7194
    %7196 = vmatmul.bf16.gmra.mxu0 %v7175
    %v7197 = vpop.f32.mrf.mxu0
    %v7198 = vadd.f32 %v219, %v7197
    %v7199 = vpop.f32.mrf.mxu0
    %v7200 = vadd.f32 %v220, %v7199
    %7201 = vdwg.mxu0
    %v7206 = vunpack.c.l.b16 %v7136
    %v7207 = vunpack.c.l.b16 %v7137
    %v7208 = vunpack.c.l.b16 %v7138
    %v7209 = vunpack.c.l.b16 %v7139
    %v7210 = vpack.c.b16 %v7207, %v7206
    %v7211 = vpack.c.b16 %v7209, %v7208
    %7212 = vrot.lane.b32.xlu0 %v7210, 64
    %v7213 = vpop.permute.xlu0 %7212
    %7214 = vrot.lane.b32.xlu0 %v7211, 64
    %v7215 = vpop.permute.xlu0 %7214
    %v7217 = vsel %vm589, %v7210, 0
    %v7220 = vsel %vm589, %v7211, 0
    %v7223 = vsel %vm589, %v7213, 0
    %v7226 = vsel %vm589, %v7215, 0
    %7228 = vmatpush.bf16.xpose.msra.mxu0 0
    %7229 = vmatpush.bf16.xpose.msra.mxu0 0
    %7230 = vmatpush.bf16.xpose.msra.mxu0 0
    %7231 = vmatpush.bf16.xpose.msra.mxu0 0
    %7232 = vmatpush.bf16.xpose.msra.mxu0 0
    %7233 = vmatpush.bf16.xpose.msra.mxu0 0
    %7234 = vmatpush.bf16.xpose.msra.mxu0 %v7226
    %7235 = vmatpush.bf16.xpose.msra.mxu0 %v7223
    %7236 = vmatmul.bf16.gmra.mxu0 %v7217
    %v7237 = vpop.f32.mrf.mxu0
    %v7238 = vadd.f32 %v217, %v7237
    %v7239 = vpop.f32.mrf.mxu0
    %v7240 = vadd.f32 %v218, %v7239
    %7241 = vmatmul.bf16.gmra.mxu0 %v7220
    %v7242 = vpop.f32.mrf.mxu0
    %v7243 = vadd.f32 %v219, %v7242
    %v7244 = vpop.f32.mrf.mxu0
    %v7245 = vadd.f32 %v220, %v7244
    %7246 = vdwg.mxu0
    %v7247 = vsel %vm666, %v7193, -inf
    %7248 = vmax.xlane.f32.xlu0 %v7247
    %v7249 = vpop.xlane.xlu0 %7248
    %v7250 = vsel %vm666, %v7195, -inf
    %7251 = vmax.xlane.f32.xlu0 %v7250
    %v7252 = vpop.xlane.xlu0 %7251
    %v7253 = vsel %vm666, %v7198, -inf
    %7254 = vmax.xlane.f32.xlu0 %v7253
    %v7255 = vpop.xlane.xlu0 %7254
    %v7256 = vsel %vm666, %v7200, -inf
    %7257 = vmax.xlane.f32.xlu0 %v7256
    %v7258 = vpop.xlane.xlu0 %7257
    %v7259 = vsel %vm666, %v7238, -inf
    %7260 = vmax.xlane.f32.xlu0 %v7259
    %v7261 = vpop.xlane.xlu0 %7260
    %v7262 = vsel %vm666, %v7240, -inf
    %7263 = vmax.xlane.f32.xlu0 %v7262
    %v7264 = vpop.xlane.xlu0 %7263
    %v7265 = vsel %vm666, %v7243, -inf
    %7266 = vmax.xlane.f32.xlu0 %v7265
    %v7267 = vpop.xlane.xlu0 %7266
    %v7268 = vsel %vm666, %v7245, -inf
    %7269 = vmax.xlane.f32.xlu0 %v7268
    %v7270 = vpop.xlane.xlu0 %7269
    %v7271 = vsub.f32 %v7193, %v7249
    %v7272 = vsub.f32 %v7195, %v7252
    %v7273 = vsub.f32 %v7198, %v7255
    %v7274 = vsub.f32 %v7200, %v7258
    %v7275 = vsub.f32 %v7238, %v7261
    %v7276 = vsub.f32 %v7240, %v7264
    %v7277 = vsub.f32 %v7243, %v7267
    %v7278 = vsub.f32 %v7245, %v7270
    %v7279 = vmul.f32 %v7271, 1.442695
    %v7280 = vpow.pop %v7279
    %v7281 = vmul.f32 %v7272, 1.442695
    %v7282 = vpow.pop %v7281
    %v7283 = vmul.f32 %v7273, 1.442695
    %v7284 = vpow.pop %v7283
    %v7285 = vmul.f32 %v7274, 1.442695
    %v7286 = vpow.pop %v7285
    %v7287 = vmul.f32 %v7275, 1.442695
    %v7288 = vpow.pop %v7287
    %v7289 = vmul.f32 %v7276, 1.442695
    %v7290 = vpow.pop %v7289
    %v7291 = vmul.f32 %v7277, 1.442695
    %v7292 = vpow.pop %v7291
    %v7293 = vmul.f32 %v7278, 1.442695
    %v7294 = vpow.pop %v7293
    %v7295 = vsel %vm666, %v7280, 0.0
    %7296 = vadd.xlane.f32.xlu0 %v7295
    %v7297 = vpop.xlane.xlu0 %7296
    %v7298 = vsel %vm666, %v7282, 0.0
    %7299 = vadd.xlane.f32.xlu0 %v7298
    %v7300 = vpop.xlane.xlu0 %7299
    %v7301 = vsel %vm666, %v7284, 0.0
    %7302 = vadd.xlane.f32.xlu0 %v7301
    %v7303 = vpop.xlane.xlu0 %7302
    %v7304 = vsel %vm666, %v7286, 0.0
    %7305 = vadd.xlane.f32.xlu0 %v7304
    %v7306 = vpop.xlane.xlu0 %7305
    %v7307 = vsel %vm666, %v7288, 0.0
    %7308 = vadd.xlane.f32.xlu0 %v7307
    %v7309 = vpop.xlane.xlu0 %7308
    %v7310 = vsel %vm666, %v7290, 0.0
    %7311 = vadd.xlane.f32.xlu0 %v7310
    %v7312 = vpop.xlane.xlu0 %7311
    %v7313 = vsel %vm666, %v7292, 0.0
    %7314 = vadd.xlane.f32.xlu0 %v7313
    %v7315 = vpop.xlane.xlu0 %7314
    %v7316 = vsel %vm666, %v7294, 0.0
    %7317 = vadd.xlane.f32.xlu0 %v7316
    %v7318 = vpop.xlane.xlu0 %7317
    %v7319 = vrcp.pop %v7297
    %v7320 = vrcp.pop %v7300
    %v7321 = vrcp.pop %v7303
    %v7322 = vrcp.pop %v7306
    %v7323 = vrcp.pop %v7309
    %v7324 = vrcp.pop %v7312
    %v7325 = vrcp.pop %v7315
    %v7326 = vrcp.pop %v7318
    %v7327 = vmul.f32 %v7280, %v7319
    %v7328 = vmul.f32 %v7282, %v7320
    %v7329 = vmul.f32 %v7284, %v7321
    %v7330 = vmul.f32 %v7286, %v7322
    %v7331 = vmul.f32 %v7288, %v7323
    %v7332 = vmul.f32 %v7290, %v7324
    %v7333 = vmul.f32 %v7292, %v7325
    %v7334 = vmul.f32 %v7294, %v7326
    %v7335 = vpack.c.bf16 %v7327, %v7327
    %v7336 = vpack.c.bf16 %v7328, %v7328
    %v7337 = vpack.c.bf16 %v7329, %v7329
    %v7338 = vpack.c.bf16 %v7330, %v7330
    %v7339 = vpack.c.bf16 %v7331, %v7331
    %v7340 = vpack.c.bf16 %v7332, %v7332
    %v7341 = vpack.c.bf16 %v7333, %v7333
    %v7342 = vpack.c.bf16 %v7334, %v7334
    %v7347 = vunpack.c.l.b16 %v7335
    %v7348 = vunpack.c.l.b16 %v7336
    %v7349 = vunpack.c.l.b16 %v7337
    %v7350 = vunpack.c.l.b16 %v7338
    %v7351 = vpack.c.b16 %v7348, %v7347
    %v7352 = vpack.c.b16 %v7350, %v7349
    %v7357 = vunpack.c.l.b16 %v7140
    %v7358 = vunpack.c.l.b16 %v7141
    %v7359 = vunpack.c.l.b16 %v7142
    %v7360 = vunpack.c.l.b16 %v7143
    %v7361 = vpack.c.b16 %v7358, %v7357
    %v7362 = vpack.c.b16 %v7360, %v7359
    %v7366 = vsel %vm666, %v7351, 0
    %v7369 = vsel %vm666, %v7352, 0
    %7371 = vmatpush.bf16.msra.mxu0 0
    %7372 = vmatpush.bf16.msra.mxu0 0
    %7373 = vmatpush.bf16.msra.mxu0 0
    %7374 = vmatpush.bf16.msra.mxu0 0
    %7375 = vmatpush.bf16.msra.mxu0 0
    %7376 = vmatpush.bf16.msra.mxu0 0
    %7377 = vmatpush.bf16.msra.mxu0 %v7362
    %7378 = vmatpush.bf16.msra.mxu0 %v7361
    %7379 = vmatmul.bf16.gmra.mxu0 %v7366
    %v7380 = vpop.f32.mrf.mxu0
    %v7381 = vadd.f32 0.0, %v7380
    %v7382 = vpop.f32.mrf.mxu0
    %v7383 = vadd.f32 0.0, %v7382
    %7384 = vmatmul.bf16.gmra.mxu0 %v7369
    %v7385 = vpop.f32.mrf.mxu0
    %v7386 = vadd.f32 0.0, %v7385
    %v7387 = vpop.f32.mrf.mxu0
    %v7388 = vadd.f32 0.0, %v7387
    %7389 = vdwg.mxu0
    %v7394 = vunpack.c.l.b16 %v7339
    %v7395 = vunpack.c.l.b16 %v7340
    %v7396 = vunpack.c.l.b16 %v7341
    %v7397 = vunpack.c.l.b16 %v7342
    %v7398 = vpack.c.b16 %v7395, %v7394
    %v7399 = vpack.c.b16 %v7397, %v7396
    %v7404 = vunpack.c.l.b16 %v7144
    %v7405 = vunpack.c.l.b16 %v7145
    %v7406 = vunpack.c.l.b16 %v7146
    %v7407 = vunpack.c.l.b16 %v7147
    %v7408 = vpack.c.b16 %v7405, %v7404
    %v7409 = vpack.c.b16 %v7407, %v7406
    %v7413 = vsel %vm666, %v7398, 0
    %v7416 = vsel %vm666, %v7399, 0
    %7418 = vmatpush.bf16.msra.mxu0 0
    %7419 = vmatpush.bf16.msra.mxu0 0
    %7420 = vmatpush.bf16.msra.mxu0 0
    %7421 = vmatpush.bf16.msra.mxu0 0
    %7422 = vmatpush.bf16.msra.mxu0 0
    %7423 = vmatpush.bf16.msra.mxu0 0
    %7424 = vmatpush.bf16.msra.mxu0 %v7409
    %7425 = vmatpush.bf16.msra.mxu0 %v7408
    %7426 = vmatmul.bf16.gmra.mxu0 %v7413
    %v7427 = vpop.f32.mrf.mxu0
    %v7428 = vadd.f32 0.0, %v7427
    %v7429 = vpop.f32.mrf.mxu0
    %v7430 = vadd.f32 0.0, %v7429
    %7431 = vmatmul.bf16.gmra.mxu0 %v7416
    %v7432 = vpop.f32.mrf.mxu0
    %v7433 = vadd.f32 0.0, %v7432
    %v7434 = vpop.f32.mrf.mxu0
    %v7435 = vadd.f32 0.0, %v7434
    %7436 = vdwg.mxu0
    %v7437 = vpack.c.bf16 %v7383, %v7381
    %v7438 = vpack.c.bf16 %v7388, %v7386
    %v7439 = vpack.c.bf16 %v7430, %v7428
    %v7440 = vpack.c.bf16 %v7435, %v7433
    %7441 = vrot.lane.b32.xlu0 %v7165, 112
    %v7442 = vpop.permute.xlu0 %7441
    %7443 = vrot.lane.b32.xlu0 %v7166, 112
    %v7444 = vpop.permute.xlu0 %7443
    %7445 = vrot.lane.b32.xlu0 %v7165, 48
    %v7446 = vpop.permute.xlu0 %7445
    %7447 = vrot.lane.b32.xlu0 %v7166, 48
    %v7448 = vpop.permute.xlu0 %7447
    %v7450 = vsel %vm589, %v7442, 0
    %v7453 = vsel %vm589, %v7444, 0
    %v7456 = vsel %vm589, %v7446, 0
    %v7459 = vsel %vm589, %v7448, 0
    %7461 = vmatpush.bf16.xpose.msra.mxu0 0
    %7462 = vmatpush.bf16.xpose.msra.mxu0 0
    %7463 = vmatpush.bf16.xpose.msra.mxu0 0
    %7464 = vmatpush.bf16.xpose.msra.mxu0 0
    %7465 = vmatpush.bf16.xpose.msra.mxu0 0
    %7466 = vmatpush.bf16.xpose.msra.mxu0 0
    %7467 = vmatpush.bf16.xpose.msra.mxu0 %v7459
    %7468 = vmatpush.bf16.xpose.msra.mxu0 %v7456
    %7469 = vmatmul.bf16.gmra.mxu0 %v7450
    %v7470 = vpop.f32.mrf.mxu0
    %v7471 = vadd.f32 %v217, %v7470
    %v7472 = vpop.f32.mrf.mxu0
    %v7473 = vadd.f32 %v218, %v7472
    %7474 = vmatmul.bf16.gmra.mxu0 %v7453
    %v7475 = vpop.f32.mrf.mxu0
    %v7476 = vadd.f32 %v219, %v7475
    %v7477 = vpop.f32.mrf.mxu0
    %v7478 = vadd.f32 %v220, %v7477
    %7479 = vdwg.mxu0
    %7480 = vrot.lane.b32.xlu0 %v7210, 112
    %v7481 = vpop.permute.xlu0 %7480
    %7482 = vrot.lane.b32.xlu0 %v7211, 112
    %v7483 = vpop.permute.xlu0 %7482
    %7484 = vrot.lane.b32.xlu0 %v7210, 48
    %v7485 = vpop.permute.xlu0 %7484
    %7486 = vrot.lane.b32.xlu0 %v7211, 48
    %v7487 = vpop.permute.xlu0 %7486
    %v7489 = vsel %vm589, %v7481, 0
    %v7492 = vsel %vm589, %v7483, 0
    %v7495 = vsel %vm589, %v7485, 0
    %v7498 = vsel %vm589, %v7487, 0
    %7500 = vmatpush.bf16.xpose.msra.mxu0 0
    %7501 = vmatpush.bf16.xpose.msra.mxu0 0
    %7502 = vmatpush.bf16.xpose.msra.mxu0 0
    %7503 = vmatpush.bf16.xpose.msra.mxu0 0
    %7504 = vmatpush.bf16.xpose.msra.mxu0 0
    %7505 = vmatpush.bf16.xpose.msra.mxu0 0
    %7506 = vmatpush.bf16.xpose.msra.mxu0 %v7498
    %7507 = vmatpush.bf16.xpose.msra.mxu0 %v7495
    %7508 = vmatmul.bf16.gmra.mxu0 %v7489
    %v7509 = vpop.f32.mrf.mxu0
    %v7510 = vadd.f32 %v217, %v7509
    %v7511 = vpop.f32.mrf.mxu0
    %v7512 = vadd.f32 %v218, %v7511
    %7513 = vmatmul.bf16.gmra.mxu0 %v7492
    %v7514 = vpop.f32.mrf.mxu0
    %v7515 = vadd.f32 %v219, %v7514
    %v7516 = vpop.f32.mrf.mxu0
    %v7517 = vadd.f32 %v220, %v7516
    %7518 = vdwg.mxu0
    %v7519 = vsel %vm666, %v7471, -inf
    %7520 = vmax.xlane.f32.xlu0 %v7519
    %v7521 = vpop.xlane.xlu0 %7520
    %v7522 = vsel %vm666, %v7473, -inf
    %7523 = vmax.xlane.f32.xlu0 %v7522
    %v7524 = vpop.xlane.xlu0 %7523
    %v7525 = vsel %vm666, %v7476, -inf
    %7526 = vmax.xlane.f32.xlu0 %v7525
    %v7527 = vpop.xlane.xlu0 %7526
    %v7528 = vsel %vm666, %v7478, -inf
    %7529 = vmax.xlane.f32.xlu0 %v7528
    %v7530 = vpop.xlane.xlu0 %7529
    %v7531 = vsel %vm666, %v7510, -inf
    %7532 = vmax.xlane.f32.xlu0 %v7531
    %v7533 = vpop.xlane.xlu0 %7532
    %v7534 = vsel %vm666, %v7512, -inf
    %7535 = vmax.xlane.f32.xlu0 %v7534
    %v7536 = vpop.xlane.xlu0 %7535
    %v7537 = vsel %vm666, %v7515, -inf
    %7538 = vmax.xlane.f32.xlu0 %v7537
    %v7539 = vpop.xlane.xlu0 %7538
    %v7540 = vsel %vm666, %v7517, -inf
    %7541 = vmax.xlane.f32.xlu0 %v7540
    %v7542 = vpop.xlane.xlu0 %7541
    %v7543 = vsub.f32 %v7471, %v7521
    %v7544 = vsub.f32 %v7473, %v7524
    %v7545 = vsub.f32 %v7476, %v7527
    %v7546 = vsub.f32 %v7478, %v7530
    %v7547 = vsub.f32 %v7510, %v7533
    %v7548 = vsub.f32 %v7512, %v7536
    %v7549 = vsub.f32 %v7515, %v7539
    %v7550 = vsub.f32 %v7517, %v7542
    %v7551 = vmul.f32 %v7543, 1.442695
    %v7552 = vpow.pop %v7551
    %v7553 = vmul.f32 %v7544, 1.442695
    %v7554 = vpow.pop %v7553
    %v7555 = vmul.f32 %v7545, 1.442695
    %v7556 = vpow.pop %v7555
    %v7557 = vmul.f32 %v7546, 1.442695
    %v7558 = vpow.pop %v7557
    %v7559 = vmul.f32 %v7547, 1.442695
    %v7560 = vpow.pop %v7559
    %v7561 = vmul.f32 %v7548, 1.442695
    %v7562 = vpow.pop %v7561
    %v7563 = vmul.f32 %v7549, 1.442695
    %v7564 = vpow.pop %v7563
    %v7565 = vmul.f32 %v7550, 1.442695
    %v7566 = vpow.pop %v7565
    %v7567 = vsel %vm666, %v7552, 0.0
    %7568 = vadd.xlane.f32.xlu0 %v7567
    %v7569 = vpop.xlane.xlu0 %7568
    %v7570 = vsel %vm666, %v7554, 0.0
    %7571 = vadd.xlane.f32.xlu0 %v7570
    %v7572 = vpop.xlane.xlu0 %7571
    %v7573 = vsel %vm666, %v7556, 0.0
    %7574 = vadd.xlane.f32.xlu0 %v7573
    %v7575 = vpop.xlane.xlu0 %7574
    %v7576 = vsel %vm666, %v7558, 0.0
    %7577 = vadd.xlane.f32.xlu0 %v7576
    %v7578 = vpop.xlane.xlu0 %7577
    %v7579 = vsel %vm666, %v7560, 0.0
    %7580 = vadd.xlane.f32.xlu0 %v7579
    %v7581 = vpop.xlane.xlu0 %7580
    %v7582 = vsel %vm666, %v7562, 0.0
    %7583 = vadd.xlane.f32.xlu0 %v7582
    %v7584 = vpop.xlane.xlu0 %7583
    %v7585 = vsel %vm666, %v7564, 0.0
    %7586 = vadd.xlane.f32.xlu0 %v7585
    %v7587 = vpop.xlane.xlu0 %7586
    %v7588 = vsel %vm666, %v7566, 0.0
    %7589 = vadd.xlane.f32.xlu0 %v7588
    %v7590 = vpop.xlane.xlu0 %7589
    %v7591 = vrcp.pop %v7569
    %v7592 = vrcp.pop %v7572
    %v7593 = vrcp.pop %v7575
    %v7594 = vrcp.pop %v7578
    %v7595 = vrcp.pop %v7581
    %v7596 = vrcp.pop %v7584
    %v7597 = vrcp.pop %v7587
    %v7598 = vrcp.pop %v7590
    %v7599 = vmul.f32 %v7552, %v7591
    %v7600 = vmul.f32 %v7554, %v7592
    %v7601 = vmul.f32 %v7556, %v7593
    %v7602 = vmul.f32 %v7558, %v7594
    %v7603 = vmul.f32 %v7560, %v7595
    %v7604 = vmul.f32 %v7562, %v7596
    %v7605 = vmul.f32 %v7564, %v7597
    %v7606 = vmul.f32 %v7566, %v7598
    %v7607 = vpack.c.bf16 %v7599, %v7599
    %v7608 = vpack.c.bf16 %v7600, %v7600
    %v7609 = vpack.c.bf16 %v7601, %v7601
    %v7610 = vpack.c.bf16 %v7602, %v7602
    %v7611 = vpack.c.bf16 %v7603, %v7603
    %v7612 = vpack.c.bf16 %v7604, %v7604
    %v7613 = vpack.c.bf16 %v7605, %v7605
    %v7614 = vpack.c.bf16 %v7606, %v7606
    %v7619 = vunpack.c.l.b16 %v7607
    %v7620 = vunpack.c.l.b16 %v7608
    %v7621 = vunpack.c.l.b16 %v7609
    %v7622 = vunpack.c.l.b16 %v7610
    %v7623 = vpack.c.b16 %v7620, %v7619
    %v7624 = vpack.c.b16 %v7622, %v7621
    %7625 = vrot.lane.b32.xlu0 %v7361, 112
    %v7626 = vpop.permute.xlu0 %7625
    %7627 = vrot.lane.b32.xlu0 %v7362, 112
    %v7628 = vpop.permute.xlu0 %7627
    %v7632 = vsel %vm666, %v7623, 0
    %v7635 = vsel %vm666, %v7624, 0
    %7637 = vmatpush.bf16.msra.mxu0 0
    %7638 = vmatpush.bf16.msra.mxu0 0
    %7639 = vmatpush.bf16.msra.mxu0 0
    %7640 = vmatpush.bf16.msra.mxu0 0
    %7641 = vmatpush.bf16.msra.mxu0 0
    %7642 = vmatpush.bf16.msra.mxu0 0
    %7643 = vmatpush.bf16.msra.mxu0 %v7628
    %7644 = vmatpush.bf16.msra.mxu0 %v7626
    %7645 = vmatmul.bf16.gmra.mxu0 %v7632
    %v7646 = vpop.f32.mrf.mxu0
    %v7647 = vadd.f32 0.0, %v7646
    %v7648 = vpop.f32.mrf.mxu0
    %v7649 = vadd.f32 0.0, %v7648
    %7650 = vmatmul.bf16.gmra.mxu0 %v7635
    %v7651 = vpop.f32.mrf.mxu0
    %v7652 = vadd.f32 0.0, %v7651
    %v7653 = vpop.f32.mrf.mxu0
    %v7654 = vadd.f32 0.0, %v7653
    %7655 = vdwg.mxu0
    %v7660 = vunpack.c.l.b16 %v7611
    %v7661 = vunpack.c.l.b16 %v7612
    %v7662 = vunpack.c.l.b16 %v7613
    %v7663 = vunpack.c.l.b16 %v7614
    %v7664 = vpack.c.b16 %v7661, %v7660
    %v7665 = vpack.c.b16 %v7663, %v7662
    %7666 = vrot.lane.b32.xlu0 %v7408, 112
    %v7667 = vpop.permute.xlu0 %7666
    %7668 = vrot.lane.b32.xlu0 %v7409, 112
    %v7669 = vpop.permute.xlu0 %7668
    %v7673 = vsel %vm666, %v7664, 0
    %v7676 = vsel %vm666, %v7665, 0
    %7678 = vmatpush.bf16.msra.mxu0 0
    %7679 = vmatpush.bf16.msra.mxu0 0
    %7680 = vmatpush.bf16.msra.mxu0 0
    %7681 = vmatpush.bf16.msra.mxu0 0
    %7682 = vmatpush.bf16.msra.mxu0 0
    %7683 = vmatpush.bf16.msra.mxu0 0
    %7684 = vmatpush.bf16.msra.mxu0 %v7669
    %7685 = vmatpush.bf16.msra.mxu0 %v7667
    %7686 = vmatmul.bf16.gmra.mxu0 %v7673
    %v7687 = vpop.f32.mrf.mxu0
    %v7688 = vadd.f32 0.0, %v7687
    %v7689 = vpop.f32.mrf.mxu0
    %v7690 = vadd.f32 0.0, %v7689
    %7691 = vmatmul.bf16.gmra.mxu0 %v7676
    %v7692 = vpop.f32.mrf.mxu0
    %v7693 = vadd.f32 0.0, %v7692
    %v7694 = vpop.f32.mrf.mxu0
    %v7695 = vadd.f32 0.0, %v7694
    %7696 = vdwg.mxu0
    %v7697 = vpack.c.bf16 %v7649, %v7647
    %v7698 = vpack.c.bf16 %v7654, %v7652
    %v7699 = vpack.c.bf16 %v7690, %v7688
    %v7700 = vpack.c.bf16 %v7695, %v7693
    %v7703 = vunpack.c.l.b16 %v7151
    %v7704 = vunpack.c.l.b16 %v7152
    %v7705 = vpack.c.b16 %v7704, %v7703
    %v7708 = vsel %vm589, %v7697, 0
    %v7711 = vsel %vm589, %v7698, 0
    %v7714 = vsel %vm589, %v7699, 0
    %v7717 = vsel %vm589, %v7700, 0
    %7719 = vmatpush.bf16.msra.mxu0 0
    %7720 = vmatpush.bf16.msra.mxu0 0
    %7721 = vmatpush.bf16.msra.mxu0 0
    %7722 = vmatpush.bf16.msra.mxu0 0
    %7723 = vmatpush.bf16.msra.mxu0 0
    %7724 = vmatpush.bf16.msra.mxu0 0
    %7725 = vmatpush.bf16.msra.mxu0 0
    %7726 = vmatpush.bf16.msra.mxu0 %v7705
    %7727 = vmatmul.bf16.gmra.mxu0 %v7708
    %v7728 = vpop.f32.mrf.mxu0
    %v7729 = vadd.f32 0.0, %v7728
    %v7730 = vpop.f32.mrf.mxu0
    %v7731 = vadd.f32 0.0, %v7730
    %7732 = vmatmul.bf16.gmra.mxu0 %v7711
    %v7733 = vpop.f32.mrf.mxu0
    %v7734 = vadd.f32 0.0, %v7733
    %v7735 = vpop.f32.mrf.mxu0
    %v7736 = vadd.f32 0.0, %v7735
    %7737 = vmatmul.bf16.gmra.mxu0 %v7714
    %v7738 = vpop.f32.mrf.mxu0
    %v7739 = vadd.f32 0.0, %v7738
    %v7740 = vpop.f32.mrf.mxu0
    %v7741 = vadd.f32 0.0, %v7740
    %7742 = vmatmul.bf16.gmra.mxu0 %v7717
    %v7743 = vpop.f32.mrf.mxu0
    %v7744 = vadd.f32 0.0, %v7743
    %v7745 = vpop.f32.mrf.mxu0
    %v7746 = vadd.f32 0.0, %v7745
    %7747 = vdwg.mxu0
    %v7750 = vunpack.c.l.b16 %v7149
    %v7751 = vunpack.c.l.b16 %v7150
    %v7752 = vpack.c.b16 %v7751, %v7750
    %v7755 = vsel %vm589, %v7437, 0
    %v7758 = vsel %vm589, %v7438, 0
    %v7761 = vsel %vm589, %v7439, 0
    %v7764 = vsel %vm589, %v7440, 0
    %7766 = vmatpush.bf16.msra.mxu0 0
    %7767 = vmatpush.bf16.msra.mxu0 0
    %7768 = vmatpush.bf16.msra.mxu0 0
    %7769 = vmatpush.bf16.msra.mxu0 0
    %7770 = vmatpush.bf16.msra.mxu0 0
    %7771 = vmatpush.bf16.msra.mxu0 0
    %7772 = vmatpush.bf16.msra.mxu0 0
    %7773 = vmatpush.bf16.msra.mxu0 %v7752
    %7774 = vmatmul.bf16.gmra.mxu0 %v7755
    %v7775 = vpop.f32.mrf.mxu0
    %v7776 = vadd.f32 %v7729, %v7775
    %v7777 = vpop.f32.mrf.mxu0
    %v7778 = vadd.f32 %v7731, %v7777
    %7779 = vmatmul.bf16.gmra.mxu0 %v7758
    %v7780 = vpop.f32.mrf.mxu0
    %v7781 = vadd.f32 %v7734, %v7780
    %v7782 = vpop.f32.mrf.mxu0
    %v7783 = vadd.f32 %v7736, %v7782
    %7784 = vmatmul.bf16.gmra.mxu0 %v7761
    %v7785 = vpop.f32.mrf.mxu0
    %v7786 = vadd.f32 %v7739, %v7785
    %v7787 = vpop.f32.mrf.mxu0
    %v7788 = vadd.f32 %v7741, %v7787
    %7789 = vmatmul.bf16.gmra.mxu0 %v7764
    %v7790 = vpop.f32.mrf.mxu0
    %v7791 = vadd.f32 %v7744, %v7790
    %v7792 = vpop.f32.mrf.mxu0
    %v7793 = vadd.f32 %v7746, %v7792
    %7794 = vdwg.mxu0
    %7795 = vrot.lane.b32.xlu0 %v7165, 96
    %v7796 = vpop.permute.xlu0 %7795
    %7797 = vrot.lane.b32.xlu0 %v7166, 96
    %v7798 = vpop.permute.xlu0 %7797
    %7799 = vrot.lane.b32.xlu0 %v7165, 32
    %v7800 = vpop.permute.xlu0 %7799
    %7801 = vrot.lane.b32.xlu0 %v7166, 32
    %v7802 = vpop.permute.xlu0 %7801
    %v7804 = vsel %vm589, %v7796, 0
    %v7807 = vsel %vm589, %v7798, 0
    %v7810 = vsel %vm589, %v7800, 0
    %v7813 = vsel %vm589, %v7802, 0
    %7815 = vmatpush.bf16.xpose.msra.mxu0 0
    %7816 = vmatpush.bf16.xpose.msra.mxu0 0
    %7817 = vmatpush.bf16.xpose.msra.mxu0 0
    %7818 = vmatpush.bf16.xpose.msra.mxu0 0
    %7819 = vmatpush.bf16.xpose.msra.mxu0 0
    %7820 = vmatpush.bf16.xpose.msra.mxu0 0
    %7821 = vmatpush.bf16.xpose.msra.mxu0 %v7813
    %7822 = vmatpush.bf16.xpose.msra.mxu0 %v7810
    %7823 = vmatmul.bf16.gmra.mxu0 %v7804
    %v7824 = vpop.f32.mrf.mxu0
    %v7825 = vadd.f32 %v217, %v7824
    %v7826 = vpop.f32.mrf.mxu0
    %v7827 = vadd.f32 %v218, %v7826
    %7828 = vmatmul.bf16.gmra.mxu0 %v7807
    %v7829 = vpop.f32.mrf.mxu0
    %v7830 = vadd.f32 %v219, %v7829
    %v7831 = vpop.f32.mrf.mxu0
    %v7832 = vadd.f32 %v220, %v7831
    %7833 = vdwg.mxu0
    %7834 = vrot.lane.b32.xlu0 %v7210, 96
    %v7835 = vpop.permute.xlu0 %7834
    %7836 = vrot.lane.b32.xlu0 %v7211, 96
    %v7837 = vpop.permute.xlu0 %7836
    %7838 = vrot.lane.b32.xlu0 %v7210, 32
    %v7839 = vpop.permute.xlu0 %7838
    %7840 = vrot.lane.b32.xlu0 %v7211, 32
    %v7841 = vpop.permute.xlu0 %7840
    %v7843 = vsel %vm589, %v7835, 0
    %v7846 = vsel %vm589, %v7837, 0
    %v7849 = vsel %vm589, %v7839, 0
    %v7852 = vsel %vm589, %v7841, 0
    %7854 = vmatpush.bf16.xpose.msra.mxu0 0
    %7855 = vmatpush.bf16.xpose.msra.mxu0 0
    %7856 = vmatpush.bf16.xpose.msra.mxu0 0
    %7857 = vmatpush.bf16.xpose.msra.mxu0 0
    %7858 = vmatpush.bf16.xpose.msra.mxu0 0
    %7859 = vmatpush.bf16.xpose.msra.mxu0 0
    %7860 = vmatpush.bf16.xpose.msra.mxu0 %v7852
    %7861 = vmatpush.bf16.xpose.msra.mxu0 %v7849
    %7862 = vmatmul.bf16.gmra.mxu0 %v7843
    %v7863 = vpop.f32.mrf.mxu0
    %v7864 = vadd.f32 %v217, %v7863
    %v7865 = vpop.f32.mrf.mxu0
    %v7866 = vadd.f32 %v218, %v7865
    %7867 = vmatmul.bf16.gmra.mxu0 %v7846
    %v7868 = vpop.f32.mrf.mxu0
    %v7869 = vadd.f32 %v219, %v7868
    %v7870 = vpop.f32.mrf.mxu0
    %v7871 = vadd.f32 %v220, %v7870
    %7872 = vdwg.mxu0
    %v7873 = vsel %vm666, %v7825, -inf
    %7874 = vmax.xlane.f32.xlu0 %v7873
    %v7875 = vpop.xlane.xlu0 %7874
    %v7876 = vsel %vm666, %v7827, -inf
    %7877 = vmax.xlane.f32.xlu0 %v7876
    %v7878 = vpop.xlane.xlu0 %7877
    %v7879 = vsel %vm666, %v7830, -inf
    %7880 = vmax.xlane.f32.xlu0 %v7879
    %v7881 = vpop.xlane.xlu0 %7880
    %v7882 = vsel %vm666, %v7832, -inf
    %7883 = vmax.xlane.f32.xlu0 %v7882
    %v7884 = vpop.xlane.xlu0 %7883
    %v7885 = vsel %vm666, %v7864, -inf
    %7886 = vmax.xlane.f32.xlu0 %v7885
    %v7887 = vpop.xlane.xlu0 %7886
    %v7888 = vsel %vm666, %v7866, -inf
    %7889 = vmax.xlane.f32.xlu0 %v7888
    %v7890 = vpop.xlane.xlu0 %7889
    %v7891 = vsel %vm666, %v7869, -inf
    %7892 = vmax.xlane.f32.xlu0 %v7891
    %v7893 = vpop.xlane.xlu0 %7892
    %v7894 = vsel %vm666, %v7871, -inf
    %7895 = vmax.xlane.f32.xlu0 %v7894
    %v7896 = vpop.xlane.xlu0 %7895
    %v7897 = vsub.f32 %v7825, %v7875
    %v7898 = vsub.f32 %v7827, %v7878
    %v7899 = vsub.f32 %v7830, %v7881
    %v7900 = vsub.f32 %v7832, %v7884
    %v7901 = vsub.f32 %v7864, %v7887
    %v7902 = vsub.f32 %v7866, %v7890
    %v7903 = vsub.f32 %v7869, %v7893
    %v7904 = vsub.f32 %v7871, %v7896
    %v7905 = vmul.f32 %v7897, 1.442695
    %v7906 = vpow.pop %v7905
    %v7907 = vmul.f32 %v7898, 1.442695
    %v7908 = vpow.pop %v7907
    %v7909 = vmul.f32 %v7899, 1.442695
    %v7910 = vpow.pop %v7909
    %v7911 = vmul.f32 %v7900, 1.442695
    %v7912 = vpow.pop %v7911
    %v7913 = vmul.f32 %v7901, 1.442695
    %v7914 = vpow.pop %v7913
    %v7915 = vmul.f32 %v7902, 1.442695
    %v7916 = vpow.pop %v7915
    %v7917 = vmul.f32 %v7903, 1.442695
    %v7918 = vpow.pop %v7917
    %v7919 = vmul.f32 %v7904, 1.442695
    %v7920 = vpow.pop %v7919
    %v7921 = vsel %vm666, %v7906, 0.0
    %7922 = vadd.xlane.f32.xlu0 %v7921
    %v7923 = vpop.xlane.xlu0 %7922
    %v7924 = vsel %vm666, %v7908, 0.0
    %7925 = vadd.xlane.f32.xlu0 %v7924
    %v7926 = vpop.xlane.xlu0 %7925
    %v7927 = vsel %vm666, %v7910, 0.0
    %7928 = vadd.xlane.f32.xlu0 %v7927
    %v7929 = vpop.xlane.xlu0 %7928
    %v7930 = vsel %vm666, %v7912, 0.0
    %7931 = vadd.xlane.f32.xlu0 %v7930
    %v7932 = vpop.xlane.xlu0 %7931
    %v7933 = vsel %vm666, %v7914, 0.0
    %7934 = vadd.xlane.f32.xlu0 %v7933
    %v7935 = vpop.xlane.xlu0 %7934
    %v7936 = vsel %vm666, %v7916, 0.0
    %7937 = vadd.xlane.f32.xlu0 %v7936
    %v7938 = vpop.xlane.xlu0 %7937
    %v7939 = vsel %vm666, %v7918, 0.0
    %7940 = vadd.xlane.f32.xlu0 %v7939
    %v7941 = vpop.xlane.xlu0 %7940
    %v7942 = vsel %vm666, %v7920, 0.0
    %7943 = vadd.xlane.f32.xlu0 %v7942
    %v7944 = vpop.xlane.xlu0 %7943
    %v7945 = vrcp.pop %v7923
    %v7946 = vrcp.pop %v7926
    %v7947 = vrcp.pop %v7929
    %v7948 = vrcp.pop %v7932
    %v7949 = vrcp.pop %v7935
    %v7950 = vrcp.pop %v7938
    %v7951 = vrcp.pop %v7941
    %v7952 = vrcp.pop %v7944
    %v7953 = vmul.f32 %v7906, %v7945
    %v7954 = vmul.f32 %v7908, %v7946
    %v7955 = vmul.f32 %v7910, %v7947
    %v7956 = vmul.f32 %v7912, %v7948
    %v7957 = vmul.f32 %v7914, %v7949
    %v7958 = vmul.f32 %v7916, %v7950
    %v7959 = vmul.f32 %v7918, %v7951
    %v7960 = vmul.f32 %v7920, %v7952
    %v7961 = vpack.c.bf16 %v7953, %v7953
    %v7962 = vpack.c.bf16 %v7954, %v7954
    %v7963 = vpack.c.bf16 %v7955, %v7955
    %v7964 = vpack.c.bf16 %v7956, %v7956
    %v7965 = vpack.c.bf16 %v7957, %v7957
    %v7966 = vpack.c.bf16 %v7958, %v7958
    %v7967 = vpack.c.bf16 %v7959, %v7959
    %v7968 = vpack.c.bf16 %v7960, %v7960
    %v7973 = vunpack.c.l.b16 %v7961
    %v7974 = vunpack.c.l.b16 %v7962
    %v7975 = vunpack.c.l.b16 %v7963
    %v7976 = vunpack.c.l.b16 %v7964
    %v7977 = vpack.c.b16 %v7974, %v7973
    %v7978 = vpack.c.b16 %v7976, %v7975
    %7979 = vrot.lane.b32.xlu0 %v7361, 96
    %v7980 = vpop.permute.xlu0 %7979
    %7981 = vrot.lane.b32.xlu0 %v7362, 96
    %v7982 = vpop.permute.xlu0 %7981
    %v7986 = vsel %vm666, %v7977, 0
    %v7989 = vsel %vm666, %v7978, 0
    %7991 = vmatpush.bf16.msra.mxu0 0
    %7992 = vmatpush.bf16.msra.mxu0 0
    %7993 = vmatpush.bf16.msra.mxu0 0
    %7994 = vmatpush.bf16.msra.mxu0 0
    %7995 = vmatpush.bf16.msra.mxu0 0
    %7996 = vmatpush.bf16.msra.mxu0 0
    %7997 = vmatpush.bf16.msra.mxu0 %v7982
    %7998 = vmatpush.bf16.msra.mxu0 %v7980
    %7999 = vmatmul.bf16.gmra.mxu0 %v7986
    %v8000 = vpop.f32.mrf.mxu0
    %v8001 = vadd.f32 0.0, %v8000
    %v8002 = vpop.f32.mrf.mxu0
    %v8003 = vadd.f32 0.0, %v8002
    %8004 = vmatmul.bf16.gmra.mxu0 %v7989
    %v8005 = vpop.f32.mrf.mxu0
    %v8006 = vadd.f32 0.0, %v8005
    %v8007 = vpop.f32.mrf.mxu0
    %v8008 = vadd.f32 0.0, %v8007
    %8009 = vdwg.mxu0
    %v8014 = vunpack.c.l.b16 %v7965
    %v8015 = vunpack.c.l.b16 %v7966
    %v8016 = vunpack.c.l.b16 %v7967
    %v8017 = vunpack.c.l.b16 %v7968
    %v8018 = vpack.c.b16 %v8015, %v8014
    %v8019 = vpack.c.b16 %v8017, %v8016
    %8020 = vrot.lane.b32.xlu0 %v7408, 96
    %v8021 = vpop.permute.xlu0 %8020
    %8022 = vrot.lane.b32.xlu0 %v7409, 96
    %v8023 = vpop.permute.xlu0 %8022
    %v8027 = vsel %vm666, %v8018, 0
    %v8030 = vsel %vm666, %v8019, 0
    %8032 = vmatpush.bf16.msra.mxu0 0
    %8033 = vmatpush.bf16.msra.mxu0 0
    %8034 = vmatpush.bf16.msra.mxu0 0
    %8035 = vmatpush.bf16.msra.mxu0 0
    %8036 = vmatpush.bf16.msra.mxu0 0
    %8037 = vmatpush.bf16.msra.mxu0 0
    %8038 = vmatpush.bf16.msra.mxu0 %v8023
    %8039 = vmatpush.bf16.msra.mxu0 %v8021
    %8040 = vmatmul.bf16.gmra.mxu0 %v8027
    %v8041 = vpop.f32.mrf.mxu0
    %v8042 = vadd.f32 0.0, %v8041
    %v8043 = vpop.f32.mrf.mxu0
    %v8044 = vadd.f32 0.0, %v8043
    %8045 = vmatmul.bf16.gmra.mxu0 %v8030
    %v8046 = vpop.f32.mrf.mxu0
    %v8047 = vadd.f32 0.0, %v8046
    %v8048 = vpop.f32.mrf.mxu0
    %v8049 = vadd.f32 0.0, %v8048
    %8050 = vdwg.mxu0
    %v8051 = vpack.c.bf16 %v8003, %v8001
    %v8052 = vpack.c.bf16 %v8008, %v8006
    %v8053 = vpack.c.bf16 %v8044, %v8042
    %v8054 = vpack.c.bf16 %v8049, %v8047
    %v8057 = vunpack.c.l.b16 %v7153
    %v8058 = vunpack.c.l.b16 %v7154
    %v8059 = vpack.c.b16 %v8058, %v8057
    %v8062 = vsel %vm589, %v8051, 0
    %v8065 = vsel %vm589, %v8052, 0
    %v8068 = vsel %vm589, %v8053, 0
    %v8071 = vsel %vm589, %v8054, 0
    %8073 = vmatpush.bf16.msra.mxu0 0
    %8074 = vmatpush.bf16.msra.mxu0 0
    %8075 = vmatpush.bf16.msra.mxu0 0
    %8076 = vmatpush.bf16.msra.mxu0 0
    %8077 = vmatpush.bf16.msra.mxu0 0
    %8078 = vmatpush.bf16.msra.mxu0 0
    %8079 = vmatpush.bf16.msra.mxu0 0
    %8080 = vmatpush.bf16.msra.mxu0 %v8059
    %8081 = vmatmul.bf16.gmra.mxu0 %v8062
    %v8082 = vpop.f32.mrf.mxu0
    %v8083 = vadd.f32 0.0, %v8082
    %v8084 = vpop.f32.mrf.mxu0
    %v8085 = vadd.f32 0.0, %v8084
    %8086 = vmatmul.bf16.gmra.mxu0 %v8065
    %v8087 = vpop.f32.mrf.mxu0
    %v8088 = vadd.f32 0.0, %v8087
    %v8089 = vpop.f32.mrf.mxu0
    %v8090 = vadd.f32 0.0, %v8089
    %8091 = vmatmul.bf16.gmra.mxu0 %v8068
    %v8092 = vpop.f32.mrf.mxu0
    %v8093 = vadd.f32 0.0, %v8092
    %v8094 = vpop.f32.mrf.mxu0
    %v8095 = vadd.f32 0.0, %v8094
    %8096 = vmatmul.bf16.gmra.mxu0 %v8071
    %v8097 = vpop.f32.mrf.mxu0
    %v8098 = vadd.f32 0.0, %v8097
    %v8099 = vpop.f32.mrf.mxu0
    %v8100 = vadd.f32 0.0, %v8099
    %8101 = vdwg.mxu0
    %v8102 = vadd.f32 %v7776, %v8083
    %v8103 = vadd.f32 %v7778, %v8085
    %v8104 = vadd.f32 %v7781, %v8088
    %v8105 = vadd.f32 %v7783, %v8090
    %v8106 = vadd.f32 %v7786, %v8093
    %v8107 = vadd.f32 %v7788, %v8095
    %v8108 = vadd.f32 %v7791, %v8098
    %v8109 = vadd.f32 %v7793, %v8100
    %8110 = vrot.lane.b32.xlu0 %v7165, 80
    %v8111 = vpop.permute.xlu0 %8110
    %8112 = vrot.lane.b32.xlu0 %v7166, 80
    %v8113 = vpop.permute.xlu0 %8112
    %8114 = vrot.lane.b32.xlu0 %v7165, 16
    %v8115 = vpop.permute.xlu0 %8114
    %8116 = vrot.lane.b32.xlu0 %v7166, 16
    %v8117 = vpop.permute.xlu0 %8116
    %v8119 = vsel %vm589, %v8111, 0
    %v8122 = vsel %vm589, %v8113, 0
    %v8125 = vsel %vm589, %v8115, 0
    %v8128 = vsel %vm589, %v8117, 0
    %8130 = vmatpush.bf16.xpose.msra.mxu0 0
    %8131 = vmatpush.bf16.xpose.msra.mxu0 0
    %8132 = vmatpush.bf16.xpose.msra.mxu0 0
    %8133 = vmatpush.bf16.xpose.msra.mxu0 0
    %8134 = vmatpush.bf16.xpose.msra.mxu0 0
    %8135 = vmatpush.bf16.xpose.msra.mxu0 0
    %8136 = vmatpush.bf16.xpose.msra.mxu0 %v8128
    %8137 = vmatpush.bf16.xpose.msra.mxu0 %v8125
    %8138 = vmatmul.bf16.gmra.mxu0 %v8119
    %v8139 = vpop.f32.mrf.mxu0
    %v8140 = vadd.f32 %v217, %v8139
    %v8141 = vpop.f32.mrf.mxu0
    %v8142 = vadd.f32 %v218, %v8141
    %8143 = vmatmul.bf16.gmra.mxu0 %v8122
    %v8144 = vpop.f32.mrf.mxu0
    %v8145 = vadd.f32 %v219, %v8144
    %v8146 = vpop.f32.mrf.mxu0
    %v8147 = vadd.f32 %v220, %v8146
    %8148 = vdwg.mxu0
    %8149 = vrot.lane.b32.xlu0 %v7210, 80
    %v8150 = vpop.permute.xlu0 %8149
    %8151 = vrot.lane.b32.xlu0 %v7211, 80
    %v8152 = vpop.permute.xlu0 %8151
    %8153 = vrot.lane.b32.xlu0 %v7210, 16
    %v8154 = vpop.permute.xlu0 %8153
    %8155 = vrot.lane.b32.xlu0 %v7211, 16
    %v8156 = vpop.permute.xlu0 %8155
    %v8158 = vsel %vm589, %v8150, 0
    %v8161 = vsel %vm589, %v8152, 0
    %v8164 = vsel %vm589, %v8154, 0
    %v8167 = vsel %vm589, %v8156, 0
    %8169 = vmatpush.bf16.xpose.msra.mxu0 0
    %8170 = vmatpush.bf16.xpose.msra.mxu0 0
    %8171 = vmatpush.bf16.xpose.msra.mxu0 0
    %8172 = vmatpush.bf16.xpose.msra.mxu0 0
    %8173 = vmatpush.bf16.xpose.msra.mxu0 0
    %8174 = vmatpush.bf16.xpose.msra.mxu0 0
    %8175 = vmatpush.bf16.xpose.msra.mxu0 %v8167
    %8176 = vmatpush.bf16.xpose.msra.mxu0 %v8164
    %8177 = vmatmul.bf16.gmra.mxu0 %v8158
    %v8178 = vpop.f32.mrf.mxu0
    %v8179 = vadd.f32 %v217, %v8178
    %v8180 = vpop.f32.mrf.mxu0
    %v8181 = vadd.f32 %v218, %v8180
    %8182 = vmatmul.bf16.gmra.mxu0 %v8161
    %v8183 = vpop.f32.mrf.mxu0
    %v8184 = vadd.f32 %v219, %v8183
    %v8185 = vpop.f32.mrf.mxu0
    %v8186 = vadd.f32 %v220, %v8185
    %8187 = vdwg.mxu0
    %v8188 = vsel %vm666, %v8140, -inf
    %8189 = vmax.xlane.f32.xlu0 %v8188
    %v8190 = vpop.xlane.xlu0 %8189
    %v8191 = vsel %vm666, %v8142, -inf
    %8192 = vmax.xlane.f32.xlu0 %v8191
    %v8193 = vpop.xlane.xlu0 %8192
    %v8194 = vsel %vm666, %v8145, -inf
    %8195 = vmax.xlane.f32.xlu0 %v8194
    %v8196 = vpop.xlane.xlu0 %8195
    %v8197 = vsel %vm666, %v8147, -inf
    %8198 = vmax.xlane.f32.xlu0 %v8197
    %v8199 = vpop.xlane.xlu0 %8198
    %v8200 = vsel %vm666, %v8179, -inf
    %8201 = vmax.xlane.f32.xlu0 %v8200
    %v8202 = vpop.xlane.xlu0 %8201
    %v8203 = vsel %vm666, %v8181, -inf
    %8204 = vmax.xlane.f32.xlu0 %v8203
    %v8205 = vpop.xlane.xlu0 %8204
    %v8206 = vsel %vm666, %v8184, -inf
    %8207 = vmax.xlane.f32.xlu0 %v8206
    %v8208 = vpop.xlane.xlu0 %8207
    %v8209 = vsel %vm666, %v8186, -inf
    %8210 = vmax.xlane.f32.xlu0 %v8209
    %v8211 = vpop.xlane.xlu0 %8210
    %v8212 = vsub.f32 %v8140, %v8190
    %v8213 = vsub.f32 %v8142, %v8193
    %v8214 = vsub.f32 %v8145, %v8196
    %v8215 = vsub.f32 %v8147, %v8199
    %v8216 = vsub.f32 %v8179, %v8202
    %v8217 = vsub.f32 %v8181, %v8205
    %v8218 = vsub.f32 %v8184, %v8208
    %v8219 = vsub.f32 %v8186, %v8211
    %v8220 = vmul.f32 %v8212, 1.442695
    %v8221 = vpow.pop %v8220
    %v8222 = vmul.f32 %v8213, 1.442695
    %v8223 = vpow.pop %v8222
    %v8224 = vmul.f32 %v8214, 1.442695
    %v8225 = vpow.pop %v8224
    %v8226 = vmul.f32 %v8215, 1.442695
    %v8227 = vpow.pop %v8226
    %v8228 = vmul.f32 %v8216, 1.442695
    %v8229 = vpow.pop %v8228
    %v8230 = vmul.f32 %v8217, 1.442695
    %v8231 = vpow.pop %v8230
    %v8232 = vmul.f32 %v8218, 1.442695
    %v8233 = vpow.pop %v8232
    %v8234 = vmul.f32 %v8219, 1.442695
    %v8235 = vpow.pop %v8234
    %v8236 = vsel %vm666, %v8221, 0.0
    %8237 = vadd.xlane.f32.xlu0 %v8236
    %v8238 = vpop.xlane.xlu0 %8237
    %v8239 = vsel %vm666, %v8223, 0.0
    %8240 = vadd.xlane.f32.xlu0 %v8239
    %v8241 = vpop.xlane.xlu0 %8240
    %v8242 = vsel %vm666, %v8225, 0.0
    %8243 = vadd.xlane.f32.xlu0 %v8242
    %v8244 = vpop.xlane.xlu0 %8243
    %v8245 = vsel %vm666, %v8227, 0.0
    %8246 = vadd.xlane.f32.xlu0 %v8245
    %v8247 = vpop.xlane.xlu0 %8246
    %v8248 = vsel %vm666, %v8229, 0.0
    %8249 = vadd.xlane.f32.xlu0 %v8248
    %v8250 = vpop.xlane.xlu0 %8249
    %v8251 = vsel %vm666, %v8231, 0.0
    %8252 = vadd.xlane.f32.xlu0 %v8251
    %v8253 = vpop.xlane.xlu0 %8252
    %v8254 = vsel %vm666, %v8233, 0.0
    %8255 = vadd.xlane.f32.xlu0 %v8254
    %v8256 = vpop.xlane.xlu0 %8255
    %v8257 = vsel %vm666, %v8235, 0.0
    %8258 = vadd.xlane.f32.xlu0 %v8257
    %v8259 = vpop.xlane.xlu0 %8258
    %v8260 = vrcp.pop %v8238
    %v8261 = vrcp.pop %v8241
    %v8262 = vrcp.pop %v8244
    %v8263 = vrcp.pop %v8247
    %v8264 = vrcp.pop %v8250
    %v8265 = vrcp.pop %v8253
    %v8266 = vrcp.pop %v8256
    %v8267 = vrcp.pop %v8259
    %v8268 = vmul.f32 %v8221, %v8260
    %v8269 = vmul.f32 %v8223, %v8261
    %v8270 = vmul.f32 %v8225, %v8262
    %v8271 = vmul.f32 %v8227, %v8263
    %v8272 = vmul.f32 %v8229, %v8264
    %v8273 = vmul.f32 %v8231, %v8265
    %v8274 = vmul.f32 %v8233, %v8266
    %v8275 = vmul.f32 %v8235, %v8267
    %v8276 = vpack.c.bf16 %v8268, %v8268
    %v8277 = vpack.c.bf16 %v8269, %v8269
    %v8278 = vpack.c.bf16 %v8270, %v8270
    %v8279 = vpack.c.bf16 %v8271, %v8271
    %v8280 = vpack.c.bf16 %v8272, %v8272
    %v8281 = vpack.c.bf16 %v8273, %v8273
    %v8282 = vpack.c.bf16 %v8274, %v8274
    %v8283 = vpack.c.bf16 %v8275, %v8275
    %v8288 = vunpack.c.l.b16 %v8276
    %v8289 = vunpack.c.l.b16 %v8277
    %v8290 = vunpack.c.l.b16 %v8278
    %v8291 = vunpack.c.l.b16 %v8279
    %v8292 = vpack.c.b16 %v8289, %v8288
    %v8293 = vpack.c.b16 %v8291, %v8290
    %8294 = vrot.lane.b32.xlu0 %v7361, 80
    %v8295 = vpop.permute.xlu0 %8294
    %8296 = vrot.lane.b32.xlu0 %v7362, 80
    %v8297 = vpop.permute.xlu0 %8296
    %v8301 = vsel %vm666, %v8292, 0
    %v8304 = vsel %vm666, %v8293, 0
    %8306 = vmatpush.bf16.msra.mxu0 0
    %8307 = vmatpush.bf16.msra.mxu0 0
    %8308 = vmatpush.bf16.msra.mxu0 0
    %8309 = vmatpush.bf16.msra.mxu0 0
    %8310 = vmatpush.bf16.msra.mxu0 0
    %8311 = vmatpush.bf16.msra.mxu0 0
    %8312 = vmatpush.bf16.msra.mxu0 %v8297
    %8313 = vmatpush.bf16.msra.mxu0 %v8295
    %8314 = vmatmul.bf16.gmra.mxu0 %v8301
    %v8315 = vpop.f32.mrf.mxu0
    %v8316 = vadd.f32 0.0, %v8315
    %v8317 = vpop.f32.mrf.mxu0
    %v8318 = vadd.f32 0.0, %v8317
    %8319 = vmatmul.bf16.gmra.mxu0 %v8304
    %v8320 = vpop.f32.mrf.mxu0
    %v8321 = vadd.f32 0.0, %v8320
    %v8322 = vpop.f32.mrf.mxu0
    %v8323 = vadd.f32 0.0, %v8322
    %8324 = vdwg.mxu0
    %v8329 = vunpack.c.l.b16 %v8280
    %v8330 = vunpack.c.l.b16 %v8281
    %v8331 = vunpack.c.l.b16 %v8282
    %v8332 = vunpack.c.l.b16 %v8283
    %v8333 = vpack.c.b16 %v8330, %v8329
    %v8334 = vpack.c.b16 %v8332, %v8331
    %8335 = vrot.lane.b32.xlu0 %v7408, 80
    %v8336 = vpop.permute.xlu0 %8335
    %8337 = vrot.lane.b32.xlu0 %v7409, 80
    %v8338 = vpop.permute.xlu0 %8337
    %v8342 = vsel %vm666, %v8333, 0
    %v8345 = vsel %vm666, %v8334, 0
    %8347 = vmatpush.bf16.msra.mxu0 0
    %8348 = vmatpush.bf16.msra.mxu0 0
    %8349 = vmatpush.bf16.msra.mxu0 0
    %8350 = vmatpush.bf16.msra.mxu0 0
    %8351 = vmatpush.bf16.msra.mxu0 0
    %8352 = vmatpush.bf16.msra.mxu0 0
    %8353 = vmatpush.bf16.msra.mxu0 %v8338
    %8354 = vmatpush.bf16.msra.mxu0 %v8336
    %8355 = vmatmul.bf16.gmra.mxu0 %v8342
    %v8356 = vpop.f32.mrf.mxu0
    %v8357 = vadd.f32 0.0, %v8356
    %v8358 = vpop.f32.mrf.mxu0
    %v8359 = vadd.f32 0.0, %v8358
    %8360 = vmatmul.bf16.gmra.mxu0 %v8345
    %v8361 = vpop.f32.mrf.mxu0
    %v8362 = vadd.f32 0.0, %v8361
    %v8363 = vpop.f32.mrf.mxu0
    %v8364 = vadd.f32 0.0, %v8363
    %8365 = vdwg.mxu0
    %v8366 = vpack.c.bf16 %v8318, %v8316
    %v8367 = vpack.c.bf16 %v8323, %v8321
    %v8368 = vpack.c.bf16 %v8359, %v8357
    %v8369 = vpack.c.bf16 %v8364, %v8362
    %v8372 = vunpack.c.l.b16 %v7155
    %v8373 = vunpack.c.l.b16 %v7156
    %v8374 = vpack.c.b16 %v8373, %v8372
    %v8377 = vsel %vm589, %v8366, 0
    %v8380 = vsel %vm589, %v8367, 0
    %v8383 = vsel %vm589, %v8368, 0
    %v8386 = vsel %vm589, %v8369, 0
    %8388 = vmatpush.bf16.msra.mxu0 0
    %8389 = vmatpush.bf16.msra.mxu0 0
    %8390 = vmatpush.bf16.msra.mxu0 0
    %8391 = vmatpush.bf16.msra.mxu0 0
    %8392 = vmatpush.bf16.msra.mxu0 0
    %8393 = vmatpush.bf16.msra.mxu0 0
    %8394 = vmatpush.bf16.msra.mxu0 0
    %8395 = vmatpush.bf16.msra.mxu0 %v8374
    %8396 = vmatmul.bf16.gmra.mxu0 %v8377
    %v8397 = vpop.f32.mrf.mxu0
    %v8398 = vadd.f32 0.0, %v8397
    %v8399 = vpop.f32.mrf.mxu0
    %v8400 = vadd.f32 0.0, %v8399
    %8401 = vmatmul.bf16.gmra.mxu0 %v8380
    %v8402 = vpop.f32.mrf.mxu0
    %v8403 = vadd.f32 0.0, %v8402
    %v8404 = vpop.f32.mrf.mxu0
    %v8405 = vadd.f32 0.0, %v8404
    %8406 = vmatmul.bf16.gmra.mxu0 %v8383
    %v8407 = vpop.f32.mrf.mxu0
    %v8408 = vadd.f32 0.0, %v8407
    %v8409 = vpop.f32.mrf.mxu0
    %v8410 = vadd.f32 0.0, %v8409
    %8411 = vmatmul.bf16.gmra.mxu0 %v8386
    %v8412 = vpop.f32.mrf.mxu0
    %v8413 = vadd.f32 0.0, %v8412
    %v8414 = vpop.f32.mrf.mxu0
    %v8415 = vadd.f32 0.0, %v8414
    %8416 = vdwg.mxu0
    %v8417 = vadd.f32 %v8102, %v8398
    %v8418 = vadd.f32 %v8103, %v8400
    %v8419 = vadd.f32 %v8104, %v8403
    %v8420 = vadd.f32 %v8105, %v8405
    %v8421 = vadd.f32 %v8106, %v8408
    %v8422 = vadd.f32 %v8107, %v8410
    %v8423 = vadd.f32 %v8108, %v8413
    %v8424 = vadd.f32 %v8109, %v8415
    %v8425 = vadd.f32 %v6799, %v8417
    %v8426 = vadd.f32 %v6800, %v8418
    %v8427 = vadd.f32 %v6801, %v8419
    %v8428 = vadd.f32 %v6802, %v8420
    %v8429 = vadd.f32 %v6803, %v8421
    %v8430 = vadd.f32 %v6804, %v8422
    %v8431 = vadd.f32 %v6805, %v8423
    %v8432 = vadd.f32 %v6806, %v8424
    %s8433 = scalar_lea.vmem %s7, 3
    %v8434 = vld [vmem:[%s8433] sm:$0x1]
    %v8436 = vperm.slane %v8434, 0
    %v8438 = vadd.f32 %v8425, %v8436
    %v8439 = vadd.f32 %v8426, %v8436
    %v8440 = vadd.f32 %v8427, %v8436
    %v8441 = vadd.f32 %v8428, %v8436
    %v8442 = vadd.f32 %v8429, %v8436
    %v8443 = vadd.f32 %v8430, %v8436
    %v8444 = vadd.f32 %v8431, %v8436
    %v8445 = vadd.f32 %v8432, %v8436
    %s8446 = scalar_lea.vmem %s3, 7
    %v8447 = vld [vmem:[%s8446] sm:$0x1]
    %s8448 = scalar_lea.vmem %s4, 7
    %v8449 = vld [vmem:[%s8448] sm:$0x1]
    %v8450 = vsel %vm223, %v8438, 0.0
    %8451 = vadd.xlane.f32.xlu0 %v8450
    %v8452 = vpop.xlane.xlu0 %8451
    %v8453 = vsel %vm223, %v8439, 0.0
    %8454 = vadd.xlane.f32.xlu0 %v8453
    %v8455 = vpop.xlane.xlu0 %8454
    %v8456 = vsel %vm223, %v8440, 0.0
    %8457 = vadd.xlane.f32.xlu0 %v8456
    %v8458 = vpop.xlane.xlu0 %8457
    %v8459 = vsel %vm223, %v8441, 0.0
    %8460 = vadd.xlane.f32.xlu0 %v8459
    %v8461 = vpop.xlane.xlu0 %8460
    %v8462 = vsel %vm223, %v8442, 0.0
    %8463 = vadd.xlane.f32.xlu0 %v8462
    %v8464 = vpop.xlane.xlu0 %8463
    %v8465 = vsel %vm223, %v8443, 0.0
    %8466 = vadd.xlane.f32.xlu0 %v8465
    %v8467 = vpop.xlane.xlu0 %8466
    %v8468 = vsel %vm223, %v8444, 0.0
    %8469 = vadd.xlane.f32.xlu0 %v8468
    %v8470 = vpop.xlane.xlu0 %8469
    %v8471 = vsel %vm223, %v8445, 0.0
    %8472 = vadd.xlane.f32.xlu0 %v8471
    %v8473 = vpop.xlane.xlu0 %8472
    %v8474 = vmul.f32 %v8452, %v254
    %v8475 = vmul.f32 %v8455, %v254
    %v8476 = vmul.f32 %v8458, %v254
    %v8477 = vmul.f32 %v8461, %v254
    %v8478 = vmul.f32 %v8464, %v254
    %v8479 = vmul.f32 %v8467, %v254
    %v8480 = vmul.f32 %v8470, %v254
    %v8481 = vmul.f32 %v8473, %v254
    %v8482 = vsub.f32 %v8438, %v8474
    %v8483 = vsub.f32 %v8439, %v8475
    %v8484 = vsub.f32 %v8440, %v8476
    %v8485 = vsub.f32 %v8441, %v8477
    %v8486 = vsub.f32 %v8442, %v8478
    %v8487 = vsub.f32 %v8443, %v8479
    %v8488 = vsub.f32 %v8444, %v8480
    %v8489 = vsub.f32 %v8445, %v8481
    %v8490 = vmul.f32 %v8482, %v8482
    %v8491 = vmul.f32 %v8483, %v8483
    %v8492 = vmul.f32 %v8484, %v8484
    %v8493 = vmul.f32 %v8485, %v8485
    %v8494 = vmul.f32 %v8486, %v8486
    %v8495 = vmul.f32 %v8487, %v8487
    %v8496 = vmul.f32 %v8488, %v8488
    %v8497 = vmul.f32 %v8489, %v8489
    %v8498 = vsel %vm223, %v8490, 0.0
    %8499 = vadd.xlane.f32.xlu0 %v8498
    %v8500 = vpop.xlane.xlu0 %8499
    %v8501 = vsel %vm223, %v8491, 0.0
    %8502 = vadd.xlane.f32.xlu0 %v8501
    %v8503 = vpop.xlane.xlu0 %8502
    %v8504 = vsel %vm223, %v8492, 0.0
    %8505 = vadd.xlane.f32.xlu0 %v8504
    %v8506 = vpop.xlane.xlu0 %8505
    %v8507 = vsel %vm223, %v8493, 0.0
    %8508 = vadd.xlane.f32.xlu0 %v8507
    %v8509 = vpop.xlane.xlu0 %8508
    %v8510 = vsel %vm223, %v8494, 0.0
    %8511 = vadd.xlane.f32.xlu0 %v8510
    %v8512 = vpop.xlane.xlu0 %8511
    %v8513 = vsel %vm223, %v8495, 0.0
    %8514 = vadd.xlane.f32.xlu0 %v8513
    %v8515 = vpop.xlane.xlu0 %8514
    %v8516 = vsel %vm223, %v8496, 0.0
    %8517 = vadd.xlane.f32.xlu0 %v8516
    %v8518 = vpop.xlane.xlu0 %8517
    %v8519 = vsel %vm223, %v8497, 0.0
    %8520 = vadd.xlane.f32.xlu0 %v8519
    %v8521 = vpop.xlane.xlu0 %8520
    %v8522 = vmul.f32 %v8500, %v254
    %v8523 = vmul.f32 %v8503, %v254
    %v8524 = vmul.f32 %v8506, %v254
    %v8525 = vmul.f32 %v8509, %v254
    %v8526 = vmul.f32 %v8512, %v254
    %v8527 = vmul.f32 %v8515, %v254
    %v8528 = vmul.f32 %v8518, %v254
    %v8529 = vmul.f32 %v8521, %v254
    %v8530 = vadd.f32 %v8522, 1e-05
    %v8531 = vadd.f32 %v8523, 1e-05
    %v8532 = vadd.f32 %v8524, 1e-05
    %v8533 = vadd.f32 %v8525, 1e-05
    %v8534 = vadd.f32 %v8526, 1e-05
    %v8535 = vadd.f32 %v8527, 1e-05
    %v8536 = vadd.f32 %v8528, 1e-05
    %v8537 = vadd.f32 %v8529, 1e-05
    %v8538 = vrsqrt.pop %v8530
    %v8539 = vmul.f32 %v8538, %v8530
    %v8540 = vmul.f32 %v8539, %v8538
    %v8541 = vmul.f32 0.5, %v8540
    %v8542 = vsub.f32 1.5, %v8541
    %v8543 = vmul.f32 %v8538, %v8542
    %vm8544 = vweird.f32 %v8530
    %vm8545 = vweird.f32 %v8538
    %vm8546 = vmor %vm8544, %vm8545
    %v8547 = vsel %vm8546, %v8538, %v8543
    %v8548 = vrsqrt.pop %v8531
    %v8549 = vmul.f32 %v8548, %v8531
    %v8550 = vmul.f32 %v8549, %v8548
    %v8551 = vmul.f32 0.5, %v8550
    %v8552 = vsub.f32 1.5, %v8551
    %v8553 = vmul.f32 %v8548, %v8552
    %vm8554 = vweird.f32 %v8531
    %vm8555 = vweird.f32 %v8548
    %vm8556 = vmor %vm8554, %vm8555
    %v8557 = vsel %vm8556, %v8548, %v8553
    %v8558 = vrsqrt.pop %v8532
    %v8559 = vmul.f32 %v8558, %v8532
    %v8560 = vmul.f32 %v8559, %v8558
    %v8561 = vmul.f32 0.5, %v8560
    %v8562 = vsub.f32 1.5, %v8561
    %v8563 = vmul.f32 %v8558, %v8562
    %vm8564 = vweird.f32 %v8532
    %vm8565 = vweird.f32 %v8558
    %vm8566 = vmor %vm8564, %vm8565
    %v8567 = vsel %vm8566, %v8558, %v8563
    %v8568 = vrsqrt.pop %v8533
    %v8569 = vmul.f32 %v8568, %v8533
    %v8570 = vmul.f32 %v8569, %v8568
    %v8571 = vmul.f32 0.5, %v8570
    %v8572 = vsub.f32 1.5, %v8571
    %v8573 = vmul.f32 %v8568, %v8572
    %vm8574 = vweird.f32 %v8533
    %vm8575 = vweird.f32 %v8568
    %vm8576 = vmor %vm8574, %vm8575
    %v8577 = vsel %vm8576, %v8568, %v8573
    %v8578 = vrsqrt.pop %v8534
    %v8579 = vmul.f32 %v8578, %v8534
    %v8580 = vmul.f32 %v8579, %v8578
    %v8581 = vmul.f32 0.5, %v8580
    %v8582 = vsub.f32 1.5, %v8581
    %v8583 = vmul.f32 %v8578, %v8582
    %vm8584 = vweird.f32 %v8534
    %vm8585 = vweird.f32 %v8578
    %vm8586 = vmor %vm8584, %vm8585
    %v8587 = vsel %vm8586, %v8578, %v8583
    %v8588 = vrsqrt.pop %v8535
    %v8589 = vmul.f32 %v8588, %v8535
    %v8590 = vmul.f32 %v8589, %v8588
    %v8591 = vmul.f32 0.5, %v8590
    %v8592 = vsub.f32 1.5, %v8591
    %v8593 = vmul.f32 %v8588, %v8592
    %vm8594 = vweird.f32 %v8535
    %vm8595 = vweird.f32 %v8588
    %vm8596 = vmor %vm8594, %vm8595
    %v8597 = vsel %vm8596, %v8588, %v8593
    %v8598 = vrsqrt.pop %v8536
    %v8599 = vmul.f32 %v8598, %v8536
    %v8600 = vmul.f32 %v8599, %v8598
    %v8601 = vmul.f32 0.5, %v8600
    %v8602 = vsub.f32 1.5, %v8601
    %v8603 = vmul.f32 %v8598, %v8602
    %vm8604 = vweird.f32 %v8536
    %vm8605 = vweird.f32 %v8598
    %vm8606 = vmor %vm8604, %vm8605
    %v8607 = vsel %vm8606, %v8598, %v8603
    %v8608 = vrsqrt.pop %v8537
    %v8609 = vmul.f32 %v8608, %v8537
    %v8610 = vmul.f32 %v8609, %v8608
    %v8611 = vmul.f32 0.5, %v8610
    %v8612 = vsub.f32 1.5, %v8611
    %v8613 = vmul.f32 %v8608, %v8612
    %vm8614 = vweird.f32 %v8537
    %vm8615 = vweird.f32 %v8608
    %vm8616 = vmor %vm8614, %vm8615
    %v8617 = vsel %vm8616, %v8608, %v8613
    %v8618 = vmul.f32 %v8482, %v8547
    %v8619 = vmul.f32 %v8483, %v8557
    %v8620 = vmul.f32 %v8484, %v8567
    %v8621 = vmul.f32 %v8485, %v8577
    %v8622 = vmul.f32 %v8486, %v8587
    %v8623 = vmul.f32 %v8487, %v8597
    %v8624 = vmul.f32 %v8488, %v8607
    %v8625 = vmul.f32 %v8489, %v8617
    %v8627 = vperm.slane %v8447, 0
    %v8629 = vmul.f32 %v8618, %v8627
    %v8630 = vmul.f32 %v8619, %v8627
    %v8631 = vmul.f32 %v8620, %v8627
    %v8632 = vmul.f32 %v8621, %v8627
    %v8633 = vmul.f32 %v8622, %v8627
    %v8634 = vmul.f32 %v8623, %v8627
    %v8635 = vmul.f32 %v8624, %v8627
    %v8636 = vmul.f32 %v8625, %v8627
    %v8638 = vperm.slane %v8449, 0
    %v8640 = vadd.f32 %v8629, %v8638
    %v8641 = vadd.f32 %v8630, %v8638
    %v8642 = vadd.f32 %v8631, %v8638
    %v8643 = vadd.f32 %v8632, %v8638
    %v8644 = vadd.f32 %v8633, %v8638
    %v8645 = vadd.f32 %v8634, %v8638
    %v8646 = vadd.f32 %v8635, %v8638
    %v8647 = vadd.f32 %v8636, %v8638
    %v8648 = vpack.c.bf16 %v8641, %v8640
    %v8649 = vpack.c.bf16 %v8643, %v8642
    %v8650 = vpack.c.bf16 %v8645, %v8644
    %v8651 = vpack.c.bf16 %v8647, %v8646
    %s8652 = scalar_lea.vmem %s8, 192
    %v8653 = vld [vmem:[%s8652] sm:$0xff]
    %v8654 = vld [vmem:[%s8652 + $0x8] sm:$0xff]
    %v8655 = vld [vmem:[%s8652 + $0x10] sm:$0xff]
    %v8656 = vld [vmem:[%s8652 + $0x18] sm:$0xff]
    %v8657 = vld [vmem:[%s8652 + $0x20] sm:$0xff]
    %v8658 = vld [vmem:[%s8652 + $0x28] sm:$0xff]
    %v8659 = vld [vmem:[%s8652 + $0x30] sm:$0xff]
    %v8660 = vld [vmem:[%s8652 + $0x38] sm:$0xff]
    %s8661 = scalar_lea.vmem %s9, 6
    %v8662 = vld [vmem:[%s8661] sm:$0x3]
    %v8664 = vperm.slane %v8662, 0
    %v8665 = vperm.slane %v8662, 1
    %v8676 = vunpack.c.l.b16 %v8653
    %v8677 = vunpack.c.h.b16 %v8653
    %v8678 = vunpack.c.l.b16 %v8654
    %v8679 = vunpack.c.h.b16 %v8654
    %v8680 = vunpack.c.l.b16 %v8655
    %v8681 = vunpack.c.h.b16 %v8655
    %v8682 = vunpack.c.l.b16 %v8656
    %v8683 = vunpack.c.h.b16 %v8656
    %v8684 = vunpack.c.l.b16 %v8657
    %v8685 = vunpack.c.h.b16 %v8657
    %v8686 = vunpack.c.l.b16 %v8658
    %v8687 = vunpack.c.h.b16 %v8658
    %v8688 = vunpack.c.l.b16 %v8659
    %v8689 = vunpack.c.h.b16 %v8659
    %v8690 = vunpack.c.l.b16 %v8660
    %v8691 = vunpack.c.h.b16 %v8660
    %v8692 = vpack.c.b16 %v8678, %v8676
    %v8693 = vpack.c.b16 %v8679, %v8677
    %v8694 = vpack.c.b16 %v8682, %v8680
    %v8695 = vpack.c.b16 %v8683, %v8681
    %v8696 = vpack.c.b16 %v8686, %v8684
    %v8697 = vpack.c.b16 %v8687, %v8685
    %v8698 = vpack.c.b16 %v8690, %v8688
    %v8699 = vpack.c.b16 %v8691, %v8689
    %v8709 = vsel %vm223, %v8648, 0
    %v8712 = vsel %vm223, %v8649, 0
    %v8715 = vsel %vm223, %v8650, 0
    %v8718 = vsel %vm223, %v8651, 0
    %8720 = vmatpush.bf16.msra.mxu0 0
    %8721 = vmatpush.bf16.msra.mxu0 0
    %8722 = vmatpush.bf16.msra.mxu0 0
    %8723 = vmatpush.bf16.msra.mxu0 0
    %8724 = vmatpush.bf16.msra.mxu0 %v8698
    %8725 = vmatpush.bf16.msra.mxu0 %v8696
    %8726 = vmatpush.bf16.msra.mxu0 %v8694
    %8727 = vmatpush.bf16.msra.mxu0 %v8692
    %8728 = vmatmul.bf16.gmra.mxu0 %v8709
    %v8729 = vpop.f32.mrf.mxu0
    %v8730 = vadd.f32 %v8664, %v8729
    %v8731 = vpop.f32.mrf.mxu0
    %v8732 = vadd.f32 %v8664, %v8731
    %8733 = vmatmul.bf16.gmra.mxu0 %v8712
    %v8734 = vpop.f32.mrf.mxu0
    %v8735 = vadd.f32 %v8664, %v8734
    %v8736 = vpop.f32.mrf.mxu0
    %v8737 = vadd.f32 %v8664, %v8736
    %8738 = vmatmul.bf16.gmra.mxu0 %v8715
    %v8739 = vpop.f32.mrf.mxu0
    %v8740 = vadd.f32 %v8664, %v8739
    %v8741 = vpop.f32.mrf.mxu0
    %v8742 = vadd.f32 %v8664, %v8741
    %8743 = vmatmul.bf16.gmra.mxu0 %v8718
    %v8744 = vpop.f32.mrf.mxu0
    %v8745 = vadd.f32 %v8664, %v8744
    %v8746 = vpop.f32.mrf.mxu0
    %v8747 = vadd.f32 %v8664, %v8746
    %8748 = vdwg.mxu0
    %8749 = vmatpush.bf16.msra.mxu0 0
    %8750 = vmatpush.bf16.msra.mxu0 0
    %8751 = vmatpush.bf16.msra.mxu0 0
    %8752 = vmatpush.bf16.msra.mxu0 0
    %8753 = vmatpush.bf16.msra.mxu0 %v8699
    %8754 = vmatpush.bf16.msra.mxu0 %v8697
    %8755 = vmatpush.bf16.msra.mxu0 %v8695
    %8756 = vmatpush.bf16.msra.mxu0 %v8693
    %8757 = vmatmul.bf16.gmra.mxu0 %v8709
    %v8758 = vpop.f32.mrf.mxu0
    %v8759 = vadd.f32 %v8665, %v8758
    %v8760 = vpop.f32.mrf.mxu0
    %v8761 = vadd.f32 %v8665, %v8760
    %8762 = vmatmul.bf16.gmra.mxu0 %v8712
    %v8763 = vpop.f32.mrf.mxu0
    %v8764 = vadd.f32 %v8665, %v8763
    %v8765 = vpop.f32.mrf.mxu0
    %v8766 = vadd.f32 %v8665, %v8765
    %8767 = vmatmul.bf16.gmra.mxu0 %v8715
    %v8768 = vpop.f32.mrf.mxu0
    %v8769 = vadd.f32 %v8665, %v8768
    %v8770 = vpop.f32.mrf.mxu0
    %v8771 = vadd.f32 %v8665, %v8770
    %8772 = vmatmul.bf16.gmra.mxu0 %v8718
    %v8773 = vpop.f32.mrf.mxu0
    %v8774 = vadd.f32 %v8665, %v8773
    %v8775 = vpop.f32.mrf.mxu0
    %v8776 = vadd.f32 %v8665, %v8775
    %8777 = vdwg.mxu0
    %v8778 = vmax.f32 %v8730, 0.0
    %v8779 = vmax.f32 %v8759, 0.0
    %v8780 = vmax.f32 %v8732, 0.0
    %v8781 = vmax.f32 %v8761, 0.0
    %v8782 = vmax.f32 %v8735, 0.0
    %v8783 = vmax.f32 %v8764, 0.0
    %v8784 = vmax.f32 %v8737, 0.0
    %v8785 = vmax.f32 %v8766, 0.0
    %v8786 = vmax.f32 %v8740, 0.0
    %v8787 = vmax.f32 %v8769, 0.0
    %v8788 = vmax.f32 %v8742, 0.0
    %v8789 = vmax.f32 %v8771, 0.0
    %v8790 = vmax.f32 %v8745, 0.0
    %v8791 = vmax.f32 %v8774, 0.0
    %v8792 = vmax.f32 %v8747, 0.0
    %v8793 = vmax.f32 %v8776, 0.0
    %v8794 = vpack.c.bf16 %v8780, %v8778
    %v8795 = vpack.c.bf16 %v8781, %v8779
    %v8796 = vpack.c.bf16 %v8784, %v8782
    %v8797 = vpack.c.bf16 %v8785, %v8783
    %v8798 = vpack.c.bf16 %v8788, %v8786
    %v8799 = vpack.c.bf16 %v8789, %v8787
    %v8800 = vpack.c.bf16 %v8792, %v8790
    %v8801 = vpack.c.bf16 %v8793, %v8791
    %s8802 = scalar_lea.vmem %s10, 384
    %v8803 = vld [vmem:[%s8802] sm:$0xf]
    %v8804 = vld [vmem:[%s8802 + $0x4] sm:$0xf]
    %v8805 = vld [vmem:[%s8802 + $0x8] sm:$0xf]
    %v8806 = vld [vmem:[%s8802 + $0xc] sm:$0xf]
    %v8807 = vld [vmem:[%s8802 + $0x10] sm:$0xf]
    %v8808 = vld [vmem:[%s8802 + $0x14] sm:$0xf]
    %v8809 = vld [vmem:[%s8802 + $0x18] sm:$0xf]
    %v8810 = vld [vmem:[%s8802 + $0x1c] sm:$0xf]
    %v8811 = vld [vmem:[%s8802 + $0x20] sm:$0xf]
    %v8812 = vld [vmem:[%s8802 + $0x24] sm:$0xf]
    %v8813 = vld [vmem:[%s8802 + $0x28] sm:$0xf]
    %v8814 = vld [vmem:[%s8802 + $0x2c] sm:$0xf]
    %v8815 = vld [vmem:[%s8802 + $0x30] sm:$0xf]
    %v8816 = vld [vmem:[%s8802 + $0x34] sm:$0xf]
    %v8817 = vld [vmem:[%s8802 + $0x38] sm:$0xf]
    %v8818 = vld [vmem:[%s8802 + $0x3c] sm:$0xf]
    %v8819 = vld [vmem:[%s8802 + $0x40] sm:$0xf]
    %v8820 = vld [vmem:[%s8802 + $0x44] sm:$0xf]
    %v8821 = vld [vmem:[%s8802 + $0x48] sm:$0xf]
    %v8822 = vld [vmem:[%s8802 + $0x4c] sm:$0xf]
    %v8823 = vld [vmem:[%s8802 + $0x50] sm:$0xf]
    %v8824 = vld [vmem:[%s8802 + $0x54] sm:$0xf]
    %v8825 = vld [vmem:[%s8802 + $0x58] sm:$0xf]
    %v8826 = vld [vmem:[%s8802 + $0x5c] sm:$0xf]
    %v8827 = vld [vmem:[%s8802 + $0x60] sm:$0xf]
    %v8828 = vld [vmem:[%s8802 + $0x64] sm:$0xf]
    %v8829 = vld [vmem:[%s8802 + $0x68] sm:$0xf]
    %v8830 = vld [vmem:[%s8802 + $0x6c] sm:$0xf]
    %v8831 = vld [vmem:[%s8802 + $0x70] sm:$0xf]
    %v8832 = vld [vmem:[%s8802 + $0x74] sm:$0xf]
    %v8833 = vld [vmem:[%s8802 + $0x78] sm:$0xf]
    %v8834 = vld [vmem:[%s8802 + $0x7c] sm:$0xf]
    %s8835 = scalar_lea.vmem %s11, 3
    %v8836 = vld [vmem:[%s8835] sm:$0x1]
    %v8838 = vperm.slane %v8836, 0
    %v8872 = vunpack.c.l.b16 %v8803
    %v8873 = vunpack.c.l.b16 %v8804
    %v8874 = vunpack.c.l.b16 %v8805
    %v8875 = vunpack.c.l.b16 %v8806
    %v8876 = vunpack.c.l.b16 %v8807
    %v8877 = vunpack.c.l.b16 %v8808
    %v8878 = vunpack.c.l.b16 %v8809
    %v8879 = vunpack.c.l.b16 %v8810
    %v8880 = vunpack.c.l.b16 %v8811
    %v8881 = vunpack.c.l.b16 %v8812
    %v8882 = vunpack.c.l.b16 %v8813
    %v8883 = vunpack.c.l.b16 %v8814
    %v8884 = vunpack.c.l.b16 %v8815
    %v8885 = vunpack.c.l.b16 %v8816
    %v8886 = vunpack.c.l.b16 %v8817
    %v8887 = vunpack.c.l.b16 %v8818
    %v8888 = vunpack.c.l.b16 %v8819
    %v8889 = vunpack.c.l.b16 %v8820
    %v8890 = vunpack.c.l.b16 %v8821
    %v8891 = vunpack.c.l.b16 %v8822
    %v8892 = vunpack.c.l.b16 %v8823
    %v8893 = vunpack.c.l.b16 %v8824
    %v8894 = vunpack.c.l.b16 %v8825
    %v8895 = vunpack.c.l.b16 %v8826
    %v8896 = vunpack.c.l.b16 %v8827
    %v8897 = vunpack.c.l.b16 %v8828
    %v8898 = vunpack.c.l.b16 %v8829
    %v8899 = vunpack.c.l.b16 %v8830
    %v8900 = vunpack.c.l.b16 %v8831
    %v8901 = vunpack.c.l.b16 %v8832
    %v8902 = vunpack.c.l.b16 %v8833
    %v8903 = vunpack.c.l.b16 %v8834
    %v8904 = vpack.c.b16 %v8873, %v8872
    %v8905 = vpack.c.b16 %v8875, %v8874
    %v8906 = vpack.c.b16 %v8877, %v8876
    %v8907 = vpack.c.b16 %v8879, %v8878
    %v8908 = vpack.c.b16 %v8881, %v8880
    %v8909 = vpack.c.b16 %v8883, %v8882
    %v8910 = vpack.c.b16 %v8885, %v8884
    %v8911 = vpack.c.b16 %v8887, %v8886
    %v8912 = vpack.c.b16 %v8889, %v8888
    %v8913 = vpack.c.b16 %v8891, %v8890
    %v8914 = vpack.c.b16 %v8893, %v8892
    %v8915 = vpack.c.b16 %v8895, %v8894
    %v8916 = vpack.c.b16 %v8897, %v8896
    %v8917 = vpack.c.b16 %v8899, %v8898
    %v8918 = vpack.c.b16 %v8901, %v8900
    %v8919 = vpack.c.b16 %v8903, %v8902
    %8936 = vmatpush.bf16.msra.mxu0 %v8911
    %8937 = vmatpush.bf16.msra.mxu0 %v8910
    %8938 = vmatpush.bf16.msra.mxu0 %v8909
    %8939 = vmatpush.bf16.msra.mxu0 %v8908
    %8940 = vmatpush.bf16.msra.mxu0 %v8907
    %8941 = vmatpush.bf16.msra.mxu0 %v8906
    %8942 = vmatpush.bf16.msra.mxu0 %v8905
    %8943 = vmatpush.bf16.msra.mxu0 %v8904
    %8944 = vmatmul.bf16.gmra.mxu0 %v8794
    %v8945 = vpop.f32.mrf.mxu0
    %v8946 = vadd.f32 %v8838, %v8945
    %v8947 = vpop.f32.mrf.mxu0
    %v8948 = vadd.f32 %v8838, %v8947
    %8949 = vmatmul.bf16.gmra.mxu0 %v8796
    %v8950 = vpop.f32.mrf.mxu0
    %v8951 = vadd.f32 %v8838, %v8950
    %v8952 = vpop.f32.mrf.mxu0
    %v8953 = vadd.f32 %v8838, %v8952
    %8954 = vmatmul.bf16.gmra.mxu0 %v8798
    %v8955 = vpop.f32.mrf.mxu0
    %v8956 = vadd.f32 %v8838, %v8955
    %v8957 = vpop.f32.mrf.mxu0
    %v8958 = vadd.f32 %v8838, %v8957
    %8959 = vmatmul.bf16.gmra.mxu0 %v8800
    %v8960 = vpop.f32.mrf.mxu0
    %v8961 = vadd.f32 %v8838, %v8960
    %v8962 = vpop.f32.mrf.mxu0
    %v8963 = vadd.f32 %v8838, %v8962
    %8964 = vdwg.mxu0
    %8965 = vmatpush.bf16.msra.mxu0 %v8919
    %8966 = vmatpush.bf16.msra.mxu0 %v8918
    %8967 = vmatpush.bf16.msra.mxu0 %v8917
    %8968 = vmatpush.bf16.msra.mxu0 %v8916
    %8969 = vmatpush.bf16.msra.mxu0 %v8915
    %8970 = vmatpush.bf16.msra.mxu0 %v8914
    %8971 = vmatpush.bf16.msra.mxu0 %v8913
    %8972 = vmatpush.bf16.msra.mxu0 %v8912
    %8973 = vmatmul.bf16.gmra.mxu0 %v8795
    %v8974 = vpop.f32.mrf.mxu0
    %v8975 = vadd.f32 %v8946, %v8974
    %v8976 = vpop.f32.mrf.mxu0
    %v8977 = vadd.f32 %v8948, %v8976
    %8978 = vmatmul.bf16.gmra.mxu0 %v8797
    %v8979 = vpop.f32.mrf.mxu0
    %v8980 = vadd.f32 %v8951, %v8979
    %v8981 = vpop.f32.mrf.mxu0
    %v8982 = vadd.f32 %v8953, %v8981
    %8983 = vmatmul.bf16.gmra.mxu0 %v8799
    %v8984 = vpop.f32.mrf.mxu0
    %v8985 = vadd.f32 %v8956, %v8984
    %v8986 = vpop.f32.mrf.mxu0
    %v8987 = vadd.f32 %v8958, %v8986
    %8988 = vmatmul.bf16.gmra.mxu0 %v8801
    %v8989 = vpop.f32.mrf.mxu0
    %v8990 = vadd.f32 %v8961, %v8989
    %v8991 = vpop.f32.mrf.mxu0
    %v8992 = vadd.f32 %v8963, %v8991
    %8993 = vdwg.mxu0
    %v8994 = vadd.f32 %v8438, %v8975
    %v8995 = vadd.f32 %v8439, %v8977
    %v8996 = vadd.f32 %v8440, %v8980
    %v8997 = vadd.f32 %v8441, %v8982
    %v8998 = vadd.f32 %v8442, %v8985
    %v8999 = vadd.f32 %v8443, %v8987
    %v9000 = vadd.f32 %v8444, %v8990
    %v9001 = vadd.f32 %v8445, %v8992
    %s9002 = scalar_lea.vmem %s3, 8
    %v9003 = vld [vmem:[%s9002] sm:$0x1]
    %s9004 = scalar_lea.vmem %s4, 8
    %v9005 = vld [vmem:[%s9004] sm:$0x1]
    %v9006 = vsel %vm223, %v8994, 0.0
    %9007 = vadd.xlane.f32.xlu0 %v9006
    %v9008 = vpop.xlane.xlu0 %9007
    %v9009 = vsel %vm223, %v8995, 0.0
    %9010 = vadd.xlane.f32.xlu0 %v9009
    %v9011 = vpop.xlane.xlu0 %9010
    %v9012 = vsel %vm223, %v8996, 0.0
    %9013 = vadd.xlane.f32.xlu0 %v9012
    %v9014 = vpop.xlane.xlu0 %9013
    %v9015 = vsel %vm223, %v8997, 0.0
    %9016 = vadd.xlane.f32.xlu0 %v9015
    %v9017 = vpop.xlane.xlu0 %9016
    %v9018 = vsel %vm223, %v8998, 0.0
    %9019 = vadd.xlane.f32.xlu0 %v9018
    %v9020 = vpop.xlane.xlu0 %9019
    %v9021 = vsel %vm223, %v8999, 0.0
    %9022 = vadd.xlane.f32.xlu0 %v9021
    %v9023 = vpop.xlane.xlu0 %9022
    %v9024 = vsel %vm223, %v9000, 0.0
    %9025 = vadd.xlane.f32.xlu0 %v9024
    %v9026 = vpop.xlane.xlu0 %9025
    %v9027 = vsel %vm223, %v9001, 0.0
    %9028 = vadd.xlane.f32.xlu0 %v9027
    %v9029 = vpop.xlane.xlu0 %9028
    %v9030 = vmul.f32 %v9008, %v254
    %v9031 = vmul.f32 %v9011, %v254
    %v9032 = vmul.f32 %v9014, %v254
    %v9033 = vmul.f32 %v9017, %v254
    %v9034 = vmul.f32 %v9020, %v254
    %v9035 = vmul.f32 %v9023, %v254
    %v9036 = vmul.f32 %v9026, %v254
    %v9037 = vmul.f32 %v9029, %v254
    %v9038 = vsub.f32 %v8994, %v9030
    %v9039 = vsub.f32 %v8995, %v9031
    %v9040 = vsub.f32 %v8996, %v9032
    %v9041 = vsub.f32 %v8997, %v9033
    %v9042 = vsub.f32 %v8998, %v9034
    %v9043 = vsub.f32 %v8999, %v9035
    %v9044 = vsub.f32 %v9000, %v9036
    %v9045 = vsub.f32 %v9001, %v9037
    %v9046 = vmul.f32 %v9038, %v9038
    %v9047 = vmul.f32 %v9039, %v9039
    %v9048 = vmul.f32 %v9040, %v9040
    %v9049 = vmul.f32 %v9041, %v9041
    %v9050 = vmul.f32 %v9042, %v9042
    %v9051 = vmul.f32 %v9043, %v9043
    %v9052 = vmul.f32 %v9044, %v9044
    %v9053 = vmul.f32 %v9045, %v9045
    %v9054 = vsel %vm223, %v9046, 0.0
    %9055 = vadd.xlane.f32.xlu0 %v9054
    %v9056 = vpop.xlane.xlu0 %9055
    %v9057 = vsel %vm223, %v9047, 0.0
    %9058 = vadd.xlane.f32.xlu0 %v9057
    %v9059 = vpop.xlane.xlu0 %9058
    %v9060 = vsel %vm223, %v9048, 0.0
    %9061 = vadd.xlane.f32.xlu0 %v9060
    %v9062 = vpop.xlane.xlu0 %9061
    %v9063 = vsel %vm223, %v9049, 0.0
    %9064 = vadd.xlane.f32.xlu0 %v9063
    %v9065 = vpop.xlane.xlu0 %9064
    %v9066 = vsel %vm223, %v9050, 0.0
    %9067 = vadd.xlane.f32.xlu0 %v9066
    %v9068 = vpop.xlane.xlu0 %9067
    %v9069 = vsel %vm223, %v9051, 0.0
    %9070 = vadd.xlane.f32.xlu0 %v9069
    %v9071 = vpop.xlane.xlu0 %9070
    %v9072 = vsel %vm223, %v9052, 0.0
    %9073 = vadd.xlane.f32.xlu0 %v9072
    %v9074 = vpop.xlane.xlu0 %9073
    %v9075 = vsel %vm223, %v9053, 0.0
    %9076 = vadd.xlane.f32.xlu0 %v9075
    %v9077 = vpop.xlane.xlu0 %9076
    %v9078 = vmul.f32 %v9056, %v254
    %v9079 = vmul.f32 %v9059, %v254
    %v9080 = vmul.f32 %v9062, %v254
    %v9081 = vmul.f32 %v9065, %v254
    %v9082 = vmul.f32 %v9068, %v254
    %v9083 = vmul.f32 %v9071, %v254
    %v9084 = vmul.f32 %v9074, %v254
    %v9085 = vmul.f32 %v9077, %v254
    %v9086 = vadd.f32 %v9078, 1e-05
    %v9087 = vadd.f32 %v9079, 1e-05
    %v9088 = vadd.f32 %v9080, 1e-05
    %v9089 = vadd.f32 %v9081, 1e-05
    %v9090 = vadd.f32 %v9082, 1e-05
    %v9091 = vadd.f32 %v9083, 1e-05
    %v9092 = vadd.f32 %v9084, 1e-05
    %v9093 = vadd.f32 %v9085, 1e-05
    %v9094 = vrsqrt.pop %v9086
    %v9095 = vmul.f32 %v9094, %v9086
    %v9096 = vmul.f32 %v9095, %v9094
    %v9097 = vmul.f32 0.5, %v9096
    %v9098 = vsub.f32 1.5, %v9097
    %v9099 = vmul.f32 %v9094, %v9098
    %vm9100 = vweird.f32 %v9086
    %vm9101 = vweird.f32 %v9094
    %vm9102 = vmor %vm9100, %vm9101
    %v9103 = vsel %vm9102, %v9094, %v9099
    %v9104 = vrsqrt.pop %v9087
    %v9105 = vmul.f32 %v9104, %v9087
    %v9106 = vmul.f32 %v9105, %v9104
    %v9107 = vmul.f32 0.5, %v9106
    %v9108 = vsub.f32 1.5, %v9107
    %v9109 = vmul.f32 %v9104, %v9108
    %vm9110 = vweird.f32 %v9087
    %vm9111 = vweird.f32 %v9104
    %vm9112 = vmor %vm9110, %vm9111
    %v9113 = vsel %vm9112, %v9104, %v9109
    %v9114 = vrsqrt.pop %v9088
    %v9115 = vmul.f32 %v9114, %v9088
    %v9116 = vmul.f32 %v9115, %v9114
    %v9117 = vmul.f32 0.5, %v9116
    %v9118 = vsub.f32 1.5, %v9117
    %v9119 = vmul.f32 %v9114, %v9118
    %vm9120 = vweird.f32 %v9088
    %vm9121 = vweird.f32 %v9114
    %vm9122 = vmor %vm9120, %vm9121
    %v9123 = vsel %vm9122, %v9114, %v9119
    %v9124 = vrsqrt.pop %v9089
    %v9125 = vmul.f32 %v9124, %v9089
    %v9126 = vmul.f32 %v9125, %v9124
    %v9127 = vmul.f32 0.5, %v9126
    %v9128 = vsub.f32 1.5, %v9127
    %v9129 = vmul.f32 %v9124, %v9128
    %vm9130 = vweird.f32 %v9089
    %vm9131 = vweird.f32 %v9124
    %vm9132 = vmor %vm9130, %vm9131
    %v9133 = vsel %vm9132, %v9124, %v9129
    %v9134 = vrsqrt.pop %v9090
    %v9135 = vmul.f32 %v9134, %v9090
    %v9136 = vmul.f32 %v9135, %v9134
    %v9137 = vmul.f32 0.5, %v9136
    %v9138 = vsub.f32 1.5, %v9137
    %v9139 = vmul.f32 %v9134, %v9138
    %vm9140 = vweird.f32 %v9090
    %vm9141 = vweird.f32 %v9134
    %vm9142 = vmor %vm9140, %vm9141
    %v9143 = vsel %vm9142, %v9134, %v9139
    %v9144 = vrsqrt.pop %v9091
    %v9145 = vmul.f32 %v9144, %v9091
    %v9146 = vmul.f32 %v9145, %v9144
    %v9147 = vmul.f32 0.5, %v9146
    %v9148 = vsub.f32 1.5, %v9147
    %v9149 = vmul.f32 %v9144, %v9148
    %vm9150 = vweird.f32 %v9091
    %vm9151 = vweird.f32 %v9144
    %vm9152 = vmor %vm9150, %vm9151
    %v9153 = vsel %vm9152, %v9144, %v9149
    %v9154 = vrsqrt.pop %v9092
    %v9155 = vmul.f32 %v9154, %v9092
    %v9156 = vmul.f32 %v9155, %v9154
    %v9157 = vmul.f32 0.5, %v9156
    %v9158 = vsub.f32 1.5, %v9157
    %v9159 = vmul.f32 %v9154, %v9158
    %vm9160 = vweird.f32 %v9092
    %vm9161 = vweird.f32 %v9154
    %vm9162 = vmor %vm9160, %vm9161
    %v9163 = vsel %vm9162, %v9154, %v9159
    %v9164 = vrsqrt.pop %v9093
    %v9165 = vmul.f32 %v9164, %v9093
    %v9166 = vmul.f32 %v9165, %v9164
    %v9167 = vmul.f32 0.5, %v9166
    %v9168 = vsub.f32 1.5, %v9167
    %v9169 = vmul.f32 %v9164, %v9168
    %vm9170 = vweird.f32 %v9093
    %vm9171 = vweird.f32 %v9164
    %vm9172 = vmor %vm9170, %vm9171
    %v9173 = vsel %vm9172, %v9164, %v9169
    %v9174 = vmul.f32 %v9038, %v9103
    %v9175 = vmul.f32 %v9039, %v9113
    %v9176 = vmul.f32 %v9040, %v9123
    %v9177 = vmul.f32 %v9041, %v9133
    %v9178 = vmul.f32 %v9042, %v9143
    %v9179 = vmul.f32 %v9043, %v9153
    %v9180 = vmul.f32 %v9044, %v9163
    %v9181 = vmul.f32 %v9045, %v9173
    %v9183 = vperm.slane %v9003, 0
    %v9185 = vmul.f32 %v9174, %v9183
    %v9186 = vmul.f32 %v9175, %v9183
    %v9187 = vmul.f32 %v9176, %v9183
    %v9188 = vmul.f32 %v9177, %v9183
    %v9189 = vmul.f32 %v9178, %v9183
    %v9190 = vmul.f32 %v9179, %v9183
    %v9191 = vmul.f32 %v9180, %v9183
    %v9192 = vmul.f32 %v9181, %v9183
    %v9194 = vperm.slane %v9005, 0
    %v9196 = vadd.f32 %v9185, %v9194
    %v9197 = vadd.f32 %v9186, %v9194
    %v9198 = vadd.f32 %v9187, %v9194
    %v9199 = vadd.f32 %v9188, %v9194
    %v9200 = vadd.f32 %v9189, %v9194
    %v9201 = vadd.f32 %v9190, %v9194
    %v9202 = vadd.f32 %v9191, %v9194
    %v9203 = vadd.f32 %v9192, %v9194
    %v9204 = vpack.c.bf16 %v9197, %v9196
    %v9205 = vpack.c.bf16 %v9199, %v9198
    %v9206 = vpack.c.bf16 %v9201, %v9200
    %v9207 = vpack.c.bf16 %v9203, %v9202
    %v9208 = vld [vmem:[%s12] sm:$0xf]
    %v9209 = vld [vmem:[%s12 + $0x4] sm:$0xf]
    %v9210 = vld [vmem:[%s12 + $0x8] sm:$0xf]
    %v9211 = vld [vmem:[%s12 + $0xc] sm:$0xf]
    %v9212 = vld [vmem:[%s12 + $0x10] sm:$0xf]
    %v9213 = vld [vmem:[%s12 + $0x14] sm:$0xf]
    %v9214 = vld [vmem:[%s12 + $0x18] sm:$0xf]
    %v9215 = vld [vmem:[%s12 + $0x1c] sm:$0xf]
    %v9216 = vld [vmem:[%s13] sm:$0x1]
    %v9218 = vperm.slane %v9216, 0
    %v9228 = vunpack.c.l.b16 %v9208
    %v9229 = vunpack.c.l.b16 %v9209
    %v9230 = vunpack.c.l.b16 %v9210
    %v9231 = vunpack.c.l.b16 %v9211
    %v9232 = vunpack.c.l.b16 %v9212
    %v9233 = vunpack.c.l.b16 %v9213
    %v9234 = vunpack.c.l.b16 %v9214
    %v9235 = vunpack.c.l.b16 %v9215
    %v9236 = vpack.c.b16 %v9229, %v9228
    %v9237 = vpack.c.b16 %v9231, %v9230
    %v9238 = vpack.c.b16 %v9233, %v9232
    %v9239 = vpack.c.b16 %v9235, %v9234
    %v9245 = vsel %vm223, %v9204, 0
    %v9248 = vsel %vm223, %v9205, 0
    %v9251 = vsel %vm223, %v9206, 0
    %v9254 = vsel %vm223, %v9207, 0
    %9256 = vmatpush.bf16.msra.mxu0 0
    %9257 = vmatpush.bf16.msra.mxu0 0
    %9258 = vmatpush.bf16.msra.mxu0 0
    %9259 = vmatpush.bf16.msra.mxu0 0
    %9260 = vmatpush.bf16.msra.mxu0 %v9239
    %9261 = vmatpush.bf16.msra.mxu0 %v9238
    %9262 = vmatpush.bf16.msra.mxu0 %v9237
    %9263 = vmatpush.bf16.msra.mxu0 %v9236
    %9264 = vmatmul.bf16.gmra.mxu0 %v9245
    %v9265 = vpop.f32.mrf.mxu0
    %v9266 = vadd.f32 %v9218, %v9265
    %v9267 = vpop.f32.mrf.mxu0
    %v9268 = vadd.f32 %v9218, %v9267
    %9269 = vmatmul.bf16.gmra.mxu0 %v9248
    %v9270 = vpop.f32.mrf.mxu0
    %v9271 = vadd.f32 %v9218, %v9270
    %v9272 = vpop.f32.mrf.mxu0
    %v9273 = vadd.f32 %v9218, %v9272
    %9274 = vmatmul.bf16.gmra.mxu0 %v9251
    %v9275 = vpop.f32.mrf.mxu0
    %v9276 = vadd.f32 %v9218, %v9275
    %v9277 = vpop.f32.mrf.mxu0
    %v9278 = vadd.f32 %v9218, %v9277
    %9279 = vmatmul.bf16.gmra.mxu0 %v9254
    %v9280 = vpop.f32.mrf.mxu0
    %v9281 = vadd.f32 %v9218, %v9280
    %v9282 = vpop.f32.mrf.mxu0
    %v9283 = vadd.f32 %v9218, %v9282
    %9284 = vdwg.mxu0
    %9285 = vst [vmem:[#allocation2] sm:$0xff] %v9266
    %9286 = vst [vmem:[#allocation2 + $0x8] sm:$0xff] %v9268
    %9287 = vst [vmem:[#allocation2 + $0x10] sm:$0xff] %v9271
    %9288 = vst [vmem:[#allocation2 + $0x18] sm:$0xff] %v9273
    %9289 = vst [vmem:[#allocation2 + $0x20] sm:$0xff] %v9276
    %9290 = vst [vmem:[#allocation2 + $0x28] sm:$0xff] %v9278
    %9291 = vst [vmem:[#allocation2 + $0x30] sm:$0xff] %v9281
    %9292 = vst [vmem:[#allocation2 + $0x38] sm:$0xff] %v9283
    // Predicated region
    $region58: #{_lambda_.1} parent=1 // pred_check
      _
    $region59: #{_lambda_.1} parent=1 // pred_check_branch
      %9294 = sbr.rel (0) target = $region61
    $region60: #{_lambda_.1} parent=1 // pred_region
      %9296 = vsyncadd [#allocation3], 0
      %s9297 = sshll.u32 [#allocation2], 4
      %s9298 = int_to_ptr.vmem [resolvable:$true] %s9297
      %s9299 = sshll.u32 %s14, 4
      %s9300 = int_to_ptr.hbm [resolvable:$true] %s9299
      %9305 = dma.vmem_to_hbm [thread:$0]  %s9298, 1024, %s9300, [#allocation3], 128, 128, 8
    $region61: #{_lambda_.1} parent=1 // pred_fallthru
      _
    // Predicated region
    $region62: #{_lambda_.1} parent=1 // pred_check
      _
    $region63: #{_lambda_.1} parent=1 // pred_check_branch
      %9307 = sbr.rel (0) target = $region65
    $region64: #{_lambda_.1} parent=1 // pred_region
      %9309 = dma.done [#allocation3], 1024
    $region65: #{_lambda_.1} parent=1 // pred_fallthru
      _
    %9310 = vsyncpa [#allocation3], 1

</llo_original>
